<compile_context>
chip_gen: v6e
topology: v6e:2x2x1
jax: 0.10.0
libtpu: 0.0.40
codegen_flags: <defaults>
</compile_context>

<pallas_src>
import functools

import jax
import jax.numpy as jnp
from jax import lax
from jax.experimental import pallas as pl
from jax.experimental.pallas import tpu as pltpu

LEAKY_SLOPE = 0.01  # InPlaceABNSync default activation: leaky_relu(slope=0.01)
VMEM_LIMIT = 64 * 1024 * 1024


# ----------------------------- Pallas kernels ------------------------------

def _conv3x3_bn_act_kernel(xrow_ref, w_ref, scale_ref, bias_ref, o_ref, acc_ref):
    """One padded input row -> one output row; dy taps accumulated over the grid.

    xrow_ref: [1, 1, W+2, Cin]  (padded row r+dy)
    w_ref   : [1, 3*Cin, Cout]  (dy tap, dx taps flattened into K)
    scale/bias: [1, Cout]  (folded BN)
    o_ref   : [1, 1, W, Cout]
    acc_ref : [W, Cout] f32 scratch (persists across the dy grid axis)
    """
    dy = pl.program_id(2)
    W = o_ref.shape[2]

    @pl.when(dy == 0)
    def _init():
        acc_ref[...] = jnp.zeros_like(acc_ref)

    row = xrow_ref[0, 0]                                              # (W+2, Cin)
    patch = jnp.concatenate(
        [row[0:W, :], row[1:W + 1, :], row[2:W + 2, :]], axis=-1)     # (W, 3*Cin)
    acc_ref[...] += jnp.dot(patch.astype(jnp.bfloat16), w_ref[0],
                            preferred_element_type=jnp.float32)

    @pl.when(dy == 2)
    def _finalize():
        y = acc_ref[...] * scale_ref[...] + bias_ref[...]
        o_ref[0, 0] = jnp.where(y >= 0.0, y, LEAKY_SLOPE * y)


def _bneck_cls_kernel(x1row_ref, x2row_ref, w1_ref, w2_ref, scale_ref, bias_ref,
                      wcls_ref, bcls_ref, o_ref, acc_ref):
    """Bottleneck 3x3 conv over concat([x, feat]) done as split-K (two inputs,
    two weight halves), folded BN + leaky relu, fused 1x1 classifier epilogue.
    Output last dim is padded to a lane-dense width (sliced in the wrapper)."""
    dy = pl.program_id(2)
    W = o_ref.shape[2]

    @pl.when(dy == 0)
    def _init():
        acc_ref[...] = jnp.zeros_like(acc_ref)

    r1 = x1row_ref[0, 0]                                              # (W+2, C1)
    r2 = x2row_ref[0, 0]                                              # (W+2, C2)
    p1 = jnp.concatenate([r1[0:W, :], r1[1:W + 1, :], r1[2:W + 2, :]], axis=-1)
    p2 = jnp.concatenate([r2[0:W, :], r2[1:W + 1, :], r2[2:W + 2, :]], axis=-1)
    acc_ref[...] += jnp.dot(p1.astype(jnp.bfloat16), w1_ref[0],
                            preferred_element_type=jnp.float32)
    acc_ref[...] += jnp.dot(p2.astype(jnp.bfloat16), w2_ref[0],
                            preferred_element_type=jnp.float32)

    @pl.when(dy == 2)
    def _finalize():
        y = acc_ref[...] * scale_ref[...] + bias_ref[...]
        y = jnp.where(y >= 0.0, y, LEAKY_SLOPE * y)
        # nn.Dropout2d(0.1) is identity at inference; fuse the 1x1 classifier.
        o_ref[0, 0] = (jnp.dot(y.astype(jnp.bfloat16), wcls_ref[...],
                               preferred_element_type=jnp.float32)
                       + bcls_ref[...])


def _cca_kernel(x_ref, xT_ref, wq_ref, bq_ref, wk_ref, bk_ref,
                wv_ref, bv_ref, gamma_ref, o_ref, oT_ref):
    """Criss-cross attention for one batch element.

    x_ref : [1, H, W, C]  (row-major view)        -> o_ref  = gamma*out_W + x
    xT_ref: [1, W, H, C]  (H/W-transposed view)   -> oT_ref = gamma*out_H (transposed)
    The wrapper adds o + transpose(oT) -> gamma*(out_H + out_W) + x.
    """
    H, W, C = x_ref.shape[1], x_ref.shape[2], x_ref.shape[3]
    Cq = wq_ref.shape[1]
    bf16 = jnp.bfloat16

    x = x_ref[0]                                        # (H, W, C) f32 residual
    xb = x.astype(bf16).reshape(H * W, C)
    xTb = xT_ref[0].astype(bf16).reshape(W * H, C)

    def proj(inp, w_ref, b_ref, rows, cols, n):
        y = (jnp.dot(inp, w_ref[...], preferred_element_type=jnp.float32)
             + b_ref[...])
        return y.reshape(rows, cols, n)

    q = proj(xb, wq_ref, bq_ref, H, W, Cq)
    k = proj(xb, wk_ref, bk_ref, H, W, Cq)
    v = proj(xb, wv_ref, bv_ref, H, W, C)
    # TODO(synk): qT/kT/vT are re-projected from the transposed view because
    # Mosaic only supports minor-dim transposes in-kernel; once (1,0,2)
    # relayouts are available, derive them from q/k/v on the XLU and drop xT.
    qT = proj(xTb, wq_ref, bq_ref, W, H, Cq)
    kT = proj(xTb, wk_ref, bk_ref, W, H, Cq)
    vT = proj(xTb, wv_ref, bv_ref, W, H, C)

    # Row (W-direction) energy: e_w[i, j, w] = <q[i,j], k[i,w]>
    e_w = jnp.einsum('ijc,iwc->ijw', q.astype(bf16), k.astype(bf16),
                     preferred_element_type=jnp.float32)              # (H, W, W)
    # Column (H-direction) energy, stored transposed: e_hT[j, i, h] = <q[i,j], k[h,j]>
    e_hT = jnp.einsum('jic,jhc->jih', qT.astype(bf16), kT.astype(bf16),
                      preferred_element_type=jnp.float32)             # (W, H, H)
    # -inf on the h == i diagonal (the INF() term in CCNet); single (H, H)
    # mask broadcast over W instead of two full-size int32 iotas.
    diag = (lax.broadcasted_iota(jnp.int32, (H, H), 0)
            == lax.broadcasted_iota(jnp.int32, (H, H), 1))
    e_hT = jnp.where(diag[None, :, :], -jnp.inf, e_hT)

    # Joint softmax over the concatenated (H + W) axis, no physical concat.
    m = jnp.maximum(jnp.max(e_w, axis=-1), jnp.max(e_hT, axis=-1).T)  # (H, W)
    p_w = jnp.exp(e_w - m[:, :, None])
    p_hT = jnp.exp(e_hT - m.T[:, :, None])
    denom = jnp.sum(p_w, axis=-1) + jnp.sum(p_hT, axis=-1).T          # (H, W)
    inv = pl.reciprocal(denom, approx=True)                           # EUP slot
    att_w = (p_w * inv[:, :, None]).astype(bf16)                      # (H, W, W)
    att_hT = (p_hT * inv.T[:, :, None]).astype(bf16)                  # (W, H, H)

    out_w = jnp.einsum('ijw,iwc->ijc', att_w, v.astype(bf16),
                       preferred_element_type=jnp.float32)            # (H, W, C)
    out_hT = jnp.einsum('jih,jhc->jic', att_hT, vT.astype(bf16),
                        preferred_element_type=jnp.float32)           # (W, H, C)

    g = gamma_ref[0]                                                  # SMEM scalar
    o_ref[0] = g * out_w + x
    oT_ref[0] = g * out_hT


# ------------------------------ wrappers ------------------------------------

def _full_spec_b(shape):
    """Whole-array block, constant index map, for a grid of rank 1 (batch)."""
    zeros = (0,) * len(shape)
    return pl.BlockSpec(tuple(shape), lambda b: zeros)


def conv3x3_bn_act(x, w, scale, bias):
    """3x3 conv (padding=1) + folded BN + leaky_relu, gridded (B, H, dy)."""
    B, H, W, Cin = x.shape
    Cout = w.shape[-1]
    # TODO(synk): the 1-px halo still comes from a wrapper-side jnp.pad (one
    # extra HBM copy of x); a manual-DMA halo fetch would remove it.
    xp = jnp.pad(x, ((0, 0), (1, 1), (1, 1), (0, 0)))
    wr = w.reshape(3, 3 * Cin, Cout).astype(jnp.bfloat16)   # K = 3*Cin per dy tap
    return pl.pallas_call(
        _conv3x3_bn_act_kernel,
        out_shape=jax.ShapeDtypeStruct((B, H, W, Cout), jnp.float32),
        grid=(B, H, 3),
        in_specs=[
            pl.BlockSpec((1, 1, W + 2, Cin), lambda b, r, dy: (b, r + dy, 0, 0)),
            pl.BlockSpec((1, 3 * Cin, Cout), lambda b, r, dy: (dy, 0, 0)),
            pl.BlockSpec((1, Cout), lambda b, r, dy: (0, 0)),
            pl.BlockSpec((1, Cout), lambda b, r, dy: (0, 0)),
        ],
        out_specs=pl.BlockSpec((1, 1, W, Cout), lambda b, r, dy: (b, r, 0, 0)),
        scratch_shapes=[pltpu.VMEM((W, Cout), jnp.float32)],
        compiler_params=pltpu.CompilerParams(
            dimension_semantics=("parallel", "parallel", "arbitrary"),
            vmem_limit_bytes=VMEM_LIMIT),
    )(xp, wr, scale, bias)


def bneck_conv_cls(x, feat, w, scale, bias, wcls, bcls, num_classes):
    """Bottleneck conv over concat([x, feat]) (split-K, no concat in HBM),
    folded BN + leaky relu, fused 1x1 classifier with lane-dense padded out."""
    B, H, W, C1 = x.shape
    C2 = feat.shape[-1]
    Cout = w.shape[-1]
    ncp = ((num_classes + 127) // 128) * 128          # lane-dense classifier width
    xp1 = jnp.pad(x, ((0, 0), (1, 1), (1, 1), (0, 0)))
    xp2 = jnp.pad(feat, ((0, 0), (1, 1), (1, 1), (0, 0)))
    w1 = w[:, :, :C1, :].reshape(3, 3 * C1, Cout).astype(jnp.bfloat16)
    w2 = w[:, :, C1:, :].reshape(3, 3 * C2, Cout).astype(jnp.bfloat16)
    wcls_p = jnp.zeros((Cout, ncp), jnp.float32).at[:, :num_classes].set(wcls)
    bcls_p = jnp.zeros((1, ncp), jnp.float32).at[:, :num_classes].set(bcls)
    out = pl.pallas_call(
        _bneck_cls_kernel,
        out_shape=jax.ShapeDtypeStruct((B, H, W, ncp), jnp.float32),
        grid=(B, H, 3),
        in_specs=[
            pl.BlockSpec((1, 1, W + 2, C1), lambda b, r, dy: (b, r + dy, 0, 0)),
            pl.BlockSpec((1, 1, W + 2, C2), lambda b, r, dy: (b, r + dy, 0, 0)),
            pl.BlockSpec((1, 3 * C1, Cout), lambda b, r, dy: (dy, 0, 0)),
            pl.BlockSpec((1, 3 * C2, Cout), lambda b, r, dy: (dy, 0, 0)),
            pl.BlockSpec((1, Cout), lambda b, r, dy: (0, 0)),
            pl.BlockSpec((1, Cout), lambda b, r, dy: (0, 0)),
            pl.BlockSpec((Cout, ncp), lambda b, r, dy: (0, 0)),
            pl.BlockSpec((1, ncp), lambda b, r, dy: (0, 0)),
        ],
        out_specs=pl.BlockSpec((1, 1, W, ncp), lambda b, r, dy: (b, r, 0, 0)),
        scratch_shapes=[pltpu.VMEM((W, Cout), jnp.float32)],
        compiler_params=pltpu.CompilerParams(
            dimension_semantics=("parallel", "parallel", "arbitrary"),
            vmem_limit_bytes=VMEM_LIMIT),
    )(xp1, xp2, w1, w2, scale, bias, wcls_p.astype(jnp.bfloat16), bcls_p)
    return out[..., :num_classes]


def criss_cross_attention(x, p):
    """out = gamma*(out_H + out_W) + x  (CCNet CrissCrossAttention)."""
    B, H, W, C = x.shape
    # TODO(synk): attention intermediates are per-image (grid over batch only);
    # tile over H/W blocks with a two-pass softmax for large feature maps
    # (required to fit v7x's 64 MiB VMEM at H=W~97, C=512).
    xT = jnp.transpose(x, (0, 2, 1, 3))
    wq = p['wq'].astype(jnp.bfloat16)
    wk = p['wk'].astype(jnp.bfloat16)
    wv = p['wv'].astype(jnp.bfloat16)
    o, oT = pl.pallas_call(
        _cca_kernel,
        out_shape=(jax.ShapeDtypeStruct((B, H, W, C), jnp.float32),
                   jax.ShapeDtypeStruct((B, W, H, C), jnp.float32)),
        grid=(B,),
        in_specs=[
            pl.BlockSpec((1, H, W, C), lambda b: (b, 0, 0, 0)),
            pl.BlockSpec((1, W, H, C), lambda b: (b, 0, 0, 0)),
            _full_spec_b(wq.shape), _full_spec_b(p['bq'].shape),
            _full_spec_b(wk.shape), _full_spec_b(p['bk'].shape),
            _full_spec_b(wv.shape), _full_spec_b(p['bv'].shape),
            pl.BlockSpec(memory_space=pltpu.MemorySpace.SMEM),
        ],
        out_specs=(pl.BlockSpec((1, H, W, C), lambda b: (b, 0, 0, 0)),
                   pl.BlockSpec((1, W, H, C), lambda b: (b, 0, 0, 0))),
        compiler_params=pltpu.CompilerParams(
            dimension_semantics=("parallel",),
            vmem_limit_bytes=VMEM_LIMIT),
    )(x, xT, wq, p['bq'], wk, p['bk'], wv, p['bv'], p['gamma'])
    # The H-direction branch comes back in (W, H, C) layout.
    return o + jnp.transpose(oT, (0, 2, 1, 3))


# --------------------------- parameters / forward ---------------------------

def _fold_bn(gamma, beta, mean, var, eps=1e-5):
    scale = gamma / jnp.sqrt(var + eps)
    bias = beta - mean * scale
    return scale[None, :], bias[None, :]


def init_params(key, in_channels, out_channels, num_classes):
    inter = in_channels // 4
    cq = max(inter // 8, 1)
    keys = iter(jax.random.split(key, 32))
    nk = lambda: next(keys)

    def conv_w(shape):
        fan_in = shape[0] * shape[1] * shape[2] if len(shape) == 4 else shape[0]
        return jax.random.normal(nk(), shape, jnp.float32) / jnp.sqrt(float(fan_in))

    def bn(c):
        g = 1.0 + 0.1 * jax.random.normal(nk(), (c,), jnp.float32)
        b = 0.1 * jax.random.normal(nk(), (c,), jnp.float32)
        m = 0.1 * jax.random.normal(nk(), (c,), jnp.float32)
        v = 1.0 + 0.1 * jnp.abs(jax.random.normal(nk(), (c,), jnp.float32))
        return _fold_bn(g, b, m, v)

    params = {}
    params['conva_w'] = conv_w((3, 3, in_channels, inter))
    params['conva_scale'], params['conva_bias'] = bn(inter)
    params['cca'] = {
        'wq': conv_w((inter, cq)), 'bq': 0.1 * jax.random.normal(nk(), (1, cq), jnp.float32),
        'wk': conv_w((inter, cq)), 'bk': 0.1 * jax.random.normal(nk(), (1, cq), jnp.float32),
        'wv': conv_w((inter, inter)), 'bv': 0.1 * jax.random.normal(nk(), (1, inter), jnp.float32),
        # The real module initializes gamma to 0 (attention path contributes nothing);
        # use a deterministic nonzero value so the criss-cross path is exercised.
        'gamma': jnp.full((1,), 0.5, jnp.float32),
    }
    params['convb_w'] = conv_w((3, 3, inter, inter))
    params['convb_scale'], params['convb_bias'] = bn(inter)
    params['bneck_w'] = conv_w((3, 3, in_channels + inter, out_channels))
    params['bneck_scale'], params['bneck_bias'] = bn(out_channels)
    # TODO(synk): PyTorch hardcodes nn.Conv2d(512, num_classes, 1); we use
    # out_channels as the classifier input width so the module composes at
    # small test sizes.
    params['cls_w'] = conv_w((out_channels, num_classes))
    params['cls_b'] = 0.1 * jax.random.normal(nk(), (1, num_classes), jnp.float32)
    return params


def rcca_forward(x_nchw, params, recurrence=2):
    # layout: NCHW in -> NHWC internally -> NCHW out.
    x = jnp.transpose(x_nchw, (0, 2, 3, 1)).astype(jnp.float32)
    out = conv3x3_bn_act(x, params['conva_w'],
                         params['conva_scale'], params['conva_bias'])
    for _ in range(recurrence):
        out = criss_cross_attention(out, params['cca'])
    out = conv3x3_bn_act(out, params['convb_w'],
                         params['convb_scale'], params['convb_bias'])
    # Bottleneck conv over concat([x, out]) + BN/act + (dropout=id) + 1x1 cls,
    # all fused into one kernel (no channel concat is materialized).
    num_classes = params['cls_w'].shape[-1]
    out = bneck_conv_cls(x, out, params['bneck_w'],
                         params['bneck_scale'], params['bneck_bias'],
                         params['cls_w'], params['cls_b'], num_classes)
    return jnp.transpose(out, (0, 3, 1, 2))


if __name__ == "__main__":
    key = jax.random.PRNGKey(0)
    kx, kp = jax.random.split(key)
    in_channels, out_channels, num_classes = 64, 32, 5
    B, H, W = 2, 16, 16
    x = jax.random.normal(kx, (B, in_channels, H, W), jnp.float32)
    params = init_params(kp, in_channels, out_channels, num_classes)
    fwd = jax.jit(functools.partial(rcca_forward, recurrence=2))
    out = fwd(x, params)
    jax.block_until_ready(out)
    assert out.shape == (B, num_classes, H, W), out.shape
    assert bool(jnp.all(jnp.isfinite(out)))
    print("KERNEL_OK")
</pallas_src>

<mosaic_0001>
module attributes {stable_mosaic.version = 11 : i64} {
  func.func @_conv3x3_bn_act_kernel(%arg0: i32, %arg1: i32, %arg2: i32, %arg3: memref<1x1x18x64xf32, #tpu.memory_space<vmem>>, %arg4: memref<1x192x16xbf16, #tpu.memory_space<vmem>>, %arg5: memref<1x16xf32, #tpu.memory_space<vmem>>, %arg6: memref<1x16xf32, #tpu.memory_space<vmem>>, %arg7: memref<1x1x16x16xf32, #tpu.memory_space<vmem>>, %arg8: memref<16x16xf32, #tpu.memory_space<vmem>>) attributes {dimension_semantics = [#tpu.dimension_semantics<parallel>, #tpu.dimension_semantics<parallel>, #tpu.dimension_semantics<arbitrary>], iteration_bounds = array<i64: 2, 16, 3>, scalar_prefetch = 0 : i64, scratch_operands = 1 : i64, tpu.core_type = #tpu.core_type<tc>, window_params = [{transform_indices = @transform_0, window_bounds = array<i64: 1, 1, 18, 64>}, {transform_indices = @transform_1, window_bounds = array<i64: 1, 192, 16>}, {pipeline_mode = #tpu.pipeline_mode<synchronous>, transform_indices = @transform_2, window_bounds = array<i64: 1, 16>}, {pipeline_mode = #tpu.pipeline_mode<synchronous>, transform_indices = @transform_3, window_bounds = array<i64: 1, 16>}, {transform_indices = @transform_4, window_bounds = array<i64: 1, 1, 16, 16>}]} {
    %c0_i32 = arith.constant 0 : i32
    %0 = arith.cmpi eq, %arg2, %c0_i32 : i32
    %1 = arith.extui %0 : i1 to i32
    %c0_i32_0 = arith.constant 0 : i32
    %2 = arith.cmpi ne, %1, %c0_i32_0 : i32
    scf.if %2 {
      %cst_12 = arith.constant 0.000000e+00 : f32
      %19 = vector.broadcast %cst_12 : f32 to vector<16x16xf32>
      %c0_13 = arith.constant 0 : index
      %c0_14 = arith.constant 0 : index
      %20 = vector.load %arg8[%c0_13, %c0_14] : memref<16x16xf32, #tpu.memory_space<vmem>>, vector<16x16xf32>
      tpu.vector_store %arg8[%c0_13, %c0_14], %19 {strides = array<i32>} : memref<16x16xf32, #tpu.memory_space<vmem>>, vector<16x16xf32>,
    } else {
    }
    %c0 = arith.constant 0 : index
    %c0_1 = arith.constant 0 : index
    %c0_2 = arith.constant 0 : index
    %c0_3 = arith.constant 0 : index
    %3 = vector.load %arg3[%c0, %c0_1, %c0_2, %c0_3] : memref<1x1x18x64xf32, #tpu.memory_space<vmem>>, vector<1x1x18x64xf32>
    %4 = vector.shape_cast %3 : vector<1x1x18x64xf32> to vector<18x64xf32>
    %5 = vector.extract_strided_slice %4 {offsets = [0, 0], sizes = [16, 64], strides = [1, 1]} : vector<18x64xf32> to vector<16x64xf32>
    %6 = vector.extract_strided_slice %4 {offsets = [1, 0], sizes = [16, 64], strides = [1, 1]} : vector<18x64xf32> to vector<16x64xf32>
    %7 = vector.extract_strided_slice %4 {offsets = [2, 0], sizes = [16, 64], strides = [1, 1]} : vector<18x64xf32> to vector<16x64xf32>
    %8 = tpu.concatenate %5, %6, %7 in 1 : vector<16x64xf32>, vector<16x64xf32>, vector<16x64xf32> -> vector<16x192xf32>
    %c0_4 = arith.constant 0 : index
    %c0_5 = arith.constant 0 : index
    %9 = vector.load %arg8[%c0_4, %c0_5] : memref<16x16xf32, #tpu.memory_space<vmem>>, vector<16x16xf32>
    %10 = arith.truncf %8 : vector<16x192xf32> to vector<16x192xbf16>
    %c0_6 = arith.constant 0 : index
    %c0_7 = arith.constant 0 : index
    %c0_8 = arith.constant 0 : index
    %11 = vector.load %arg4[%c0_6, %c0_7, %c0_8] : memref<1x192x16xbf16, #tpu.memory_space<vmem>>, vector<1x192x16xbf16>
    %12 = vector.shape_cast %11 : vector<1x192x16xbf16> to vector<192x16xbf16>
    %cst = arith.constant dense<0.000000e+00> : vector<16x16xf32>
    %13 = tpu.matmul %10, %12, %cst {dimension_numbers = #tpu.dot_dimension_numbers<[1], [0], [0], [1], [0, 0, 1, 1], [], []>} : vector<16x192xbf16>, vector<192x16xbf16>, vector<16x16xf32> -> vector<16x16xf32>
    %14 = arith.addf %9, %13 : vector<16x16xf32>
    %c0_9 = arith.constant 0 : index
    %c0_10 = arith.constant 0 : index
    %15 = vector.load %arg8[%c0_9, %c0_10] : memref<16x16xf32, #tpu.memory_space<vmem>>, vector<16x16xf32>
    tpu.vector_store %arg8[%c0_9, %c0_10], %14 {strides = array<i32>} : memref<16x16xf32, #tpu.memory_space<vmem>>, vector<16x16xf32>,
    %c2_i32 = arith.constant 2 : i32
    %16 = arith.cmpi eq, %arg2, %c2_i32 : i32
    %17 = arith.extui %16 : i1 to i32
    %c0_i32_11 = arith.constant 0 : i32
    %18 = arith.cmpi ne, %17, %c0_i32_11 : i32
    scf.if %18 {
      %c0_12 = arith.constant 0 : index
      %c0_13 = arith.constant 0 : index
      %19 = vector.load %arg8[%c0_12, %c0_13] : memref<16x16xf32, #tpu.memory_space<vmem>>, vector<16x16xf32>
      %c0_14 = arith.constant 0 : index
      %c0_15 = arith.constant 0 : index
      %20 = vector.load %arg5[%c0_14, %c0_15] : memref<1x16xf32, #tpu.memory_space<vmem>>, vector<1x16xf32>
      %21 = vector.broadcast %20 : vector<1x16xf32> to vector<16x16xf32>
      %22 = arith.mulf %19, %21 : vector<16x16xf32>
      %c0_16 = arith.constant 0 : index
      %c0_17 = arith.constant 0 : index
      %23 = vector.load %arg6[%c0_16, %c0_17] : memref<1x16xf32, #tpu.memory_space<vmem>>, vector<1x16xf32>
      %24 = vector.broadcast %23 : vector<1x16xf32> to vector<16x16xf32>
      %25 = arith.addf %22, %24 : vector<16x16xf32>
      %cst_18 = arith.constant 0.000000e+00 : f32
      %26 = vector.broadcast %cst_18 : f32 to vector<16x16xf32>
      %27 = arith.cmpf oge, %25, %26 : vector<16x16xf32>
      %cst_19 = arith.constant 0.00999999977 : f32
      %28 = vector.broadcast %cst_19 : f32 to vector<16x16xf32>
      %29 = arith.mulf %28, %25 : vector<16x16xf32>
      %30 = arith.select %27, %25, %29 : vector<16x16xi1>, vector<16x16xf32>
      %c0_20 = arith.constant 0 : index
      %c0_21 = arith.constant 0 : index
      %c0_22 = arith.constant 0 : index
      %c0_23 = arith.constant 0 : index
      %31 = vector.load %arg7[%c0_20, %c0_21, %c0_22, %c0_23] : memref<1x1x16x16xf32, #tpu.memory_space<vmem>>, vector<1x1x16x16xf32>
      %32 = vector.shape_cast %31 : vector<1x1x16x16xf32> to vector<16x16xf32>
      %33 = vector.shape_cast %30 : vector<16x16xf32> to vector<1x1x16x16xf32>
      tpu.vector_store %arg7[%c0_20, %c0_21, %c0_22, %c0_23], %33 {strides = array<i32>} : memref<1x1x16x16xf32, #tpu.memory_space<vmem>>, vector<1x1x16x16xf32>,
    } else {
    }
    return
  }
  func.func @transform_0(%arg0: i32, %arg1: i32, %arg2: i32) -> (i32, i32, i32, i32) {
    %0 = arith.addi %arg1, %arg2 : i32
    %c0_i32 = arith.constant 0 : i32
    %c0_i32_0 = arith.constant 0 : i32
    %c0_i32_1 = arith.constant 0 : i32
    return %arg0, %0, %c0_i32, %c0_i32_0 : i32, i32, i32, i32
  }
  func.func @transform_1(%arg0: i32, %arg1: i32, %arg2: i32) -> (i32, i32, i32) {
    %c0_i32 = arith.constant 0 : i32
    %c0_i32_0 = arith.constant 0 : i32
    %c0_i32_1 = arith.constant 0 : i32
    return %arg2, %c0_i32, %c0_i32_0 : i32, i32, i32
  }
  func.func @transform_2(%arg0: i32, %arg1: i32, %arg2: i32) -> (i32, i32) {
    %c0_i32 = arith.constant 0 : i32
    %c0_i32_0 = arith.constant 0 : i32
    %c0_i32_1 = arith.constant 0 : i32
    return %c0_i32, %c0_i32_0 : i32, i32
  }
  func.func @transform_3(%arg0: i32, %arg1: i32, %arg2: i32) -> (i32, i32) {
    %c0_i32 = arith.constant 0 : i32
    %c0_i32_0 = arith.constant 0 : i32
    %c0_i32_1 = arith.constant 0 : i32
    return %c0_i32, %c0_i32_0 : i32, i32
  }
  func.func @transform_4(%arg0: i32, %arg1: i32, %arg2: i32) -> (i32, i32, i32, i32) {
    %c0_i32 = arith.constant 0 : i32
    %c0_i32_0 = arith.constant 0 : i32
    %c0_i32_1 = arith.constant 0 : i32
    return %arg0, %arg1, %c0_i32, %c0_i32_0 : i32, i32, i32, i32
  }
}

module attributes {stable_mosaic.version = 11 : i64} {
  func.func @_cca_kernel(%arg0: i32, %arg1: memref<1x16x16x16xf32, #tpu.memory_space<vmem>>, %arg2: memref<1x16x16x16xf32, #tpu.memory_space<vmem>>, %arg3: memref<16x2xbf16, #tpu.memory_space<vmem>>, %arg4: memref<1x2xf32, #tpu.memory_space<vmem>>, %arg5: memref<16x2xbf16, #tpu.memory_space<vmem>>, %arg6: memref<1x2xf32, #tpu.memory_space<vmem>>, %arg7: memref<16x16xbf16, #tpu.memory_space<vmem>>, %arg8: memref<1x16xf32, #tpu.memory_space<vmem>>, %arg9: memref<1xf32, #tpu.memory_space<smem>>, %arg10: memref<1x16x16x16xf32, #tpu.memory_space<vmem>>, %arg11: memref<1x16x16x16xf32, #tpu.memory_space<vmem>>) attributes {dimension_semantics = [#tpu.dimension_semantics<parallel>], iteration_bounds = array<i64: 2>, scalar_prefetch = 0 : i64, scratch_operands = 0 : i64, tpu.core_type = #tpu.core_type<tc>, window_params = [{transform_indices = @transform_0, window_bounds = array<i64: 1, 16, 16, 16>}, {transform_indices = @transform_1, window_bounds = array<i64: 1, 16, 16, 16>}, {pipeline_mode = #tpu.pipeline_mode<synchronous>, transform_indices = @transform_2, window_bounds = array<i64: 16, 2>}, {pipeline_mode = #tpu.pipeline_mode<synchronous>, transform_indices = @transform_3, window_bounds = array<i64: 1, 2>}, {pipeline_mode = #tpu.pipeline_mode<synchronous>, transform_indices = @transform_4, window_bounds = array<i64: 16, 2>}, {pipeline_mode = #tpu.pipeline_mode<synchronous>, transform_indices = @transform_5, window_bounds = array<i64: 1, 2>}, {pipeline_mode = #tpu.pipeline_mode<synchronous>, transform_indices = @transform_6, window_bounds = array<i64: 16, 16>}, {pipeline_mode = #tpu.pipeline_mode<synchronous>, transform_indices = @transform_7, window_bounds = array<i64: 1, 16>}, {transform_indices = @transform_8, window_bounds = array<i64: 1>}, {transform_indices = @transform_9, window_bounds = array<i64: 1, 16, 16, 16>}, {transform_indices = @transform_10, window_bounds = array<i64: 1, 16, 16, 16>}]} {
    %c0 = arith.constant 0 : index
    %c0_0 = arith.constant 0 : index
    %c0_1 = arith.constant 0 : index
    %c0_2 = arith.constant 0 : index
    %0 = vector.load %arg1[%c0, %c0_0, %c0_1, %c0_2] : memref<1x16x16x16xf32, #tpu.memory_space<vmem>>, vector<1x16x16x16xf32>
    %1 = vector.shape_cast %0 : vector<1x16x16x16xf32> to vector<16x16x16xf32>
    %2 = arith.truncf %1 : vector<16x16x16xf32> to vector<16x16x16xbf16>
    %3 = vector.shape_cast %2 : vector<16x16x16xbf16> to vector<256x16xbf16>
    %c0_3 = arith.constant 0 : index
    %c0_4 = arith.constant 0 : index
    %c0_5 = arith.constant 0 : index
    %c0_6 = arith.constant 0 : index
    %4 = vector.load %arg2[%c0_3, %c0_4, %c0_5, %c0_6] : memref<1x16x16x16xf32, #tpu.memory_space<vmem>>, vector<1x16x16x16xf32>
    %5 = vector.shape_cast %4 : vector<1x16x16x16xf32> to vector<16x16x16xf32>
    %6 = arith.truncf %5 : vector<16x16x16xf32> to vector<16x16x16xbf16>
    %7 = vector.shape_cast %6 : vector<16x16x16xbf16> to vector<256x16xbf16>
    %c0_7 = arith.constant 0 : index
    %c0_8 = arith.constant 0 : index
    %8 = vector.load %arg3[%c0_7, %c0_8] : memref<16x2xbf16, #tpu.memory_space<vmem>>, vector<16x2xbf16>
    %cst = arith.constant dense<0.000000e+00> : vector<256x2xf32>
    %9 = tpu.matmul %3, %8, %cst {dimension_numbers = #tpu.dot_dimension_numbers<[1], [0], [0], [1], [0, 0, 1, 1], [], []>} : vector<256x16xbf16>, vector<16x2xbf16>, vector<256x2xf32> -> vector<256x2xf32>
    %c0_9 = arith.constant 0 : index
    %c0_10 = arith.constant 0 : index
    %10 = vector.load %arg4[%c0_9, %c0_10] : memref<1x2xf32, #tpu.memory_space<vmem>>, vector<1x2xf32>
    %11 = vector.broadcast %10 : vector<1x2xf32> to vector<256x2xf32>
    %12 = arith.addf %9, %11 : vector<256x2xf32>
    %13 = vector.shape_cast %12 : vector<256x2xf32> to vector<16x16x2xf32>
    %c0_11 = arith.constant 0 : index
    %c0_12 = arith.constant 0 : index
    %14 = vector.load %arg5[%c0_11, %c0_12] : memref<16x2xbf16, #tpu.memory_space<vmem>>, vector<16x2xbf16>
    %cst_13 = arith.constant dense<0.000000e+00> : vector<256x2xf32>
    %15 = tpu.matmul %3, %14, %cst_13 {dimension_numbers = #tpu.dot_dimension_numbers<[1], [0], [0], [1], [0, 0, 1, 1], [], []>} : vector<256x16xbf16>, vector<16x2xbf16>, vector<256x2xf32> -> vector<256x2xf32>
    %c0_14 = arith.constant 0 : index
    %c0_15 = arith.constant 0 : index
    %16 = vector.load %arg6[%c0_14, %c0_15] : memref<1x2xf32, #tpu.memory_space<vmem>>, vector<1x2xf32>
    %17 = vector.broadcast %16 : vector<1x2xf32> to vector<256x2xf32>
    %18 = arith.addf %15, %17 : vector<256x2xf32>
    %19 = vector.shape_cast %18 : vector<256x2xf32> to vector<16x16x2xf32>
    %c0_16 = arith.constant 0 : index
    %c0_17 = arith.constant 0 : index
    %20 = vector.load %arg7[%c0_16, %c0_17] : memref<16x16xbf16, #tpu.memory_space<vmem>>, vector<16x16xbf16>
    %cst_18 = arith.constant dense<0.000000e+00> : vector<256x16xf32>
    %21 = tpu.matmul %3, %20, %cst_18 {dimension_numbers = #tpu.dot_dimension_numbers<[1], [0], [0], [1], [0, 0, 1, 1], [], []>} : vector<256x16xbf16>, vector<16x16xbf16>, vector<256x16xf32> -> vector<256x16xf32>
    %c0_19 = arith.constant 0 : index
    %c0_20 = arith.constant 0 : index
    %22 = vector.load %arg8[%c0_19, %c0_20] : memref<1x16xf32, #tpu.memory_space<vmem>>, vector<1x16xf32>
    %23 = vector.broadcast %22 : vector<1x16xf32> to vector<256x16xf32>
    %24 = arith.addf %21, %23 : vector<256x16xf32>
    %25 = vector.shape_cast %24 : vector<256x16xf32> to vector<16x16x16xf32>
    %c0_21 = arith.constant 0 : index
    %c0_22 = arith.constant 0 : index
    %26 = vector.load %arg3[%c0_21, %c0_22] : memref<16x2xbf16, #tpu.memory_space<vmem>>, vector<16x2xbf16>
    %cst_23 = arith.constant dense<0.000000e+00> : vector<256x2xf32>
    %27 = tpu.matmul %7, %26, %cst_23 {dimension_numbers = #tpu.dot_dimension_numbers<[1], [0], [0], [1], [0, 0, 1, 1], [], []>} : vector<256x16xbf16>, vector<16x2xbf16>, vector<256x2xf32> -> vector<256x2xf32>
    %c0_24 = arith.constant 0 : index
    %c0_25 = arith.constant 0 : index
    %28 = vector.load %arg4[%c0_24, %c0_25] : memref<1x2xf32, #tpu.memory_space<vmem>>, vector<1x2xf32>
    %29 = vector.broadcast %28 : vector<1x2xf32> to vector<256x2xf32>
    %30 = arith.addf %27, %29 : vector<256x2xf32>
    %31 = vector.shape_cast %30 : vector<256x2xf32> to vector<16x16x2xf32>
    %c0_26 = arith.constant 0 : index
    %c0_27 = arith.constant 0 : index
    %32 = vector.load %arg5[%c0_26, %c0_27] : memref<16x2xbf16, #tpu.memory_space<vmem>>, vector<16x2xbf16>
    %cst_28 = arith.constant dense<0.000000e+00> : vector<256x2xf32>
    %33 = tpu.matmul %7, %32, %cst_28 {dimension_numbers = #tpu.dot_dimension_numbers<[1], [0], [0], [1], [0, 0, 1, 1], [], []>} : vector<256x16xbf16>, vector<16x2xbf16>, vector<256x2xf32> -> vector<256x2xf32>
    %c0_29 = arith.constant 0 : index
    %c0_30 = arith.constant 0 : index
    %34 = vector.load %arg6[%c0_29, %c0_30] : memref<1x2xf32, #tpu.memory_space<vmem>>, vector<1x2xf32>
    %35 = vector.broadcast %34 : vector<1x2xf32> to vector<256x2xf32>
    %36 = arith.addf %33, %35 : vector<256x2xf32>
    %37 = vector.shape_cast %36 : vector<256x2xf32> to vector<16x16x2xf32>
    %c0_31 = arith.constant 0 : index
    %c0_32 = arith.constant 0 : index
    %38 = vector.load %arg7[%c0_31, %c0_32] : memref<16x16xbf16, #tpu.memory_space<vmem>>, vector<16x16xbf16>
    %cst_33 = arith.constant dense<0.000000e+00> : vector<256x16xf32>
    %39 = tpu.matmul %7, %38, %cst_33 {dimension_numbers = #tpu.dot_dimension_numbers<[1], [0], [0], [1], [0, 0, 1, 1], [], []>} : vector<256x16xbf16>, vector<16x16xbf16>, vector<256x16xf32> -> vector<256x16xf32>
    %c0_34 = arith.constant 0 : index
    %c0_35 = arith.constant 0 : index
    %40 = vector.load %arg8[%c0_34, %c0_35] : memref<1x16xf32, #tpu.memory_space<vmem>>, vector<1x16xf32>
    %41 = vector.broadcast %40 : vector<1x16xf32> to vector<256x16xf32>
    %42 = arith.addf %39, %41 : vector<256x16xf32>
    %43 = vector.shape_cast %42 : vector<256x16xf32> to vector<16x16x16xf32>
    %44 = arith.truncf %13 : vector<16x16x2xf32> to vector<16x16x2xbf16>
    %45 = arith.truncf %19 : vector<16x16x2xf32> to vector<16x16x2xbf16>
    "tpu.trace_start"() <{level = 10 : i32, message = "ijc,iwc->ijw"}> : () -> ()
    %cst_36 = arith.constant dense<0.000000e+00> : vector<16x16x16xf32>
    %46 = tpu.matmul %44, %45, %cst_36 {dimension_numbers = #tpu.dot_dimension_numbers<[2], [2], [1], [1], [0, 0, 0, 1, 1, 1], [0], [0]>} : vector<16x16x2xbf16>, vector<16x16x2xbf16>, vector<16x16x16xf32> -> vector<16x16x16xf32>
    "tpu.trace_stop"() : () -> ()
    %47 = arith.truncf %31 : vector<16x16x2xf32> to vector<16x16x2xbf16>
    %48 = arith.truncf %37 : vector<16x16x2xf32> to vector<16x16x2xbf16>
    "tpu.trace_start"() <{level = 10 : i32, message = "jic,jhc->jih"}> : () -> ()
    %cst_37 = arith.constant dense<0.000000e+00> : vector<16x16x16xf32>
    %49 = tpu.matmul %47, %48, %cst_37 {dimension_numbers = #tpu.dot_dimension_numbers<[2], [2], [1], [1], [0, 0, 0, 1, 1, 1], [0], [0]>} : vector<16x16x2xbf16>, vector<16x16x2xbf16>, vector<16x16x16xf32> -> vector<16x16x16xf32>
    "tpu.trace_stop"() : () -> ()
    %50 = tpu.iota {dimensions = array<i32: 0>} : vector<16x16xi32>
    %51 = tpu.iota {dimensions = array<i32: 1>} : vector<16x16xi32>
    %52 = arith.cmpi eq, %50, %51 : vector<16x16xi32>
    %53 = vector.shape_cast %52 : vector<16x16xi1> to vector<1x16x16xi1>
    %cst_38 = arith.constant 0xFF800000 : f32
    %54 = vector.shape_cast %53 : vector<1x16x16xi1> to vector<1x16x16xi1>
    %55 = vector.broadcast %54 : vector<1x16x16xi1> to vector<16x16x16xi1>
    %56 = vector.broadcast %cst_38 : f32 to vector<16x16x16xf32>
    %57 = arith.select %55, %56, %49 : vector<16x16x16xi1>, vector<16x16x16xf32>
    %cst_39 = arith.constant dense<0xFF800000> : vector<16x16xf32>
    %58 = vector.multi_reduction <maximumf>, %46, %cst_39 [2] : vector<16x16x16xf32> to vector<16x16xf32>
    %cst_40 = arith.constant dense<0xFF800000> : vector<16x16xf32>
    %59 = vector.multi_reduction <maximumf>, %57, %cst_40 [2] : vector<16x16x16xf32> to vector<16x16xf32>
    %60 = tpu.transpose %59, [1, 0] : vector<16x16xf32> -> vector<16x16xf32>
    %61 = arith.maximumf %58, %60 : vector<16x16xf32>
    %62 = vector.shape_cast %61 : vector<16x16xf32> to vector<16x16x1xf32>
    %63 = vector.broadcast %62 : vector<16x16x1xf32> to vector<16x16x16xf32>
    %64 = arith.subf %46, %63 : vector<16x16x16xf32>
    %65 = math.exp %64 : vector<16x16x16xf32>
    %66 = tpu.transpose %61, [1, 0] : vector<16x16xf32> -> vector<16x16xf32>
    %67 = vector.shape_cast %66 : vector<16x16xf32> to vector<16x16x1xf32>
    %68 = vector.broadcast %67 : vector<16x16x1xf32> to vector<16x16x16xf32>
    %69 = arith.subf %57, %68 : vector<16x16x16xf32>
    %70 = math.exp %69 : vector<16x16x16xf32>
    %cst_41 = arith.constant dense<0.000000e+00> : vector<16x16xf32>
    %71 = vector.multi_reduction <add>, %65, %cst_41 [2] : vector<16x16x16xf32> to vector<16x16xf32>
    %cst_42 = arith.constant dense<0.000000e+00> : vector<16x16xf32>
    %72 = vector.multi_reduction <add>, %70, %cst_42 [2] : vector<16x16x16xf32> to vector<16x16xf32>
    %73 = tpu.transpose %72, [1, 0] : vector<16x16xf32> -> vector<16x16xf32>
    %74 = arith.addf %71, %73 : vector<16x16xf32>
    %75 = tpu.reciprocal %74 {approx = true} : vector<16x16xf32> -> vector<16x16xf32>
    %76 = vector.shape_cast %75 : vector<16x16xf32> to vector<16x16x1xf32>
    %77 = vector.broadcast %76 : vector<16x16x1xf32> to vector<16x16x16xf32>
    %78 = arith.mulf %65, %77 : vector<16x16x16xf32>
    %79 = arith.truncf %78 : vector<16x16x16xf32> to vector<16x16x16xbf16>
    %80 = tpu.transpose %75, [1, 0] : vector<16x16xf32> -> vector<16x16xf32>
    %81 = vector.shape_cast %80 : vector<16x16xf32> to vector<16x16x1xf32>
    %82 = vector.broadcast %81 : vector<16x16x1xf32> to vector<16x16x16xf32>
    %83 = arith.mulf %70, %82 : vector<16x16x16xf32>
    %84 = arith.truncf %83 : vector<16x16x16xf32> to vector<16x16x16xbf16>
    %85 = arith.truncf %25 : vector<16x16x16xf32> to vector<16x16x16xbf16>
    "tpu.trace_start"() <{level = 10 : i32, message = "ijw,iwc->ijc"}> : () -> ()
    %cst_43 = arith.constant dense<0.000000e+00> : vector<16x16x16xf32>
    %86 = tpu.matmul %79, %85, %cst_43 {dimension_numbers = #tpu.dot_dimension_numbers<[2], [1], [1], [2], [0, 0, 0, 1, 1, 2], [0], [0]>} : vector<16x16x16xbf16>, vector<16x16x16xbf16>, vector<16x16x16xf32> -> vector<16x16x16xf32>
    "tpu.trace_stop"() : () -> ()
    %87 = arith.truncf %43 : vector<16x16x16xf32> to vector<16x16x16xbf16>
    "tpu.trace_start"() <{level = 10 : i32, message = "jih,jhc->jic"}> : () -> ()
    %cst_44 = arith.constant dense<0.000000e+00> : vector<16x16x16xf32>
    %88 = tpu.matmul %84, %87, %cst_44 {dimension_numbers = #tpu.dot_dimension_numbers<[2], [1], [1], [2], [0, 0, 0, 1, 1, 2], [0], [0]>} : vector<16x16x16xbf16>, vector<16x16x16xbf16>, vector<16x16x16xf32> -> vector<16x16x16xf32>
    "tpu.trace_stop"() : () -> ()
    %c0_45 = arith.constant 0 : index
    %89 = memref.load %arg9[%c0_45] : memref<1xf32, #tpu.memory_space<smem>>
    %90 = vector.broadcast %89 : f32 to vector<16x16x16xf32>
    %91 = arith.mulf %90, %86 : vector<16x16x16xf32>
    %92 = arith.addf %91, %1 : vector<16x16x16xf32>
    %c0_46 = arith.constant 0 : index
    %c0_47 = arith.constant 0 : index
    %c0_48 = arith.constant 0 : index
    %c0_49 = arith.constant 0 : index
    %93 = vector.load %arg10[%c0_46, %c0_47, %c0_48, %c0_49] : memref<1x16x16x16xf32, #tpu.memory_space<vmem>>, vector<1x16x16x16xf32>
    %94 = vector.shape_cast %93 : vector<1x16x16x16xf32> to vector<16x16x16xf32>
    %95 = vector.shape_cast %92 : vector<16x16x16xf32> to vector<1x16x16x16xf32>
    tpu.vector_store %arg10[%c0_46, %c0_47, %c0_48, %c0_49], %95 {strides = array<i32>} : memref<1x16x16x16xf32, #tpu.memory_space<vmem>>, vector<1x16x16x16xf32>,
    %96 = vector.broadcast %89 : f32 to vector<16x16x16xf32>
    %97 = arith.mulf %96, %88 : vector<16x16x16xf32>
    %c0_50 = arith.constant 0 : index
    %c0_51 = arith.constant 0 : index
    %c0_52 = arith.constant 0 : index
    %c0_53 = arith.constant 0 : index
    %98 = vector.load %arg11[%c0_50, %c0_51, %c0_52, %c0_53] : memref<1x16x16x16xf32, #tpu.memory_space<vmem>>, vector<1x16x16x16xf32>
    %99 = vector.shape_cast %98 : vector<1x16x16x16xf32> to vector<16x16x16xf32>
    %100 = vector.shape_cast %97 : vector<16x16x16xf32> to vector<1x16x16x16xf32>
    tpu.vector_store %arg11[%c0_50, %c0_51, %c0_52, %c0_53], %100 {strides = array<i32>} : memref<1x16x16x16xf32, #tpu.memory_space<vmem>>, vector<1x16x16x16xf32>,
    return
  }
  func.func @transform_0(%arg0: i32) -> (i32, i32, i32, i32) {
    %c0_i32 = arith.constant 0 : i32
    %c0_i32_0 = arith.constant 0 : i32
    %c0_i32_1 = arith.constant 0 : i32
    %c0_i32_2 = arith.constant 0 : i32
    return %arg0, %c0_i32, %c0_i32_0, %c0_i32_1 : i32, i32, i32, i32
  }
  func.func @transform_1(%arg0: i32) -> (i32, i32, i32, i32) {
    %c0_i32 = arith.constant 0 : i32
    %c0_i32_0 = arith.constant 0 : i32
    %c0_i32_1 = arith.constant 0 : i32
    %c0_i32_2 = arith.constant 0 : i32
    return %arg0, %c0_i32, %c0_i32_0, %c0_i32_1 : i32, i32, i32, i32
  }
  func.func @transform_2(%arg0: i32) -> (i32, i32) {
    %c0_i32 = arith.constant 0 : i32
    %c0_i32_0 = arith.constant 0 : i32
    %c0_i32_1 = arith.constant 0 : i32
    return %c0_i32, %c0_i32_0 : i32, i32
  }
  func.func @transform_3(%arg0: i32) -> (i32, i32) {
    %c0_i32 = arith.constant 0 : i32
    %c0_i32_0 = arith.constant 0 : i32
    %c0_i32_1 = arith.constant 0 : i32
    return %c0_i32, %c0_i32_0 : i32, i32
  }
  func.func @transform_4(%arg0: i32) -> (i32, i32) {
    %c0_i32 = arith.constant 0 : i32
    %c0_i32_0 = arith.constant 0 : i32
    %c0_i32_1 = arith.constant 0 : i32
    return %c0_i32, %c0_i32_0 : i32, i32
  }
  func.func @transform_5(%arg0: i32) -> (i32, i32) {
    %c0_i32 = arith.constant 0 : i32
    %c0_i32_0 = arith.constant 0 : i32
    %c0_i32_1 = arith.constant 0 : i32
    return %c0_i32, %c0_i32_0 : i32, i32
  }
  func.func @transform_6(%arg0: i32) -> (i32, i32) {
    %c0_i32 = arith.constant 0 : i32
    %c0_i32_0 = arith.constant 0 : i32
    %c0_i32_1 = arith.constant 0 : i32
    return %c0_i32, %c0_i32_0 : i32, i32
  }
  func.func @transform_7(%arg0: i32) -> (i32, i32) {
    %c0_i32 = arith.constant 0 : i32
    %c0_i32_0 = arith.constant 0 : i32
    %c0_i32_1 = arith.constant 0 : i32
    return %c0_i32, %c0_i32_0 : i32, i32
  }
  func.func @transform_8(%arg0: i32) -> i32 {
    %c0_i32 = arith.constant 0 : i32
    %c0_i32_0 = arith.constant 0 : i32
    return %c0_i32 : i32
  }
  func.func @transform_9(%arg0: i32) -> (i32, i32, i32, i32) {
    %c0_i32 = arith.constant 0 : i32
    %c0_i32_0 = arith.constant 0 : i32
    %c0_i32_1 = arith.constant 0 : i32
    %c0_i32_2 = arith.constant 0 : i32
    return %arg0, %c0_i32, %c0_i32_0, %c0_i32_1 : i32, i32, i32, i32
  }
  func.func @transform_10(%arg0: i32) -> (i32, i32, i32, i32) {
    %c0_i32 = arith.constant 0 : i32
    %c0_i32_0 = arith.constant 0 : i32
    %c0_i32_1 = arith.constant 0 : i32
    %c0_i32_2 = arith.constant 0 : i32
    return %arg0, %c0_i32, %c0_i32_0, %c0_i32_1 : i32, i32, i32, i32
  }
}

module attributes {stable_mosaic.version = 11 : i64} {
  func.func @_conv3x3_bn_act_kernel(%arg0: i32, %arg1: i32, %arg2: i32, %arg3: memref<1x1x18x16xf32, #tpu.memory_space<vmem>>, %arg4: memref<1x48x16xbf16, #tpu.memory_space<vmem>>, %arg5: memref<1x16xf32, #tpu.memory_space<vmem>>, %arg6: memref<1x16xf32, #tpu.memory_space<vmem>>, %arg7: memref<1x1x16x16xf32, #tpu.memory_space<vmem>>, %arg8: memref<16x16xf32, #tpu.memory_space<vmem>>) attributes {dimension_semantics = [#tpu.dimension_semantics<parallel>, #tpu.dimension_semantics<parallel>, #tpu.dimension_semantics<arbitrary>], iteration_bounds = array<i64: 2, 16, 3>, scalar_prefetch = 0 : i64, scratch_operands = 1 : i64, tpu.core_type = #tpu.core_type<tc>, window_params = [{transform_indices = @transform_0, window_bounds = array<i64: 1, 1, 18, 16>}, {transform_indices = @transform_1, window_bounds = array<i64: 1, 48, 16>}, {pipeline_mode = #tpu.pipeline_mode<synchronous>, transform_indices = @transform_2, window_bounds = array<i64: 1, 16>}, {pipeline_mode = #tpu.pipeline_mode<synchronous>, transform_indices = @transform_3, window_bounds = array<i64: 1, 16>}, {transform_indices = @transform_4, window_bounds = array<i64: 1, 1, 16, 16>}]} {
    %c0_i32 = arith.constant 0 : i32
    %0 = arith.cmpi eq, %arg2, %c0_i32 : i32
    %1 = arith.extui %0 : i1 to i32
    %c0_i32_0 = arith.constant 0 : i32
    %2 = arith.cmpi ne, %1, %c0_i32_0 : i32
    scf.if %2 {
      %cst_12 = arith.constant 0.000000e+00 : f32
      %19 = vector.broadcast %cst_12 : f32 to vector<16x16xf32>
      %c0_13 = arith.constant 0 : index
      %c0_14 = arith.constant 0 : index
      %20 = vector.load %arg8[%c0_13, %c0_14] : memref<16x16xf32, #tpu.memory_space<vmem>>, vector<16x16xf32>
      tpu.vector_store %arg8[%c0_13, %c0_14], %19 {strides = array<i32>} : memref<16x16xf32, #tpu.memory_space<vmem>>, vector<16x16xf32>,
    } else {
    }
    %c0 = arith.constant 0 : index
    %c0_1 = arith.constant 0 : index
    %c0_2 = arith.constant 0 : index
    %c0_3 = arith.constant 0 : index
    %3 = vector.load %arg3[%c0, %c0_1, %c0_2, %c0_3] : memref<1x1x18x16xf32, #tpu.memory_space<vmem>>, vector<1x1x18x16xf32>
    %4 = vector.shape_cast %3 : vector<1x1x18x16xf32> to vector<18x16xf32>
    %5 = vector.extract_strided_slice %4 {offsets = [0, 0], sizes = [16, 16], strides = [1, 1]} : vector<18x16xf32> to vector<16x16xf32>
    %6 = vector.extract_strided_slice %4 {offsets = [1, 0], sizes = [16, 16], strides = [1, 1]} : vector<18x16xf32> to vector<16x16xf32>
    %7 = vector.extract_strided_slice %4 {offsets = [2, 0], sizes = [16, 16], strides = [1, 1]} : vector<18x16xf32> to vector<16x16xf32>
    %8 = tpu.concatenate %5, %6, %7 in 1 : vector<16x16xf32>, vector<16x16xf32>, vector<16x16xf32> -> vector<16x48xf32>
    %c0_4 = arith.constant 0 : index
    %c0_5 = arith.constant 0 : index
    %9 = vector.load %arg8[%c0_4, %c0_5] : memref<16x16xf32, #tpu.memory_space<vmem>>, vector<16x16xf32>
    %10 = arith.truncf %8 : vector<16x48xf32> to vector<16x48xbf16>
    %c0_6 = arith.constant 0 : index
    %c0_7 = arith.constant 0 : index
    %c0_8 = arith.constant 0 : index
    %11 = vector.load %arg4[%c0_6, %c0_7, %c0_8] : memref<1x48x16xbf16, #tpu.memory_space<vmem>>, vector<1x48x16xbf16>
    %12 = vector.shape_cast %11 : vector<1x48x16xbf16> to vector<48x16xbf16>
    %cst = arith.constant dense<0.000000e+00> : vector<16x16xf32>
    %13 = tpu.matmul %10, %12, %cst {dimension_numbers = #tpu.dot_dimension_numbers<[1], [0], [0], [1], [0, 0, 1, 1], [], []>} : vector<16x48xbf16>, vector<48x16xbf16>, vector<16x16xf32> -> vector<16x16xf32>
    %14 = arith.addf %9, %13 : vector<16x16xf32>
    %c0_9 = arith.constant 0 : index
    %c0_10 = arith.constant 0 : index
    %15 = vector.load %arg8[%c0_9, %c0_10] : memref<16x16xf32, #tpu.memory_space<vmem>>, vector<16x16xf32>
    tpu.vector_store %arg8[%c0_9, %c0_10], %14 {strides = array<i32>} : memref<16x16xf32, #tpu.memory_space<vmem>>, vector<16x16xf32>,
    %c2_i32 = arith.constant 2 : i32
    %16 = arith.cmpi eq, %arg2, %c2_i32 : i32
    %17 = arith.extui %16 : i1 to i32
    %c0_i32_11 = arith.constant 0 : i32
    %18 = arith.cmpi ne, %17, %c0_i32_11 : i32
    scf.if %18 {
      %c0_12 = arith.constant 0 : index
      %c0_13 = arith.constant 0 : index
      %19 = vector.load %arg8[%c0_12, %c0_13] : memref<16x16xf32, #tpu.memory_space<vmem>>, vector<16x16xf32>
      %c0_14 = arith.constant 0 : index
      %c0_15 = arith.constant 0 : index
      %20 = vector.load %arg5[%c0_14, %c0_15] : memref<1x16xf32, #tpu.memory_space<vmem>>, vector<1x16xf32>
      %21 = vector.broadcast %20 : vector<1x16xf32> to vector<16x16xf32>
      %22 = arith.mulf %19, %21 : vector<16x16xf32>
      %c0_16 = arith.constant 0 : index
      %c0_17 = arith.constant 0 : index
      %23 = vector.load %arg6[%c0_16, %c0_17] : memref<1x16xf32, #tpu.memory_space<vmem>>, vector<1x16xf32>
      %24 = vector.broadcast %23 : vector<1x16xf32> to vector<16x16xf32>
      %25 = arith.addf %22, %24 : vector<16x16xf32>
      %cst_18 = arith.constant 0.000000e+00 : f32
      %26 = vector.broadcast %cst_18 : f32 to vector<16x16xf32>
      %27 = arith.cmpf oge, %25, %26 : vector<16x16xf32>
      %cst_19 = arith.constant 0.00999999977 : f32
      %28 = vector.broadcast %cst_19 : f32 to vector<16x16xf32>
      %29 = arith.mulf %28, %25 : vector<16x16xf32>
      %30 = arith.select %27, %25, %29 : vector<16x16xi1>, vector<16x16xf32>
      %c0_20 = arith.constant 0 : index
      %c0_21 = arith.constant 0 : index
      %c0_22 = arith.constant 0 : index
      %c0_23 = arith.constant 0 : index
      %31 = vector.load %arg7[%c0_20, %c0_21, %c0_22, %c0_23] : memref<1x1x16x16xf32, #tpu.memory_space<vmem>>, vector<1x1x16x16xf32>
      %32 = vector.shape_cast %31 : vector<1x1x16x16xf32> to vector<16x16xf32>
      %33 = vector.shape_cast %30 : vector<16x16xf32> to vector<1x1x16x16xf32>
      tpu.vector_store %arg7[%c0_20, %c0_21, %c0_22, %c0_23], %33 {strides = array<i32>} : memref<1x1x16x16xf32, #tpu.memory_space<vmem>>, vector<1x1x16x16xf32>,
    } else {
    }
    return
  }
  func.func @transform_0(%arg0: i32, %arg1: i32, %arg2: i32) -> (i32, i32, i32, i32) {
    %0 = arith.addi %arg1, %arg2 : i32
    %c0_i32 = arith.constant 0 : i32
    %c0_i32_0 = arith.constant 0 : i32
    %c0_i32_1 = arith.constant 0 : i32
    return %arg0, %0, %c0_i32, %c0_i32_0 : i32, i32, i32, i32
  }
  func.func @transform_1(%arg0: i32, %arg1: i32, %arg2: i32) -> (i32, i32, i32) {
    %c0_i32 = arith.constant 0 : i32
    %c0_i32_0 = arith.constant 0 : i32
    %c0_i32_1 = arith.constant 0 : i32
    return %arg2, %c0_i32, %c0_i32_0 : i32, i32, i32
  }
  func.func @transform_2(%arg0: i32, %arg1: i32, %arg2: i32) -> (i32, i32) {
    %c0_i32 = arith.constant 0 : i32
    %c0_i32_0 = arith.constant 0 : i32
    %c0_i32_1 = arith.constant 0 : i32
    return %c0_i32, %c0_i32_0 : i32, i32
  }
  func.func @transform_3(%arg0: i32, %arg1: i32, %arg2: i32) -> (i32, i32) {
    %c0_i32 = arith.constant 0 : i32
    %c0_i32_0 = arith.constant 0 : i32
    %c0_i32_1 = arith.constant 0 : i32
    return %c0_i32, %c0_i32_0 : i32, i32
  }
  func.func @transform_4(%arg0: i32, %arg1: i32, %arg2: i32) -> (i32, i32, i32, i32) {
    %c0_i32 = arith.constant 0 : i32
    %c0_i32_0 = arith.constant 0 : i32
    %c0_i32_1 = arith.constant 0 : i32
    return %arg0, %arg1, %c0_i32, %c0_i32_0 : i32, i32, i32, i32
  }
}

module attributes {stable_mosaic.version = 11 : i64} {
  func.func @_bneck_cls_kernel(%arg0: i32, %arg1: i32, %arg2: i32, %arg3: memref<1x1x18x64xf32, #tpu.memory_space<vmem>>, %arg4: memref<1x1x18x16xf32, #tpu.memory_space<vmem>>, %arg5: memref<1x192x32xbf16, #tpu.memory_space<vmem>>, %arg6: memref<1x48x32xbf16, #tpu.memory_space<vmem>>, %arg7: memref<1x32xf32, #tpu.memory_space<vmem>>, %arg8: memref<1x32xf32, #tpu.memory_space<vmem>>, %arg9: memref<32x128xbf16, #tpu.memory_space<vmem>>, %arg10: memref<1x128xf32, #tpu.memory_space<vmem>>, %arg11: memref<1x1x16x128xf32, #tpu.memory_space<vmem>>, %arg12: memref<16x32xf32, #tpu.memory_space<vmem>>) attributes {dimension_semantics = [#tpu.dimension_semantics<parallel>, #tpu.dimension_semantics<parallel>, #tpu.dimension_semantics<arbitrary>], iteration_bounds = array<i64: 2, 16, 3>, scalar_prefetch = 0 : i64, scratch_operands = 1 : i64, tpu.core_type = #tpu.core_type<tc>, window_params = [{transform_indices = @transform_0, window_bounds = array<i64: 1, 1, 18, 64>}, {transform_indices = @transform_1, window_bounds = array<i64: 1, 1, 18, 16>}, {transform_indices = @transform_2, window_bounds = array<i64: 1, 192, 32>}, {transform_indices = @transform_3, window_bounds = array<i64: 1, 48, 32>}, {pipeline_mode = #tpu.pipeline_mode<synchronous>, transform_indices = @transform_4, window_bounds = array<i64: 1, 32>}, {pipeline_mode = #tpu.pipeline_mode<synchronous>, transform_indices = @transform_5, window_bounds = array<i64: 1, 32>}, {pipeline_mode = #tpu.pipeline_mode<synchronous>, transform_indices = @transform_6, window_bounds = array<i64: 32, 128>}, {pipeline_mode = #tpu.pipeline_mode<synchronous>, transform_indices = @transform_7, window_bounds = array<i64: 1, 128>}, {transform_indices = @transform_8, window_bounds = array<i64: 1, 1, 16, 128>}]} {
    %c0_i32 = arith.constant 0 : i32
    %0 = arith.cmpi eq, %arg2, %c0_i32 : i32
    %1 = arith.extui %0 : i1 to i32
    %c0_i32_0 = arith.constant 0 : i32
    %2 = arith.cmpi ne, %1, %c0_i32_0 : i32
    scf.if %2 {
      %cst_24 = arith.constant 0.000000e+00 : f32
      %32 = vector.broadcast %cst_24 : f32 to vector<16x32xf32>
      %c0_25 = arith.constant 0 : index
      %c0_26 = arith.constant 0 : index
      %33 = vector.load %arg12[%c0_25, %c0_26] : memref<16x32xf32, #tpu.memory_space<vmem>>, vector<16x32xf32>
      tpu.vector_store %arg12[%c0_25, %c0_26], %32 {strides = array<i32>} : memref<16x32xf32, #tpu.memory_space<vmem>>, vector<16x32xf32>,
    } else {
    }
    %c0 = arith.constant 0 : index
    %c0_1 = arith.constant 0 : index
    %c0_2 = arith.constant 0 : index
    %c0_3 = arith.constant 0 : index
    %3 = vector.load %arg3[%c0, %c0_1, %c0_2, %c0_3] : memref<1x1x18x64xf32, #tpu.memory_space<vmem>>, vector<1x1x18x64xf32>
    %4 = vector.shape_cast %3 : vector<1x1x18x64xf32> to vector<18x64xf32>
    %c0_4 = arith.constant 0 : index
    %c0_5 = arith.constant 0 : index
    %c0_6 = arith.constant 0 : index
    %c0_7 = arith.constant 0 : index
    %5 = vector.load %arg4[%c0_4, %c0_5, %c0_6, %c0_7] : memref<1x1x18x16xf32, #tpu.memory_space<vmem>>, vector<1x1x18x16xf32>
    %6 = vector.shape_cast %5 : vector<1x1x18x16xf32> to vector<18x16xf32>
    %7 = vector.extract_strided_slice %4 {offsets = [0, 0], sizes = [16, 64], strides = [1, 1]} : vector<18x64xf32> to vector<16x64xf32>
    %8 = vector.extract_strided_slice %4 {offsets = [1, 0], sizes = [16, 64], strides = [1, 1]} : vector<18x64xf32> to vector<16x64xf32>
    %9 = vector.extract_strided_slice %4 {offsets = [2, 0], sizes = [16, 64], strides = [1, 1]} : vector<18x64xf32> to vector<16x64xf32>
    %10 = tpu.concatenate %7, %8, %9 in 1 : vector<16x64xf32>, vector<16x64xf32>, vector<16x64xf32> -> vector<16x192xf32>
    %11 = vector.extract_strided_slice %6 {offsets = [0, 0], sizes = [16, 16], strides = [1, 1]} : vector<18x16xf32> to vector<16x16xf32>
    %12 = vector.extract_strided_slice %6 {offsets = [1, 0], sizes = [16, 16], strides = [1, 1]} : vector<18x16xf32> to vector<16x16xf32>
    %13 = vector.extract_strided_slice %6 {offsets = [2, 0], sizes = [16, 16], strides = [1, 1]} : vector<18x16xf32> to vector<16x16xf32>
    %14 = tpu.concatenate %11, %12, %13 in 1 : vector<16x16xf32>, vector<16x16xf32>, vector<16x16xf32> -> vector<16x48xf32>
    %c0_8 = arith.constant 0 : index
    %c0_9 = arith.constant 0 : index
    %15 = vector.load %arg12[%c0_8, %c0_9] : memref<16x32xf32, #tpu.memory_space<vmem>>, vector<16x32xf32>
    %16 = arith.truncf %10 : vector<16x192xf32> to vector<16x192xbf16>
    %c0_10 = arith.constant 0 : index
    %c0_11 = arith.constant 0 : index
    %c0_12 = arith.constant 0 : index
    %17 = vector.load %arg5[%c0_10, %c0_11, %c0_12] : memref<1x192x32xbf16, #tpu.memory_space<vmem>>, vector<1x192x32xbf16>
    %18 = vector.shape_cast %17 : vector<1x192x32xbf16> to vector<192x32xbf16>
    %cst = arith.constant dense<0.000000e+00> : vector<16x32xf32>
    %19 = tpu.matmul %16, %18, %cst {dimension_numbers = #tpu.dot_dimension_numbers<[1], [0], [0], [1], [0, 0, 1, 1], [], []>} : vector<16x192xbf16>, vector<192x32xbf16>, vector<16x32xf32> -> vector<16x32xf32>
    %20 = arith.addf %15, %19 : vector<16x32xf32>
    %c0_13 = arith.constant 0 : index
    %c0_14 = arith.constant 0 : index
    %21 = vector.load %arg12[%c0_13, %c0_14] : memref<16x32xf32, #tpu.memory_space<vmem>>, vector<16x32xf32>
    tpu.vector_store %arg12[%c0_13, %c0_14], %20 {strides = array<i32>} : memref<16x32xf32, #tpu.memory_space<vmem>>, vector<16x32xf32>,
    %c0_15 = arith.constant 0 : index
    %c0_16 = arith.constant 0 : index
    %22 = vector.load %arg12[%c0_15, %c0_16] : memref<16x32xf32, #tpu.memory_space<vmem>>, vector<16x32xf32>
    %23 = arith.truncf %14 : vector<16x48xf32> to vector<16x48xbf16>
    %c0_17 = arith.constant 0 : index
    %c0_18 = arith.constant 0 : index
    %c0_19 = arith.constant 0 : index
    %24 = vector.load %arg6[%c0_17, %c0_18, %c0_19] : memref<1x48x32xbf16, #tpu.memory_space<vmem>>, vector<1x48x32xbf16>
    %25 = vector.shape_cast %24 : vector<1x48x32xbf16> to vector<48x32xbf16>
    %cst_20 = arith.constant dense<0.000000e+00> : vector<16x32xf32>
    %26 = tpu.matmul %23, %25, %cst_20 {dimension_numbers = #tpu.dot_dimension_numbers<[1], [0], [0], [1], [0, 0, 1, 1], [], []>} : vector<16x48xbf16>, vector<48x32xbf16>, vector<16x32xf32> -> vector<16x32xf32>
    %27 = arith.addf %22, %26 : vector<16x32xf32>
    %c0_21 = arith.constant 0 : index
    %c0_22 = arith.constant 0 : index
    %28 = vector.load %arg12[%c0_21, %c0_22] : memref<16x32xf32, #tpu.memory_space<vmem>>, vector<16x32xf32>
    tpu.vector_store %arg12[%c0_21, %c0_22], %27 {strides = array<i32>} : memref<16x32xf32, #tpu.memory_space<vmem>>, vector<16x32xf32>,
    %c2_i32 = arith.constant 2 : i32
    %29 = arith.cmpi eq, %arg2, %c2_i32 : i32
    %30 = arith.extui %29 : i1 to i32
    %c0_i32_23 = arith.constant 0 : i32
    %31 = arith.cmpi ne, %30, %c0_i32_23 : i32
    scf.if %31 {
      %c0_24 = arith.constant 0 : index
      %c0_25 = arith.constant 0 : index
      %32 = vector.load %arg12[%c0_24, %c0_25] : memref<16x32xf32, #tpu.memory_space<vmem>>, vector<16x32xf32>
      %c0_26 = arith.constant 0 : index
      %c0_27 = arith.constant 0 : index
      %33 = vector.load %arg7[%c0_26, %c0_27] : memref<1x32xf32, #tpu.memory_space<vmem>>, vector<1x32xf32>
      %34 = vector.broadcast %33 : vector<1x32xf32> to vector<16x32xf32>
      %35 = arith.mulf %32, %34 : vector<16x32xf32>
      %c0_28 = arith.constant 0 : index
      %c0_29 = arith.constant 0 : index
      %36 = vector.load %arg8[%c0_28, %c0_29] : memref<1x32xf32, #tpu.memory_space<vmem>>, vector<1x32xf32>
      %37 = vector.broadcast %36 : vector<1x32xf32> to vector<16x32xf32>
      %38 = arith.addf %35, %37 : vector<16x32xf32>
      %cst_30 = arith.constant 0.000000e+00 : f32
      %39 = vector.broadcast %cst_30 : f32 to vector<16x32xf32>
      %40 = arith.cmpf oge, %38, %39 : vector<16x32xf32>
      %cst_31 = arith.constant 0.00999999977 : f32
      %41 = vector.broadcast %cst_31 : f32 to vector<16x32xf32>
      %42 = arith.mulf %41, %38 : vector<16x32xf32>
      %43 = arith.select %40, %38, %42 : vector<16x32xi1>, vector<16x32xf32>
      %44 = arith.truncf %43 : vector<16x32xf32> to vector<16x32xbf16>
      %c0_32 = arith.constant 0 : index
      %c0_33 = arith.constant 0 : index
      %45 = vector.load %arg9[%c0_32, %c0_33] : memref<32x128xbf16, #tpu.memory_space<vmem>>, vector<32x128xbf16>
      %cst_34 = arith.constant dense<0.000000e+00> : vector<16x128xf32>
      %46 = tpu.matmul %44, %45, %cst_34 {dimension_numbers = #tpu.dot_dimension_numbers<[1], [0], [0], [1], [0, 0, 1, 1], [], []>} : vector<16x32xbf16>, vector<32x128xbf16>, vector<16x128xf32> -> vector<16x128xf32>
      %c0_35 = arith.constant 0 : index
      %c0_36 = arith.constant 0 : index
      %47 = vector.load %arg10[%c0_35, %c0_36] : memref<1x128xf32, #tpu.memory_space<vmem>>, vector<1x128xf32>
      %48 = vector.broadcast %47 : vector<1x128xf32> to vector<16x128xf32>
      %49 = arith.addf %46, %48 : vector<16x128xf32>
      %c0_37 = arith.constant 0 : index
      %c0_38 = arith.constant 0 : index
      %c0_39 = arith.constant 0 : index
      %c0_40 = arith.constant 0 : index
      %50 = vector.load %arg11[%c0_37, %c0_38, %c0_39, %c0_40] : memref<1x1x16x128xf32, #tpu.memory_space<vmem>>, vector<1x1x16x128xf32>
      %51 = vector.shape_cast %50 : vector<1x1x16x128xf32> to vector<16x128xf32>
      %52 = vector.shape_cast %49 : vector<16x128xf32> to vector<1x1x16x128xf32>
      tpu.vector_store %arg11[%c0_37, %c0_38, %c0_39, %c0_40], %52 {strides = array<i32>} : memref<1x1x16x128xf32, #tpu.memory_space<vmem>>, vector<1x1x16x128xf32>,
    } else {
    }
    return
  }
  func.func @transform_0(%arg0: i32, %arg1: i32, %arg2: i32) -> (i32, i32, i32, i32) {
    %0 = arith.addi %arg1, %arg2 : i32
    %c0_i32 = arith.constant 0 : i32
    %c0_i32_0 = arith.constant 0 : i32
    %c0_i32_1 = arith.constant 0 : i32
    return %arg0, %0, %c0_i32, %c0_i32_0 : i32, i32, i32, i32
  }
  func.func @transform_1(%arg0: i32, %arg1: i32, %arg2: i32) -> (i32, i32, i32, i32) {
    %0 = arith.addi %arg1, %arg2 : i32
    %c0_i32 = arith.constant 0 : i32
    %c0_i32_0 = arith.constant 0 : i32
    %c0_i32_1 = arith.constant 0 : i32
    return %arg0, %0, %c0_i32, %c0_i32_0 : i32, i32, i32, i32
  }
  func.func @transform_2(%arg0: i32, %arg1: i32, %arg2: i32) -> (i32, i32, i32) {
    %c0_i32 = arith.constant 0 : i32
    %c0_i32_0 = arith.constant 0 : i32
    %c0_i32_1 = arith.constant 0 : i32
    return %arg2, %c0_i32, %c0_i32_0 : i32, i32, i32
  }
  func.func @transform_3(%arg0: i32, %arg1: i32, %arg2: i32) -> (i32, i32, i32) {
    %c0_i32 = arith.constant 0 : i32
    %c0_i32_0 = arith.constant 0 : i32
    %c0_i32_1 = arith.constant 0 : i32
    return %arg2, %c0_i32, %c0_i32_0 : i32, i32, i32
  }
  func.func @transform_4(%arg0: i32, %arg1: i32, %arg2: i32) -> (i32, i32) {
    %c0_i32 = arith.constant 0 : i32
    %c0_i32_0 = arith.constant 0 : i32
    %c0_i32_1 = arith.constant 0 : i32
    return %c0_i32, %c0_i32_0 : i32, i32
  }
  func.func @transform_5(%arg0: i32, %arg1: i32, %arg2: i32) -> (i32, i32) {
    %c0_i32 = arith.constant 0 : i32
    %c0_i32_0 = arith.constant 0 : i32
    %c0_i32_1 = arith.constant 0 : i32
    return %c0_i32, %c0_i32_0 : i32, i32
  }
  func.func @transform_6(%arg0: i32, %arg1: i32, %arg2: i32) -> (i32, i32) {
    %c0_i32 = arith.constant 0 : i32
    %c0_i32_0 = arith.constant 0 : i32
    %c0_i32_1 = arith.constant 0 : i32
    return %c0_i32, %c0_i32_0 : i32, i32
  }
  func.func @transform_7(%arg0: i32, %arg1: i32, %arg2: i32) -> (i32, i32) {
    %c0_i32 = arith.constant 0 : i32
    %c0_i32_0 = arith.constant 0 : i32
    %c0_i32_1 = arith.constant 0 : i32
    return %c0_i32, %c0_i32_0 : i32, i32
  }
  func.func @transform_8(%arg0: i32, %arg1: i32, %arg2: i32) -> (i32, i32, i32, i32) {
    %c0_i32 = arith.constant 0 : i32
    %c0_i32_0 = arith.constant 0 : i32
    %c0_i32_1 = arith.constant 0 : i32
    return %arg0, %arg1, %c0_i32, %c0_i32_0 : i32, i32, i32, i32
  }
}

</mosaic_0001>

<llo_original>
// kernel: rcca_forward.5
$region0: #{rcca_forward.5}
  #allocation0 [shape = 'u32[]', space=smem, size = 0x4, offset = 0x4, fixed_abs, tag = 'smem constant byte address 0x4 - core index']
  #allocation1 [shape = 'u32[144,128]{1,0:T(1,128)}', space=vmem, size = 0x12000, scoped, tag = 'internal scratch']
  #allocation2 [shape = 'f32[16,16]{1,0:T(8,128)}', space=vmem, size = 0x2000, scoped, tag = 'scratch operand']
  %s0 = inlined_call_operand.vmem [shape: f32[2,18,18,64], index: 0, kind: input, shape index: {}]
  %s1 = inlined_call_operand.vmem [shape: bf16[3,192,16], index: 1, kind: input, shape index: {}]
  %s2 = inlined_call_operand.vmem [shape: f32[1,16], index: 2, kind: input, shape index: {}]
  %s3 = inlined_call_operand.vmem [shape: f32[1,16], index: 3, kind: input, shape index: {}]
  %s4 = inlined_call_operand.vmem [shape: f32[2,16,16,16], index: 4, kind: output, shape index: {}]
  %s5 = sld [smem:[#allocation0]]
  $region57: #{rcca_forward.5} parent=0
    _
  %s7 = ssub.s32 1, %s5
  %s8 = scalar_select 0, %s7, %s5
  loop: start=0, step=1, limit=98
  $region2: #{rcca_forward.5} parent=0 // loop_pre_header
    _
  $region3: #{rcca_forward.5} parent=0 // loop_header
    %s10 = sphi 0, %s14
    %p11 = scmp.ge.s32.totalorder %s10, 98
    %s17 = sphi 0, %s36
    %s18 = sphi 0, %s32
    %s19 = sphi 0, %s28
    %s20 = sphi 0, %s17
    %s21 = sphi 0, %s18
    %s22 = sphi 0, %s19
    %s23 = sphi 0, %s20
    %s24 = sphi 0, %s21
    %s25 = sphi 0, %s22
    %s43 = sphi 0, %s45
    %s46 = sphi 0, %s43
    %s47 = sphi 0, %s46
    %s63 = sphi 0, %s47
    %s69 = sphi 0, %s71
    %s72 = sphi 0, %s69
    %s73 = sphi 0, %s72
    %s89 = sphi 0, %s73
    %s93 = sphi 0, %s93
    %s95 = sphi 0, %s93
    %s96 = sphi 0, %s95
    %s110 = sphi 0, %s96
    %s114 = sphi 0, %s114
    %s116 = sphi 0, %s114
    %s117 = sphi 0, %s116
    %s131 = sphi 0, %s117
    %s139 = sphi 0, %s141
    %s142 = sphi 0, %s139
    %s143 = sphi 0, %s142
    %s159 = sphi 0, %s143
  $region4: #{rcca_forward.5} parent=0 // loop_header_branch
    %13 = sbr.rel (%p11) target = $region8
  $region5: #{rcca_forward.5} parent=0 // loop_body
    %s15 = ssub.s32 %s10, 1
    %s16 = ssub.s32 %s10, 2
    %s26 = sadd.s32 1, %s19
    %p27 = scmp.ge.s32.totalorder %s26, 3
    %s28 = scalar_select %p27, 0, %s26
    %s29 = sadd.s32 1, %s18
    %s30 = scalar_select %p27, %s29, %s18
    %p31 = scmp.ge.s32.totalorder %s30, 16
    %s32 = scalar_select %p31, 0, %s30
    %s33 = sadd.s32 1, %s17
    %s34 = scalar_select %p31, %s33, %s17
    %p35 = scmp.ge.s32.totalorder %s34, 2
    %s36 = scalar_select %p35, 0, %s34
    %s37 = sadd.s32 %s18, %s19
    %s38 = sadd.s32 %s32, %s28
    %s39 = ssub.s32 %s17, %s36
    %s40 = ssub.s32 %s37, %s38
    %s41 = sor.u32 %s39, %s40
    %p42 = scmp.eq.s32.totalorder %s41, 0
    %s44 = sadd.s32 %s43, 1
    %s45 = scalar_select %p42, %s43, %s44
    %p48 = pneg %p42
    %p49 = scmp.eq.s32.totalorder %s10, 95
    %p50 = por %p48, %p49
    %p51 = scmp.ne.s32.totalorder %s43, %s46
    %p52 = scmp.eq.s32.totalorder %s10, 0
    %p53 = por %p51, %p52
    %p54 = scmp.ne.s32.totalorder %s43, %s46
    %p55 = scmp.eq.s32.totalorder %s15, 95
    %p56 = por %p54, %p55
    %p57 = scmp.ne.s32.totalorder %s46, %s47
    %p58 = scmp.eq.s32.totalorder %s15, 0
    %p59 = por %p57, %p58
    %p60 = scmp.ne.s32.totalorder %s46, %s47
    %p61 = scmp.eq.s32.totalorder %s16, 95
    %p62 = por %p60, %p61
    %p64 = scmp.ne.s32.totalorder %s47, %s63
    %p65 = scmp.eq.s32.totalorder %s16, 0
    %p66 = por %p64, %p65
    %s67 = ssub.s32 %s19, %s28
    %p68 = scmp.eq.s32.totalorder %s67, 0
    %s70 = sadd.s32 %s69, 1
    %s71 = scalar_select %p68, %s69, %s70
    %p74 = pneg %p68
    %p75 = scmp.eq.s32.totalorder %s10, 95
    %p76 = por %p74, %p75
    %p77 = scmp.ne.s32.totalorder %s69, %s72
    %p78 = scmp.eq.s32.totalorder %s10, 0
    %p79 = por %p77, %p78
    %p80 = scmp.ne.s32.totalorder %s69, %s72
    %p81 = scmp.eq.s32.totalorder %s15, 95
    %p82 = por %p80, %p81
    %p83 = scmp.ne.s32.totalorder %s72, %s73
    %p84 = scmp.eq.s32.totalorder %s15, 0
    %p85 = por %p83, %p84
    %p86 = scmp.ne.s32.totalorder %s72, %s73
    %p87 = scmp.eq.s32.totalorder %s16, 95
    %p88 = por %p86, %p87
    %p90 = scmp.ne.s32.totalorder %s73, %s89
    %p91 = scmp.eq.s32.totalorder %s16, 0
    %p92 = por %p90, %p91
    %s94 = sadd.s32 %s93, 1
    %p97 = scmp.eq.s32.totalorder %s10, 95
    %p98 = scmp.ne.s32.totalorder %s93, %s95
    %p99 = scmp.eq.s32.totalorder %s10, 0
    %p100 = por %p98, %p99
    %p101 = scmp.ne.s32.totalorder %s93, %s95
    %p102 = scmp.eq.s32.totalorder %s15, 95
    %p103 = por %p101, %p102
    %p104 = scmp.ne.s32.totalorder %s95, %s96
    %p105 = scmp.eq.s32.totalorder %s15, 0
    %p106 = por %p104, %p105
    %p107 = scmp.ne.s32.totalorder %s95, %s96
    %p108 = scmp.eq.s32.totalorder %s16, 95
    %p109 = por %p107, %p108
    %p111 = scmp.ne.s32.totalorder %s96, %s110
    %p112 = scmp.eq.s32.totalorder %s16, 0
    %p113 = por %p111, %p112
    %s115 = sadd.s32 %s114, 1
    %p118 = scmp.eq.s32.totalorder %s10, 95
    %p119 = scmp.ne.s32.totalorder %s114, %s116
    %p120 = scmp.eq.s32.totalorder %s10, 0
    %p121 = por %p119, %p120
    %p122 = scmp.ne.s32.totalorder %s114, %s116
    %p123 = scmp.eq.s32.totalorder %s15, 95
    %p124 = por %p122, %p123
    %p125 = scmp.ne.s32.totalorder %s116, %s117
    %p126 = scmp.eq.s32.totalorder %s15, 0
    %p127 = por %p125, %p126
    %p128 = scmp.ne.s32.totalorder %s116, %s117
    %p129 = scmp.eq.s32.totalorder %s16, 95
    %p130 = por %p128, %p129
    %p132 = scmp.ne.s32.totalorder %s117, %s131
    %p133 = scmp.eq.s32.totalorder %s16, 0
    %p134 = por %p132, %p133
    %s135 = ssub.s32 %s17, %s36
    %s136 = ssub.s32 %s18, %s32
    %s137 = sor.u32 %s135, %s136
    %p138 = scmp.eq.s32.totalorder %s137, 0
    %s140 = sadd.s32 %s139, 1
    %s141 = scalar_select %p138, %s139, %s140
    %p144 = pneg %p138
    %p145 = scmp.eq.s32.totalorder %s10, 95
    %p146 = por %p144, %p145
    %p147 = scmp.ne.s32.totalorder %s139, %s142
    %p148 = scmp.eq.s32.totalorder %s10, 0
    %p149 = por %p147, %p148
    %p150 = scmp.ne.s32.totalorder %s139, %s142
    %p151 = scmp.eq.s32.totalorder %s15, 95
    %p152 = por %p150, %p151
    %p153 = scmp.ne.s32.totalorder %s142, %s143
    %p154 = scmp.eq.s32.totalorder %s15, 0
    %p155 = por %p153, %p154
    %p156 = scmp.ne.s32.totalorder %s142, %s143
    %p157 = scmp.eq.s32.totalorder %s16, 95
    %p158 = por %p156, %p157
    %p160 = scmp.ne.s32.totalorder %s143, %s159
    %p161 = scmp.eq.s32.totalorder %s16, 0
    %p162 = por %p160, %p161
    %p163 = scmp.le.s32.totalorder 1, %s10
    %p164 = scmp.lt.s32.totalorder %s10, 97
    %p165 = pnand %p163, %p164
    %p166 = pneg %p165
    // Predicated region
    $region9: #{rcca_forward.5} parent=5 // pred_check
      _
    $region10: #{rcca_forward.5} parent=5 // pred_check_branch
      %168 = sbr.rel (%p165) target = $region12
    $region11: #{rcca_forward.5} parent=5 // pred_region
      %s169 = ssub.s32 %s10, 1
      // Predicated region
      $region13: #{rcca_forward.5} parent=11 // pred_check
        %p170 = pneg %p106
      $region14: #{rcca_forward.5} parent=11 // pred_check_branch
        %172 = sbr.rel (%p170) target = $region16
      $region15: #{rcca_forward.5} parent=11 // pred_region
        _
      $region16: #{rcca_forward.5} parent=11 // pred_fallthru
        _
      // Predicated region
      $region17: #{rcca_forward.5} parent=11 // pred_check
        %p173 = pneg %p127
      $region18: #{rcca_forward.5} parent=11 // pred_check_branch
        %175 = sbr.rel (%p173) target = $region20
      $region19: #{rcca_forward.5} parent=11 // pred_region
        _
      $region20: #{rcca_forward.5} parent=11 // pred_fallthru
        _
    $region12: #{rcca_forward.5} parent=5 // pred_fallthru
      _
    %p176 = scmp.lt.s32.totalorder %s10, 96
    // Predicated region
    $region21: #{rcca_forward.5} parent=5 // pred_check
      %p177 = pneg %p176
    $region22: #{rcca_forward.5} parent=5 // pred_check_branch
      %179 = sbr.rel (%p177) target = $region24
    $region23: #{rcca_forward.5} parent=5 // pred_region
      // Predicated region
      $region25: #{rcca_forward.5} parent=23 // pred_check
        %p180 = pneg %p53
      $region26: #{rcca_forward.5} parent=23 // pred_check_branch
        %182 = sbr.rel (%p180) target = $region28
      $region27: #{rcca_forward.5} parent=23 // pred_region
        %s183 = sadd.s32 %s18, %s19
        %p184 = scmp.lt.s32.totalorder %s17, 1
        %s185 = scalar_select %p184, %s17, 1
        %p186 = scmp.lt.s32.totalorder %s183, 17
        %s187 = scalar_select %p186, %s183, 17
        %s188 = smul.addr %s187, 3
        %s189 = smul.addr %s185, 54
        %s190 = sadd.s32 %s188, %s189
        %s191 = smul.addr %s190, 8
        %s192 = scalar_lea.vmem %s0, %s191
        %s193 = sadd.s32 %s18, %s19
      $region28: #{rcca_forward.5} parent=23 // pred_fallthru
        _
      // Predicated region
      $region29: #{rcca_forward.5} parent=23 // pred_check
        %p194 = pneg %p79
      $region30: #{rcca_forward.5} parent=23 // pred_check_branch
        %196 = sbr.rel (%p194) target = $region32
      $region31: #{rcca_forward.5} parent=23 // pred_region
        %p197 = scmp.lt.s32.totalorder %s19, 2
        %s198 = scalar_select %p197, %s19, 2
        %s199 = smul.addr %s198, 24
        %s200 = smul.addr %s199, 4
        %s201 = scalar_lea.vmem %s1, %s200
      $region32: #{rcca_forward.5} parent=23 // pred_fallthru
        _
    $region24: #{rcca_forward.5} parent=5 // pred_fallthru
      _
    %p202 = scmp.le.s32.totalorder 1, %s10
    %p203 = scmp.lt.s32.totalorder %s10, 97
    %p204 = pnand %p202, %p203
    %p205 = pneg %p204
    // Predicated region
    $region33: #{rcca_forward.5} parent=5 // pred_check
      _
    $region34: #{rcca_forward.5} parent=5 // pred_check_branch
      %207 = sbr.rel (%p204) target = $region36
    $region35: #{rcca_forward.5} parent=5 // pred_region
      %s208 = ssub.s32 %s10, 1
      %s209 = sadd.s32 %s21, %s22
      %p210 = scmp.lt.s32.totalorder %s20, 1
      %s211 = scalar_select %p210, %s20, 1
      %p212 = scmp.lt.s32.totalorder %s209, 17
      %s213 = scalar_select %p212, %s209, 17
      %s214 = smul.addr %s213, 3
      %s215 = smul.addr %s211, 54
      %s216 = sadd.s32 %s214, %s215
      %s217 = smul.addr %s216, 8
      %s218 = scalar_lea.vmem %s0, %s217
      %p219 = pneg %p59
      %p220 = pneg %p56
      %p221 = scmp.lt.s32.totalorder %s22, 2
      %s222 = scalar_select %p221, %s22, 2
      %s223 = smul.addr %s222, 24
      %s224 = smul.addr %s223, 4
      %s225 = scalar_lea.vmem %s1, %s224
      %p226 = pneg %p85
      %p227 = pneg %p82
      %p228 = pneg %p106
      %p229 = pneg %p103
      %p230 = pneg %p127
      %p231 = pneg %p124
      %p232 = pneg %p155
      %p233 = pneg %p152
      %p234 = scmp.lt.s32.totalorder %s20, 1
      %s235 = scalar_select %p234, %s20, 1
      %p236 = scmp.lt.s32.totalorder %s21, 15
      %s237 = scalar_select %p236, %s21, 15
      %s238 = smul.addr %s237, 2
      %s239 = smul.addr %s235, 32
      %s240 = sadd.s32 %s238, %s239
      %s241 = smul.addr %s240, 8
      %s242 = scalar_lea.vmem %s4, %s241
      %s243 = sadd.s32 %s21, %s22
      %p244 = scmp.lt.s32.totalorder %s20, 1
      %s245 = scalar_select %p244, %s20, 1
      %p246 = scmp.lt.s32.totalorder %s243, 17
      %s247 = scalar_select %p246, %s243, 17
      %s248 = smul.addr %s247, 3
      %s249 = smul.addr %s245, 54
      %s250 = sadd.s32 %s248, %s249
      %s251 = smul.addr %s250, 8
      %s252 = scalar_lea.vmem %s0, %s251
      %s253 = sadd.s32 %s21, %s22
      %p254 = scmp.lt.s32.totalorder %s22, 2
      %s255 = scalar_select %p254, %s22, 2
      %s256 = smul.addr %s255, 24
      %s257 = smul.addr %s256, 4
      %s258 = scalar_lea.vmem %s1, %s257
      %p259 = scmp.lt.s32.totalorder %s20, 1
      %s260 = scalar_select %p259, %s20, 1
      %p261 = scmp.lt.s32.totalorder %s21, 15
      %s262 = scalar_select %p261, %s21, 15
      %s263 = smul.addr %s262, 2
      %s264 = smul.addr %s260, 32
      %s265 = sadd.s32 %s263, %s264
      %s266 = smul.addr %s265, 8
      %s267 = scalar_lea.vmem %s4, %s266
      %p269 = scmp.eq.s32.totalorder %s22, 0
      // Predicated region
      $region37: #{rcca_forward.5} parent=35 // pred_check
        %p270 = pneg %p269
      $region38: #{rcca_forward.5} parent=35 // pred_check_branch
        %272 = sbr.rel (%p270) target = $region40
      $region39: #{rcca_forward.5} parent=35 // pred_region
        %vm273 = vcmask 130048
        %274 = vst.msk [vmem:[#allocation2] sm:$0xff] %vm273, 0.0
        %275 = vst.msk [vmem:[#allocation2 + $0x8] sm:$0xff] %vm273, 0.0
      $region40: #{rcca_forward.5} parent=35 // pred_fallthru
        _
      %v276 = vld [vmem:[%s252] sm:$0xff]
      %v277 = vld [vmem:[%s252 + $0x8] sm:$0xff]
      %v278 = vld [vmem:[%s252 + $0x10] sm:$0x3]
      %vm282 = vcmask 1046528
      %v283 = vrot.slane %v276, 1
      %v284 = vrot.slane %v277, 1
      %v285 = vsel %vm282, %v283, %v284
      %v286 = vrot.slane %v278, 1
      %v287 = vsel %vm282, %v284, %v286
      %288 = vrot.lane.b32.xlu0 %v285, 64
      %v289 = vpop.permute.xlu0 %288
      %290 = vrot.lane.b32.xlu0 %v287, 64
      %v291 = vpop.permute.xlu0 %290
      %vm294 = vcmask 1045504
      %v295 = vrot.slane %v276, 2
      %v296 = vrot.slane %v277, 2
      %v297 = vsel %vm294, %v295, %v296
      %v298 = vrot.slane %v278, 2
      %v299 = vsel %vm294, %v296, %v298
      %vm302 = vcmask 523264
      %v303 = vsel %vm302, %v276, %v289
      %v304 = vsel %vm302, %v277, %v291
      %v305 = vld [vmem:[#allocation2] sm:$0xff]
      %v306 = vld [vmem:[#allocation2 + $0x8] sm:$0xff]
      %v307 = vpack.c.bf16 %v304, %v303
      %v308 = vpack.c.bf16 %v299, %v297
      %v309 = vld [vmem:[%s258] sm:$0xf]
      %v310 = vld [vmem:[%s258 + $0x4] sm:$0xf]
      %v311 = vld [vmem:[%s258 + $0x8] sm:$0xf]
      %v312 = vld [vmem:[%s258 + $0xc] sm:$0xf]
      %v313 = vld [vmem:[%s258 + $0x10] sm:$0xf]
      %v314 = vld [vmem:[%s258 + $0x14] sm:$0xf]
      %v315 = vld [vmem:[%s258 + $0x18] sm:$0xf]
      %v316 = vld [vmem:[%s258 + $0x1c] sm:$0xf]
      %v317 = vld [vmem:[%s258 + $0x20] sm:$0xf]
      %v318 = vld [vmem:[%s258 + $0x24] sm:$0xf]
      %v319 = vld [vmem:[%s258 + $0x28] sm:$0xf]
      %v320 = vld [vmem:[%s258 + $0x2c] sm:$0xf]
      %v321 = vld [vmem:[%s258 + $0x30] sm:$0xf]
      %v322 = vld [vmem:[%s258 + $0x34] sm:$0xf]
      %v323 = vld [vmem:[%s258 + $0x38] sm:$0xf]
      %v324 = vld [vmem:[%s258 + $0x3c] sm:$0xf]
      %v325 = vld [vmem:[%s258 + $0x40] sm:$0xf]
      %v326 = vld [vmem:[%s258 + $0x44] sm:$0xf]
      %v327 = vld [vmem:[%s258 + $0x48] sm:$0xf]
      %v328 = vld [vmem:[%s258 + $0x4c] sm:$0xf]
      %v329 = vld [vmem:[%s258 + $0x50] sm:$0xf]
      %v330 = vld [vmem:[%s258 + $0x54] sm:$0xf]
      %v331 = vld [vmem:[%s258 + $0x58] sm:$0xf]
      %v332 = vld [vmem:[%s258 + $0x5c] sm:$0xf]
      %v357 = vunpack.c.l.b16 %v309
      %v358 = vunpack.c.l.b16 %v310
      %v359 = vunpack.c.l.b16 %v311
      %v360 = vunpack.c.l.b16 %v312
      %v361 = vunpack.c.l.b16 %v313
      %v362 = vunpack.c.l.b16 %v314
      %v363 = vunpack.c.l.b16 %v315
      %v364 = vunpack.c.l.b16 %v316
      %v365 = vunpack.c.l.b16 %v317
      %v366 = vunpack.c.l.b16 %v318
      %v367 = vunpack.c.l.b16 %v319
      %v368 = vunpack.c.l.b16 %v320
      %v369 = vunpack.c.l.b16 %v321
      %v370 = vunpack.c.l.b16 %v322
      %v371 = vunpack.c.l.b16 %v323
      %v372 = vunpack.c.l.b16 %v324
      %v373 = vunpack.c.l.b16 %v325
      %v374 = vunpack.c.l.b16 %v326
      %v375 = vunpack.c.l.b16 %v327
      %v376 = vunpack.c.l.b16 %v328
      %v377 = vunpack.c.l.b16 %v329
      %v378 = vunpack.c.l.b16 %v330
      %v379 = vunpack.c.l.b16 %v331
      %v380 = vunpack.c.l.b16 %v332
      %v381 = vpack.c.b16 %v358, %v357
      %v382 = vpack.c.b16 %v360, %v359
      %v383 = vpack.c.b16 %v362, %v361
      %v384 = vpack.c.b16 %v364, %v363
      %v385 = vpack.c.b16 %v366, %v365
      %v386 = vpack.c.b16 %v368, %v367
      %v387 = vpack.c.b16 %v370, %v369
      %v388 = vpack.c.b16 %v372, %v371
      %v389 = vpack.c.b16 %v374, %v373
      %v390 = vpack.c.b16 %v376, %v375
      %v391 = vpack.c.b16 %v378, %v377
      %v392 = vpack.c.b16 %v380, %v379
      %v406 = vsel %vm302, %v308, 0
      %408 = vmatprep.subr.bf16.mxu0 0
      %409 = vmatpush1.bf16.msra.mxu0 %v388
      %410 = vmatprep.subr.bf16.mxu0 0
      %411 = vmatpush1.bf16.msra.mxu0 %v387
      %412 = vmatprep.subr.bf16.mxu0 0
      %413 = vmatpush1.bf16.msra.mxu0 %v386
      %414 = vmatprep.subr.bf16.mxu0 0
      %415 = vmatpush1.bf16.msra.mxu0 %v385
      %416 = vmatprep.subr.bf16.mxu0 0
      %417 = vmatpush1.bf16.msra.mxu0 %v384
      %418 = vmatprep.subr.bf16.mxu0 0
      %419 = vmatpush1.bf16.msra.mxu0 %v383
      %420 = vmatprep.subr.bf16.mxu0 0
      %421 = vmatpush1.bf16.msra.mxu0 %v382
      %422 = vmatprep.subr.bf16.mxu0 0
      %423 = vmatpush1.bf16.msra.mxu0 %v381
      %424 = vmatprep.subr.bf16.mxu0 0
      %425 = vmatpush2.bf16.msra.mxu0 0
      %426 = vmatprep.subr.bf16.mxu0 0
      %427 = vmatpush2.bf16.msra.mxu0 0
      %428 = vmatprep.subr.bf16.mxu0 0
      %429 = vmatpush2.bf16.msra.mxu0 0
      %430 = vmatprep.subr.bf16.mxu0 0
      %431 = vmatpush2.bf16.msra.mxu0 0
      %432 = vmatprep.subr.bf16.mxu0 0
      %433 = vmatpush2.bf16.msra.mxu0 %v392
      %434 = vmatprep.subr.bf16.mxu0 0
      %435 = vmatpush2.bf16.msra.mxu0 %v391
      %436 = vmatprep.subr.bf16.mxu0 0
      %437 = vmatpush2.bf16.msra.mxu0 %v390
      %438 = vmatprep.subr.bf16.mxu0 0
      %439 = vmatpush2.bf16.msra.mxu0 %v389
      %440 = vmatprep.mubr.bf16.mxu0 %v406
      %441 = vmatmul.mubr.bf16.gmra.mxu0 %v307
      %v442 = vpop.f32.mrf.mxu0
      %v443 = vadd.f32 0.0, %v442
      %v444 = vpop.f32.mrf.mxu0
      %v445 = vpop.f32.mrf.mxu0
      %v446 = vadd.f32 0.0, %v445
      %v447 = vpop.f32.mrf.mxu0
      %448 = vdwg.mxu0
      %v449 = vadd.f32 %v305, %v443
      %v450 = vadd.f32 %v306, %v446
      %vm451 = vcmask 130048
      %452 = vst.msk [vmem:[#allocation2] sm:$0xff] %vm451, %v449
      %453 = vst.msk [vmem:[#allocation2 + $0x8] sm:$0xff] %vm451, %v450
      %p454 = scmp.eq.s32.totalorder %s22, 2
      // Predicated region
      $region41: #{rcca_forward.5} parent=35 // pred_check
        %p455 = pneg %p454
      $region42: #{rcca_forward.5} parent=35 // pred_check_branch
        %457 = sbr.rel (%p455) target = $region44
      $region43: #{rcca_forward.5} parent=35 // pred_region
        %v458 = vld [vmem:[#allocation2] sm:$0xff]
        %v459 = vld [vmem:[#allocation2 + $0x8] sm:$0xff]
        %v460 = vld [vmem:[%s2] sm:$0x1]
        %v462 = vlaneseq
        %v463 = vshrl.u32 %v462, 7
        %v464 = vsub.s32 0, %v463
        %v465 = vrot.slane %v460, %v464
        %v467 = vmul.f32 %v458, %v465
        %v468 = vmul.f32 %v459, %v465
        %v469 = vld [vmem:[%s3] sm:$0x1]
        %v471 = vlaneseq
        %v472 = vshrl.u32 %v471, 7
        %v473 = vsub.s32 0, %v472
        %v474 = vrot.slane %v469, %v473
        %v476 = vadd.f32 %v467, %v474
        %v477 = vadd.f32 %v468, %v474
        %vm478 = vcmp.ge.f32.partialorder %v476, 0.0
        %vm479 = vcmp.ge.f32.partialorder %v477, 0.0
        %v480 = vmul.f32 %v476, 0.01
        %v481 = vmul.f32 %v477, 0.01
        %v482 = vsel %vm478, %v476, %v480
        %v483 = vsel %vm479, %v477, %v481
        %484 = vst.msk [vmem:[%s267] sm:$0xff] %vm451, %v482
        %485 = vst.msk [vmem:[%s267 + $0x8] sm:$0xff] %vm451, %v483
      $region44: #{rcca_forward.5} parent=35 // pred_fallthru
        _
      %p486 = scmp.lt.s32.totalorder %s20, 1
      %s487 = scalar_select %p486, %s20, 1
      %p488 = scmp.lt.s32.totalorder %s21, 15
      %s489 = scalar_select %p488, %s21, 15
      %s490 = smul.addr %s489, 2
      %s491 = smul.addr %s487, 32
      %s492 = sadd.s32 %s490, %s491
      %s493 = smul.addr %s492, 8
      %s494 = scalar_lea.vmem %s4, %s493
      // Predicated region
      $region45: #{rcca_forward.5} parent=35 // pred_check
        %p495 = pneg %p152
      $region46: #{rcca_forward.5} parent=35 // pred_check_branch
        %497 = sbr.rel (%p495) target = $region48
      $region47: #{rcca_forward.5} parent=35 // pred_region
        _
      $region48: #{rcca_forward.5} parent=35 // pred_fallthru
        _
    $region36: #{rcca_forward.5} parent=5 // pred_fallthru
      _
    %p498 = scmp.le.s32.totalorder 2, %s10
    // Predicated region
    $region49: #{rcca_forward.5} parent=5 // pred_check
      %p499 = pneg %p498
    $region50: #{rcca_forward.5} parent=5 // pred_check_branch
      %501 = sbr.rel (%p499) target = $region52
    $region51: #{rcca_forward.5} parent=5 // pred_region
      %s502 = ssub.s32 %s10, 2
      // Predicated region
      $region53: #{rcca_forward.5} parent=51 // pred_check
        %p503 = pneg %p158
      $region54: #{rcca_forward.5} parent=51 // pred_check_branch
        %505 = sbr.rel (%p503) target = $region56
      $region55: #{rcca_forward.5} parent=51 // pred_region
        %p506 = scmp.lt.s32.totalorder %s23, 1
        %s507 = scalar_select %p506, %s23, 1
        %p508 = scmp.lt.s32.totalorder %s24, 15
        %s509 = scalar_select %p508, %s24, 15
        %s510 = smul.addr %s509, 2
        %s511 = smul.addr %s507, 32
        %s512 = sadd.s32 %s510, %s511
        %s513 = smul.addr %s512, 8
        %s514 = scalar_lea.vmem %s4, %s513
      $region56: #{rcca_forward.5} parent=51 // pred_fallthru
        _
    $region52: #{rcca_forward.5} parent=5 // pred_fallthru
      _
  $region6: #{rcca_forward.5} parent=0 // loop_footer
    %s14 = sadd.s32 1, %s10
  $region7: #{rcca_forward.5} parent=0 // loop_footer_branch
    %9 = sbr.rel target = $region3
  $region8: #{rcca_forward.5} parent=0 // loop_exit
    _

// kernel: rcca_forward.8
$region0: #{rcca_forward.8}
  #allocation0 [shape = 'u32[]', space=smem, size = 0x4, offset = 0x4, fixed_abs, tag = 'smem constant byte address 0x4 - core index']
  #allocation1 [shape = 'u32[144,128]{1,0:T(1,128)}', space=vmem, size = 0x12000, scoped, tag = 'internal scratch']
  #allocation2 [shape = 'f32[16,16]{1,0:T(8,128)}', space=vmem, size = 0x2000, scoped, tag = 'scratch operand']
  %s0 = inlined_call_operand.vmem [shape: f32[2,18,18,16], index: 0, kind: input, shape index: {}]
  %s1 = inlined_call_operand.vmem [shape: bf16[3,48,16], index: 1, kind: input, shape index: {}]
  %s2 = inlined_call_operand.vmem [shape: f32[1,16], index: 2, kind: input, shape index: {}]
  %s3 = inlined_call_operand.vmem [shape: f32[1,16], index: 3, kind: input, shape index: {}]
  %s4 = inlined_call_operand.vmem [shape: f32[2,16,16,16], index: 4, kind: output, shape index: {}]
  %s5 = sld [smem:[#allocation0]]
  $region57: #{rcca_forward.8} parent=0
    _
  %s7 = ssub.s32 1, %s5
  %s8 = scalar_select 0, %s7, %s5
  loop: start=0, step=1, limit=98
  $region2: #{rcca_forward.8} parent=0 // loop_pre_header
    _
  $region3: #{rcca_forward.8} parent=0 // loop_header
    %s10 = sphi 0, %s14
    %p11 = scmp.ge.s32.totalorder %s10, 98
    %s17 = sphi 0, %s36
    %s18 = sphi 0, %s32
    %s19 = sphi 0, %s28
    %s20 = sphi 0, %s17
    %s21 = sphi 0, %s18
    %s22 = sphi 0, %s19
    %s23 = sphi 0, %s20
    %s24 = sphi 0, %s21
    %s25 = sphi 0, %s22
    %s43 = sphi 0, %s45
    %s46 = sphi 0, %s43
    %s47 = sphi 0, %s46
    %s63 = sphi 0, %s47
    %s69 = sphi 0, %s71
    %s72 = sphi 0, %s69
    %s73 = sphi 0, %s72
    %s89 = sphi 0, %s73
    %s93 = sphi 0, %s93
    %s95 = sphi 0, %s93
    %s96 = sphi 0, %s95
    %s110 = sphi 0, %s96
    %s114 = sphi 0, %s114
    %s116 = sphi 0, %s114
    %s117 = sphi 0, %s116
    %s131 = sphi 0, %s117
    %s139 = sphi 0, %s141
    %s142 = sphi 0, %s139
    %s143 = sphi 0, %s142
    %s159 = sphi 0, %s143
  $region4: #{rcca_forward.8} parent=0 // loop_header_branch
    %13 = sbr.rel (%p11) target = $region8
  $region5: #{rcca_forward.8} parent=0 // loop_body
    %s15 = ssub.s32 %s10, 1
    %s16 = ssub.s32 %s10, 2
    %s26 = sadd.s32 1, %s19
    %p27 = scmp.ge.s32.totalorder %s26, 3
    %s28 = scalar_select %p27, 0, %s26
    %s29 = sadd.s32 1, %s18
    %s30 = scalar_select %p27, %s29, %s18
    %p31 = scmp.ge.s32.totalorder %s30, 16
    %s32 = scalar_select %p31, 0, %s30
    %s33 = sadd.s32 1, %s17
    %s34 = scalar_select %p31, %s33, %s17
    %p35 = scmp.ge.s32.totalorder %s34, 2
    %s36 = scalar_select %p35, 0, %s34
    %s37 = sadd.s32 %s18, %s19
    %s38 = sadd.s32 %s32, %s28
    %s39 = ssub.s32 %s17, %s36
    %s40 = ssub.s32 %s37, %s38
    %s41 = sor.u32 %s39, %s40
    %p42 = scmp.eq.s32.totalorder %s41, 0
    %s44 = sadd.s32 %s43, 1
    %s45 = scalar_select %p42, %s43, %s44
    %p48 = pneg %p42
    %p49 = scmp.eq.s32.totalorder %s10, 95
    %p50 = por %p48, %p49
    %p51 = scmp.ne.s32.totalorder %s43, %s46
    %p52 = scmp.eq.s32.totalorder %s10, 0
    %p53 = por %p51, %p52
    %p54 = scmp.ne.s32.totalorder %s43, %s46
    %p55 = scmp.eq.s32.totalorder %s15, 95
    %p56 = por %p54, %p55
    %p57 = scmp.ne.s32.totalorder %s46, %s47
    %p58 = scmp.eq.s32.totalorder %s15, 0
    %p59 = por %p57, %p58
    %p60 = scmp.ne.s32.totalorder %s46, %s47
    %p61 = scmp.eq.s32.totalorder %s16, 95
    %p62 = por %p60, %p61
    %p64 = scmp.ne.s32.totalorder %s47, %s63
    %p65 = scmp.eq.s32.totalorder %s16, 0
    %p66 = por %p64, %p65
    %s67 = ssub.s32 %s19, %s28
    %p68 = scmp.eq.s32.totalorder %s67, 0
    %s70 = sadd.s32 %s69, 1
    %s71 = scalar_select %p68, %s69, %s70
    %p74 = pneg %p68
    %p75 = scmp.eq.s32.totalorder %s10, 95
    %p76 = por %p74, %p75
    %p77 = scmp.ne.s32.totalorder %s69, %s72
    %p78 = scmp.eq.s32.totalorder %s10, 0
    %p79 = por %p77, %p78
    %p80 = scmp.ne.s32.totalorder %s69, %s72
    %p81 = scmp.eq.s32.totalorder %s15, 95
    %p82 = por %p80, %p81
    %p83 = scmp.ne.s32.totalorder %s72, %s73
    %p84 = scmp.eq.s32.totalorder %s15, 0
    %p85 = por %p83, %p84
    %p86 = scmp.ne.s32.totalorder %s72, %s73
    %p87 = scmp.eq.s32.totalorder %s16, 95
    %p88 = por %p86, %p87
    %p90 = scmp.ne.s32.totalorder %s73, %s89
    %p91 = scmp.eq.s32.totalorder %s16, 0
    %p92 = por %p90, %p91
    %s94 = sadd.s32 %s93, 1
    %p97 = scmp.eq.s32.totalorder %s10, 95
    %p98 = scmp.ne.s32.totalorder %s93, %s95
    %p99 = scmp.eq.s32.totalorder %s10, 0
    %p100 = por %p98, %p99
    %p101 = scmp.ne.s32.totalorder %s93, %s95
    %p102 = scmp.eq.s32.totalorder %s15, 95
    %p103 = por %p101, %p102
    %p104 = scmp.ne.s32.totalorder %s95, %s96
    %p105 = scmp.eq.s32.totalorder %s15, 0
    %p106 = por %p104, %p105
    %p107 = scmp.ne.s32.totalorder %s95, %s96
    %p108 = scmp.eq.s32.totalorder %s16, 95
    %p109 = por %p107, %p108
    %p111 = scmp.ne.s32.totalorder %s96, %s110
    %p112 = scmp.eq.s32.totalorder %s16, 0
    %p113 = por %p111, %p112
    %s115 = sadd.s32 %s114, 1
    %p118 = scmp.eq.s32.totalorder %s10, 95
    %p119 = scmp.ne.s32.totalorder %s114, %s116
    %p120 = scmp.eq.s32.totalorder %s10, 0
    %p121 = por %p119, %p120
    %p122 = scmp.ne.s32.totalorder %s114, %s116
    %p123 = scmp.eq.s32.totalorder %s15, 95
    %p124 = por %p122, %p123
    %p125 = scmp.ne.s32.totalorder %s116, %s117
    %p126 = scmp.eq.s32.totalorder %s15, 0
    %p127 = por %p125, %p126
    %p128 = scmp.ne.s32.totalorder %s116, %s117
    %p129 = scmp.eq.s32.totalorder %s16, 95
    %p130 = por %p128, %p129
    %p132 = scmp.ne.s32.totalorder %s117, %s131
    %p133 = scmp.eq.s32.totalorder %s16, 0
    %p134 = por %p132, %p133
    %s135 = ssub.s32 %s17, %s36
    %s136 = ssub.s32 %s18, %s32
    %s137 = sor.u32 %s135, %s136
    %p138 = scmp.eq.s32.totalorder %s137, 0
    %s140 = sadd.s32 %s139, 1
    %s141 = scalar_select %p138, %s139, %s140
    %p144 = pneg %p138
    %p145 = scmp.eq.s32.totalorder %s10, 95
    %p146 = por %p144, %p145
    %p147 = scmp.ne.s32.totalorder %s139, %s142
    %p148 = scmp.eq.s32.totalorder %s10, 0
    %p149 = por %p147, %p148
    %p150 = scmp.ne.s32.totalorder %s139, %s142
    %p151 = scmp.eq.s32.totalorder %s15, 95
    %p152 = por %p150, %p151
    %p153 = scmp.ne.s32.totalorder %s142, %s143
    %p154 = scmp.eq.s32.totalorder %s15, 0
    %p155 = por %p153, %p154
    %p156 = scmp.ne.s32.totalorder %s142, %s143
    %p157 = scmp.eq.s32.totalorder %s16, 95
    %p158 = por %p156, %p157
    %p160 = scmp.ne.s32.totalorder %s143, %s159
    %p161 = scmp.eq.s32.totalorder %s16, 0
    %p162 = por %p160, %p161
    %p163 = scmp.le.s32.totalorder 1, %s10
    %p164 = scmp.lt.s32.totalorder %s10, 97
    %p165 = pnand %p163, %p164
    %p166 = pneg %p165
    // Predicated region
    $region9: #{rcca_forward.8} parent=5 // pred_check
      _
    $region10: #{rcca_forward.8} parent=5 // pred_check_branch
      %168 = sbr.rel (%p165) target = $region12
    $region11: #{rcca_forward.8} parent=5 // pred_region
      %s169 = ssub.s32 %s10, 1
      // Predicated region
      $region13: #{rcca_forward.8} parent=11 // pred_check
        %p170 = pneg %p106
      $region14: #{rcca_forward.8} parent=11 // pred_check_branch
        %172 = sbr.rel (%p170) target = $region16
      $region15: #{rcca_forward.8} parent=11 // pred_region
        _
      $region16: #{rcca_forward.8} parent=11 // pred_fallthru
        _
      // Predicated region
      $region17: #{rcca_forward.8} parent=11 // pred_check
        %p173 = pneg %p127
      $region18: #{rcca_forward.8} parent=11 // pred_check_branch
        %175 = sbr.rel (%p173) target = $region20
      $region19: #{rcca_forward.8} parent=11 // pred_region
        _
      $region20: #{rcca_forward.8} parent=11 // pred_fallthru
        _
    $region12: #{rcca_forward.8} parent=5 // pred_fallthru
      _
    %p176 = scmp.lt.s32.totalorder %s10, 96
    // Predicated region
    $region21: #{rcca_forward.8} parent=5 // pred_check
      %p177 = pneg %p176
    $region22: #{rcca_forward.8} parent=5 // pred_check_branch
      %179 = sbr.rel (%p177) target = $region24
    $region23: #{rcca_forward.8} parent=5 // pred_region
      // Predicated region
      $region25: #{rcca_forward.8} parent=23 // pred_check
        %p180 = pneg %p53
      $region26: #{rcca_forward.8} parent=23 // pred_check_branch
        %182 = sbr.rel (%p180) target = $region28
      $region27: #{rcca_forward.8} parent=23 // pred_region
        %s183 = sadd.s32 %s18, %s19
        %p184 = scmp.lt.s32.totalorder %s17, 1
        %s185 = scalar_select %p184, %s17, 1
        %p186 = scmp.lt.s32.totalorder %s183, 17
        %s187 = scalar_select %p186, %s183, 17
        %s188 = smul.addr %s187, 3
        %s189 = smul.addr %s185, 54
        %s190 = sadd.s32 %s188, %s189
        %s191 = smul.addr %s190, 8
        %s192 = scalar_lea.vmem %s0, %s191
        %s193 = sadd.s32 %s18, %s19
      $region28: #{rcca_forward.8} parent=23 // pred_fallthru
        _
      // Predicated region
      $region29: #{rcca_forward.8} parent=23 // pred_check
        %p194 = pneg %p79
      $region30: #{rcca_forward.8} parent=23 // pred_check_branch
        %196 = sbr.rel (%p194) target = $region32
      $region31: #{rcca_forward.8} parent=23 // pred_region
        %p197 = scmp.lt.s32.totalorder %s19, 2
        %s198 = scalar_select %p197, %s19, 2
        %s199 = smul.addr %s198, 6
        %s200 = smul.addr %s199, 4
        %s201 = scalar_lea.vmem %s1, %s200
      $region32: #{rcca_forward.8} parent=23 // pred_fallthru
        _
    $region24: #{rcca_forward.8} parent=5 // pred_fallthru
      _
    %p202 = scmp.le.s32.totalorder 1, %s10
    %p203 = scmp.lt.s32.totalorder %s10, 97
    %p204 = pnand %p202, %p203
    %p205 = pneg %p204
    // Predicated region
    $region33: #{rcca_forward.8} parent=5 // pred_check
      _
    $region34: #{rcca_forward.8} parent=5 // pred_check_branch
      %207 = sbr.rel (%p204) target = $region36
    $region35: #{rcca_forward.8} parent=5 // pred_region
      %s208 = ssub.s32 %s10, 1
      %s209 = sadd.s32 %s21, %s22
      %p210 = scmp.lt.s32.totalorder %s20, 1
      %s211 = scalar_select %p210, %s20, 1
      %p212 = scmp.lt.s32.totalorder %s209, 17
      %s213 = scalar_select %p212, %s209, 17
      %s214 = smul.addr %s213, 3
      %s215 = smul.addr %s211, 54
      %s216 = sadd.s32 %s214, %s215
      %s217 = smul.addr %s216, 8
      %s218 = scalar_lea.vmem %s0, %s217
      %p219 = pneg %p59
      %p220 = pneg %p56
      %p221 = scmp.lt.s32.totalorder %s22, 2
      %s222 = scalar_select %p221, %s22, 2
      %s223 = smul.addr %s222, 6
      %s224 = smul.addr %s223, 4
      %s225 = scalar_lea.vmem %s1, %s224
      %p226 = pneg %p85
      %p227 = pneg %p82
      %p228 = pneg %p106
      %p229 = pneg %p103
      %p230 = pneg %p127
      %p231 = pneg %p124
      %p232 = pneg %p155
      %p233 = pneg %p152
      %p234 = scmp.lt.s32.totalorder %s20, 1
      %s235 = scalar_select %p234, %s20, 1
      %p236 = scmp.lt.s32.totalorder %s21, 15
      %s237 = scalar_select %p236, %s21, 15
      %s238 = smul.addr %s237, 2
      %s239 = smul.addr %s235, 32
      %s240 = sadd.s32 %s238, %s239
      %s241 = smul.addr %s240, 8
      %s242 = scalar_lea.vmem %s4, %s241
      %s243 = sadd.s32 %s21, %s22
      %p244 = scmp.lt.s32.totalorder %s20, 1
      %s245 = scalar_select %p244, %s20, 1
      %p246 = scmp.lt.s32.totalorder %s243, 17
      %s247 = scalar_select %p246, %s243, 17
      %s248 = smul.addr %s247, 3
      %s249 = smul.addr %s245, 54
      %s250 = sadd.s32 %s248, %s249
      %s251 = smul.addr %s250, 8
      %s252 = scalar_lea.vmem %s0, %s251
      %s253 = sadd.s32 %s21, %s22
      %p254 = scmp.lt.s32.totalorder %s22, 2
      %s255 = scalar_select %p254, %s22, 2
      %s256 = smul.addr %s255, 6
      %s257 = smul.addr %s256, 4
      %s258 = scalar_lea.vmem %s1, %s257
      %p259 = scmp.lt.s32.totalorder %s20, 1
      %s260 = scalar_select %p259, %s20, 1
      %p261 = scmp.lt.s32.totalorder %s21, 15
      %s262 = scalar_select %p261, %s21, 15
      %s263 = smul.addr %s262, 2
      %s264 = smul.addr %s260, 32
      %s265 = sadd.s32 %s263, %s264
      %s266 = smul.addr %s265, 8
      %s267 = scalar_lea.vmem %s4, %s266
      %p269 = scmp.eq.s32.totalorder %s22, 0
      // Predicated region
      $region37: #{rcca_forward.8} parent=35 // pred_check
        %p270 = pneg %p269
      $region38: #{rcca_forward.8} parent=35 // pred_check_branch
        %272 = sbr.rel (%p270) target = $region40
      $region39: #{rcca_forward.8} parent=35 // pred_region
        %vm273 = vcmask 130048
        %274 = vst.msk [vmem:[#allocation2] sm:$0xff] %vm273, 0.0
        %275 = vst.msk [vmem:[#allocation2 + $0x8] sm:$0xff] %vm273, 0.0
      $region40: #{rcca_forward.8} parent=35 // pred_fallthru
        _
      %v276 = vld [vmem:[%s252] sm:$0xff]
      %v277 = vld [vmem:[%s252 + $0x8] sm:$0xff]
      %v278 = vld [vmem:[%s252 + $0x10] sm:$0x3]
      %vm282 = vcmask 1046528
      %v283 = vrot.slane %v276, 1
      %v284 = vrot.slane %v277, 1
      %v285 = vsel %vm282, %v283, %v284
      %v286 = vrot.slane %v278, 1
      %v287 = vsel %vm282, %v284, %v286
      %288 = vrot.lane.b32.xlu0 %v285, 16
      %v289 = vpop.permute.xlu0 %288
      %290 = vrot.lane.b32.xlu0 %v287, 16
      %v291 = vpop.permute.xlu0 %290
      %vm294 = vcmask 1045504
      %v295 = vrot.slane %v276, 2
      %v296 = vrot.slane %v277, 2
      %v297 = vsel %vm294, %v295, %v296
      %v298 = vrot.slane %v278, 2
      %v299 = vsel %vm294, %v296, %v298
      %300 = vrot.lane.b32.xlu0 %v297, 32
      %v301 = vpop.permute.xlu0 %300
      %302 = vrot.lane.b32.xlu0 %v299, 32
      %v303 = vpop.permute.xlu0 %302
      %vm306 = vcmask 130048
      %v307 = vsel %vm306, %v276, %v289
      %v308 = vsel %vm306, %v277, %v291
      %vm309 = vcmask 261120
      %v310 = vsel %vm309, %v307, %v301
      %v311 = vsel %vm309, %v308, %v303
      %v312 = vld [vmem:[#allocation2] sm:$0xff]
      %v313 = vld [vmem:[#allocation2 + $0x8] sm:$0xff]
      %v314 = vpack.c.bf16 %v311, %v310
      %v315 = vld [vmem:[%s258] sm:$0xf]
      %v316 = vld [vmem:[%s258 + $0x4] sm:$0xf]
      %v317 = vld [vmem:[%s258 + $0x8] sm:$0xf]
      %v318 = vld [vmem:[%s258 + $0xc] sm:$0xf]
      %v319 = vld [vmem:[%s258 + $0x10] sm:$0xf]
      %v320 = vld [vmem:[%s258 + $0x14] sm:$0xf]
      %v327 = vunpack.c.l.b16 %v315
      %v328 = vunpack.c.l.b16 %v316
      %v329 = vunpack.c.l.b16 %v317
      %v330 = vunpack.c.l.b16 %v318
      %v331 = vunpack.c.l.b16 %v319
      %v332 = vunpack.c.l.b16 %v320
      %v333 = vpack.c.b16 %v328, %v327
      %v334 = vpack.c.b16 %v330, %v329
      %v335 = vpack.c.b16 %v332, %v331
      %vm339 = vcmask 392192
      %v341 = vsel %vm339, %v314, 0
      %343 = vmatprep.subr.bf16.mxu0 0
      %344 = vmatpush1.bf16.msra.mxu0 0
      %345 = vmatprep.subr.bf16.mxu0 0
      %346 = vmatpush1.bf16.msra.mxu0 0
      %347 = vmatprep.subr.bf16.mxu0 0
      %348 = vmatpush1.bf16.msra.mxu0 0
      %349 = vmatprep.subr.bf16.mxu0 0
      %350 = vmatpush1.bf16.msra.mxu0 0
      %351 = vmatprep.subr.bf16.mxu0 0
      %352 = vmatpush1.bf16.msra.mxu0 0
      %353 = vmatprep.subr.bf16.mxu0 0
      %354 = vmatpush1.bf16.msra.mxu0 %v335
      %355 = vmatprep.subr.bf16.mxu0 0
      %356 = vmatpush1.bf16.msra.mxu0 %v334
      %357 = vmatprep.subr.bf16.mxu0 0
      %358 = vmatpush1.bf16.msra.mxu0 %v333
      %359 = vmatprep.subr.bf16.mxu0 0
      %360 = vmatpush2.bf16.msra.mxu0 0
      %361 = vmatprep.subr.bf16.mxu0 0
      %362 = vmatpush2.bf16.msra.mxu0 0
      %363 = vmatprep.subr.bf16.mxu0 0
      %364 = vmatpush2.bf16.msra.mxu0 0
      %365 = vmatprep.subr.bf16.mxu0 0
      %366 = vmatpush2.bf16.msra.mxu0 0
      %367 = vmatprep.subr.bf16.mxu0 0
      %368 = vmatpush2.bf16.msra.mxu0 0
      %369 = vmatprep.subr.bf16.mxu0 0
      %370 = vmatpush2.bf16.msra.mxu0 0
      %371 = vmatprep.subr.bf16.mxu0 0
      %372 = vmatpush2.bf16.msra.mxu0 0
      %373 = vmatprep.subr.bf16.mxu0 0
      %374 = vmatpush2.bf16.msra.mxu0 0
      %375 = vmatprep.mubr.bf16.mxu0 0
      %376 = vmatmul.mubr.bf16.gmra.mxu0 %v341
      %v377 = vpop.f32.mrf.mxu0
      %v378 = vadd.f32 0.0, %v377
      %v379 = vpop.f32.mrf.mxu0
      %v380 = vpop.f32.mrf.mxu0
      %v381 = vadd.f32 0.0, %v380
      %v382 = vpop.f32.mrf.mxu0
      %383 = vdwg.mxu0
      %v384 = vadd.f32 %v312, %v378
      %v385 = vadd.f32 %v313, %v381
      %386 = vst.msk [vmem:[#allocation2] sm:$0xff] %vm306, %v384
      %387 = vst.msk [vmem:[#allocation2 + $0x8] sm:$0xff] %vm306, %v385
      %p388 = scmp.eq.s32.totalorder %s22, 2
      // Predicated region
      $region41: #{rcca_forward.8} parent=35 // pred_check
        %p389 = pneg %p388
      $region42: #{rcca_forward.8} parent=35 // pred_check_branch
        %391 = sbr.rel (%p389) target = $region44
      $region43: #{rcca_forward.8} parent=35 // pred_region
        %v392 = vld [vmem:[#allocation2] sm:$0xff]
        %v393 = vld [vmem:[#allocation2 + $0x8] sm:$0xff]
        %v394 = vld [vmem:[%s2] sm:$0x1]
        %v396 = vlaneseq
        %v397 = vshrl.u32 %v396, 7
        %v398 = vsub.s32 0, %v397
        %v399 = vrot.slane %v394, %v398
        %v401 = vmul.f32 %v392, %v399
        %v402 = vmul.f32 %v393, %v399
        %v403 = vld [vmem:[%s3] sm:$0x1]
        %v405 = vlaneseq
        %v406 = vshrl.u32 %v405, 7
        %v407 = vsub.s32 0, %v406
        %v408 = vrot.slane %v403, %v407
        %v410 = vadd.f32 %v401, %v408
        %v411 = vadd.f32 %v402, %v408
        %vm412 = vcmp.ge.f32.partialorder %v410, 0.0
        %vm413 = vcmp.ge.f32.partialorder %v411, 0.0
        %v414 = vmul.f32 %v410, 0.01
        %v415 = vmul.f32 %v411, 0.01
        %v416 = vsel %vm412, %v410, %v414
        %v417 = vsel %vm413, %v411, %v415
        %418 = vst.msk [vmem:[%s267] sm:$0xff] %vm306, %v416
        %419 = vst.msk [vmem:[%s267 + $0x8] sm:$0xff] %vm306, %v417
      $region44: #{rcca_forward.8} parent=35 // pred_fallthru
        _
      %p420 = scmp.lt.s32.totalorder %s20, 1
      %s421 = scalar_select %p420, %s20, 1
      %p422 = scmp.lt.s32.totalorder %s21, 15
      %s423 = scalar_select %p422, %s21, 15
      %s424 = smul.addr %s423, 2
      %s425 = smul.addr %s421, 32
      %s426 = sadd.s32 %s424, %s425
      %s427 = smul.addr %s426, 8
      %s428 = scalar_lea.vmem %s4, %s427
      // Predicated region
      $region45: #{rcca_forward.8} parent=35 // pred_check
        %p429 = pneg %p152
      $region46: #{rcca_forward.8} parent=35 // pred_check_branch
        %431 = sbr.rel (%p429) target = $region48
      $region47: #{rcca_forward.8} parent=35 // pred_region
        _
      $region48: #{rcca_forward.8} parent=35 // pred_fallthru
        _
    $region36: #{rcca_forward.8} parent=5 // pred_fallthru
      _
    %p432 = scmp.le.s32.totalorder 2, %s10
    // Predicated region
    $region49: #{rcca_forward.8} parent=5 // pred_check
      %p433 = pneg %p432
    $region50: #{rcca_forward.8} parent=5 // pred_check_branch
      %435 = sbr.rel (%p433) target = $region52
    $region51: #{rcca_forward.8} parent=5 // pred_region
      %s436 = ssub.s32 %s10, 2
      // Predicated region
      $region53: #{rcca_forward.8} parent=51 // pred_check
        %p437 = pneg %p158
      $region54: #{rcca_forward.8} parent=51 // pred_check_branch
        %439 = sbr.rel (%p437) target = $region56
      $region55: #{rcca_forward.8} parent=51 // pred_region
        %p440 = scmp.lt.s32.totalorder %s23, 1
        %s441 = scalar_select %p440, %s23, 1
        %p442 = scmp.lt.s32.totalorder %s24, 15
        %s443 = scalar_select %p442, %s24, 15
        %s444 = smul.addr %s443, 2
        %s445 = smul.addr %s441, 32
        %s446 = sadd.s32 %s444, %s445
        %s447 = smul.addr %s446, 8
        %s448 = scalar_lea.vmem %s4, %s447
      $region56: #{rcca_forward.8} parent=51 // pred_fallthru
        _
    $region52: #{rcca_forward.8} parent=5 // pred_fallthru
      _
  $region6: #{rcca_forward.8} parent=0 // loop_footer
    %s14 = sadd.s32 1, %s10
  $region7: #{rcca_forward.8} parent=0 // loop_footer_branch
    %9 = sbr.rel target = $region3
  $region8: #{rcca_forward.8} parent=0 // loop_exit
    _

// kernel: rcca_forward.9
$region0: #{rcca_forward.9}
  #allocation0 [shape = 'u32[]', space=smem, size = 0x4, offset = 0x4, fixed_abs, tag = 'smem constant byte address 0x4 - core index']
  #allocation1 [shape = 'u32[144,128]{1,0:T(1,128)}', space=vmem, size = 0x12000, scoped, tag = 'internal scratch']
  #allocation2 [shape = 'f32[16,32]{1,0:T(8,128)}', space=vmem, size = 0x2000, scoped, tag = 'scratch operand']
  %s0 = inlined_call_operand.vmem [shape: f32[2,18,18,64], index: 0, kind: input, shape index: {}]
  %s1 = inlined_call_operand.vmem [shape: f32[2,18,18,16], index: 1, kind: input, shape index: {}]
  %s2 = inlined_call_operand.vmem [shape: bf16[3,192,32], index: 2, kind: input, shape index: {}]
  %s3 = inlined_call_operand.vmem [shape: bf16[3,48,32], index: 3, kind: input, shape index: {}]
  %s4 = inlined_call_operand.vmem [shape: f32[1,32], index: 4, kind: input, shape index: {}]
  %s5 = inlined_call_operand.vmem [shape: f32[1,32], index: 5, kind: input, shape index: {}]
  %s6 = inlined_call_operand.vmem [shape: bf16[32,128], index: 6, kind: input, shape index: {}]
  %s7 = inlined_call_operand.vmem [shape: f32[1,128], index: 7, kind: input, shape index: {}]
  %s8 = inlined_call_operand.vmem [shape: f32[2,16,16,128], index: 8, kind: output, shape index: {}]
  %s9 = sld [smem:[#allocation0]]
  $region73: #{rcca_forward.9} parent=0
    _
  %s11 = ssub.s32 1, %s9
  %s12 = scalar_select 0, %s11, %s9
  loop: start=0, step=1, limit=98
  $region2: #{rcca_forward.9} parent=0 // loop_pre_header
    _
  $region3: #{rcca_forward.9} parent=0 // loop_header
    %s14 = sphi 0, %s18
    %p15 = scmp.ge.s32.totalorder %s14, 98
    %s21 = sphi 0, %s40
    %s22 = sphi 0, %s36
    %s23 = sphi 0, %s32
    %s24 = sphi 0, %s21
    %s25 = sphi 0, %s22
    %s26 = sphi 0, %s23
    %s27 = sphi 0, %s24
    %s28 = sphi 0, %s25
    %s29 = sphi 0, %s26
    %s47 = sphi 0, %s49
    %s50 = sphi 0, %s47
    %s51 = sphi 0, %s50
    %s67 = sphi 0, %s51
    %s77 = sphi 0, %s79
    %s80 = sphi 0, %s77
    %s81 = sphi 0, %s80
    %s97 = sphi 0, %s81
    %s103 = sphi 0, %s105
    %s106 = sphi 0, %s103
    %s107 = sphi 0, %s106
    %s123 = sphi 0, %s107
    %s129 = sphi 0, %s131
    %s132 = sphi 0, %s129
    %s133 = sphi 0, %s132
    %s149 = sphi 0, %s133
    %s153 = sphi 0, %s153
    %s155 = sphi 0, %s153
    %s156 = sphi 0, %s155
    %s170 = sphi 0, %s156
    %s174 = sphi 0, %s174
    %s176 = sphi 0, %s174
    %s177 = sphi 0, %s176
    %s191 = sphi 0, %s177
    %s195 = sphi 0, %s195
    %s197 = sphi 0, %s195
    %s198 = sphi 0, %s197
    %s212 = sphi 0, %s198
    %s216 = sphi 0, %s216
    %s218 = sphi 0, %s216
    %s219 = sphi 0, %s218
    %s233 = sphi 0, %s219
    %s241 = sphi 0, %s243
    %s244 = sphi 0, %s241
    %s245 = sphi 0, %s244
    %s261 = sphi 0, %s245
  $region4: #{rcca_forward.9} parent=0 // loop_header_branch
    %17 = sbr.rel (%p15) target = $region8
  $region5: #{rcca_forward.9} parent=0 // loop_body
    %s19 = ssub.s32 %s14, 1
    %s20 = ssub.s32 %s14, 2
    %s30 = sadd.s32 1, %s23
    %p31 = scmp.ge.s32.totalorder %s30, 3
    %s32 = scalar_select %p31, 0, %s30
    %s33 = sadd.s32 1, %s22
    %s34 = scalar_select %p31, %s33, %s22
    %p35 = scmp.ge.s32.totalorder %s34, 16
    %s36 = scalar_select %p35, 0, %s34
    %s37 = sadd.s32 1, %s21
    %s38 = scalar_select %p35, %s37, %s21
    %p39 = scmp.ge.s32.totalorder %s38, 2
    %s40 = scalar_select %p39, 0, %s38
    %s41 = sadd.s32 %s22, %s23
    %s42 = sadd.s32 %s36, %s32
    %s43 = ssub.s32 %s21, %s40
    %s44 = ssub.s32 %s41, %s42
    %s45 = sor.u32 %s43, %s44
    %p46 = scmp.eq.s32.totalorder %s45, 0
    %s48 = sadd.s32 %s47, 1
    %s49 = scalar_select %p46, %s47, %s48
    %p52 = pneg %p46
    %p53 = scmp.eq.s32.totalorder %s14, 95
    %p54 = por %p52, %p53
    %p55 = scmp.ne.s32.totalorder %s47, %s50
    %p56 = scmp.eq.s32.totalorder %s14, 0
    %p57 = por %p55, %p56
    %p58 = scmp.ne.s32.totalorder %s47, %s50
    %p59 = scmp.eq.s32.totalorder %s19, 95
    %p60 = por %p58, %p59
    %p61 = scmp.ne.s32.totalorder %s50, %s51
    %p62 = scmp.eq.s32.totalorder %s19, 0
    %p63 = por %p61, %p62
    %p64 = scmp.ne.s32.totalorder %s50, %s51
    %p65 = scmp.eq.s32.totalorder %s20, 95
    %p66 = por %p64, %p65
    %p68 = scmp.ne.s32.totalorder %s51, %s67
    %p69 = scmp.eq.s32.totalorder %s20, 0
    %p70 = por %p68, %p69
    %s71 = sadd.s32 %s22, %s23
    %s72 = sadd.s32 %s36, %s32
    %s73 = ssub.s32 %s21, %s40
    %s74 = ssub.s32 %s71, %s72
    %s75 = sor.u32 %s73, %s74
    %p76 = scmp.eq.s32.totalorder %s75, 0
    %s78 = sadd.s32 %s77, 1
    %s79 = scalar_select %p76, %s77, %s78
    %p82 = pneg %p76
    %p83 = scmp.eq.s32.totalorder %s14, 95
    %p84 = por %p82, %p83
    %p85 = scmp.ne.s32.totalorder %s77, %s80
    %p86 = scmp.eq.s32.totalorder %s14, 0
    %p87 = por %p85, %p86
    %p88 = scmp.ne.s32.totalorder %s77, %s80
    %p89 = scmp.eq.s32.totalorder %s19, 95
    %p90 = por %p88, %p89
    %p91 = scmp.ne.s32.totalorder %s80, %s81
    %p92 = scmp.eq.s32.totalorder %s19, 0
    %p93 = por %p91, %p92
    %p94 = scmp.ne.s32.totalorder %s80, %s81
    %p95 = scmp.eq.s32.totalorder %s20, 95
    %p96 = por %p94, %p95
    %p98 = scmp.ne.s32.totalorder %s81, %s97
    %p99 = scmp.eq.s32.totalorder %s20, 0
    %p100 = por %p98, %p99
    %s101 = ssub.s32 %s23, %s32
    %p102 = scmp.eq.s32.totalorder %s101, 0
    %s104 = sadd.s32 %s103, 1
    %s105 = scalar_select %p102, %s103, %s104
    %p108 = pneg %p102
    %p109 = scmp.eq.s32.totalorder %s14, 95
    %p110 = por %p108, %p109
    %p111 = scmp.ne.s32.totalorder %s103, %s106
    %p112 = scmp.eq.s32.totalorder %s14, 0
    %p113 = por %p111, %p112
    %p114 = scmp.ne.s32.totalorder %s103, %s106
    %p115 = scmp.eq.s32.totalorder %s19, 95
    %p116 = por %p114, %p115
    %p117 = scmp.ne.s32.totalorder %s106, %s107
    %p118 = scmp.eq.s32.totalorder %s19, 0
    %p119 = por %p117, %p118
    %p120 = scmp.ne.s32.totalorder %s106, %s107
    %p121 = scmp.eq.s32.totalorder %s20, 95
    %p122 = por %p120, %p121
    %p124 = scmp.ne.s32.totalorder %s107, %s123
    %p125 = scmp.eq.s32.totalorder %s20, 0
    %p126 = por %p124, %p125
    %s127 = ssub.s32 %s23, %s32
    %p128 = scmp.eq.s32.totalorder %s127, 0
    %s130 = sadd.s32 %s129, 1
    %s131 = scalar_select %p128, %s129, %s130
    %p134 = pneg %p128
    %p135 = scmp.eq.s32.totalorder %s14, 95
    %p136 = por %p134, %p135
    %p137 = scmp.ne.s32.totalorder %s129, %s132
    %p138 = scmp.eq.s32.totalorder %s14, 0
    %p139 = por %p137, %p138
    %p140 = scmp.ne.s32.totalorder %s129, %s132
    %p141 = scmp.eq.s32.totalorder %s19, 95
    %p142 = por %p140, %p141
    %p143 = scmp.ne.s32.totalorder %s132, %s133
    %p144 = scmp.eq.s32.totalorder %s19, 0
    %p145 = por %p143, %p144
    %p146 = scmp.ne.s32.totalorder %s132, %s133
    %p147 = scmp.eq.s32.totalorder %s20, 95
    %p148 = por %p146, %p147
    %p150 = scmp.ne.s32.totalorder %s133, %s149
    %p151 = scmp.eq.s32.totalorder %s20, 0
    %p152 = por %p150, %p151
    %s154 = sadd.s32 %s153, 1
    %p157 = scmp.eq.s32.totalorder %s14, 95
    %p158 = scmp.ne.s32.totalorder %s153, %s155
    %p159 = scmp.eq.s32.totalorder %s14, 0
    %p160 = por %p158, %p159
    %p161 = scmp.ne.s32.totalorder %s153, %s155
    %p162 = scmp.eq.s32.totalorder %s19, 95
    %p163 = por %p161, %p162
    %p164 = scmp.ne.s32.totalorder %s155, %s156
    %p165 = scmp.eq.s32.totalorder %s19, 0
    %p166 = por %p164, %p165
    %p167 = scmp.ne.s32.totalorder %s155, %s156
    %p168 = scmp.eq.s32.totalorder %s20, 95
    %p169 = por %p167, %p168
    %p171 = scmp.ne.s32.totalorder %s156, %s170
    %p172 = scmp.eq.s32.totalorder %s20, 0
    %p173 = por %p171, %p172
    %s175 = sadd.s32 %s174, 1
    %p178 = scmp.eq.s32.totalorder %s14, 95
    %p179 = scmp.ne.s32.totalorder %s174, %s176
    %p180 = scmp.eq.s32.totalorder %s14, 0
    %p181 = por %p179, %p180
    %p182 = scmp.ne.s32.totalorder %s174, %s176
    %p183 = scmp.eq.s32.totalorder %s19, 95
    %p184 = por %p182, %p183
    %p185 = scmp.ne.s32.totalorder %s176, %s177
    %p186 = scmp.eq.s32.totalorder %s19, 0
    %p187 = por %p185, %p186
    %p188 = scmp.ne.s32.totalorder %s176, %s177
    %p189 = scmp.eq.s32.totalorder %s20, 95
    %p190 = por %p188, %p189
    %p192 = scmp.ne.s32.totalorder %s177, %s191
    %p193 = scmp.eq.s32.totalorder %s20, 0
    %p194 = por %p192, %p193
    %s196 = sadd.s32 %s195, 1
    %p199 = scmp.eq.s32.totalorder %s14, 95
    %p200 = scmp.ne.s32.totalorder %s195, %s197
    %p201 = scmp.eq.s32.totalorder %s14, 0
    %p202 = por %p200, %p201
    %p203 = scmp.ne.s32.totalorder %s195, %s197
    %p204 = scmp.eq.s32.totalorder %s19, 95
    %p205 = por %p203, %p204
    %p206 = scmp.ne.s32.totalorder %s197, %s198
    %p207 = scmp.eq.s32.totalorder %s19, 0
    %p208 = por %p206, %p207
    %p209 = scmp.ne.s32.totalorder %s197, %s198
    %p210 = scmp.eq.s32.totalorder %s20, 95
    %p211 = por %p209, %p210
    %p213 = scmp.ne.s32.totalorder %s198, %s212
    %p214 = scmp.eq.s32.totalorder %s20, 0
    %p215 = por %p213, %p214
    %s217 = sadd.s32 %s216, 1
    %p220 = scmp.eq.s32.totalorder %s14, 95
    %p221 = scmp.ne.s32.totalorder %s216, %s218
    %p222 = scmp.eq.s32.totalorder %s14, 0
    %p223 = por %p221, %p222
    %p224 = scmp.ne.s32.totalorder %s216, %s218
    %p225 = scmp.eq.s32.totalorder %s19, 95
    %p226 = por %p224, %p225
    %p227 = scmp.ne.s32.totalorder %s218, %s219
    %p228 = scmp.eq.s32.totalorder %s19, 0
    %p229 = por %p227, %p228
    %p230 = scmp.ne.s32.totalorder %s218, %s219
    %p231 = scmp.eq.s32.totalorder %s20, 95
    %p232 = por %p230, %p231
    %p234 = scmp.ne.s32.totalorder %s219, %s233
    %p235 = scmp.eq.s32.totalorder %s20, 0
    %p236 = por %p234, %p235
    %s237 = ssub.s32 %s21, %s40
    %s238 = ssub.s32 %s22, %s36
    %s239 = sor.u32 %s237, %s238
    %p240 = scmp.eq.s32.totalorder %s239, 0
    %s242 = sadd.s32 %s241, 1
    %s243 = scalar_select %p240, %s241, %s242
    %p246 = pneg %p240
    %p247 = scmp.eq.s32.totalorder %s14, 95
    %p248 = por %p246, %p247
    %p249 = scmp.ne.s32.totalorder %s241, %s244
    %p250 = scmp.eq.s32.totalorder %s14, 0
    %p251 = por %p249, %p250
    %p252 = scmp.ne.s32.totalorder %s241, %s244
    %p253 = scmp.eq.s32.totalorder %s19, 95
    %p254 = por %p252, %p253
    %p255 = scmp.ne.s32.totalorder %s244, %s245
    %p256 = scmp.eq.s32.totalorder %s19, 0
    %p257 = por %p255, %p256
    %p258 = scmp.ne.s32.totalorder %s244, %s245
    %p259 = scmp.eq.s32.totalorder %s20, 95
    %p260 = por %p258, %p259
    %p262 = scmp.ne.s32.totalorder %s245, %s261
    %p263 = scmp.eq.s32.totalorder %s20, 0
    %p264 = por %p262, %p263
    %p265 = scmp.le.s32.totalorder 1, %s14
    %p266 = scmp.lt.s32.totalorder %s14, 97
    %p267 = pnand %p265, %p266
    %p268 = pneg %p267
    // Predicated region
    $region9: #{rcca_forward.9} parent=5 // pred_check
      _
    $region10: #{rcca_forward.9} parent=5 // pred_check_branch
      %270 = sbr.rel (%p267) target = $region12
    $region11: #{rcca_forward.9} parent=5 // pred_region
      %s271 = ssub.s32 %s14, 1
      // Predicated region
      $region13: #{rcca_forward.9} parent=11 // pred_check
        %p272 = pneg %p166
      $region14: #{rcca_forward.9} parent=11 // pred_check_branch
        %274 = sbr.rel (%p272) target = $region16
      $region15: #{rcca_forward.9} parent=11 // pred_region
        _
      $region16: #{rcca_forward.9} parent=11 // pred_fallthru
        _
      // Predicated region
      $region17: #{rcca_forward.9} parent=11 // pred_check
        %p275 = pneg %p187
      $region18: #{rcca_forward.9} parent=11 // pred_check_branch
        %277 = sbr.rel (%p275) target = $region20
      $region19: #{rcca_forward.9} parent=11 // pred_region
        _
      $region20: #{rcca_forward.9} parent=11 // pred_fallthru
        _
      // Predicated region
      $region21: #{rcca_forward.9} parent=11 // pred_check
        %p278 = pneg %p208
      $region22: #{rcca_forward.9} parent=11 // pred_check_branch
        %280 = sbr.rel (%p278) target = $region24
      $region23: #{rcca_forward.9} parent=11 // pred_region
        _
      $region24: #{rcca_forward.9} parent=11 // pred_fallthru
        _
      // Predicated region
      $region25: #{rcca_forward.9} parent=11 // pred_check
        %p281 = pneg %p229
      $region26: #{rcca_forward.9} parent=11 // pred_check_branch
        %283 = sbr.rel (%p281) target = $region28
      $region27: #{rcca_forward.9} parent=11 // pred_region
        _
      $region28: #{rcca_forward.9} parent=11 // pred_fallthru
        _
    $region12: #{rcca_forward.9} parent=5 // pred_fallthru
      _
    %p284 = scmp.lt.s32.totalorder %s14, 96
    // Predicated region
    $region29: #{rcca_forward.9} parent=5 // pred_check
      %p285 = pneg %p284
    $region30: #{rcca_forward.9} parent=5 // pred_check_branch
      %287 = sbr.rel (%p285) target = $region32
    $region31: #{rcca_forward.9} parent=5 // pred_region
      // Predicated region
      $region33: #{rcca_forward.9} parent=31 // pred_check
        %p288 = pneg %p57
      $region34: #{rcca_forward.9} parent=31 // pred_check_branch
        %290 = sbr.rel (%p288) target = $region36
      $region35: #{rcca_forward.9} parent=31 // pred_region
        %s291 = sadd.s32 %s22, %s23
        %p292 = scmp.lt.s32.totalorder %s21, 1
        %s293 = scalar_select %p292, %s21, 1
        %p294 = scmp.lt.s32.totalorder %s291, 17
        %s295 = scalar_select %p294, %s291, 17
        %s296 = smul.addr %s295, 3
        %s297 = smul.addr %s293, 54
        %s298 = sadd.s32 %s296, %s297
        %s299 = smul.addr %s298, 8
        %s300 = scalar_lea.vmem %s0, %s299
        %s301 = sadd.s32 %s22, %s23
      $region36: #{rcca_forward.9} parent=31 // pred_fallthru
        _
      // Predicated region
      $region37: #{rcca_forward.9} parent=31 // pred_check
        %p302 = pneg %p87
      $region38: #{rcca_forward.9} parent=31 // pred_check_branch
        %304 = sbr.rel (%p302) target = $region40
      $region39: #{rcca_forward.9} parent=31 // pred_region
        %s305 = sadd.s32 %s22, %s23
        %p306 = scmp.lt.s32.totalorder %s21, 1
        %s307 = scalar_select %p306, %s21, 1
        %p308 = scmp.lt.s32.totalorder %s305, 17
        %s309 = scalar_select %p308, %s305, 17
        %s310 = smul.addr %s309, 3
        %s311 = smul.addr %s307, 54
        %s312 = sadd.s32 %s310, %s311
        %s313 = smul.addr %s312, 8
        %s314 = scalar_lea.vmem %s1, %s313
        %s315 = sadd.s32 %s22, %s23
      $region40: #{rcca_forward.9} parent=31 // pred_fallthru
        _
      // Predicated region
      $region41: #{rcca_forward.9} parent=31 // pred_check
        %p316 = pneg %p113
      $region42: #{rcca_forward.9} parent=31 // pred_check_branch
        %318 = sbr.rel (%p316) target = $region44
      $region43: #{rcca_forward.9} parent=31 // pred_region
        %p319 = scmp.lt.s32.totalorder %s23, 2
        %s320 = scalar_select %p319, %s23, 2
        %s321 = smul.addr %s320, 24
        %s322 = smul.addr %s321, 4
        %s323 = scalar_lea.vmem %s2, %s322
      $region44: #{rcca_forward.9} parent=31 // pred_fallthru
        _
      // Predicated region
      $region45: #{rcca_forward.9} parent=31 // pred_check
        %p324 = pneg %p139
      $region46: #{rcca_forward.9} parent=31 // pred_check_branch
        %326 = sbr.rel (%p324) target = $region48
      $region47: #{rcca_forward.9} parent=31 // pred_region
        %p327 = scmp.lt.s32.totalorder %s23, 2
        %s328 = scalar_select %p327, %s23, 2
        %s329 = smul.addr %s328, 6
        %s330 = smul.addr %s329, 4
        %s331 = scalar_lea.vmem %s3, %s330
      $region48: #{rcca_forward.9} parent=31 // pred_fallthru
        _
    $region32: #{rcca_forward.9} parent=5 // pred_fallthru
      _
    %p332 = scmp.le.s32.totalorder 1, %s14
    %p333 = scmp.lt.s32.totalorder %s14, 97
    %p334 = pnand %p332, %p333
    %p335 = pneg %p334
    // Predicated region
    $region49: #{rcca_forward.9} parent=5 // pred_check
      _
    $region50: #{rcca_forward.9} parent=5 // pred_check_branch
      %337 = sbr.rel (%p334) target = $region52
    $region51: #{rcca_forward.9} parent=5 // pred_region
      %s338 = ssub.s32 %s14, 1
      %s339 = sadd.s32 %s25, %s26
      %p340 = scmp.lt.s32.totalorder %s24, 1
      %s341 = scalar_select %p340, %s24, 1
      %p342 = scmp.lt.s32.totalorder %s339, 17
      %s343 = scalar_select %p342, %s339, 17
      %s344 = smul.addr %s343, 3
      %s345 = smul.addr %s341, 54
      %s346 = sadd.s32 %s344, %s345
      %s347 = smul.addr %s346, 8
      %s348 = scalar_lea.vmem %s0, %s347
      %p349 = pneg %p63
      %p350 = pneg %p60
      %s351 = sadd.s32 %s25, %s26
      %p352 = scmp.lt.s32.totalorder %s24, 1
      %s353 = scalar_select %p352, %s24, 1
      %p354 = scmp.lt.s32.totalorder %s351, 17
      %s355 = scalar_select %p354, %s351, 17
      %s356 = smul.addr %s355, 3
      %s357 = smul.addr %s353, 54
      %s358 = sadd.s32 %s356, %s357
      %s359 = smul.addr %s358, 8
      %s360 = scalar_lea.vmem %s1, %s359
      %p361 = pneg %p93
      %p362 = pneg %p90
      %p363 = scmp.lt.s32.totalorder %s26, 2
      %s364 = scalar_select %p363, %s26, 2
      %s365 = smul.addr %s364, 24
      %s366 = smul.addr %s365, 4
      %s367 = scalar_lea.vmem %s2, %s366
      %p368 = pneg %p119
      %p369 = pneg %p116
      %p370 = scmp.lt.s32.totalorder %s26, 2
      %s371 = scalar_select %p370, %s26, 2
      %s372 = smul.addr %s371, 6
      %s373 = smul.addr %s372, 4
      %s374 = scalar_lea.vmem %s3, %s373
      %p375 = pneg %p145
      %p376 = pneg %p142
      %p377 = pneg %p166
      %p378 = pneg %p163
      %p379 = pneg %p187
      %p380 = pneg %p184
      %p381 = pneg %p208
      %p382 = pneg %p205
      %p383 = pneg %p229
      %p384 = pneg %p226
      %p385 = pneg %p257
      %p386 = pneg %p254
      %p387 = scmp.lt.s32.totalorder %s24, 1
      %s388 = scalar_select %p387, %s24, 1
      %p389 = scmp.lt.s32.totalorder %s25, 15
      %s390 = scalar_select %p389, %s25, 15
      %s391 = smul.addr %s390, 2
      %s392 = smul.addr %s388, 32
      %s393 = sadd.s32 %s391, %s392
      %s394 = smul.addr %s393, 8
      %s395 = scalar_lea.vmem %s8, %s394
      %s396 = sadd.s32 %s25, %s26
      %p397 = scmp.lt.s32.totalorder %s24, 1
      %s398 = scalar_select %p397, %s24, 1
      %p399 = scmp.lt.s32.totalorder %s396, 17
      %s400 = scalar_select %p399, %s396, 17
      %s401 = smul.addr %s400, 3
      %s402 = smul.addr %s398, 54
      %s403 = sadd.s32 %s401, %s402
      %s404 = smul.addr %s403, 8
      %s405 = scalar_lea.vmem %s0, %s404
      %s406 = sadd.s32 %s25, %s26
      %s407 = sadd.s32 %s25, %s26
      %p408 = scmp.lt.s32.totalorder %s24, 1
      %s409 = scalar_select %p408, %s24, 1
      %p410 = scmp.lt.s32.totalorder %s407, 17
      %s411 = scalar_select %p410, %s407, 17
      %s412 = smul.addr %s411, 3
      %s413 = smul.addr %s409, 54
      %s414 = sadd.s32 %s412, %s413
      %s415 = smul.addr %s414, 8
      %s416 = scalar_lea.vmem %s1, %s415
      %s417 = sadd.s32 %s25, %s26
      %p418 = scmp.lt.s32.totalorder %s26, 2
      %s419 = scalar_select %p418, %s26, 2
      %s420 = smul.addr %s419, 24
      %s421 = smul.addr %s420, 4
      %s422 = scalar_lea.vmem %s2, %s421
      %p423 = scmp.lt.s32.totalorder %s26, 2
      %s424 = scalar_select %p423, %s26, 2
      %s425 = smul.addr %s424, 6
      %s426 = smul.addr %s425, 4
      %s427 = scalar_lea.vmem %s3, %s426
      %p428 = scmp.lt.s32.totalorder %s24, 1
      %s429 = scalar_select %p428, %s24, 1
      %p430 = scmp.lt.s32.totalorder %s25, 15
      %s431 = scalar_select %p430, %s25, 15
      %s432 = smul.addr %s431, 2
      %s433 = smul.addr %s429, 32
      %s434 = sadd.s32 %s432, %s433
      %s435 = smul.addr %s434, 8
      %s436 = scalar_lea.vmem %s8, %s435
      %p438 = scmp.eq.s32.totalorder %s26, 0
      // Predicated region
      $region53: #{rcca_forward.9} parent=51 // pred_check
        %p439 = pneg %p438
      $region54: #{rcca_forward.9} parent=51 // pred_check_branch
        %441 = sbr.rel (%p439) target = $region56
      $region55: #{rcca_forward.9} parent=51 // pred_region
        %vm442 = vcmask 261120
        %443 = vst.msk [vmem:[#allocation2] sm:$0xff] %vm442, 0.0
        %444 = vst.msk [vmem:[#allocation2 + $0x8] sm:$0xff] %vm442, 0.0
      $region56: #{rcca_forward.9} parent=51 // pred_fallthru
        _
      %v445 = vld [vmem:[%s405] sm:$0xff]
      %v446 = vld [vmem:[%s405 + $0x8] sm:$0xff]
      %v447 = vld [vmem:[%s405 + $0x10] sm:$0x3]
      %v448 = vld [vmem:[%s416] sm:$0xff]
      %v449 = vld [vmem:[%s416 + $0x8] sm:$0xff]
      %v450 = vld [vmem:[%s416 + $0x10] sm:$0x3]
      %vm454 = vcmask 1046528
      %v455 = vrot.slane %v445, 1
      %v456 = vrot.slane %v446, 1
      %v457 = vsel %vm454, %v455, %v456
      %v458 = vrot.slane %v447, 1
      %v459 = vsel %vm454, %v456, %v458
      %460 = vrot.lane.b32.xlu0 %v457, 64
      %v461 = vpop.permute.xlu0 %460
      %462 = vrot.lane.b32.xlu0 %v459, 64
      %v463 = vpop.permute.xlu0 %462
      %vm466 = vcmask 1045504
      %v467 = vrot.slane %v445, 2
      %v468 = vrot.slane %v446, 2
      %v469 = vsel %vm466, %v467, %v468
      %v470 = vrot.slane %v447, 2
      %v471 = vsel %vm466, %v468, %v470
      %vm474 = vcmask 523264
      %v475 = vsel %vm474, %v445, %v461
      %v476 = vsel %vm474, %v446, %v463
      %v480 = vrot.slane %v448, 1
      %v481 = vrot.slane %v449, 1
      %v482 = vsel %vm454, %v480, %v481
      %v483 = vrot.slane %v450, 1
      %v484 = vsel %vm454, %v481, %v483
      %485 = vrot.lane.b32.xlu0 %v482, 16
      %v486 = vpop.permute.xlu0 %485
      %487 = vrot.lane.b32.xlu0 %v484, 16
      %v488 = vpop.permute.xlu0 %487
      %v491 = vrot.slane %v448, 2
      %v492 = vrot.slane %v449, 2
      %v493 = vsel %vm466, %v491, %v492
      %v494 = vrot.slane %v450, 2
      %v495 = vsel %vm466, %v492, %v494
      %496 = vrot.lane.b32.xlu0 %v493, 32
      %v497 = vpop.permute.xlu0 %496
      %498 = vrot.lane.b32.xlu0 %v495, 32
      %v499 = vpop.permute.xlu0 %498
      %vm502 = vcmask 130048
      %v503 = vsel %vm502, %v448, %v486
      %v504 = vsel %vm502, %v449, %v488
      %vm505 = vcmask 261120
      %v506 = vsel %vm505, %v503, %v497
      %v507 = vsel %vm505, %v504, %v499
      %v508 = vld [vmem:[#allocation2] sm:$0xff]
      %v509 = vld [vmem:[#allocation2 + $0x8] sm:$0xff]
      %v510 = vpack.c.bf16 %v476, %v475
      %v511 = vpack.c.bf16 %v471, %v469
      %v512 = vld [vmem:[%s422] sm:$0xf]
      %v513 = vld [vmem:[%s422 + $0x4] sm:$0xf]
      %v514 = vld [vmem:[%s422 + $0x8] sm:$0xf]
      %v515 = vld [vmem:[%s422 + $0xc] sm:$0xf]
      %v516 = vld [vmem:[%s422 + $0x10] sm:$0xf]
      %v517 = vld [vmem:[%s422 + $0x14] sm:$0xf]
      %v518 = vld [vmem:[%s422 + $0x18] sm:$0xf]
      %v519 = vld [vmem:[%s422 + $0x1c] sm:$0xf]
      %v520 = vld [vmem:[%s422 + $0x20] sm:$0xf]
      %v521 = vld [vmem:[%s422 + $0x24] sm:$0xf]
      %v522 = vld [vmem:[%s422 + $0x28] sm:$0xf]
      %v523 = vld [vmem:[%s422 + $0x2c] sm:$0xf]
      %v524 = vld [vmem:[%s422 + $0x30] sm:$0xf]
      %v525 = vld [vmem:[%s422 + $0x34] sm:$0xf]
      %v526 = vld [vmem:[%s422 + $0x38] sm:$0xf]
      %v527 = vld [vmem:[%s422 + $0x3c] sm:$0xf]
      %v528 = vld [vmem:[%s422 + $0x40] sm:$0xf]
      %v529 = vld [vmem:[%s422 + $0x44] sm:$0xf]
      %v530 = vld [vmem:[%s422 + $0x48] sm:$0xf]
      %v531 = vld [vmem:[%s422 + $0x4c] sm:$0xf]
      %v532 = vld [vmem:[%s422 + $0x50] sm:$0xf]
      %v533 = vld [vmem:[%s422 + $0x54] sm:$0xf]
      %v534 = vld [vmem:[%s422 + $0x58] sm:$0xf]
      %v535 = vld [vmem:[%s422 + $0x5c] sm:$0xf]
      %v560 = vunpack.c.l.b16 %v512
      %v561 = vunpack.c.l.b16 %v513
      %v562 = vunpack.c.l.b16 %v514
      %v563 = vunpack.c.l.b16 %v515
      %v564 = vunpack.c.l.b16 %v516
      %v565 = vunpack.c.l.b16 %v517
      %v566 = vunpack.c.l.b16 %v518
      %v567 = vunpack.c.l.b16 %v519
      %v568 = vunpack.c.l.b16 %v520
      %v569 = vunpack.c.l.b16 %v521
      %v570 = vunpack.c.l.b16 %v522
      %v571 = vunpack.c.l.b16 %v523
      %v572 = vunpack.c.l.b16 %v524
      %v573 = vunpack.c.l.b16 %v525
      %v574 = vunpack.c.l.b16 %v526
      %v575 = vunpack.c.l.b16 %v527
      %v576 = vunpack.c.l.b16 %v528
      %v577 = vunpack.c.l.b16 %v529
      %v578 = vunpack.c.l.b16 %v530
      %v579 = vunpack.c.l.b16 %v531
      %v580 = vunpack.c.l.b16 %v532
      %v581 = vunpack.c.l.b16 %v533
      %v582 = vunpack.c.l.b16 %v534
      %v583 = vunpack.c.l.b16 %v535
      %v584 = vpack.c.b16 %v561, %v560
      %v585 = vpack.c.b16 %v563, %v562
      %v586 = vpack.c.b16 %v565, %v564
      %v587 = vpack.c.b16 %v567, %v566
      %v588 = vpack.c.b16 %v569, %v568
      %v589 = vpack.c.b16 %v571, %v570
      %v590 = vpack.c.b16 %v573, %v572
      %v591 = vpack.c.b16 %v575, %v574
      %v592 = vpack.c.b16 %v577, %v576
      %v593 = vpack.c.b16 %v579, %v578
      %v594 = vpack.c.b16 %v581, %v580
      %v595 = vpack.c.b16 %v583, %v582
      %v609 = vsel %vm474, %v511, 0
      %611 = vmatprep.subr.bf16.mxu0 0
      %612 = vmatpush1.bf16.msra.mxu0 %v591
      %613 = vmatprep.subr.bf16.mxu0 0
      %614 = vmatpush1.bf16.msra.mxu0 %v590
      %615 = vmatprep.subr.bf16.mxu0 0
      %616 = vmatpush1.bf16.msra.mxu0 %v589
      %617 = vmatprep.subr.bf16.mxu0 0
      %618 = vmatpush1.bf16.msra.mxu0 %v588
      %619 = vmatprep.subr.bf16.mxu0 0
      %620 = vmatpush1.bf16.msra.mxu0 %v587
      %621 = vmatprep.subr.bf16.mxu0 0
      %622 = vmatpush1.bf16.msra.mxu0 %v586
      %623 = vmatprep.subr.bf16.mxu0 0
      %624 = vmatpush1.bf16.msra.mxu0 %v585
      %625 = vmatprep.subr.bf16.mxu0 0
      %626 = vmatpush1.bf16.msra.mxu0 %v584
      %627 = vmatprep.subr.bf16.mxu0 0
      %628 = vmatpush2.bf16.msra.mxu0 0
      %629 = vmatprep.subr.bf16.mxu0 0
      %630 = vmatpush2.bf16.msra.mxu0 0
      %631 = vmatprep.subr.bf16.mxu0 0
      %632 = vmatpush2.bf16.msra.mxu0 0
      %633 = vmatprep.subr.bf16.mxu0 0
      %634 = vmatpush2.bf16.msra.mxu0 0
      %635 = vmatprep.subr.bf16.mxu0 0
      %636 = vmatpush2.bf16.msra.mxu0 %v595
      %637 = vmatprep.subr.bf16.mxu0 0
      %638 = vmatpush2.bf16.msra.mxu0 %v594
      %639 = vmatprep.subr.bf16.mxu0 0
      %640 = vmatpush2.bf16.msra.mxu0 %v593
      %641 = vmatprep.subr.bf16.mxu0 0
      %642 = vmatpush2.bf16.msra.mxu0 %v592
      %643 = vmatprep.mubr.bf16.mxu0 %v609
      %644 = vmatmul.mubr.bf16.gmra.mxu0 %v510
      %v645 = vpop.f32.mrf.mxu0
      %v646 = vadd.f32 0.0, %v645
      %v647 = vpop.f32.mrf.mxu0
      %v648 = vpop.f32.mrf.mxu0
      %v649 = vadd.f32 0.0, %v648
      %v650 = vpop.f32.mrf.mxu0
      %651 = vdwg.mxu0
      %v652 = vadd.f32 %v508, %v646
      %v653 = vadd.f32 %v509, %v649
      %654 = vst.msk [vmem:[#allocation2] sm:$0xff] %vm505, %v652
      %655 = vst.msk [vmem:[#allocation2 + $0x8] sm:$0xff] %vm505, %v653
      %v656 = vld [vmem:[#allocation2] sm:$0xff]
      %v657 = vld [vmem:[#allocation2 + $0x8] sm:$0xff]
      %v658 = vpack.c.bf16 %v507, %v506
      %v659 = vld [vmem:[%s427] sm:$0xf]
      %v660 = vld [vmem:[%s427 + $0x4] sm:$0xf]
      %v661 = vld [vmem:[%s427 + $0x8] sm:$0xf]
      %v662 = vld [vmem:[%s427 + $0xc] sm:$0xf]
      %v663 = vld [vmem:[%s427 + $0x10] sm:$0xf]
      %v664 = vld [vmem:[%s427 + $0x14] sm:$0xf]
      %v671 = vunpack.c.l.b16 %v659
      %v672 = vunpack.c.l.b16 %v660
      %v673 = vunpack.c.l.b16 %v661
      %v674 = vunpack.c.l.b16 %v662
      %v675 = vunpack.c.l.b16 %v663
      %v676 = vunpack.c.l.b16 %v664
      %v677 = vpack.c.b16 %v672, %v671
      %v678 = vpack.c.b16 %v674, %v673
      %v679 = vpack.c.b16 %v676, %v675
      %vm683 = vcmask 392192
      %v685 = vsel %vm683, %v658, 0
      %687 = vmatprep.subr.bf16.mxu0 0
      %688 = vmatpush1.bf16.msra.mxu0 0
      %689 = vmatprep.subr.bf16.mxu0 0
      %690 = vmatpush1.bf16.msra.mxu0 0
      %691 = vmatprep.subr.bf16.mxu0 0
      %692 = vmatpush1.bf16.msra.mxu0 0
      %693 = vmatprep.subr.bf16.mxu0 0
      %694 = vmatpush1.bf16.msra.mxu0 0
      %695 = vmatprep.subr.bf16.mxu0 0
      %696 = vmatpush1.bf16.msra.mxu0 0
      %697 = vmatprep.subr.bf16.mxu0 0
      %698 = vmatpush1.bf16.msra.mxu0 %v679
      %699 = vmatprep.subr.bf16.mxu0 0
      %700 = vmatpush1.bf16.msra.mxu0 %v678
      %701 = vmatprep.subr.bf16.mxu0 0
      %702 = vmatpush1.bf16.msra.mxu0 %v677
      %703 = vmatprep.subr.bf16.mxu0 0
      %704 = vmatpush2.bf16.msra.mxu0 0
      %705 = vmatprep.subr.bf16.mxu0 0
      %706 = vmatpush2.bf16.msra.mxu0 0
      %707 = vmatprep.subr.bf16.mxu0 0
      %708 = vmatpush2.bf16.msra.mxu0 0
      %709 = vmatprep.subr.bf16.mxu0 0
      %710 = vmatpush2.bf16.msra.mxu0 0
      %711 = vmatprep.subr.bf16.mxu0 0
      %712 = vmatpush2.bf16.msra.mxu0 0
      %713 = vmatprep.subr.bf16.mxu0 0
      %714 = vmatpush2.bf16.msra.mxu0 0
      %715 = vmatprep.subr.bf16.mxu0 0
      %716 = vmatpush2.bf16.msra.mxu0 0
      %717 = vmatprep.subr.bf16.mxu0 0
      %718 = vmatpush2.bf16.msra.mxu0 0
      %719 = vmatprep.mubr.bf16.mxu0 0
      %720 = vmatmul.mubr.bf16.gmra.mxu0 %v685
      %v721 = vpop.f32.mrf.mxu0
      %v722 = vadd.f32 0.0, %v721
      %v723 = vpop.f32.mrf.mxu0
      %v724 = vpop.f32.mrf.mxu0
      %v725 = vadd.f32 0.0, %v724
      %v726 = vpop.f32.mrf.mxu0
      %727 = vdwg.mxu0
      %v728 = vadd.f32 %v656, %v722
      %v729 = vadd.f32 %v657, %v725
      %730 = vst.msk [vmem:[#allocation2] sm:$0xff] %vm505, %v728
      %731 = vst.msk [vmem:[#allocation2 + $0x8] sm:$0xff] %vm505, %v729
      %p732 = scmp.eq.s32.totalorder %s26, 2
      // Predicated region
      $region57: #{rcca_forward.9} parent=51 // pred_check
        %p733 = pneg %p732
      $region58: #{rcca_forward.9} parent=51 // pred_check_branch
        %735 = sbr.rel (%p733) target = $region60
      $region59: #{rcca_forward.9} parent=51 // pred_region
        %v736 = vld [vmem:[#allocation2] sm:$0xff]
        %v737 = vld [vmem:[#allocation2 + $0x8] sm:$0xff]
        %v738 = vld [vmem:[%s4] sm:$0x1]
        %v740 = vlaneseq
        %v741 = vshrl.u32 %v740, 7
        %v742 = vsub.s32 0, %v741
        %v743 = vrot.slane %v738, %v742
        %v745 = vmul.f32 %v736, %v743
        %v746 = vmul.f32 %v737, %v743
        %v747 = vld [vmem:[%s5] sm:$0x1]
        %v749 = vlaneseq
        %v750 = vshrl.u32 %v749, 7
        %v751 = vsub.s32 0, %v750
        %v752 = vrot.slane %v747, %v751
        %v754 = vadd.f32 %v745, %v752
        %v755 = vadd.f32 %v746, %v752
        %vm756 = vcmp.ge.f32.partialorder %v754, 0.0
        %vm757 = vcmp.ge.f32.partialorder %v755, 0.0
        %v758 = vmul.f32 %v754, 0.01
        %v759 = vmul.f32 %v755, 0.01
        %v760 = vsel %vm756, %v754, %v758
        %v761 = vsel %vm757, %v755, %v759
        %v762 = vpack.c.bf16 %v761, %v760
        %v763 = vld [vmem:[%s6] sm:$0xf]
        %v764 = vld [vmem:[%s6 + $0x4] sm:$0xf]
        %v765 = vld [vmem:[%s6 + $0x8] sm:$0xf]
        %v766 = vld [vmem:[%s6 + $0xc] sm:$0xf]
        %v767 = vld [vmem:[%s7] sm:$0x1]
        %v769 = vlaneseq
        %v770 = vshrl.u32 %v769, 7
        %v771 = vsub.s32 0, %v770
        %v772 = vrot.slane %v767, %v771
        %v778 = vunpack.c.l.b16 %v763
        %v779 = vunpack.c.l.b16 %v764
        %v780 = vunpack.c.l.b16 %v765
        %v781 = vunpack.c.l.b16 %v766
        %v782 = vpack.c.b16 %v779, %v778
        %v783 = vpack.c.b16 %v781, %v780
        %v787 = vsel %vm505, %v762, 0
        %789 = vmatprep.subr.bf16.mxu0 0
        %790 = vmatpush1.bf16.msra.mxu0 0
        %791 = vmatprep.subr.bf16.mxu0 0
        %792 = vmatpush1.bf16.msra.mxu0 0
        %793 = vmatprep.subr.bf16.mxu0 0
        %794 = vmatpush1.bf16.msra.mxu0 0
        %795 = vmatprep.subr.bf16.mxu0 0
        %796 = vmatpush1.bf16.msra.mxu0 0
        %797 = vmatprep.subr.bf16.mxu0 0
        %798 = vmatpush1.bf16.msra.mxu0 0
        %799 = vmatprep.subr.bf16.mxu0 0
        %800 = vmatpush1.bf16.msra.mxu0 0
        %801 = vmatprep.subr.bf16.mxu0 0
        %802 = vmatpush1.bf16.msra.mxu0 %v783
        %803 = vmatprep.subr.bf16.mxu0 0
        %804 = vmatpush1.bf16.msra.mxu0 %v782
        %805 = vmatprep.subr.bf16.mxu0 0
        %806 = vmatpush2.bf16.msra.mxu0 0
        %807 = vmatprep.subr.bf16.mxu0 0
        %808 = vmatpush2.bf16.msra.mxu0 0
        %809 = vmatprep.subr.bf16.mxu0 0
        %810 = vmatpush2.bf16.msra.mxu0 0
        %811 = vmatprep.subr.bf16.mxu0 0
        %812 = vmatpush2.bf16.msra.mxu0 0
        %813 = vmatprep.subr.bf16.mxu0 0
        %814 = vmatpush2.bf16.msra.mxu0 0
        %815 = vmatprep.subr.bf16.mxu0 0
        %816 = vmatpush2.bf16.msra.mxu0 0
        %817 = vmatprep.subr.bf16.mxu0 0
        %818 = vmatpush2.bf16.msra.mxu0 0
        %819 = vmatprep.subr.bf16.mxu0 0
        %820 = vmatpush2.bf16.msra.mxu0 0
        %821 = vmatprep.mubr.bf16.mxu0 0
        %822 = vmatmul.mubr.bf16.gmra.mxu0 %v787
        %v823 = vpop.f32.mrf.mxu0
        %v824 = vadd.f32 %v772, %v823
        %v825 = vpop.f32.mrf.mxu0
        %v826 = vpop.f32.mrf.mxu0
        %v827 = vadd.f32 %v772, %v826
        %v828 = vpop.f32.mrf.mxu0
        %829 = vdwg.mxu0
        %830 = vst [vmem:[%s436] sm:$0xff] %v824
        %831 = vst [vmem:[%s436 + $0x8] sm:$0xff] %v827
      $region60: #{rcca_forward.9} parent=51 // pred_fallthru
        _
      %p832 = scmp.lt.s32.totalorder %s24, 1
      %s833 = scalar_select %p832, %s24, 1
      %p834 = scmp.lt.s32.totalorder %s25, 15
      %s835 = scalar_select %p834, %s25, 15
      %s836 = smul.addr %s835, 2
      %s837 = smul.addr %s833, 32
      %s838 = sadd.s32 %s836, %s837
      %s839 = smul.addr %s838, 8
      %s840 = scalar_lea.vmem %s8, %s839
      // Predicated region
      $region61: #{rcca_forward.9} parent=51 // pred_check
        %p841 = pneg %p254
      $region62: #{rcca_forward.9} parent=51 // pred_check_branch
        %843 = sbr.rel (%p841) target = $region64
      $region63: #{rcca_forward.9} parent=51 // pred_region
        _
      $region64: #{rcca_forward.9} parent=51 // pred_fallthru
        _
    $region52: #{rcca_forward.9} parent=5 // pred_fallthru
      _
    %p844 = scmp.le.s32.totalorder 2, %s14
    // Predicated region
    $region65: #{rcca_forward.9} parent=5 // pred_check
      %p845 = pneg %p844
    $region66: #{rcca_forward.9} parent=5 // pred_check_branch
      %847 = sbr.rel (%p845) target = $region68
    $region67: #{rcca_forward.9} parent=5 // pred_region
      %s848 = ssub.s32 %s14, 2
      // Predicated region
      $region69: #{rcca_forward.9} parent=67 // pred_check
        %p849 = pneg %p260
      $region70: #{rcca_forward.9} parent=67 // pred_check_branch
        %851 = sbr.rel (%p849) target = $region72
      $region71: #{rcca_forward.9} parent=67 // pred_region
        %p852 = scmp.lt.s32.totalorder %s27, 1
        %s853 = scalar_select %p852, %s27, 1
        %p854 = scmp.lt.s32.totalorder %s28, 15
        %s855 = scalar_select %p854, %s28, 15
        %s856 = smul.addr %s855, 2
        %s857 = smul.addr %s853, 32
        %s858 = sadd.s32 %s856, %s857
        %s859 = smul.addr %s858, 8
        %s860 = scalar_lea.vmem %s8, %s859
      $region72: #{rcca_forward.9} parent=67 // pred_fallthru
        _
    $region68: #{rcca_forward.9} parent=5 // pred_fallthru
      _
  $region6: #{rcca_forward.9} parent=0 // loop_footer
    %s18 = sadd.s32 1, %s14
  $region7: #{rcca_forward.9} parent=0 // loop_footer_branch
    %13 = sbr.rel target = $region3
  $region8: #{rcca_forward.9} parent=0 // loop_exit
    _

// kernel: rcca_forward.6
$region0: #{rcca_forward.6}
  #allocation0 [shape = 'u32[]', space=smem, size = 0x4, offset = 0x4, fixed_abs, tag = 'smem constant byte address 0x4 - core index']
  #allocation1 [shape = 'u32[144,128]{1,0:T(1,128)}', space=vmem, size = 0x12000, scoped, tag = 'internal scratch']
  #allocation2 [shape = 'f32[1]{0:T(128)S(6)}', space=smem, size = 0x200, scoped, tag = 'scoped memory for rcca_forward.6']
  %s0 = inlined_call_operand.vmem [shape: f32[2,16,16,16], index: 0, kind: input, shape index: {}]
  %s1 = inlined_call_operand.vmem [shape: f32[2,16,16,16], index: 1, kind: input, shape index: {}]
  %s2 = inlined_call_operand.vmem [shape: bf16[16,2], index: 2, kind: input, shape index: {}]
  %s3 = inlined_call_operand.vmem [shape: f32[1,2], index: 3, kind: input, shape index: {}]
  %s4 = inlined_call_operand.vmem [shape: bf16[16,2], index: 4, kind: input, shape index: {}]
  %s5 = inlined_call_operand.vmem [shape: f32[1,2], index: 5, kind: input, shape index: {}]
  %s6 = inlined_call_operand.vmem [shape: bf16[16,16], index: 6, kind: input, shape index: {}]
  %s7 = inlined_call_operand.vmem [shape: f32[1,16], index: 7, kind: input, shape index: {}]
  %s8 = inlined_call_operand.<no memory space> [shape: f32[1], index: 8, kind: input, shape index: {}]
  %s9 = inlined_call_operand.vmem [shape: f32[2,16,16,16], index: 9, kind: output, shape index: {0}]
  %s10 = inlined_call_operand.vmem [shape: f32[2,16,16,16], index: 10, kind: output, shape index: {1}]
  %11 = xla_tuple %s9, %s10
  %s12 = sld [smem:[#allocation0]]
  $region77: #{rcca_forward.6} parent=0
    _
  %s14 = ssub.s32 1, %s12
  %s15 = scalar_select 0, %s14, %s12
  %16 = sst [smem:[#allocation2]] %s8
  loop: start=0, step=1, limit=4
  $region2: #{rcca_forward.6} parent=0 // loop_pre_header
    _
  $region3: #{rcca_forward.6} parent=0 // loop_header
    %s18 = sphi 0, %s22
    %p19 = scmp.ge.s32.totalorder %s18, 4
    %s28 = sphi 0, %s30
    %s31 = sphi 0, %s28
    %s32 = sphi 0, %s31
    %s48 = sphi 0, %s32
    %s54 = sphi 0, %s56
    %s57 = sphi 0, %s54
    %s58 = sphi 0, %s57
    %s74 = sphi 0, %s58
    %s78 = sphi 0, %s78
    %s80 = sphi 0, %s78
    %s81 = sphi 0, %s80
    %s95 = sphi 0, %s81
    %s99 = sphi 0, %s99
    %s101 = sphi 0, %s99
    %s102 = sphi 0, %s101
    %s116 = sphi 0, %s102
    %s120 = sphi 0, %s120
    %s122 = sphi 0, %s120
    %s123 = sphi 0, %s122
    %s137 = sphi 0, %s123
    %s141 = sphi 0, %s141
    %s143 = sphi 0, %s141
    %s144 = sphi 0, %s143
    %s158 = sphi 0, %s144
    %s162 = sphi 0, %s162
    %s164 = sphi 0, %s162
    %s165 = sphi 0, %s164
    %s179 = sphi 0, %s165
    %s183 = sphi 0, %s183
    %s185 = sphi 0, %s183
    %s186 = sphi 0, %s185
    %s200 = sphi 0, %s186
    %s204 = sphi 0, %s204
    %s206 = sphi 0, %s204
    %s207 = sphi 0, %s206
    %s221 = sphi 0, %s207
    %s227 = sphi 0, %s229
    %s230 = sphi 0, %s227
    %s231 = sphi 0, %s230
    %s247 = sphi 0, %s231
    %s253 = sphi 0, %s255
    %s256 = sphi 0, %s253
    %s257 = sphi 0, %s256
    %s273 = sphi 0, %s257
  $region4: #{rcca_forward.6} parent=0 // loop_header_branch
    %21 = sbr.rel (%p19) target = $region8
  $region5: #{rcca_forward.6} parent=0 // loop_body
    %s23 = ssub.s32 %s18, 1
    %s24 = ssub.s32 %s18, 2
    %s25 = sadd.s32 %s18, 1
    %s26 = ssub.s32 %s18, %s25
    %p27 = scmp.eq.s32.totalorder %s26, 0
    %s29 = sadd.s32 %s28, 1
    %s30 = scalar_select %p27, %s28, %s29
    %p33 = pneg %p27
    %p34 = scmp.eq.s32.totalorder %s18, 1
    %p35 = por %p33, %p34
    %p36 = scmp.ne.s32.totalorder %s28, %s31
    %p37 = scmp.eq.s32.totalorder %s18, 0
    %p38 = por %p36, %p37
    %p39 = scmp.ne.s32.totalorder %s28, %s31
    %p40 = scmp.eq.s32.totalorder %s23, 1
    %p41 = por %p39, %p40
    %p42 = scmp.ne.s32.totalorder %s31, %s32
    %p43 = scmp.eq.s32.totalorder %s23, 0
    %p44 = por %p42, %p43
    %p45 = scmp.ne.s32.totalorder %s31, %s32
    %p46 = scmp.eq.s32.totalorder %s24, 1
    %p47 = por %p45, %p46
    %p49 = scmp.ne.s32.totalorder %s32, %s48
    %p50 = scmp.eq.s32.totalorder %s24, 0
    %p51 = por %p49, %p50
    %s52 = ssub.s32 %s18, %s25
    %p53 = scmp.eq.s32.totalorder %s52, 0
    %s55 = sadd.s32 %s54, 1
    %s56 = scalar_select %p53, %s54, %s55
    %p59 = pneg %p53
    %p60 = scmp.eq.s32.totalorder %s18, 1
    %p61 = por %p59, %p60
    %p62 = scmp.ne.s32.totalorder %s54, %s57
    %p63 = scmp.eq.s32.totalorder %s18, 0
    %p64 = por %p62, %p63
    %p65 = scmp.ne.s32.totalorder %s54, %s57
    %p66 = scmp.eq.s32.totalorder %s23, 1
    %p67 = por %p65, %p66
    %p68 = scmp.ne.s32.totalorder %s57, %s58
    %p69 = scmp.eq.s32.totalorder %s23, 0
    %p70 = por %p68, %p69
    %p71 = scmp.ne.s32.totalorder %s57, %s58
    %p72 = scmp.eq.s32.totalorder %s24, 1
    %p73 = por %p71, %p72
    %p75 = scmp.ne.s32.totalorder %s58, %s74
    %p76 = scmp.eq.s32.totalorder %s24, 0
    %p77 = por %p75, %p76
    %s79 = sadd.s32 %s78, 1
    %p82 = scmp.eq.s32.totalorder %s18, 1
    %p83 = scmp.ne.s32.totalorder %s78, %s80
    %p84 = scmp.eq.s32.totalorder %s18, 0
    %p85 = por %p83, %p84
    %p86 = scmp.ne.s32.totalorder %s78, %s80
    %p87 = scmp.eq.s32.totalorder %s23, 1
    %p88 = por %p86, %p87
    %p89 = scmp.ne.s32.totalorder %s80, %s81
    %p90 = scmp.eq.s32.totalorder %s23, 0
    %p91 = por %p89, %p90
    %p92 = scmp.ne.s32.totalorder %s80, %s81
    %p93 = scmp.eq.s32.totalorder %s24, 1
    %p94 = por %p92, %p93
    %p96 = scmp.ne.s32.totalorder %s81, %s95
    %p97 = scmp.eq.s32.totalorder %s24, 0
    %p98 = por %p96, %p97
    %s100 = sadd.s32 %s99, 1
    %p103 = scmp.eq.s32.totalorder %s18, 1
    %p104 = scmp.ne.s32.totalorder %s99, %s101
    %p105 = scmp.eq.s32.totalorder %s18, 0
    %p106 = por %p104, %p105
    %p107 = scmp.ne.s32.totalorder %s99, %s101
    %p108 = scmp.eq.s32.totalorder %s23, 1
    %p109 = por %p107, %p108
    %p110 = scmp.ne.s32.totalorder %s101, %s102
    %p111 = scmp.eq.s32.totalorder %s23, 0
    %p112 = por %p110, %p111
    %p113 = scmp.ne.s32.totalorder %s101, %s102
    %p114 = scmp.eq.s32.totalorder %s24, 1
    %p115 = por %p113, %p114
    %p117 = scmp.ne.s32.totalorder %s102, %s116
    %p118 = scmp.eq.s32.totalorder %s24, 0
    %p119 = por %p117, %p118
    %s121 = sadd.s32 %s120, 1
    %p124 = scmp.eq.s32.totalorder %s18, 1
    %p125 = scmp.ne.s32.totalorder %s120, %s122
    %p126 = scmp.eq.s32.totalorder %s18, 0
    %p127 = por %p125, %p126
    %p128 = scmp.ne.s32.totalorder %s120, %s122
    %p129 = scmp.eq.s32.totalorder %s23, 1
    %p130 = por %p128, %p129
    %p131 = scmp.ne.s32.totalorder %s122, %s123
    %p132 = scmp.eq.s32.totalorder %s23, 0
    %p133 = por %p131, %p132
    %p134 = scmp.ne.s32.totalorder %s122, %s123
    %p135 = scmp.eq.s32.totalorder %s24, 1
    %p136 = por %p134, %p135
    %p138 = scmp.ne.s32.totalorder %s123, %s137
    %p139 = scmp.eq.s32.totalorder %s24, 0
    %p140 = por %p138, %p139
    %s142 = sadd.s32 %s141, 1
    %p145 = scmp.eq.s32.totalorder %s18, 1
    %p146 = scmp.ne.s32.totalorder %s141, %s143
    %p147 = scmp.eq.s32.totalorder %s18, 0
    %p148 = por %p146, %p147
    %p149 = scmp.ne.s32.totalorder %s141, %s143
    %p150 = scmp.eq.s32.totalorder %s23, 1
    %p151 = por %p149, %p150
    %p152 = scmp.ne.s32.totalorder %s143, %s144
    %p153 = scmp.eq.s32.totalorder %s23, 0
    %p154 = por %p152, %p153
    %p155 = scmp.ne.s32.totalorder %s143, %s144
    %p156 = scmp.eq.s32.totalorder %s24, 1
    %p157 = por %p155, %p156
    %p159 = scmp.ne.s32.totalorder %s144, %s158
    %p160 = scmp.eq.s32.totalorder %s24, 0
    %p161 = por %p159, %p160
    %s163 = sadd.s32 %s162, 1
    %p166 = scmp.eq.s32.totalorder %s18, 1
    %p167 = scmp.ne.s32.totalorder %s162, %s164
    %p168 = scmp.eq.s32.totalorder %s18, 0
    %p169 = por %p167, %p168
    %p170 = scmp.ne.s32.totalorder %s162, %s164
    %p171 = scmp.eq.s32.totalorder %s23, 1
    %p172 = por %p170, %p171
    %p173 = scmp.ne.s32.totalorder %s164, %s165
    %p174 = scmp.eq.s32.totalorder %s23, 0
    %p175 = por %p173, %p174
    %p176 = scmp.ne.s32.totalorder %s164, %s165
    %p177 = scmp.eq.s32.totalorder %s24, 1
    %p178 = por %p176, %p177
    %p180 = scmp.ne.s32.totalorder %s165, %s179
    %p181 = scmp.eq.s32.totalorder %s24, 0
    %p182 = por %p180, %p181
    %s184 = sadd.s32 %s183, 1
    %p187 = scmp.eq.s32.totalorder %s18, 1
    %p188 = scmp.ne.s32.totalorder %s183, %s185
    %p189 = scmp.eq.s32.totalorder %s18, 0
    %p190 = por %p188, %p189
    %p191 = scmp.ne.s32.totalorder %s183, %s185
    %p192 = scmp.eq.s32.totalorder %s23, 1
    %p193 = por %p191, %p192
    %p194 = scmp.ne.s32.totalorder %s185, %s186
    %p195 = scmp.eq.s32.totalorder %s23, 0
    %p196 = por %p194, %p195
    %p197 = scmp.ne.s32.totalorder %s185, %s186
    %p198 = scmp.eq.s32.totalorder %s24, 1
    %p199 = por %p197, %p198
    %p201 = scmp.ne.s32.totalorder %s186, %s200
    %p202 = scmp.eq.s32.totalorder %s24, 0
    %p203 = por %p201, %p202
    %s205 = sadd.s32 %s204, 1
    %p208 = scmp.eq.s32.totalorder %s18, 1
    %p209 = scmp.ne.s32.totalorder %s204, %s206
    %p210 = scmp.eq.s32.totalorder %s18, 0
    %p211 = por %p209, %p210
    %p212 = scmp.ne.s32.totalorder %s204, %s206
    %p213 = scmp.eq.s32.totalorder %s23, 1
    %p214 = por %p212, %p213
    %p215 = scmp.ne.s32.totalorder %s206, %s207
    %p216 = scmp.eq.s32.totalorder %s23, 0
    %p217 = por %p215, %p216
    %p218 = scmp.ne.s32.totalorder %s206, %s207
    %p219 = scmp.eq.s32.totalorder %s24, 1
    %p220 = por %p218, %p219
    %p222 = scmp.ne.s32.totalorder %s207, %s221
    %p223 = scmp.eq.s32.totalorder %s24, 0
    %p224 = por %p222, %p223
    %s225 = ssub.s32 %s18, %s25
    %p226 = scmp.eq.s32.totalorder %s225, 0
    %s228 = sadd.s32 %s227, 1
    %s229 = scalar_select %p226, %s227, %s228
    %p232 = pneg %p226
    %p233 = scmp.eq.s32.totalorder %s18, 1
    %p234 = por %p232, %p233
    %p235 = scmp.ne.s32.totalorder %s227, %s230
    %p236 = scmp.eq.s32.totalorder %s18, 0
    %p237 = por %p235, %p236
    %p238 = scmp.ne.s32.totalorder %s227, %s230
    %p239 = scmp.eq.s32.totalorder %s23, 1
    %p240 = por %p238, %p239
    %p241 = scmp.ne.s32.totalorder %s230, %s231
    %p242 = scmp.eq.s32.totalorder %s23, 0
    %p243 = por %p241, %p242
    %p244 = scmp.ne.s32.totalorder %s230, %s231
    %p245 = scmp.eq.s32.totalorder %s24, 1
    %p246 = por %p244, %p245
    %p248 = scmp.ne.s32.totalorder %s231, %s247
    %p249 = scmp.eq.s32.totalorder %s24, 0
    %p250 = por %p248, %p249
    %s251 = ssub.s32 %s18, %s25
    %p252 = scmp.eq.s32.totalorder %s251, 0
    %s254 = sadd.s32 %s253, 1
    %s255 = scalar_select %p252, %s253, %s254
    %p258 = pneg %p252
    %p259 = scmp.eq.s32.totalorder %s18, 1
    %p260 = por %p258, %p259
    %p261 = scmp.ne.s32.totalorder %s253, %s256
    %p262 = scmp.eq.s32.totalorder %s18, 0
    %p263 = por %p261, %p262
    %p264 = scmp.ne.s32.totalorder %s253, %s256
    %p265 = scmp.eq.s32.totalorder %s23, 1
    %p266 = por %p264, %p265
    %p267 = scmp.ne.s32.totalorder %s256, %s257
    %p268 = scmp.eq.s32.totalorder %s23, 0
    %p269 = por %p267, %p268
    %p270 = scmp.ne.s32.totalorder %s256, %s257
    %p271 = scmp.eq.s32.totalorder %s24, 1
    %p272 = por %p270, %p271
    %p274 = scmp.ne.s32.totalorder %s257, %s273
    %p275 = scmp.eq.s32.totalorder %s24, 0
    %p276 = por %p274, %p275
    %p277 = scmp.le.s32.totalorder 1, %s18
    %p278 = scmp.lt.s32.totalorder %s18, 3
    %p279 = pnand %p277, %p278
    %p280 = pneg %p279
    // Predicated region
    $region9: #{rcca_forward.6} parent=5 // pred_check
      _
    $region10: #{rcca_forward.6} parent=5 // pred_check_branch
      %282 = sbr.rel (%p279) target = $region12
    $region11: #{rcca_forward.6} parent=5 // pred_region
      %s283 = ssub.s32 %s18, 1
      // Predicated region
      $region13: #{rcca_forward.6} parent=11 // pred_check
        %p284 = pneg %p91
      $region14: #{rcca_forward.6} parent=11 // pred_check_branch
        %286 = sbr.rel (%p284) target = $region16
      $region15: #{rcca_forward.6} parent=11 // pred_region
        _
      $region16: #{rcca_forward.6} parent=11 // pred_fallthru
        _
      // Predicated region
      $region17: #{rcca_forward.6} parent=11 // pred_check
        %p287 = pneg %p112
      $region18: #{rcca_forward.6} parent=11 // pred_check_branch
        %289 = sbr.rel (%p287) target = $region20
      $region19: #{rcca_forward.6} parent=11 // pred_region
        _
      $region20: #{rcca_forward.6} parent=11 // pred_fallthru
        _
      // Predicated region
      $region21: #{rcca_forward.6} parent=11 // pred_check
        %p290 = pneg %p133
      $region22: #{rcca_forward.6} parent=11 // pred_check_branch
        %292 = sbr.rel (%p290) target = $region24
      $region23: #{rcca_forward.6} parent=11 // pred_region
        _
      $region24: #{rcca_forward.6} parent=11 // pred_fallthru
        _
      // Predicated region
      $region25: #{rcca_forward.6} parent=11 // pred_check
        %p293 = pneg %p154
      $region26: #{rcca_forward.6} parent=11 // pred_check_branch
        %295 = sbr.rel (%p293) target = $region28
      $region27: #{rcca_forward.6} parent=11 // pred_region
        _
      $region28: #{rcca_forward.6} parent=11 // pred_fallthru
        _
      // Predicated region
      $region29: #{rcca_forward.6} parent=11 // pred_check
        %p296 = pneg %p175
      $region30: #{rcca_forward.6} parent=11 // pred_check_branch
        %298 = sbr.rel (%p296) target = $region32
      $region31: #{rcca_forward.6} parent=11 // pred_region
        _
      $region32: #{rcca_forward.6} parent=11 // pred_fallthru
        _
      // Predicated region
      $region33: #{rcca_forward.6} parent=11 // pred_check
        %p299 = pneg %p196
      $region34: #{rcca_forward.6} parent=11 // pred_check_branch
        %301 = sbr.rel (%p299) target = $region36
      $region35: #{rcca_forward.6} parent=11 // pred_region
        _
      $region36: #{rcca_forward.6} parent=11 // pred_fallthru
        _
      // Predicated region
      $region37: #{rcca_forward.6} parent=11 // pred_check
        %p302 = pneg %p217
      $region38: #{rcca_forward.6} parent=11 // pred_check_branch
        %304 = sbr.rel (%p302) target = $region40
      $region39: #{rcca_forward.6} parent=11 // pred_region
        _
      $region40: #{rcca_forward.6} parent=11 // pred_fallthru
        _
    $region12: #{rcca_forward.6} parent=5 // pred_fallthru
      _
    %p305 = scmp.lt.s32.totalorder %s18, 2
    // Predicated region
    $region41: #{rcca_forward.6} parent=5 // pred_check
      %p306 = pneg %p305
    $region42: #{rcca_forward.6} parent=5 // pred_check_branch
      %308 = sbr.rel (%p306) target = $region44
    $region43: #{rcca_forward.6} parent=5 // pred_region
      // Predicated region
      $region45: #{rcca_forward.6} parent=43 // pred_check
        %p309 = pneg %p38
      $region46: #{rcca_forward.6} parent=43 // pred_check_branch
        %311 = sbr.rel (%p309) target = $region48
      $region47: #{rcca_forward.6} parent=43 // pred_region
        %p312 = scmp.lt.s32.totalorder %s18, 1
        %s313 = scalar_select %p312, %s18, 1
        %s314 = smul.addr %s313, 32
        %s315 = smul.addr %s314, 8
        %s316 = scalar_lea.vmem %s0, %s315
      $region48: #{rcca_forward.6} parent=43 // pred_fallthru
        _
      // Predicated region
      $region49: #{rcca_forward.6} parent=43 // pred_check
        %p317 = pneg %p64
      $region50: #{rcca_forward.6} parent=43 // pred_check_branch
        %319 = sbr.rel (%p317) target = $region52
      $region51: #{rcca_forward.6} parent=43 // pred_region
        %p320 = scmp.lt.s32.totalorder %s18, 1
        %s321 = scalar_select %p320, %s18, 1
        %s322 = smul.addr %s321, 32
        %s323 = smul.addr %s322, 8
        %s324 = scalar_lea.vmem %s1, %s323
      $region52: #{rcca_forward.6} parent=43 // pred_fallthru
        _
    $region44: #{rcca_forward.6} parent=5 // pred_fallthru
      _
    %p325 = scmp.le.s32.totalorder 1, %s18
    %p326 = scmp.lt.s32.totalorder %s18, 3
    %p327 = pnand %p325, %p326
    %p328 = pneg %p327
    // Predicated region
    $region53: #{rcca_forward.6} parent=5 // pred_check
      _
    $region54: #{rcca_forward.6} parent=5 // pred_check_branch
      %330 = sbr.rel (%p327) target = $region56
    $region55: #{rcca_forward.6} parent=5 // pred_region
      %s331 = ssub.s32 %s18, 1
      %p332 = scmp.lt.s32.totalorder %s23, 1
      %s333 = scalar_select %p332, %s23, 1
      %s334 = smul.addr %s333, 32
      %s335 = smul.addr %s334, 8
      %s336 = scalar_lea.vmem %s0, %s335
      %p337 = pneg %p44
      %p338 = pneg %p41
      %p339 = scmp.lt.s32.totalorder %s23, 1
      %s340 = scalar_select %p339, %s23, 1
      %s341 = smul.addr %s340, 32
      %s342 = smul.addr %s341, 8
      %s343 = scalar_lea.vmem %s1, %s342
      %p344 = pneg %p70
      %p345 = pneg %p67
      %p346 = pneg %p91
      %p347 = pneg %p88
      %p348 = pneg %p112
      %p349 = pneg %p109
      %p350 = pneg %p133
      %p351 = pneg %p130
      %p352 = pneg %p154
      %p353 = pneg %p151
      %p354 = pneg %p175
      %p355 = pneg %p172
      %p356 = pneg %p196
      %p357 = pneg %p193
      %p358 = pneg %p217
      %p359 = pneg %p214
      %p360 = pneg %p243
      %p361 = pneg %p240
      %p362 = scmp.lt.s32.totalorder %s23, 1
      %s363 = scalar_select %p362, %s23, 1
      %s364 = smul.addr %s363, 32
      %s365 = smul.addr %s364, 8
      %s366 = scalar_lea.vmem %s9, %s365
      %p367 = pneg %p269
      %p368 = pneg %p266
      %p369 = scmp.lt.s32.totalorder %s23, 1
      %s370 = scalar_select %p369, %s23, 1
      %s371 = smul.addr %s370, 32
      %s372 = smul.addr %s371, 8
      %s373 = scalar_lea.vmem %s10, %s372
      %p374 = scmp.lt.s32.totalorder %s23, 1
      %s375 = scalar_select %p374, %s23, 1
      %s376 = smul.addr %s375, 32
      %s377 = smul.addr %s376, 8
      %s378 = scalar_lea.vmem %s0, %s377
      %p379 = scmp.lt.s32.totalorder %s23, 1
      %s380 = scalar_select %p379, %s23, 1
      %s381 = smul.addr %s380, 32
      %s382 = smul.addr %s381, 8
      %s383 = scalar_lea.vmem %s1, %s382
      %p384 = scmp.lt.s32.totalorder %s23, 1
      %s385 = scalar_select %p384, %s23, 1
      %s386 = smul.addr %s385, 32
      %s387 = smul.addr %s386, 8
      %s388 = scalar_lea.vmem %s9, %s387
      %p389 = scmp.lt.s32.totalorder %s23, 1
      %s390 = scalar_select %p389, %s23, 1
      %s391 = smul.addr %s390, 32
      %s392 = smul.addr %s391, 8
      %s393 = scalar_lea.vmem %s10, %s392
      %v395 = vld [vmem:[%s378] sm:$0xff]
      %v396 = vld [vmem:[%s378 + $0x8] sm:$0xff]
      %v397 = vld [vmem:[%s378 + $0x10] sm:$0xff]
      %v398 = vld [vmem:[%s378 + $0x18] sm:$0xff]
      %v399 = vld [vmem:[%s378 + $0x20] sm:$0xff]
      %v400 = vld [vmem:[%s378 + $0x28] sm:$0xff]
      %v401 = vld [vmem:[%s378 + $0x30] sm:$0xff]
      %v402 = vld [vmem:[%s378 + $0x38] sm:$0xff]
      %v403 = vld [vmem:[%s378 + $0x40] sm:$0xff]
      %v404 = vld [vmem:[%s378 + $0x48] sm:$0xff]
      %v405 = vld [vmem:[%s378 + $0x50] sm:$0xff]
      %v406 = vld [vmem:[%s378 + $0x58] sm:$0xff]
      %v407 = vld [vmem:[%s378 + $0x60] sm:$0xff]
      %v408 = vld [vmem:[%s378 + $0x68] sm:$0xff]
      %v409 = vld [vmem:[%s378 + $0x70] sm:$0xff]
      %v410 = vld [vmem:[%s378 + $0x78] sm:$0xff]
      %v411 = vld [vmem:[%s378 + $0x80] sm:$0xff]
      %v412 = vld [vmem:[%s378 + $0x88] sm:$0xff]
      %v413 = vld [vmem:[%s378 + $0x90] sm:$0xff]
      %v414 = vld [vmem:[%s378 + $0x98] sm:$0xff]
      %v415 = vld [vmem:[%s378 + $0xa0] sm:$0xff]
      %v416 = vld [vmem:[%s378 + $0xa8] sm:$0xff]
      %v417 = vld [vmem:[%s378 + $0xb0] sm:$0xff]
      %v418 = vld [vmem:[%s378 + $0xb8] sm:$0xff]
      %v419 = vld [vmem:[%s378 + $0xc0] sm:$0xff]
      %v420 = vld [vmem:[%s378 + $0xc8] sm:$0xff]
      %v421 = vld [vmem:[%s378 + $0xd0] sm:$0xff]
      %v422 = vld [vmem:[%s378 + $0xd8] sm:$0xff]
      %v423 = vld [vmem:[%s378 + $0xe0] sm:$0xff]
      %v424 = vld [vmem:[%s378 + $0xe8] sm:$0xff]
      %v425 = vld [vmem:[%s378 + $0xf0] sm:$0xff]
      %v426 = vld [vmem:[%s378 + $0xf8] sm:$0xff]
      %v427 = vpack.c.bf16 %v396, %v395
      %v428 = vpack.c.bf16 %v398, %v397
      %v429 = vpack.c.bf16 %v400, %v399
      %v430 = vpack.c.bf16 %v402, %v401
      %v431 = vpack.c.bf16 %v404, %v403
      %v432 = vpack.c.bf16 %v406, %v405
      %v433 = vpack.c.bf16 %v408, %v407
      %v434 = vpack.c.bf16 %v410, %v409
      %v435 = vpack.c.bf16 %v412, %v411
      %v436 = vpack.c.bf16 %v414, %v413
      %v437 = vpack.c.bf16 %v416, %v415
      %v438 = vpack.c.bf16 %v418, %v417
      %v439 = vpack.c.bf16 %v420, %v419
      %v440 = vpack.c.bf16 %v422, %v421
      %v441 = vpack.c.bf16 %v424, %v423
      %v442 = vpack.c.bf16 %v426, %v425
      %v443 = vld [vmem:[%s383] sm:$0xff]
      %v444 = vld [vmem:[%s383 + $0x8] sm:$0xff]
      %v445 = vld [vmem:[%s383 + $0x10] sm:$0xff]
      %v446 = vld [vmem:[%s383 + $0x18] sm:$0xff]
      %v447 = vld [vmem:[%s383 + $0x20] sm:$0xff]
      %v448 = vld [vmem:[%s383 + $0x28] sm:$0xff]
      %v449 = vld [vmem:[%s383 + $0x30] sm:$0xff]
      %v450 = vld [vmem:[%s383 + $0x38] sm:$0xff]
      %v451 = vld [vmem:[%s383 + $0x40] sm:$0xff]
      %v452 = vld [vmem:[%s383 + $0x48] sm:$0xff]
      %v453 = vld [vmem:[%s383 + $0x50] sm:$0xff]
      %v454 = vld [vmem:[%s383 + $0x58] sm:$0xff]
      %v455 = vld [vmem:[%s383 + $0x60] sm:$0xff]
      %v456 = vld [vmem:[%s383 + $0x68] sm:$0xff]
      %v457 = vld [vmem:[%s383 + $0x70] sm:$0xff]
      %v458 = vld [vmem:[%s383 + $0x78] sm:$0xff]
      %v459 = vld [vmem:[%s383 + $0x80] sm:$0xff]
      %v460 = vld [vmem:[%s383 + $0x88] sm:$0xff]
      %v461 = vld [vmem:[%s383 + $0x90] sm:$0xff]
      %v462 = vld [vmem:[%s383 + $0x98] sm:$0xff]
      %v463 = vld [vmem:[%s383 + $0xa0] sm:$0xff]
      %v464 = vld [vmem:[%s383 + $0xa8] sm:$0xff]
      %v465 = vld [vmem:[%s383 + $0xb0] sm:$0xff]
      %v466 = vld [vmem:[%s383 + $0xb8] sm:$0xff]
      %v467 = vld [vmem:[%s383 + $0xc0] sm:$0xff]
      %v468 = vld [vmem:[%s383 + $0xc8] sm:$0xff]
      %v469 = vld [vmem:[%s383 + $0xd0] sm:$0xff]
      %v470 = vld [vmem:[%s383 + $0xd8] sm:$0xff]
      %v471 = vld [vmem:[%s383 + $0xe0] sm:$0xff]
      %v472 = vld [vmem:[%s383 + $0xe8] sm:$0xff]
      %v473 = vld [vmem:[%s383 + $0xf0] sm:$0xff]
      %v474 = vld [vmem:[%s383 + $0xf8] sm:$0xff]
      %v475 = vpack.c.bf16 %v444, %v443
      %v476 = vpack.c.bf16 %v446, %v445
      %v477 = vpack.c.bf16 %v448, %v447
      %v478 = vpack.c.bf16 %v450, %v449
      %v479 = vpack.c.bf16 %v452, %v451
      %v480 = vpack.c.bf16 %v454, %v453
      %v481 = vpack.c.bf16 %v456, %v455
      %v482 = vpack.c.bf16 %v458, %v457
      %v483 = vpack.c.bf16 %v460, %v459
      %v484 = vpack.c.bf16 %v462, %v461
      %v485 = vpack.c.bf16 %v464, %v463
      %v486 = vpack.c.bf16 %v466, %v465
      %v487 = vpack.c.bf16 %v468, %v467
      %v488 = vpack.c.bf16 %v470, %v469
      %v489 = vpack.c.bf16 %v472, %v471
      %v490 = vpack.c.bf16 %v474, %v473
      %v491 = vld [vmem:[%s2] sm:$0xf]
      %v492 = vld [vmem:[%s2 + $0x4] sm:$0xf]
      %v493 = vld [vmem:[%s3] sm:$0x1]
      %v495 = vlaneseq
      %v496 = vshrl.u32 %v495, 7
      %v497 = vsub.s32 0, %v496
      %v498 = vrot.slane %v493, %v497
      %v502 = vunpack.c.l.b16 %v491
      %v503 = vunpack.c.l.b16 %v492
      %v504 = vpack.c.b16 %v503, %v502
      %vm506 = vcmask 130048
      %v508 = vsel %vm506, %v427, 0
      %v511 = vsel %vm506, %v428, 0
      %v514 = vsel %vm506, %v429, 0
      %v517 = vsel %vm506, %v430, 0
      %v520 = vsel %vm506, %v431, 0
      %v523 = vsel %vm506, %v432, 0
      %v526 = vsel %vm506, %v433, 0
      %v529 = vsel %vm506, %v434, 0
      %v532 = vsel %vm506, %v435, 0
      %v535 = vsel %vm506, %v436, 0
      %v538 = vsel %vm506, %v437, 0
      %v541 = vsel %vm506, %v438, 0
      %v544 = vsel %vm506, %v439, 0
      %v547 = vsel %vm506, %v440, 0
      %v550 = vsel %vm506, %v441, 0
      %v553 = vsel %vm506, %v442, 0
      %555 = vmatprep.subr.bf16.mxu0 0
      %556 = vmatpush1.bf16.msra.mxu0 0
      %557 = vmatprep.subr.bf16.mxu0 0
      %558 = vmatpush1.bf16.msra.mxu0 0
      %559 = vmatprep.subr.bf16.mxu0 0
      %560 = vmatpush1.bf16.msra.mxu0 0
      %561 = vmatprep.subr.bf16.mxu0 0
      %562 = vmatpush1.bf16.msra.mxu0 0
      %563 = vmatprep.subr.bf16.mxu0 0
      %564 = vmatpush1.bf16.msra.mxu0 0
      %565 = vmatprep.subr.bf16.mxu0 0
      %566 = vmatpush1.bf16.msra.mxu0 0
      %567 = vmatprep.subr.bf16.mxu0 0
      %568 = vmatpush1.bf16.msra.mxu0 0
      %569 = vmatprep.subr.bf16.mxu0 0
      %570 = vmatpush1.bf16.msra.mxu0 %v504
      %571 = vmatprep.subr.bf16.mxu0 0
      %572 = vmatpush2.bf16.msra.mxu0 0
      %573 = vmatprep.subr.bf16.mxu0 0
      %574 = vmatpush2.bf16.msra.mxu0 0
      %575 = vmatprep.subr.bf16.mxu0 0
      %576 = vmatpush2.bf16.msra.mxu0 0
      %577 = vmatprep.subr.bf16.mxu0 0
      %578 = vmatpush2.bf16.msra.mxu0 0
      %579 = vmatprep.subr.bf16.mxu0 0
      %580 = vmatpush2.bf16.msra.mxu0 0
      %581 = vmatprep.subr.bf16.mxu0 0
      %582 = vmatpush2.bf16.msra.mxu0 0
      %583 = vmatprep.subr.bf16.mxu0 0
      %584 = vmatpush2.bf16.msra.mxu0 0
      %585 = vmatprep.subr.bf16.mxu0 0
      %586 = vmatpush2.bf16.msra.mxu0 0
      %587 = vmatprep.mubr.bf16.mxu0 0
      %588 = vmatmul.mubr.bf16.gmra.mxu0 %v508
      %v589 = vpop.f32.mrf.mxu0
      %v590 = vadd.f32 %v498, %v589
      %v591 = vpop.f32.mrf.mxu0
      %v592 = vpop.f32.mrf.mxu0
      %v593 = vadd.f32 %v498, %v592
      %v594 = vpop.f32.mrf.mxu0
      %595 = vmatprep.mubr.bf16.mxu0 0
      %596 = vmatmul.mubr.bf16.gmra.mxu0 %v511
      %v597 = vpop.f32.mrf.mxu0
      %v598 = vadd.f32 %v498, %v597
      %v599 = vpop.f32.mrf.mxu0
      %v600 = vpop.f32.mrf.mxu0
      %v601 = vadd.f32 %v498, %v600
      %v602 = vpop.f32.mrf.mxu0
      %603 = vmatprep.mubr.bf16.mxu0 0
      %604 = vmatmul.mubr.bf16.gmra.mxu0 %v514
      %v605 = vpop.f32.mrf.mxu0
      %v606 = vadd.f32 %v498, %v605
      %v607 = vpop.f32.mrf.mxu0
      %v608 = vpop.f32.mrf.mxu0
      %v609 = vadd.f32 %v498, %v608
      %v610 = vpop.f32.mrf.mxu0
      %611 = vmatprep.mubr.bf16.mxu0 0
      %612 = vmatmul.mubr.bf16.gmra.mxu0 %v517
      %v613 = vpop.f32.mrf.mxu0
      %v614 = vadd.f32 %v498, %v613
      %v615 = vpop.f32.mrf.mxu0
      %v616 = vpop.f32.mrf.mxu0
      %v617 = vadd.f32 %v498, %v616
      %v618 = vpop.f32.mrf.mxu0
      %619 = vmatprep.mubr.bf16.mxu0 0
      %620 = vmatmul.mubr.bf16.gmra.mxu0 %v520
      %v621 = vpop.f32.mrf.mxu0
      %v622 = vadd.f32 %v498, %v621
      %v623 = vpop.f32.mrf.mxu0
      %v624 = vpop.f32.mrf.mxu0
      %v625 = vadd.f32 %v498, %v624
      %v626 = vpop.f32.mrf.mxu0
      %627 = vmatprep.mubr.bf16.mxu0 0
      %628 = vmatmul.mubr.bf16.gmra.mxu0 %v523
      %v629 = vpop.f32.mrf.mxu0
      %v630 = vadd.f32 %v498, %v629
      %v631 = vpop.f32.mrf.mxu0
      %v632 = vpop.f32.mrf.mxu0
      %v633 = vadd.f32 %v498, %v632
      %v634 = vpop.f32.mrf.mxu0
      %635 = vmatprep.mubr.bf16.mxu0 0
      %636 = vmatmul.mubr.bf16.gmra.mxu0 %v526
      %v637 = vpop.f32.mrf.mxu0
      %v638 = vadd.f32 %v498, %v637
      %v639 = vpop.f32.mrf.mxu0
      %v640 = vpop.f32.mrf.mxu0
      %v641 = vadd.f32 %v498, %v640
      %v642 = vpop.f32.mrf.mxu0
      %643 = vmatprep.mubr.bf16.mxu0 0
      %644 = vmatmul.mubr.bf16.gmra.mxu0 %v529
      %v645 = vpop.f32.mrf.mxu0
      %v646 = vadd.f32 %v498, %v645
      %v647 = vpop.f32.mrf.mxu0
      %v648 = vpop.f32.mrf.mxu0
      %v649 = vadd.f32 %v498, %v648
      %v650 = vpop.f32.mrf.mxu0
      %651 = vmatprep.mubr.bf16.mxu0 0
      %652 = vmatmul.mubr.bf16.gmra.mxu0 %v532
      %v653 = vpop.f32.mrf.mxu0
      %v654 = vadd.f32 %v498, %v653
      %v655 = vpop.f32.mrf.mxu0
      %v656 = vpop.f32.mrf.mxu0
      %v657 = vadd.f32 %v498, %v656
      %v658 = vpop.f32.mrf.mxu0
      %659 = vmatprep.mubr.bf16.mxu0 0
      %660 = vmatmul.mubr.bf16.gmra.mxu0 %v535
      %v661 = vpop.f32.mrf.mxu0
      %v662 = vadd.f32 %v498, %v661
      %v663 = vpop.f32.mrf.mxu0
      %v664 = vpop.f32.mrf.mxu0
      %v665 = vadd.f32 %v498, %v664
      %v666 = vpop.f32.mrf.mxu0
      %667 = vmatprep.mubr.bf16.mxu0 0
      %668 = vmatmul.mubr.bf16.gmra.mxu0 %v538
      %v669 = vpop.f32.mrf.mxu0
      %v670 = vadd.f32 %v498, %v669
      %v671 = vpop.f32.mrf.mxu0
      %v672 = vpop.f32.mrf.mxu0
      %v673 = vadd.f32 %v498, %v672
      %v674 = vpop.f32.mrf.mxu0
      %675 = vmatprep.mubr.bf16.mxu0 0
      %676 = vmatmul.mubr.bf16.gmra.mxu0 %v541
      %v677 = vpop.f32.mrf.mxu0
      %v678 = vadd.f32 %v498, %v677
      %v679 = vpop.f32.mrf.mxu0
      %v680 = vpop.f32.mrf.mxu0
      %v681 = vadd.f32 %v498, %v680
      %v682 = vpop.f32.mrf.mxu0
      %683 = vmatprep.mubr.bf16.mxu0 0
      %684 = vmatmul.mubr.bf16.gmra.mxu0 %v544
      %v685 = vpop.f32.mrf.mxu0
      %v686 = vadd.f32 %v498, %v685
      %v687 = vpop.f32.mrf.mxu0
      %v688 = vpop.f32.mrf.mxu0
      %v689 = vadd.f32 %v498, %v688
      %v690 = vpop.f32.mrf.mxu0
      %691 = vmatprep.mubr.bf16.mxu0 0
      %692 = vmatmul.mubr.bf16.gmra.mxu0 %v547
      %v693 = vpop.f32.mrf.mxu0
      %v694 = vadd.f32 %v498, %v693
      %v695 = vpop.f32.mrf.mxu0
      %v696 = vpop.f32.mrf.mxu0
      %v697 = vadd.f32 %v498, %v696
      %v698 = vpop.f32.mrf.mxu0
      %699 = vmatprep.mubr.bf16.mxu0 0
      %700 = vmatmul.mubr.bf16.gmra.mxu0 %v550
      %v701 = vpop.f32.mrf.mxu0
      %v702 = vadd.f32 %v498, %v701
      %v703 = vpop.f32.mrf.mxu0
      %v704 = vpop.f32.mrf.mxu0
      %v705 = vadd.f32 %v498, %v704
      %v706 = vpop.f32.mrf.mxu0
      %707 = vmatprep.mubr.bf16.mxu0 0
      %708 = vmatmul.mubr.bf16.gmra.mxu0 %v553
      %v709 = vpop.f32.mrf.mxu0
      %v710 = vadd.f32 %v498, %v709
      %v711 = vpop.f32.mrf.mxu0
      %v712 = vpop.f32.mrf.mxu0
      %v713 = vadd.f32 %v498, %v712
      %v714 = vpop.f32.mrf.mxu0
      %715 = vdwg.mxu0
      %v716 = vld [vmem:[%s4] sm:$0xf]
      %v717 = vld [vmem:[%s4 + $0x4] sm:$0xf]
      %v718 = vld [vmem:[%s5] sm:$0x1]
      %v720 = vlaneseq
      %v721 = vshrl.u32 %v720, 7
      %v722 = vsub.s32 0, %v721
      %v723 = vrot.slane %v718, %v722
      %v727 = vunpack.c.l.b16 %v716
      %v728 = vunpack.c.l.b16 %v717
      %v729 = vpack.c.b16 %v728, %v727
      %731 = vmatprep.subr.bf16.mxu0 0
      %732 = vmatpush1.bf16.msra.mxu0 0
      %733 = vmatprep.subr.bf16.mxu0 0
      %734 = vmatpush1.bf16.msra.mxu0 0
      %735 = vmatprep.subr.bf16.mxu0 0
      %736 = vmatpush1.bf16.msra.mxu0 0
      %737 = vmatprep.subr.bf16.mxu0 0
      %738 = vmatpush1.bf16.msra.mxu0 0
      %739 = vmatprep.subr.bf16.mxu0 0
      %740 = vmatpush1.bf16.msra.mxu0 0
      %741 = vmatprep.subr.bf16.mxu0 0
      %742 = vmatpush1.bf16.msra.mxu0 0
      %743 = vmatprep.subr.bf16.mxu0 0
      %744 = vmatpush1.bf16.msra.mxu0 0
      %745 = vmatprep.subr.bf16.mxu0 0
      %746 = vmatpush1.bf16.msra.mxu0 %v729
      %747 = vmatprep.subr.bf16.mxu0 0
      %748 = vmatpush2.bf16.msra.mxu0 0
      %749 = vmatprep.subr.bf16.mxu0 0
      %750 = vmatpush2.bf16.msra.mxu0 0
      %751 = vmatprep.subr.bf16.mxu0 0
      %752 = vmatpush2.bf16.msra.mxu0 0
      %753 = vmatprep.subr.bf16.mxu0 0
      %754 = vmatpush2.bf16.msra.mxu0 0
      %755 = vmatprep.subr.bf16.mxu0 0
      %756 = vmatpush2.bf16.msra.mxu0 0
      %757 = vmatprep.subr.bf16.mxu0 0
      %758 = vmatpush2.bf16.msra.mxu0 0
      %759 = vmatprep.subr.bf16.mxu0 0
      %760 = vmatpush2.bf16.msra.mxu0 0
      %761 = vmatprep.subr.bf16.mxu0 0
      %762 = vmatpush2.bf16.msra.mxu0 0
      %763 = vmatprep.mubr.bf16.mxu0 0
      %764 = vmatmul.mubr.bf16.gmra.mxu0 %v508
      %v765 = vpop.f32.mrf.mxu0
      %v766 = vadd.f32 %v723, %v765
      %v767 = vpop.f32.mrf.mxu0
      %v768 = vpop.f32.mrf.mxu0
      %v769 = vadd.f32 %v723, %v768
      %v770 = vpop.f32.mrf.mxu0
      %771 = vmatprep.mubr.bf16.mxu0 0
      %772 = vmatmul.mubr.bf16.gmra.mxu0 %v511
      %v773 = vpop.f32.mrf.mxu0
      %v774 = vadd.f32 %v723, %v773
      %v775 = vpop.f32.mrf.mxu0
      %v776 = vpop.f32.mrf.mxu0
      %v777 = vadd.f32 %v723, %v776
      %v778 = vpop.f32.mrf.mxu0
      %779 = vmatprep.mubr.bf16.mxu0 0
      %780 = vmatmul.mubr.bf16.gmra.mxu0 %v514
      %v781 = vpop.f32.mrf.mxu0
      %v782 = vadd.f32 %v723, %v781
      %v783 = vpop.f32.mrf.mxu0
      %v784 = vpop.f32.mrf.mxu0
      %v785 = vadd.f32 %v723, %v784
      %v786 = vpop.f32.mrf.mxu0
      %787 = vmatprep.mubr.bf16.mxu0 0
      %788 = vmatmul.mubr.bf16.gmra.mxu0 %v517
      %v789 = vpop.f32.mrf.mxu0
      %v790 = vadd.f32 %v723, %v789
      %v791 = vpop.f32.mrf.mxu0
      %v792 = vpop.f32.mrf.mxu0
      %v793 = vadd.f32 %v723, %v792
      %v794 = vpop.f32.mrf.mxu0
      %795 = vmatprep.mubr.bf16.mxu0 0
      %796 = vmatmul.mubr.bf16.gmra.mxu0 %v520
      %v797 = vpop.f32.mrf.mxu0
      %v798 = vadd.f32 %v723, %v797
      %v799 = vpop.f32.mrf.mxu0
      %v800 = vpop.f32.mrf.mxu0
      %v801 = vadd.f32 %v723, %v800
      %v802 = vpop.f32.mrf.mxu0
      %803 = vmatprep.mubr.bf16.mxu0 0
      %804 = vmatmul.mubr.bf16.gmra.mxu0 %v523
      %v805 = vpop.f32.mrf.mxu0
      %v806 = vadd.f32 %v723, %v805
      %v807 = vpop.f32.mrf.mxu0
      %v808 = vpop.f32.mrf.mxu0
      %v809 = vadd.f32 %v723, %v808
      %v810 = vpop.f32.mrf.mxu0
      %811 = vmatprep.mubr.bf16.mxu0 0
      %812 = vmatmul.mubr.bf16.gmra.mxu0 %v526
      %v813 = vpop.f32.mrf.mxu0
      %v814 = vadd.f32 %v723, %v813
      %v815 = vpop.f32.mrf.mxu0
      %v816 = vpop.f32.mrf.mxu0
      %v817 = vadd.f32 %v723, %v816
      %v818 = vpop.f32.mrf.mxu0
      %819 = vmatprep.mubr.bf16.mxu0 0
      %820 = vmatmul.mubr.bf16.gmra.mxu0 %v529
      %v821 = vpop.f32.mrf.mxu0
      %v822 = vadd.f32 %v723, %v821
      %v823 = vpop.f32.mrf.mxu0
      %v824 = vpop.f32.mrf.mxu0
      %v825 = vadd.f32 %v723, %v824
      %v826 = vpop.f32.mrf.mxu0
      %827 = vmatprep.mubr.bf16.mxu0 0
      %828 = vmatmul.mubr.bf16.gmra.mxu0 %v532
      %v829 = vpop.f32.mrf.mxu0
      %v830 = vadd.f32 %v723, %v829
      %v831 = vpop.f32.mrf.mxu0
      %v832 = vpop.f32.mrf.mxu0
      %v833 = vadd.f32 %v723, %v832
      %v834 = vpop.f32.mrf.mxu0
      %835 = vmatprep.mubr.bf16.mxu0 0
      %836 = vmatmul.mubr.bf16.gmra.mxu0 %v535
      %v837 = vpop.f32.mrf.mxu0
      %v838 = vadd.f32 %v723, %v837
      %v839 = vpop.f32.mrf.mxu0
      %v840 = vpop.f32.mrf.mxu0
      %v841 = vadd.f32 %v723, %v840
      %v842 = vpop.f32.mrf.mxu0
      %843 = vmatprep.mubr.bf16.mxu0 0
      %844 = vmatmul.mubr.bf16.gmra.mxu0 %v538
      %v845 = vpop.f32.mrf.mxu0
      %v846 = vadd.f32 %v723, %v845
      %v847 = vpop.f32.mrf.mxu0
      %v848 = vpop.f32.mrf.mxu0
      %v849 = vadd.f32 %v723, %v848
      %v850 = vpop.f32.mrf.mxu0
      %851 = vmatprep.mubr.bf16.mxu0 0
      %852 = vmatmul.mubr.bf16.gmra.mxu0 %v541
      %v853 = vpop.f32.mrf.mxu0
      %v854 = vadd.f32 %v723, %v853
      %v855 = vpop.f32.mrf.mxu0
      %v856 = vpop.f32.mrf.mxu0
      %v857 = vadd.f32 %v723, %v856
      %v858 = vpop.f32.mrf.mxu0
      %859 = vmatprep.mubr.bf16.mxu0 0
      %860 = vmatmul.mubr.bf16.gmra.mxu0 %v544
      %v861 = vpop.f32.mrf.mxu0
      %v862 = vadd.f32 %v723, %v861
      %v863 = vpop.f32.mrf.mxu0
      %v864 = vpop.f32.mrf.mxu0
      %v865 = vadd.f32 %v723, %v864
      %v866 = vpop.f32.mrf.mxu0
      %867 = vmatprep.mubr.bf16.mxu0 0
      %868 = vmatmul.mubr.bf16.gmra.mxu0 %v547
      %v869 = vpop.f32.mrf.mxu0
      %v870 = vadd.f32 %v723, %v869
      %v871 = vpop.f32.mrf.mxu0
      %v872 = vpop.f32.mrf.mxu0
      %v873 = vadd.f32 %v723, %v872
      %v874 = vpop.f32.mrf.mxu0
      %875 = vmatprep.mubr.bf16.mxu0 0
      %876 = vmatmul.mubr.bf16.gmra.mxu0 %v550
      %v877 = vpop.f32.mrf.mxu0
      %v878 = vadd.f32 %v723, %v877
      %v879 = vpop.f32.mrf.mxu0
      %v880 = vpop.f32.mrf.mxu0
      %v881 = vadd.f32 %v723, %v880
      %v882 = vpop.f32.mrf.mxu0
      %883 = vmatprep.mubr.bf16.mxu0 0
      %884 = vmatmul.mubr.bf16.gmra.mxu0 %v553
      %v885 = vpop.f32.mrf.mxu0
      %v886 = vadd.f32 %v723, %v885
      %v887 = vpop.f32.mrf.mxu0
      %v888 = vpop.f32.mrf.mxu0
      %v889 = vadd.f32 %v723, %v888
      %v890 = vpop.f32.mrf.mxu0
      %891 = vdwg.mxu0
      %v892 = vld [vmem:[%s6] sm:$0xf]
      %v893 = vld [vmem:[%s6 + $0x4] sm:$0xf]
      %v894 = vld [vmem:[%s7] sm:$0x1]
      %v896 = vlaneseq
      %v897 = vshrl.u32 %v896, 7
      %v898 = vsub.s32 0, %v897
      %v899 = vrot.slane %v894, %v898
      %v903 = vunpack.c.l.b16 %v892
      %v904 = vunpack.c.l.b16 %v893
      %v905 = vpack.c.b16 %v904, %v903
      %907 = vmatprep.subr.bf16.mxu0 0
      %908 = vmatpush1.bf16.msra.mxu0 0
      %909 = vmatprep.subr.bf16.mxu0 0
      %910 = vmatpush1.bf16.msra.mxu0 0
      %911 = vmatprep.subr.bf16.mxu0 0
      %912 = vmatpush1.bf16.msra.mxu0 0
      %913 = vmatprep.subr.bf16.mxu0 0
      %914 = vmatpush1.bf16.msra.mxu0 0
      %915 = vmatprep.subr.bf16.mxu0 0
      %916 = vmatpush1.bf16.msra.mxu0 0
      %917 = vmatprep.subr.bf16.mxu0 0
      %918 = vmatpush1.bf16.msra.mxu0 0
      %919 = vmatprep.subr.bf16.mxu0 0
      %920 = vmatpush1.bf16.msra.mxu0 0
      %921 = vmatprep.subr.bf16.mxu0 0
      %922 = vmatpush1.bf16.msra.mxu0 %v905
      %923 = vmatprep.subr.bf16.mxu0 0
      %924 = vmatpush2.bf16.msra.mxu0 0
      %925 = vmatprep.subr.bf16.mxu0 0
      %926 = vmatpush2.bf16.msra.mxu0 0
      %927 = vmatprep.subr.bf16.mxu0 0
      %928 = vmatpush2.bf16.msra.mxu0 0
      %929 = vmatprep.subr.bf16.mxu0 0
      %930 = vmatpush2.bf16.msra.mxu0 0
      %931 = vmatprep.subr.bf16.mxu0 0
      %932 = vmatpush2.bf16.msra.mxu0 0
      %933 = vmatprep.subr.bf16.mxu0 0
      %934 = vmatpush2.bf16.msra.mxu0 0
      %935 = vmatprep.subr.bf16.mxu0 0
      %936 = vmatpush2.bf16.msra.mxu0 0
      %937 = vmatprep.subr.bf16.mxu0 0
      %938 = vmatpush2.bf16.msra.mxu0 0
      %939 = vmatprep.mubr.bf16.mxu0 0
      %940 = vmatmul.mubr.bf16.gmra.mxu0 %v508
      %v941 = vpop.f32.mrf.mxu0
      %v942 = vadd.f32 %v899, %v941
      %v943 = vpop.f32.mrf.mxu0
      %v944 = vpop.f32.mrf.mxu0
      %v945 = vadd.f32 %v899, %v944
      %v946 = vpop.f32.mrf.mxu0
      %947 = vmatprep.mubr.bf16.mxu0 0
      %948 = vmatmul.mubr.bf16.gmra.mxu0 %v511
      %v949 = vpop.f32.mrf.mxu0
      %v950 = vadd.f32 %v899, %v949
      %v951 = vpop.f32.mrf.mxu0
      %v952 = vpop.f32.mrf.mxu0
      %v953 = vadd.f32 %v899, %v952
      %v954 = vpop.f32.mrf.mxu0
      %955 = vmatprep.mubr.bf16.mxu0 0
      %956 = vmatmul.mubr.bf16.gmra.mxu0 %v514
      %v957 = vpop.f32.mrf.mxu0
      %v958 = vadd.f32 %v899, %v957
      %v959 = vpop.f32.mrf.mxu0
      %v960 = vpop.f32.mrf.mxu0
      %v961 = vadd.f32 %v899, %v960
      %v962 = vpop.f32.mrf.mxu0
      %963 = vmatprep.mubr.bf16.mxu0 0
      %964 = vmatmul.mubr.bf16.gmra.mxu0 %v517
      %v965 = vpop.f32.mrf.mxu0
      %v966 = vadd.f32 %v899, %v965
      %v967 = vpop.f32.mrf.mxu0
      %v968 = vpop.f32.mrf.mxu0
      %v969 = vadd.f32 %v899, %v968
      %v970 = vpop.f32.mrf.mxu0
      %971 = vmatprep.mubr.bf16.mxu0 0
      %972 = vmatmul.mubr.bf16.gmra.mxu0 %v520
      %v973 = vpop.f32.mrf.mxu0
      %v974 = vadd.f32 %v899, %v973
      %v975 = vpop.f32.mrf.mxu0
      %v976 = vpop.f32.mrf.mxu0
      %v977 = vadd.f32 %v899, %v976
      %v978 = vpop.f32.mrf.mxu0
      %979 = vmatprep.mubr.bf16.mxu0 0
      %980 = vmatmul.mubr.bf16.gmra.mxu0 %v523
      %v981 = vpop.f32.mrf.mxu0
      %v982 = vadd.f32 %v899, %v981
      %v983 = vpop.f32.mrf.mxu0
      %v984 = vpop.f32.mrf.mxu0
      %v985 = vadd.f32 %v899, %v984
      %v986 = vpop.f32.mrf.mxu0
      %987 = vmatprep.mubr.bf16.mxu0 0
      %988 = vmatmul.mubr.bf16.gmra.mxu0 %v526
      %v989 = vpop.f32.mrf.mxu0
      %v990 = vadd.f32 %v899, %v989
      %v991 = vpop.f32.mrf.mxu0
      %v992 = vpop.f32.mrf.mxu0
      %v993 = vadd.f32 %v899, %v992
      %v994 = vpop.f32.mrf.mxu0
      %995 = vmatprep.mubr.bf16.mxu0 0
      %996 = vmatmul.mubr.bf16.gmra.mxu0 %v529
      %v997 = vpop.f32.mrf.mxu0
      %v998 = vadd.f32 %v899, %v997
      %v999 = vpop.f32.mrf.mxu0
      %v1000 = vpop.f32.mrf.mxu0
      %v1001 = vadd.f32 %v899, %v1000
      %v1002 = vpop.f32.mrf.mxu0
      %1003 = vmatprep.mubr.bf16.mxu0 0
      %1004 = vmatmul.mubr.bf16.gmra.mxu0 %v532
      %v1005 = vpop.f32.mrf.mxu0
      %v1006 = vadd.f32 %v899, %v1005
      %v1007 = vpop.f32.mrf.mxu0
      %v1008 = vpop.f32.mrf.mxu0
      %v1009 = vadd.f32 %v899, %v1008
      %v1010 = vpop.f32.mrf.mxu0
      %1011 = vmatprep.mubr.bf16.mxu0 0
      %1012 = vmatmul.mubr.bf16.gmra.mxu0 %v535
      %v1013 = vpop.f32.mrf.mxu0
      %v1014 = vadd.f32 %v899, %v1013
      %v1015 = vpop.f32.mrf.mxu0
      %v1016 = vpop.f32.mrf.mxu0
      %v1017 = vadd.f32 %v899, %v1016
      %v1018 = vpop.f32.mrf.mxu0
      %1019 = vmatprep.mubr.bf16.mxu0 0
      %1020 = vmatmul.mubr.bf16.gmra.mxu0 %v538
      %v1021 = vpop.f32.mrf.mxu0
      %v1022 = vadd.f32 %v899, %v1021
      %v1023 = vpop.f32.mrf.mxu0
      %v1024 = vpop.f32.mrf.mxu0
      %v1025 = vadd.f32 %v899, %v1024
      %v1026 = vpop.f32.mrf.mxu0
      %1027 = vmatprep.mubr.bf16.mxu0 0
      %1028 = vmatmul.mubr.bf16.gmra.mxu0 %v541
      %v1029 = vpop.f32.mrf.mxu0
      %v1030 = vadd.f32 %v899, %v1029
      %v1031 = vpop.f32.mrf.mxu0
      %v1032 = vpop.f32.mrf.mxu0
      %v1033 = vadd.f32 %v899, %v1032
      %v1034 = vpop.f32.mrf.mxu0
      %1035 = vmatprep.mubr.bf16.mxu0 0
      %1036 = vmatmul.mubr.bf16.gmra.mxu0 %v544
      %v1037 = vpop.f32.mrf.mxu0
      %v1038 = vadd.f32 %v899, %v1037
      %v1039 = vpop.f32.mrf.mxu0
      %v1040 = vpop.f32.mrf.mxu0
      %v1041 = vadd.f32 %v899, %v1040
      %v1042 = vpop.f32.mrf.mxu0
      %1043 = vmatprep.mubr.bf16.mxu0 0
      %1044 = vmatmul.mubr.bf16.gmra.mxu0 %v547
      %v1045 = vpop.f32.mrf.mxu0
      %v1046 = vadd.f32 %v899, %v1045
      %v1047 = vpop.f32.mrf.mxu0
      %v1048 = vpop.f32.mrf.mxu0
      %v1049 = vadd.f32 %v899, %v1048
      %v1050 = vpop.f32.mrf.mxu0
      %1051 = vmatprep.mubr.bf16.mxu0 0
      %1052 = vmatmul.mubr.bf16.gmra.mxu0 %v550
      %v1053 = vpop.f32.mrf.mxu0
      %v1054 = vadd.f32 %v899, %v1053
      %v1055 = vpop.f32.mrf.mxu0
      %v1056 = vpop.f32.mrf.mxu0
      %v1057 = vadd.f32 %v899, %v1056
      %v1058 = vpop.f32.mrf.mxu0
      %1059 = vmatprep.mubr.bf16.mxu0 0
      %1060 = vmatmul.mubr.bf16.gmra.mxu0 %v553
      %v1061 = vpop.f32.mrf.mxu0
      %v1062 = vadd.f32 %v899, %v1061
      %v1063 = vpop.f32.mrf.mxu0
      %v1064 = vpop.f32.mrf.mxu0
      %v1065 = vadd.f32 %v899, %v1064
      %v1066 = vpop.f32.mrf.mxu0
      %1067 = vdwg.mxu0
      %v1069 = vsel %vm506, %v475, 0
      %v1072 = vsel %vm506, %v476, 0
      %v1075 = vsel %vm506, %v477, 0
      %v1078 = vsel %vm506, %v478, 0
      %v1081 = vsel %vm506, %v479, 0
      %v1084 = vsel %vm506, %v480, 0
      %v1087 = vsel %vm506, %v481, 0
      %v1090 = vsel %vm506, %v482, 0
      %v1093 = vsel %vm506, %v483, 0
      %v1096 = vsel %vm506, %v484, 0
      %v1099 = vsel %vm506, %v485, 0
      %v1102 = vsel %vm506, %v486, 0
      %v1105 = vsel %vm506, %v487, 0
      %v1108 = vsel %vm506, %v488, 0
      %v1111 = vsel %vm506, %v489, 0
      %v1114 = vsel %vm506, %v490, 0
      %1116 = vmatprep.subr.bf16.mxu0 0
      %1117 = vmatpush1.bf16.msra.mxu0 0
      %1118 = vmatprep.subr.bf16.mxu0 0
      %1119 = vmatpush1.bf16.msra.mxu0 0
      %1120 = vmatprep.subr.bf16.mxu0 0
      %1121 = vmatpush1.bf16.msra.mxu0 0
      %1122 = vmatprep.subr.bf16.mxu0 0
      %1123 = vmatpush1.bf16.msra.mxu0 0
      %1124 = vmatprep.subr.bf16.mxu0 0
      %1125 = vmatpush1.bf16.msra.mxu0 0
      %1126 = vmatprep.subr.bf16.mxu0 0
      %1127 = vmatpush1.bf16.msra.mxu0 0
      %1128 = vmatprep.subr.bf16.mxu0 0
      %1129 = vmatpush1.bf16.msra.mxu0 0
      %1130 = vmatprep.subr.bf16.mxu0 0
      %1131 = vmatpush1.bf16.msra.mxu0 %v504
      %1132 = vmatprep.subr.bf16.mxu0 0
      %1133 = vmatpush2.bf16.msra.mxu0 0
      %1134 = vmatprep.subr.bf16.mxu0 0
      %1135 = vmatpush2.bf16.msra.mxu0 0
      %1136 = vmatprep.subr.bf16.mxu0 0
      %1137 = vmatpush2.bf16.msra.mxu0 0
      %1138 = vmatprep.subr.bf16.mxu0 0
      %1139 = vmatpush2.bf16.msra.mxu0 0
      %1140 = vmatprep.subr.bf16.mxu0 0
      %1141 = vmatpush2.bf16.msra.mxu0 0
      %1142 = vmatprep.subr.bf16.mxu0 0
      %1143 = vmatpush2.bf16.msra.mxu0 0
      %1144 = vmatprep.subr.bf16.mxu0 0
      %1145 = vmatpush2.bf16.msra.mxu0 0
      %1146 = vmatprep.subr.bf16.mxu0 0
      %1147 = vmatpush2.bf16.msra.mxu0 0
      %1148 = vmatprep.mubr.bf16.mxu0 0
      %1149 = vmatmul.mubr.bf16.gmra.mxu0 %v1069
      %v1150 = vpop.f32.mrf.mxu0
      %v1151 = vadd.f32 %v498, %v1150
      %v1152 = vpop.f32.mrf.mxu0
      %v1153 = vpop.f32.mrf.mxu0
      %v1154 = vadd.f32 %v498, %v1153
      %v1155 = vpop.f32.mrf.mxu0
      %1156 = vmatprep.mubr.bf16.mxu0 0
      %1157 = vmatmul.mubr.bf16.gmra.mxu0 %v1072
      %v1158 = vpop.f32.mrf.mxu0
      %v1159 = vadd.f32 %v498, %v1158
      %v1160 = vpop.f32.mrf.mxu0
      %v1161 = vpop.f32.mrf.mxu0
      %v1162 = vadd.f32 %v498, %v1161
      %v1163 = vpop.f32.mrf.mxu0
      %1164 = vmatprep.mubr.bf16.mxu0 0
      %1165 = vmatmul.mubr.bf16.gmra.mxu0 %v1075
      %v1166 = vpop.f32.mrf.mxu0
      %v1167 = vadd.f32 %v498, %v1166
      %v1168 = vpop.f32.mrf.mxu0
      %v1169 = vpop.f32.mrf.mxu0
      %v1170 = vadd.f32 %v498, %v1169
      %v1171 = vpop.f32.mrf.mxu0
      %1172 = vmatprep.mubr.bf16.mxu0 0
      %1173 = vmatmul.mubr.bf16.gmra.mxu0 %v1078
      %v1174 = vpop.f32.mrf.mxu0
      %v1175 = vadd.f32 %v498, %v1174
      %v1176 = vpop.f32.mrf.mxu0
      %v1177 = vpop.f32.mrf.mxu0
      %v1178 = vadd.f32 %v498, %v1177
      %v1179 = vpop.f32.mrf.mxu0
      %1180 = vmatprep.mubr.bf16.mxu0 0
      %1181 = vmatmul.mubr.bf16.gmra.mxu0 %v1081
      %v1182 = vpop.f32.mrf.mxu0
      %v1183 = vadd.f32 %v498, %v1182
      %v1184 = vpop.f32.mrf.mxu0
      %v1185 = vpop.f32.mrf.mxu0
      %v1186 = vadd.f32 %v498, %v1185
      %v1187 = vpop.f32.mrf.mxu0
      %1188 = vmatprep.mubr.bf16.mxu0 0
      %1189 = vmatmul.mubr.bf16.gmra.mxu0 %v1084
      %v1190 = vpop.f32.mrf.mxu0
      %v1191 = vadd.f32 %v498, %v1190
      %v1192 = vpop.f32.mrf.mxu0
      %v1193 = vpop.f32.mrf.mxu0
      %v1194 = vadd.f32 %v498, %v1193
      %v1195 = vpop.f32.mrf.mxu0
      %1196 = vmatprep.mubr.bf16.mxu0 0
      %1197 = vmatmul.mubr.bf16.gmra.mxu0 %v1087
      %v1198 = vpop.f32.mrf.mxu0
      %v1199 = vadd.f32 %v498, %v1198
      %v1200 = vpop.f32.mrf.mxu0
      %v1201 = vpop.f32.mrf.mxu0
      %v1202 = vadd.f32 %v498, %v1201
      %v1203 = vpop.f32.mrf.mxu0
      %1204 = vmatprep.mubr.bf16.mxu0 0
      %1205 = vmatmul.mubr.bf16.gmra.mxu0 %v1090
      %v1206 = vpop.f32.mrf.mxu0
      %v1207 = vadd.f32 %v498, %v1206
      %v1208 = vpop.f32.mrf.mxu0
      %v1209 = vpop.f32.mrf.mxu0
      %v1210 = vadd.f32 %v498, %v1209
      %v1211 = vpop.f32.mrf.mxu0
      %1212 = vmatprep.mubr.bf16.mxu0 0
      %1213 = vmatmul.mubr.bf16.gmra.mxu0 %v1093
      %v1214 = vpop.f32.mrf.mxu0
      %v1215 = vadd.f32 %v498, %v1214
      %v1216 = vpop.f32.mrf.mxu0
      %v1217 = vpop.f32.mrf.mxu0
      %v1218 = vadd.f32 %v498, %v1217
      %v1219 = vpop.f32.mrf.mxu0
      %1220 = vmatprep.mubr.bf16.mxu0 0
      %1221 = vmatmul.mubr.bf16.gmra.mxu0 %v1096
      %v1222 = vpop.f32.mrf.mxu0
      %v1223 = vadd.f32 %v498, %v1222
      %v1224 = vpop.f32.mrf.mxu0
      %v1225 = vpop.f32.mrf.mxu0
      %v1226 = vadd.f32 %v498, %v1225
      %v1227 = vpop.f32.mrf.mxu0
      %1228 = vmatprep.mubr.bf16.mxu0 0
      %1229 = vmatmul.mubr.bf16.gmra.mxu0 %v1099
      %v1230 = vpop.f32.mrf.mxu0
      %v1231 = vadd.f32 %v498, %v1230
      %v1232 = vpop.f32.mrf.mxu0
      %v1233 = vpop.f32.mrf.mxu0
      %v1234 = vadd.f32 %v498, %v1233
      %v1235 = vpop.f32.mrf.mxu0
      %1236 = vmatprep.mubr.bf16.mxu0 0
      %1237 = vmatmul.mubr.bf16.gmra.mxu0 %v1102
      %v1238 = vpop.f32.mrf.mxu0
      %v1239 = vadd.f32 %v498, %v1238
      %v1240 = vpop.f32.mrf.mxu0
      %v1241 = vpop.f32.mrf.mxu0
      %v1242 = vadd.f32 %v498, %v1241
      %v1243 = vpop.f32.mrf.mxu0
      %1244 = vmatprep.mubr.bf16.mxu0 0
      %1245 = vmatmul.mubr.bf16.gmra.mxu0 %v1105
      %v1246 = vpop.f32.mrf.mxu0
      %v1247 = vadd.f32 %v498, %v1246
      %v1248 = vpop.f32.mrf.mxu0
      %v1249 = vpop.f32.mrf.mxu0
      %v1250 = vadd.f32 %v498, %v1249
      %v1251 = vpop.f32.mrf.mxu0
      %1252 = vmatprep.mubr.bf16.mxu0 0
      %1253 = vmatmul.mubr.bf16.gmra.mxu0 %v1108
      %v1254 = vpop.f32.mrf.mxu0
      %v1255 = vadd.f32 %v498, %v1254
      %v1256 = vpop.f32.mrf.mxu0
      %v1257 = vpop.f32.mrf.mxu0
      %v1258 = vadd.f32 %v498, %v1257
      %v1259 = vpop.f32.mrf.mxu0
      %1260 = vmatprep.mubr.bf16.mxu0 0
      %1261 = vmatmul.mubr.bf16.gmra.mxu0 %v1111
      %v1262 = vpop.f32.mrf.mxu0
      %v1263 = vadd.f32 %v498, %v1262
      %v1264 = vpop.f32.mrf.mxu0
      %v1265 = vpop.f32.mrf.mxu0
      %v1266 = vadd.f32 %v498, %v1265
      %v1267 = vpop.f32.mrf.mxu0
      %1268 = vmatprep.mubr.bf16.mxu0 0
      %1269 = vmatmul.mubr.bf16.gmra.mxu0 %v1114
      %v1270 = vpop.f32.mrf.mxu0
      %v1271 = vadd.f32 %v498, %v1270
      %v1272 = vpop.f32.mrf.mxu0
      %v1273 = vpop.f32.mrf.mxu0
      %v1274 = vadd.f32 %v498, %v1273
      %v1275 = vpop.f32.mrf.mxu0
      %1276 = vdwg.mxu0
      %1277 = vmatprep.subr.bf16.mxu0 0
      %1278 = vmatpush1.bf16.msra.mxu0 0
      %1279 = vmatprep.subr.bf16.mxu0 0
      %1280 = vmatpush1.bf16.msra.mxu0 0
      %1281 = vmatprep.subr.bf16.mxu0 0
      %1282 = vmatpush1.bf16.msra.mxu0 0
      %1283 = vmatprep.subr.bf16.mxu0 0
      %1284 = vmatpush1.bf16.msra.mxu0 0
      %1285 = vmatprep.subr.bf16.mxu0 0
      %1286 = vmatpush1.bf16.msra.mxu0 0
      %1287 = vmatprep.subr.bf16.mxu0 0
      %1288 = vmatpush1.bf16.msra.mxu0 0
      %1289 = vmatprep.subr.bf16.mxu0 0
      %1290 = vmatpush1.bf16.msra.mxu0 0
      %1291 = vmatprep.subr.bf16.mxu0 0
      %1292 = vmatpush1.bf16.msra.mxu0 %v729
      %1293 = vmatprep.subr.bf16.mxu0 0
      %1294 = vmatpush2.bf16.msra.mxu0 0
      %1295 = vmatprep.subr.bf16.mxu0 0
      %1296 = vmatpush2.bf16.msra.mxu0 0
      %1297 = vmatprep.subr.bf16.mxu0 0
      %1298 = vmatpush2.bf16.msra.mxu0 0
      %1299 = vmatprep.subr.bf16.mxu0 0
      %1300 = vmatpush2.bf16.msra.mxu0 0
      %1301 = vmatprep.subr.bf16.mxu0 0
      %1302 = vmatpush2.bf16.msra.mxu0 0
      %1303 = vmatprep.subr.bf16.mxu0 0
      %1304 = vmatpush2.bf16.msra.mxu0 0
      %1305 = vmatprep.subr.bf16.mxu0 0
      %1306 = vmatpush2.bf16.msra.mxu0 0
      %1307 = vmatprep.subr.bf16.mxu0 0
      %1308 = vmatpush2.bf16.msra.mxu0 0
      %1309 = vmatprep.mubr.bf16.mxu0 0
      %1310 = vmatmul.mubr.bf16.gmra.mxu0 %v1069
      %v1311 = vpop.f32.mrf.mxu0
      %v1312 = vadd.f32 %v723, %v1311
      %v1313 = vpop.f32.mrf.mxu0
      %v1314 = vpop.f32.mrf.mxu0
      %v1315 = vadd.f32 %v723, %v1314
      %v1316 = vpop.f32.mrf.mxu0
      %1317 = vmatprep.mubr.bf16.mxu0 0
      %1318 = vmatmul.mubr.bf16.gmra.mxu0 %v1072
      %v1319 = vpop.f32.mrf.mxu0
      %v1320 = vadd.f32 %v723, %v1319
      %v1321 = vpop.f32.mrf.mxu0
      %v1322 = vpop.f32.mrf.mxu0
      %v1323 = vadd.f32 %v723, %v1322
      %v1324 = vpop.f32.mrf.mxu0
      %1325 = vmatprep.mubr.bf16.mxu0 0
      %1326 = vmatmul.mubr.bf16.gmra.mxu0 %v1075
      %v1327 = vpop.f32.mrf.mxu0
      %v1328 = vadd.f32 %v723, %v1327
      %v1329 = vpop.f32.mrf.mxu0
      %v1330 = vpop.f32.mrf.mxu0
      %v1331 = vadd.f32 %v723, %v1330
      %v1332 = vpop.f32.mrf.mxu0
      %1333 = vmatprep.mubr.bf16.mxu0 0
      %1334 = vmatmul.mubr.bf16.gmra.mxu0 %v1078
      %v1335 = vpop.f32.mrf.mxu0
      %v1336 = vadd.f32 %v723, %v1335
      %v1337 = vpop.f32.mrf.mxu0
      %v1338 = vpop.f32.mrf.mxu0
      %v1339 = vadd.f32 %v723, %v1338
      %v1340 = vpop.f32.mrf.mxu0
      %1341 = vmatprep.mubr.bf16.mxu0 0
      %1342 = vmatmul.mubr.bf16.gmra.mxu0 %v1081
      %v1343 = vpop.f32.mrf.mxu0
      %v1344 = vadd.f32 %v723, %v1343
      %v1345 = vpop.f32.mrf.mxu0
      %v1346 = vpop.f32.mrf.mxu0
      %v1347 = vadd.f32 %v723, %v1346
      %v1348 = vpop.f32.mrf.mxu0
      %1349 = vmatprep.mubr.bf16.mxu0 0
      %1350 = vmatmul.mubr.bf16.gmra.mxu0 %v1084
      %v1351 = vpop.f32.mrf.mxu0
      %v1352 = vadd.f32 %v723, %v1351
      %v1353 = vpop.f32.mrf.mxu0
      %v1354 = vpop.f32.mrf.mxu0
      %v1355 = vadd.f32 %v723, %v1354
      %v1356 = vpop.f32.mrf.mxu0
      %1357 = vmatprep.mubr.bf16.mxu0 0
      %1358 = vmatmul.mubr.bf16.gmra.mxu0 %v1087
      %v1359 = vpop.f32.mrf.mxu0
      %v1360 = vadd.f32 %v723, %v1359
      %v1361 = vpop.f32.mrf.mxu0
      %v1362 = vpop.f32.mrf.mxu0
      %v1363 = vadd.f32 %v723, %v1362
      %v1364 = vpop.f32.mrf.mxu0
      %1365 = vmatprep.mubr.bf16.mxu0 0
      %1366 = vmatmul.mubr.bf16.gmra.mxu0 %v1090
      %v1367 = vpop.f32.mrf.mxu0
      %v1368 = vadd.f32 %v723, %v1367
      %v1369 = vpop.f32.mrf.mxu0
      %v1370 = vpop.f32.mrf.mxu0
      %v1371 = vadd.f32 %v723, %v1370
      %v1372 = vpop.f32.mrf.mxu0
      %1373 = vmatprep.mubr.bf16.mxu0 0
      %1374 = vmatmul.mubr.bf16.gmra.mxu0 %v1093
      %v1375 = vpop.f32.mrf.mxu0
      %v1376 = vadd.f32 %v723, %v1375
      %v1377 = vpop.f32.mrf.mxu0
      %v1378 = vpop.f32.mrf.mxu0
      %v1379 = vadd.f32 %v723, %v1378
      %v1380 = vpop.f32.mrf.mxu0
      %1381 = vmatprep.mubr.bf16.mxu0 0
      %1382 = vmatmul.mubr.bf16.gmra.mxu0 %v1096
      %v1383 = vpop.f32.mrf.mxu0
      %v1384 = vadd.f32 %v723, %v1383
      %v1385 = vpop.f32.mrf.mxu0
      %v1386 = vpop.f32.mrf.mxu0
      %v1387 = vadd.f32 %v723, %v1386
      %v1388 = vpop.f32.mrf.mxu0
      %1389 = vmatprep.mubr.bf16.mxu0 0
      %1390 = vmatmul.mubr.bf16.gmra.mxu0 %v1099
      %v1391 = vpop.f32.mrf.mxu0
      %v1392 = vadd.f32 %v723, %v1391
      %v1393 = vpop.f32.mrf.mxu0
      %v1394 = vpop.f32.mrf.mxu0
      %v1395 = vadd.f32 %v723, %v1394
      %v1396 = vpop.f32.mrf.mxu0
      %1397 = vmatprep.mubr.bf16.mxu0 0
      %1398 = vmatmul.mubr.bf16.gmra.mxu0 %v1102
      %v1399 = vpop.f32.mrf.mxu0
      %v1400 = vadd.f32 %v723, %v1399
      %v1401 = vpop.f32.mrf.mxu0
      %v1402 = vpop.f32.mrf.mxu0
      %v1403 = vadd.f32 %v723, %v1402
      %v1404 = vpop.f32.mrf.mxu0
      %1405 = vmatprep.mubr.bf16.mxu0 0
      %1406 = vmatmul.mubr.bf16.gmra.mxu0 %v1105
      %v1407 = vpop.f32.mrf.mxu0
      %v1408 = vadd.f32 %v723, %v1407
      %v1409 = vpop.f32.mrf.mxu0
      %v1410 = vpop.f32.mrf.mxu0
      %v1411 = vadd.f32 %v723, %v1410
      %v1412 = vpop.f32.mrf.mxu0
      %1413 = vmatprep.mubr.bf16.mxu0 0
      %1414 = vmatmul.mubr.bf16.gmra.mxu0 %v1108
      %v1415 = vpop.f32.mrf.mxu0
      %v1416 = vadd.f32 %v723, %v1415
      %v1417 = vpop.f32.mrf.mxu0
      %v1418 = vpop.f32.mrf.mxu0
      %v1419 = vadd.f32 %v723, %v1418
      %v1420 = vpop.f32.mrf.mxu0
      %1421 = vmatprep.mubr.bf16.mxu0 0
      %1422 = vmatmul.mubr.bf16.gmra.mxu0 %v1111
      %v1423 = vpop.f32.mrf.mxu0
      %v1424 = vadd.f32 %v723, %v1423
      %v1425 = vpop.f32.mrf.mxu0
      %v1426 = vpop.f32.mrf.mxu0
      %v1427 = vadd.f32 %v723, %v1426
      %v1428 = vpop.f32.mrf.mxu0
      %1429 = vmatprep.mubr.bf16.mxu0 0
      %1430 = vmatmul.mubr.bf16.gmra.mxu0 %v1114
      %v1431 = vpop.f32.mrf.mxu0
      %v1432 = vadd.f32 %v723, %v1431
      %v1433 = vpop.f32.mrf.mxu0
      %v1434 = vpop.f32.mrf.mxu0
      %v1435 = vadd.f32 %v723, %v1434
      %v1436 = vpop.f32.mrf.mxu0
      %1437 = vdwg.mxu0
      %1438 = vmatprep.subr.bf16.mxu0 0
      %1439 = vmatpush1.bf16.msra.mxu0 0
      %1440 = vmatprep.subr.bf16.mxu0 0
      %1441 = vmatpush1.bf16.msra.mxu0 0
      %1442 = vmatprep.subr.bf16.mxu0 0
      %1443 = vmatpush1.bf16.msra.mxu0 0
      %1444 = vmatprep.subr.bf16.mxu0 0
      %1445 = vmatpush1.bf16.msra.mxu0 0
      %1446 = vmatprep.subr.bf16.mxu0 0
      %1447 = vmatpush1.bf16.msra.mxu0 0
      %1448 = vmatprep.subr.bf16.mxu0 0
      %1449 = vmatpush1.bf16.msra.mxu0 0
      %1450 = vmatprep.subr.bf16.mxu0 0
      %1451 = vmatpush1.bf16.msra.mxu0 0
      %1452 = vmatprep.subr.bf16.mxu0 0
      %1453 = vmatpush1.bf16.msra.mxu0 %v905
      %1454 = vmatprep.subr.bf16.mxu0 0
      %1455 = vmatpush2.bf16.msra.mxu0 0
      %1456 = vmatprep.subr.bf16.mxu0 0
      %1457 = vmatpush2.bf16.msra.mxu0 0
      %1458 = vmatprep.subr.bf16.mxu0 0
      %1459 = vmatpush2.bf16.msra.mxu0 0
      %1460 = vmatprep.subr.bf16.mxu0 0
      %1461 = vmatpush2.bf16.msra.mxu0 0
      %1462 = vmatprep.subr.bf16.mxu0 0
      %1463 = vmatpush2.bf16.msra.mxu0 0
      %1464 = vmatprep.subr.bf16.mxu0 0
      %1465 = vmatpush2.bf16.msra.mxu0 0
      %1466 = vmatprep.subr.bf16.mxu0 0
      %1467 = vmatpush2.bf16.msra.mxu0 0
      %1468 = vmatprep.subr.bf16.mxu0 0
      %1469 = vmatpush2.bf16.msra.mxu0 0
      %1470 = vmatprep.mubr.bf16.mxu0 0
      %1471 = vmatmul.mubr.bf16.gmra.mxu0 %v1069
      %v1472 = vpop.f32.mrf.mxu0
      %v1473 = vadd.f32 %v899, %v1472
      %v1474 = vpop.f32.mrf.mxu0
      %v1475 = vpop.f32.mrf.mxu0
      %v1476 = vadd.f32 %v899, %v1475
      %v1477 = vpop.f32.mrf.mxu0
      %1478 = vmatprep.mubr.bf16.mxu0 0
      %1479 = vmatmul.mubr.bf16.gmra.mxu0 %v1072
      %v1480 = vpop.f32.mrf.mxu0
      %v1481 = vadd.f32 %v899, %v1480
      %v1482 = vpop.f32.mrf.mxu0
      %v1483 = vpop.f32.mrf.mxu0
      %v1484 = vadd.f32 %v899, %v1483
      %v1485 = vpop.f32.mrf.mxu0
      %1486 = vmatprep.mubr.bf16.mxu0 0
      %1487 = vmatmul.mubr.bf16.gmra.mxu0 %v1075
      %v1488 = vpop.f32.mrf.mxu0
      %v1489 = vadd.f32 %v899, %v1488
      %v1490 = vpop.f32.mrf.mxu0
      %v1491 = vpop.f32.mrf.mxu0
      %v1492 = vadd.f32 %v899, %v1491
      %v1493 = vpop.f32.mrf.mxu0
      %1494 = vmatprep.mubr.bf16.mxu0 0
      %1495 = vmatmul.mubr.bf16.gmra.mxu0 %v1078
      %v1496 = vpop.f32.mrf.mxu0
      %v1497 = vadd.f32 %v899, %v1496
      %v1498 = vpop.f32.mrf.mxu0
      %v1499 = vpop.f32.mrf.mxu0
      %v1500 = vadd.f32 %v899, %v1499
      %v1501 = vpop.f32.mrf.mxu0
      %1502 = vmatprep.mubr.bf16.mxu0 0
      %1503 = vmatmul.mubr.bf16.gmra.mxu0 %v1081
      %v1504 = vpop.f32.mrf.mxu0
      %v1505 = vadd.f32 %v899, %v1504
      %v1506 = vpop.f32.mrf.mxu0
      %v1507 = vpop.f32.mrf.mxu0
      %v1508 = vadd.f32 %v899, %v1507
      %v1509 = vpop.f32.mrf.mxu0
      %1510 = vmatprep.mubr.bf16.mxu0 0
      %1511 = vmatmul.mubr.bf16.gmra.mxu0 %v1084
      %v1512 = vpop.f32.mrf.mxu0
      %v1513 = vadd.f32 %v899, %v1512
      %v1514 = vpop.f32.mrf.mxu0
      %v1515 = vpop.f32.mrf.mxu0
      %v1516 = vadd.f32 %v899, %v1515
      %v1517 = vpop.f32.mrf.mxu0
      %1518 = vmatprep.mubr.bf16.mxu0 0
      %1519 = vmatmul.mubr.bf16.gmra.mxu0 %v1087
      %v1520 = vpop.f32.mrf.mxu0
      %v1521 = vadd.f32 %v899, %v1520
      %v1522 = vpop.f32.mrf.mxu0
      %v1523 = vpop.f32.mrf.mxu0
      %v1524 = vadd.f32 %v899, %v1523
      %v1525 = vpop.f32.mrf.mxu0
      %1526 = vmatprep.mubr.bf16.mxu0 0
      %1527 = vmatmul.mubr.bf16.gmra.mxu0 %v1090
      %v1528 = vpop.f32.mrf.mxu0
      %v1529 = vadd.f32 %v899, %v1528
      %v1530 = vpop.f32.mrf.mxu0
      %v1531 = vpop.f32.mrf.mxu0
      %v1532 = vadd.f32 %v899, %v1531
      %v1533 = vpop.f32.mrf.mxu0
      %1534 = vmatprep.mubr.bf16.mxu0 0
      %1535 = vmatmul.mubr.bf16.gmra.mxu0 %v1093
      %v1536 = vpop.f32.mrf.mxu0
      %v1537 = vadd.f32 %v899, %v1536
      %v1538 = vpop.f32.mrf.mxu0
      %v1539 = vpop.f32.mrf.mxu0
      %v1540 = vadd.f32 %v899, %v1539
      %v1541 = vpop.f32.mrf.mxu0
      %1542 = vmatprep.mubr.bf16.mxu0 0
      %1543 = vmatmul.mubr.bf16.gmra.mxu0 %v1096
      %v1544 = vpop.f32.mrf.mxu0
      %v1545 = vadd.f32 %v899, %v1544
      %v1546 = vpop.f32.mrf.mxu0
      %v1547 = vpop.f32.mrf.mxu0
      %v1548 = vadd.f32 %v899, %v1547
      %v1549 = vpop.f32.mrf.mxu0
      %1550 = vmatprep.mubr.bf16.mxu0 0
      %1551 = vmatmul.mubr.bf16.gmra.mxu0 %v1099
      %v1552 = vpop.f32.mrf.mxu0
      %v1553 = vadd.f32 %v899, %v1552
      %v1554 = vpop.f32.mrf.mxu0
      %v1555 = vpop.f32.mrf.mxu0
      %v1556 = vadd.f32 %v899, %v1555
      %v1557 = vpop.f32.mrf.mxu0
      %1558 = vmatprep.mubr.bf16.mxu0 0
      %1559 = vmatmul.mubr.bf16.gmra.mxu0 %v1102
      %v1560 = vpop.f32.mrf.mxu0
      %v1561 = vadd.f32 %v899, %v1560
      %v1562 = vpop.f32.mrf.mxu0
      %v1563 = vpop.f32.mrf.mxu0
      %v1564 = vadd.f32 %v899, %v1563
      %v1565 = vpop.f32.mrf.mxu0
      %1566 = vmatprep.mubr.bf16.mxu0 0
      %1567 = vmatmul.mubr.bf16.gmra.mxu0 %v1105
      %v1568 = vpop.f32.mrf.mxu0
      %v1569 = vadd.f32 %v899, %v1568
      %v1570 = vpop.f32.mrf.mxu0
      %v1571 = vpop.f32.mrf.mxu0
      %v1572 = vadd.f32 %v899, %v1571
      %v1573 = vpop.f32.mrf.mxu0
      %1574 = vmatprep.mubr.bf16.mxu0 0
      %1575 = vmatmul.mubr.bf16.gmra.mxu0 %v1108
      %v1576 = vpop.f32.mrf.mxu0
      %v1577 = vadd.f32 %v899, %v1576
      %v1578 = vpop.f32.mrf.mxu0
      %v1579 = vpop.f32.mrf.mxu0
      %v1580 = vadd.f32 %v899, %v1579
      %v1581 = vpop.f32.mrf.mxu0
      %1582 = vmatprep.mubr.bf16.mxu0 0
      %1583 = vmatmul.mubr.bf16.gmra.mxu0 %v1111
      %v1584 = vpop.f32.mrf.mxu0
      %v1585 = vadd.f32 %v899, %v1584
      %v1586 = vpop.f32.mrf.mxu0
      %v1587 = vpop.f32.mrf.mxu0
      %v1588 = vadd.f32 %v899, %v1587
      %v1589 = vpop.f32.mrf.mxu0
      %1590 = vmatprep.mubr.bf16.mxu0 0
      %1591 = vmatmul.mubr.bf16.gmra.mxu0 %v1114
      %v1592 = vpop.f32.mrf.mxu0
      %v1593 = vadd.f32 %v899, %v1592
      %v1594 = vpop.f32.mrf.mxu0
      %v1595 = vpop.f32.mrf.mxu0
      %v1596 = vadd.f32 %v899, %v1595
      %v1597 = vpop.f32.mrf.mxu0
      %1598 = vdwg.mxu0
      %v1599 = vpack.c.bf16 %v593, %v590
      %v1600 = vpack.c.bf16 %v601, %v598
      %v1601 = vpack.c.bf16 %v609, %v606
      %v1602 = vpack.c.bf16 %v617, %v614
      %v1603 = vpack.c.bf16 %v625, %v622
      %v1604 = vpack.c.bf16 %v633, %v630
      %v1605 = vpack.c.bf16 %v641, %v638
      %v1606 = vpack.c.bf16 %v649, %v646
      %v1607 = vpack.c.bf16 %v657, %v654
      %v1608 = vpack.c.bf16 %v665, %v662
      %v1609 = vpack.c.bf16 %v673, %v670
      %v1610 = vpack.c.bf16 %v681, %v678
      %v1611 = vpack.c.bf16 %v689, %v686
      %v1612 = vpack.c.bf16 %v697, %v694
      %v1613 = vpack.c.bf16 %v705, %v702
      %v1614 = vpack.c.bf16 %v713, %v710
      %v1615 = vpack.c.bf16 %v769, %v766
      %v1616 = vpack.c.bf16 %v777, %v774
      %v1617 = vpack.c.bf16 %v785, %v782
      %v1618 = vpack.c.bf16 %v793, %v790
      %v1619 = vpack.c.bf16 %v801, %v798
      %v1620 = vpack.c.bf16 %v809, %v806
      %v1621 = vpack.c.bf16 %v817, %v814
      %v1622 = vpack.c.bf16 %v825, %v822
      %v1623 = vpack.c.bf16 %v833, %v830
      %v1624 = vpack.c.bf16 %v841, %v838
      %v1625 = vpack.c.bf16 %v849, %v846
      %v1626 = vpack.c.bf16 %v857, %v854
      %v1627 = vpack.c.bf16 %v865, %v862
      %v1628 = vpack.c.bf16 %v873, %v870
      %v1629 = vpack.c.bf16 %v881, %v878
      %v1630 = vpack.c.bf16 %v889, %v886
      %vm1631 = vcmask 15360
      %v1633 = vsel %vm1631, %v1599, 0
      %v1636 = vsel %vm1631, %v1615, 0
      %1638 = vmatprep.subr.bf16.mxu0 0
      %1639 = vmatpush1.bf16.xpose.msra.mxu0 0
      %1640 = vmatprep.subr.bf16.mxu0 0
      %1641 = vmatpush1.bf16.xpose.msra.mxu0 0
      %1642 = vmatprep.subr.bf16.mxu0 0
      %1643 = vmatpush1.bf16.xpose.msra.mxu0 0
      %1644 = vmatprep.subr.bf16.mxu0 0
      %1645 = vmatpush1.bf16.xpose.msra.mxu0 0
      %1646 = vmatprep.subr.bf16.mxu0 0
      %1647 = vmatpush1.bf16.xpose.msra.mxu0 0
      %1648 = vmatprep.subr.bf16.mxu0 0
      %1649 = vmatpush1.bf16.xpose.msra.mxu0 0
      %1650 = vmatprep.subr.bf16.mxu0 0
      %1651 = vmatpush1.bf16.xpose.msra.mxu0 0
      %1652 = vmatprep.subr.bf16.mxu0 0
      %1653 = vmatpush1.bf16.xpose.msra.mxu0 %v1636
      %1654 = vmatprep.subr.bf16.mxu0 0
      %1655 = vmatpush2.bf16.xpose.msra.mxu0 0
      %1656 = vmatprep.subr.bf16.mxu0 0
      %1657 = vmatpush2.bf16.xpose.msra.mxu0 0
      %1658 = vmatprep.subr.bf16.mxu0 0
      %1659 = vmatpush2.bf16.xpose.msra.mxu0 0
      %1660 = vmatprep.subr.bf16.mxu0 0
      %1661 = vmatpush2.bf16.xpose.msra.mxu0 0
      %1662 = vmatprep.subr.bf16.mxu0 0
      %1663 = vmatpush2.bf16.xpose.msra.mxu0 0
      %1664 = vmatprep.subr.bf16.mxu0 0
      %1665 = vmatpush2.bf16.xpose.msra.mxu0 0
      %1666 = vmatprep.subr.bf16.mxu0 0
      %1667 = vmatpush2.bf16.xpose.msra.mxu0 0
      %1668 = vmatprep.subr.bf16.mxu0 0
      %1669 = vmatpush2.bf16.xpose.msra.mxu0 0
      %1670 = vmatprep.mubr.bf16.mxu0 0
      %1671 = vmatmul.mubr.bf16.gmra.mxu0 %v1633
      %v1672 = vpop.f32.mrf.mxu0
      %v1673 = vadd.f32 0.0, %v1672
      %v1674 = vpop.f32.mrf.mxu0
      %v1675 = vpop.f32.mrf.mxu0
      %v1676 = vadd.f32 0.0, %v1675
      %v1677 = vpop.f32.mrf.mxu0
      %1678 = vdwg.mxu0
      %v1680 = vsel %vm1631, %v1600, 0
      %v1683 = vsel %vm1631, %v1616, 0
      %1685 = vmatprep.subr.bf16.mxu0 0
      %1686 = vmatpush1.bf16.xpose.msra.mxu0 0
      %1687 = vmatprep.subr.bf16.mxu0 0
      %1688 = vmatpush1.bf16.xpose.msra.mxu0 0
      %1689 = vmatprep.subr.bf16.mxu0 0
      %1690 = vmatpush1.bf16.xpose.msra.mxu0 0
      %1691 = vmatprep.subr.bf16.mxu0 0
      %1692 = vmatpush1.bf16.xpose.msra.mxu0 0
      %1693 = vmatprep.subr.bf16.mxu0 0
      %1694 = vmatpush1.bf16.xpose.msra.mxu0 0
      %1695 = vmatprep.subr.bf16.mxu0 0
      %1696 = vmatpush1.bf16.xpose.msra.mxu0 0
      %1697 = vmatprep.subr.bf16.mxu0 0
      %1698 = vmatpush1.bf16.xpose.msra.mxu0 0
      %1699 = vmatprep.subr.bf16.mxu0 0
      %1700 = vmatpush1.bf16.xpose.msra.mxu0 %v1683
      %1701 = vmatprep.subr.bf16.mxu0 0
      %1702 = vmatpush2.bf16.xpose.msra.mxu0 0
      %1703 = vmatprep.subr.bf16.mxu0 0
      %1704 = vmatpush2.bf16.xpose.msra.mxu0 0
      %1705 = vmatprep.subr.bf16.mxu0 0
      %1706 = vmatpush2.bf16.xpose.msra.mxu0 0
      %1707 = vmatprep.subr.bf16.mxu0 0
      %1708 = vmatpush2.bf16.xpose.msra.mxu0 0
      %1709 = vmatprep.subr.bf16.mxu0 0
      %1710 = vmatpush2.bf16.xpose.msra.mxu0 0
      %1711 = vmatprep.subr.bf16.mxu0 0
      %1712 = vmatpush2.bf16.xpose.msra.mxu0 0
      %1713 = vmatprep.subr.bf16.mxu0 0
      %1714 = vmatpush2.bf16.xpose.msra.mxu0 0
      %1715 = vmatprep.subr.bf16.mxu0 0
      %1716 = vmatpush2.bf16.xpose.msra.mxu0 0
      %1717 = vmatprep.mubr.bf16.mxu0 0
      %1718 = vmatmul.mubr.bf16.gmra.mxu0 %v1680
      %v1719 = vpop.f32.mrf.mxu0
      %v1720 = vadd.f32 0.0, %v1719
      %v1721 = vpop.f32.mrf.mxu0
      %v1722 = vpop.f32.mrf.mxu0
      %v1723 = vadd.f32 0.0, %v1722
      %v1724 = vpop.f32.mrf.mxu0
      %1725 = vdwg.mxu0
      %v1727 = vsel %vm1631, %v1601, 0
      %v1730 = vsel %vm1631, %v1617, 0
      %1732 = vmatprep.subr.bf16.mxu0 0
      %1733 = vmatpush1.bf16.xpose.msra.mxu0 0
      %1734 = vmatprep.subr.bf16.mxu0 0
      %1735 = vmatpush1.bf16.xpose.msra.mxu0 0
      %1736 = vmatprep.subr.bf16.mxu0 0
      %1737 = vmatpush1.bf16.xpose.msra.mxu0 0
      %1738 = vmatprep.subr.bf16.mxu0 0
      %1739 = vmatpush1.bf16.xpose.msra.mxu0 0
      %1740 = vmatprep.subr.bf16.mxu0 0
      %1741 = vmatpush1.bf16.xpose.msra.mxu0 0
      %1742 = vmatprep.subr.bf16.mxu0 0
      %1743 = vmatpush1.bf16.xpose.msra.mxu0 0
      %1744 = vmatprep.subr.bf16.mxu0 0
      %1745 = vmatpush1.bf16.xpose.msra.mxu0 0
      %1746 = vmatprep.subr.bf16.mxu0 0
      %1747 = vmatpush1.bf16.xpose.msra.mxu0 %v1730
      %1748 = vmatprep.subr.bf16.mxu0 0
      %1749 = vmatpush2.bf16.xpose.msra.mxu0 0
      %1750 = vmatprep.subr.bf16.mxu0 0
      %1751 = vmatpush2.bf16.xpose.msra.mxu0 0
      %1752 = vmatprep.subr.bf16.mxu0 0
      %1753 = vmatpush2.bf16.xpose.msra.mxu0 0
      %1754 = vmatprep.subr.bf16.mxu0 0
      %1755 = vmatpush2.bf16.xpose.msra.mxu0 0
      %1756 = vmatprep.subr.bf16.mxu0 0
      %1757 = vmatpush2.bf16.xpose.msra.mxu0 0
      %1758 = vmatprep.subr.bf16.mxu0 0
      %1759 = vmatpush2.bf16.xpose.msra.mxu0 0
      %1760 = vmatprep.subr.bf16.mxu0 0
      %1761 = vmatpush2.bf16.xpose.msra.mxu0 0
      %1762 = vmatprep.subr.bf16.mxu0 0
      %1763 = vmatpush2.bf16.xpose.msra.mxu0 0
      %1764 = vmatprep.mubr.bf16.mxu0 0
      %1765 = vmatmul.mubr.bf16.gmra.mxu0 %v1727
      %v1766 = vpop.f32.mrf.mxu0
      %v1767 = vadd.f32 0.0, %v1766
      %v1768 = vpop.f32.mrf.mxu0
      %v1769 = vpop.f32.mrf.mxu0
      %v1770 = vadd.f32 0.0, %v1769
      %v1771 = vpop.f32.mrf.mxu0
      %1772 = vdwg.mxu0
      %v1774 = vsel %vm1631, %v1602, 0
      %v1777 = vsel %vm1631, %v1618, 0
      %1779 = vmatprep.subr.bf16.mxu0 0
      %1780 = vmatpush1.bf16.xpose.msra.mxu0 0
      %1781 = vmatprep.subr.bf16.mxu0 0
      %1782 = vmatpush1.bf16.xpose.msra.mxu0 0
      %1783 = vmatprep.subr.bf16.mxu0 0
      %1784 = vmatpush1.bf16.xpose.msra.mxu0 0
      %1785 = vmatprep.subr.bf16.mxu0 0
      %1786 = vmatpush1.bf16.xpose.msra.mxu0 0
      %1787 = vmatprep.subr.bf16.mxu0 0
      %1788 = vmatpush1.bf16.xpose.msra.mxu0 0
      %1789 = vmatprep.subr.bf16.mxu0 0
      %1790 = vmatpush1.bf16.xpose.msra.mxu0 0
      %1791 = vmatprep.subr.bf16.mxu0 0
      %1792 = vmatpush1.bf16.xpose.msra.mxu0 0
      %1793 = vmatprep.subr.bf16.mxu0 0
      %1794 = vmatpush1.bf16.xpose.msra.mxu0 %v1777
      %1795 = vmatprep.subr.bf16.mxu0 0
      %1796 = vmatpush2.bf16.xpose.msra.mxu0 0
      %1797 = vmatprep.subr.bf16.mxu0 0
      %1798 = vmatpush2.bf16.xpose.msra.mxu0 0
      %1799 = vmatprep.subr.bf16.mxu0 0
      %1800 = vmatpush2.bf16.xpose.msra.mxu0 0
      %1801 = vmatprep.subr.bf16.mxu0 0
      %1802 = vmatpush2.bf16.xpose.msra.mxu0 0
      %1803 = vmatprep.subr.bf16.mxu0 0
      %1804 = vmatpush2.bf16.xpose.msra.mxu0 0
      %1805 = vmatprep.subr.bf16.mxu0 0
      %1806 = vmatpush2.bf16.xpose.msra.mxu0 0
      %1807 = vmatprep.subr.bf16.mxu0 0
      %1808 = vmatpush2.bf16.xpose.msra.mxu0 0
      %1809 = vmatprep.subr.bf16.mxu0 0
      %1810 = vmatpush2.bf16.xpose.msra.mxu0 0
      %1811 = vmatprep.mubr.bf16.mxu0 0
      %1812 = vmatmul.mubr.bf16.gmra.mxu0 %v1774
      %v1813 = vpop.f32.mrf.mxu0
      %v1814 = vadd.f32 0.0, %v1813
      %v1815 = vpop.f32.mrf.mxu0
      %v1816 = vpop.f32.mrf.mxu0
      %v1817 = vadd.f32 0.0, %v1816
      %v1818 = vpop.f32.mrf.mxu0
      %1819 = vdwg.mxu0
      %v1821 = vsel %vm1631, %v1603, 0
      %v1824 = vsel %vm1631, %v1619, 0
      %1826 = vmatprep.subr.bf16.mxu0 0
      %1827 = vmatpush1.bf16.xpose.msra.mxu0 0
      %1828 = vmatprep.subr.bf16.mxu0 0
      %1829 = vmatpush1.bf16.xpose.msra.mxu0 0
      %1830 = vmatprep.subr.bf16.mxu0 0
      %1831 = vmatpush1.bf16.xpose.msra.mxu0 0
      %1832 = vmatprep.subr.bf16.mxu0 0
      %1833 = vmatpush1.bf16.xpose.msra.mxu0 0
      %1834 = vmatprep.subr.bf16.mxu0 0
      %1835 = vmatpush1.bf16.xpose.msra.mxu0 0
      %1836 = vmatprep.subr.bf16.mxu0 0
      %1837 = vmatpush1.bf16.xpose.msra.mxu0 0
      %1838 = vmatprep.subr.bf16.mxu0 0
      %1839 = vmatpush1.bf16.xpose.msra.mxu0 0
      %1840 = vmatprep.subr.bf16.mxu0 0
      %1841 = vmatpush1.bf16.xpose.msra.mxu0 %v1824
      %1842 = vmatprep.subr.bf16.mxu0 0
      %1843 = vmatpush2.bf16.xpose.msra.mxu0 0
      %1844 = vmatprep.subr.bf16.mxu0 0
      %1845 = vmatpush2.bf16.xpose.msra.mxu0 0
      %1846 = vmatprep.subr.bf16.mxu0 0
      %1847 = vmatpush2.bf16.xpose.msra.mxu0 0
      %1848 = vmatprep.subr.bf16.mxu0 0
      %1849 = vmatpush2.bf16.xpose.msra.mxu0 0
      %1850 = vmatprep.subr.bf16.mxu0 0
      %1851 = vmatpush2.bf16.xpose.msra.mxu0 0
      %1852 = vmatprep.subr.bf16.mxu0 0
      %1853 = vmatpush2.bf16.xpose.msra.mxu0 0
      %1854 = vmatprep.subr.bf16.mxu0 0
      %1855 = vmatpush2.bf16.xpose.msra.mxu0 0
      %1856 = vmatprep.subr.bf16.mxu0 0
      %1857 = vmatpush2.bf16.xpose.msra.mxu0 0
      %1858 = vmatprep.mubr.bf16.mxu0 0
      %1859 = vmatmul.mubr.bf16.gmra.mxu0 %v1821
      %v1860 = vpop.f32.mrf.mxu0
      %v1861 = vadd.f32 0.0, %v1860
      %v1862 = vpop.f32.mrf.mxu0
      %v1863 = vpop.f32.mrf.mxu0
      %v1864 = vadd.f32 0.0, %v1863
      %v1865 = vpop.f32.mrf.mxu0
      %1866 = vdwg.mxu0
      %v1868 = vsel %vm1631, %v1604, 0
      %v1871 = vsel %vm1631, %v1620, 0
      %1873 = vmatprep.subr.bf16.mxu0 0
      %1874 = vmatpush1.bf16.xpose.msra.mxu0 0
      %1875 = vmatprep.subr.bf16.mxu0 0
      %1876 = vmatpush1.bf16.xpose.msra.mxu0 0
      %1877 = vmatprep.subr.bf16.mxu0 0
      %1878 = vmatpush1.bf16.xpose.msra.mxu0 0
      %1879 = vmatprep.subr.bf16.mxu0 0
      %1880 = vmatpush1.bf16.xpose.msra.mxu0 0
      %1881 = vmatprep.subr.bf16.mxu0 0
      %1882 = vmatpush1.bf16.xpose.msra.mxu0 0
      %1883 = vmatprep.subr.bf16.mxu0 0
      %1884 = vmatpush1.bf16.xpose.msra.mxu0 0
      %1885 = vmatprep.subr.bf16.mxu0 0
      %1886 = vmatpush1.bf16.xpose.msra.mxu0 0
      %1887 = vmatprep.subr.bf16.mxu0 0
      %1888 = vmatpush1.bf16.xpose.msra.mxu0 %v1871
      %1889 = vmatprep.subr.bf16.mxu0 0
      %1890 = vmatpush2.bf16.xpose.msra.mxu0 0
      %1891 = vmatprep.subr.bf16.mxu0 0
      %1892 = vmatpush2.bf16.xpose.msra.mxu0 0
      %1893 = vmatprep.subr.bf16.mxu0 0
      %1894 = vmatpush2.bf16.xpose.msra.mxu0 0
      %1895 = vmatprep.subr.bf16.mxu0 0
      %1896 = vmatpush2.bf16.xpose.msra.mxu0 0
      %1897 = vmatprep.subr.bf16.mxu0 0
      %1898 = vmatpush2.bf16.xpose.msra.mxu0 0
      %1899 = vmatprep.subr.bf16.mxu0 0
      %1900 = vmatpush2.bf16.xpose.msra.mxu0 0
      %1901 = vmatprep.subr.bf16.mxu0 0
      %1902 = vmatpush2.bf16.xpose.msra.mxu0 0
      %1903 = vmatprep.subr.bf16.mxu0 0
      %1904 = vmatpush2.bf16.xpose.msra.mxu0 0
      %1905 = vmatprep.mubr.bf16.mxu0 0
      %1906 = vmatmul.mubr.bf16.gmra.mxu0 %v1868
      %v1907 = vpop.f32.mrf.mxu0
      %v1908 = vadd.f32 0.0, %v1907
      %v1909 = vpop.f32.mrf.mxu0
      %v1910 = vpop.f32.mrf.mxu0
      %v1911 = vadd.f32 0.0, %v1910
      %v1912 = vpop.f32.mrf.mxu0
      %1913 = vdwg.mxu0
      %v1915 = vsel %vm1631, %v1605, 0
      %v1918 = vsel %vm1631, %v1621, 0
      %1920 = vmatprep.subr.bf16.mxu0 0
      %1921 = vmatpush1.bf16.xpose.msra.mxu0 0
      %1922 = vmatprep.subr.bf16.mxu0 0
      %1923 = vmatpush1.bf16.xpose.msra.mxu0 0
      %1924 = vmatprep.subr.bf16.mxu0 0
      %1925 = vmatpush1.bf16.xpose.msra.mxu0 0
      %1926 = vmatprep.subr.bf16.mxu0 0
      %1927 = vmatpush1.bf16.xpose.msra.mxu0 0
      %1928 = vmatprep.subr.bf16.mxu0 0
      %1929 = vmatpush1.bf16.xpose.msra.mxu0 0
      %1930 = vmatprep.subr.bf16.mxu0 0
      %1931 = vmatpush1.bf16.xpose.msra.mxu0 0
      %1932 = vmatprep.subr.bf16.mxu0 0
      %1933 = vmatpush1.bf16.xpose.msra.mxu0 0
      %1934 = vmatprep.subr.bf16.mxu0 0
      %1935 = vmatpush1.bf16.xpose.msra.mxu0 %v1918
      %1936 = vmatprep.subr.bf16.mxu0 0
      %1937 = vmatpush2.bf16.xpose.msra.mxu0 0
      %1938 = vmatprep.subr.bf16.mxu0 0
      %1939 = vmatpush2.bf16.xpose.msra.mxu0 0
      %1940 = vmatprep.subr.bf16.mxu0 0
      %1941 = vmatpush2.bf16.xpose.msra.mxu0 0
      %1942 = vmatprep.subr.bf16.mxu0 0
      %1943 = vmatpush2.bf16.xpose.msra.mxu0 0
      %1944 = vmatprep.subr.bf16.mxu0 0
      %1945 = vmatpush2.bf16.xpose.msra.mxu0 0
      %1946 = vmatprep.subr.bf16.mxu0 0
      %1947 = vmatpush2.bf16.xpose.msra.mxu0 0
      %1948 = vmatprep.subr.bf16.mxu0 0
      %1949 = vmatpush2.bf16.xpose.msra.mxu0 0
      %1950 = vmatprep.subr.bf16.mxu0 0
      %1951 = vmatpush2.bf16.xpose.msra.mxu0 0
      %1952 = vmatprep.mubr.bf16.mxu0 0
      %1953 = vmatmul.mubr.bf16.gmra.mxu0 %v1915
      %v1954 = vpop.f32.mrf.mxu0
      %v1955 = vadd.f32 0.0, %v1954
      %v1956 = vpop.f32.mrf.mxu0
      %v1957 = vpop.f32.mrf.mxu0
      %v1958 = vadd.f32 0.0, %v1957
      %v1959 = vpop.f32.mrf.mxu0
      %1960 = vdwg.mxu0
      %v1962 = vsel %vm1631, %v1606, 0
      %v1965 = vsel %vm1631, %v1622, 0
      %1967 = vmatprep.subr.bf16.mxu0 0
      %1968 = vmatpush1.bf16.xpose.msra.mxu0 0
      %1969 = vmatprep.subr.bf16.mxu0 0
      %1970 = vmatpush1.bf16.xpose.msra.mxu0 0
      %1971 = vmatprep.subr.bf16.mxu0 0
      %1972 = vmatpush1.bf16.xpose.msra.mxu0 0
      %1973 = vmatprep.subr.bf16.mxu0 0
      %1974 = vmatpush1.bf16.xpose.msra.mxu0 0
      %1975 = vmatprep.subr.bf16.mxu0 0
      %1976 = vmatpush1.bf16.xpose.msra.mxu0 0
      %1977 = vmatprep.subr.bf16.mxu0 0
      %1978 = vmatpush1.bf16.xpose.msra.mxu0 0
      %1979 = vmatprep.subr.bf16.mxu0 0
      %1980 = vmatpush1.bf16.xpose.msra.mxu0 0
      %1981 = vmatprep.subr.bf16.mxu0 0
      %1982 = vmatpush1.bf16.xpose.msra.mxu0 %v1965
      %1983 = vmatprep.subr.bf16.mxu0 0
      %1984 = vmatpush2.bf16.xpose.msra.mxu0 0
      %1985 = vmatprep.subr.bf16.mxu0 0
      %1986 = vmatpush2.bf16.xpose.msra.mxu0 0
      %1987 = vmatprep.subr.bf16.mxu0 0
      %1988 = vmatpush2.bf16.xpose.msra.mxu0 0
      %1989 = vmatprep.subr.bf16.mxu0 0
      %1990 = vmatpush2.bf16.xpose.msra.mxu0 0
      %1991 = vmatprep.subr.bf16.mxu0 0
      %1992 = vmatpush2.bf16.xpose.msra.mxu0 0
      %1993 = vmatprep.subr.bf16.mxu0 0
      %1994 = vmatpush2.bf16.xpose.msra.mxu0 0
      %1995 = vmatprep.subr.bf16.mxu0 0
      %1996 = vmatpush2.bf16.xpose.msra.mxu0 0
      %1997 = vmatprep.subr.bf16.mxu0 0
      %1998 = vmatpush2.bf16.xpose.msra.mxu0 0
      %1999 = vmatprep.mubr.bf16.mxu0 0
      %2000 = vmatmul.mubr.bf16.gmra.mxu0 %v1962
      %v2001 = vpop.f32.mrf.mxu0
      %v2002 = vadd.f32 0.0, %v2001
      %v2003 = vpop.f32.mrf.mxu0
      %v2004 = vpop.f32.mrf.mxu0
      %v2005 = vadd.f32 0.0, %v2004
      %v2006 = vpop.f32.mrf.mxu0
      %2007 = vdwg.mxu0
      %v2009 = vsel %vm1631, %v1607, 0
      %v2012 = vsel %vm1631, %v1623, 0
      %2014 = vmatprep.subr.bf16.mxu0 0
      %2015 = vmatpush1.bf16.xpose.msra.mxu0 0
      %2016 = vmatprep.subr.bf16.mxu0 0
      %2017 = vmatpush1.bf16.xpose.msra.mxu0 0
      %2018 = vmatprep.subr.bf16.mxu0 0
      %2019 = vmatpush1.bf16.xpose.msra.mxu0 0
      %2020 = vmatprep.subr.bf16.mxu0 0
      %2021 = vmatpush1.bf16.xpose.msra.mxu0 0
      %2022 = vmatprep.subr.bf16.mxu0 0
      %2023 = vmatpush1.bf16.xpose.msra.mxu0 0
      %2024 = vmatprep.subr.bf16.mxu0 0
      %2025 = vmatpush1.bf16.xpose.msra.mxu0 0
      %2026 = vmatprep.subr.bf16.mxu0 0
      %2027 = vmatpush1.bf16.xpose.msra.mxu0 0
      %2028 = vmatprep.subr.bf16.mxu0 0
      %2029 = vmatpush1.bf16.xpose.msra.mxu0 %v2012
      %2030 = vmatprep.subr.bf16.mxu0 0
      %2031 = vmatpush2.bf16.xpose.msra.mxu0 0
      %2032 = vmatprep.subr.bf16.mxu0 0
      %2033 = vmatpush2.bf16.xpose.msra.mxu0 0
      %2034 = vmatprep.subr.bf16.mxu0 0
      %2035 = vmatpush2.bf16.xpose.msra.mxu0 0
      %2036 = vmatprep.subr.bf16.mxu0 0
      %2037 = vmatpush2.bf16.xpose.msra.mxu0 0
      %2038 = vmatprep.subr.bf16.mxu0 0
      %2039 = vmatpush2.bf16.xpose.msra.mxu0 0
      %2040 = vmatprep.subr.bf16.mxu0 0
      %2041 = vmatpush2.bf16.xpose.msra.mxu0 0
      %2042 = vmatprep.subr.bf16.mxu0 0
      %2043 = vmatpush2.bf16.xpose.msra.mxu0 0
      %2044 = vmatprep.subr.bf16.mxu0 0
      %2045 = vmatpush2.bf16.xpose.msra.mxu0 0
      %2046 = vmatprep.mubr.bf16.mxu0 0
      %2047 = vmatmul.mubr.bf16.gmra.mxu0 %v2009
      %v2048 = vpop.f32.mrf.mxu0
      %v2049 = vadd.f32 0.0, %v2048
      %v2050 = vpop.f32.mrf.mxu0
      %v2051 = vpop.f32.mrf.mxu0
      %v2052 = vadd.f32 0.0, %v2051
      %v2053 = vpop.f32.mrf.mxu0
      %2054 = vdwg.mxu0
      %v2056 = vsel %vm1631, %v1608, 0
      %v2059 = vsel %vm1631, %v1624, 0
      %2061 = vmatprep.subr.bf16.mxu0 0
      %2062 = vmatpush1.bf16.xpose.msra.mxu0 0
      %2063 = vmatprep.subr.bf16.mxu0 0
      %2064 = vmatpush1.bf16.xpose.msra.mxu0 0
      %2065 = vmatprep.subr.bf16.mxu0 0
      %2066 = vmatpush1.bf16.xpose.msra.mxu0 0
      %2067 = vmatprep.subr.bf16.mxu0 0
      %2068 = vmatpush1.bf16.xpose.msra.mxu0 0
      %2069 = vmatprep.subr.bf16.mxu0 0
      %2070 = vmatpush1.bf16.xpose.msra.mxu0 0
      %2071 = vmatprep.subr.bf16.mxu0 0
      %2072 = vmatpush1.bf16.xpose.msra.mxu0 0
      %2073 = vmatprep.subr.bf16.mxu0 0
      %2074 = vmatpush1.bf16.xpose.msra.mxu0 0
      %2075 = vmatprep.subr.bf16.mxu0 0
      %2076 = vmatpush1.bf16.xpose.msra.mxu0 %v2059
      %2077 = vmatprep.subr.bf16.mxu0 0
      %2078 = vmatpush2.bf16.xpose.msra.mxu0 0
      %2079 = vmatprep.subr.bf16.mxu0 0
      %2080 = vmatpush2.bf16.xpose.msra.mxu0 0
      %2081 = vmatprep.subr.bf16.mxu0 0
      %2082 = vmatpush2.bf16.xpose.msra.mxu0 0
      %2083 = vmatprep.subr.bf16.mxu0 0
      %2084 = vmatpush2.bf16.xpose.msra.mxu0 0
      %2085 = vmatprep.subr.bf16.mxu0 0
      %2086 = vmatpush2.bf16.xpose.msra.mxu0 0
      %2087 = vmatprep.subr.bf16.mxu0 0
      %2088 = vmatpush2.bf16.xpose.msra.mxu0 0
      %2089 = vmatprep.subr.bf16.mxu0 0
      %2090 = vmatpush2.bf16.xpose.msra.mxu0 0
      %2091 = vmatprep.subr.bf16.mxu0 0
      %2092 = vmatpush2.bf16.xpose.msra.mxu0 0
      %2093 = vmatprep.mubr.bf16.mxu0 0
      %2094 = vmatmul.mubr.bf16.gmra.mxu0 %v2056
      %v2095 = vpop.f32.mrf.mxu0
      %v2096 = vadd.f32 0.0, %v2095
      %v2097 = vpop.f32.mrf.mxu0
      %v2098 = vpop.f32.mrf.mxu0
      %v2099 = vadd.f32 0.0, %v2098
      %v2100 = vpop.f32.mrf.mxu0
      %2101 = vdwg.mxu0
      %v2103 = vsel %vm1631, %v1609, 0
      %v2106 = vsel %vm1631, %v1625, 0
      %2108 = vmatprep.subr.bf16.mxu0 0
      %2109 = vmatpush1.bf16.xpose.msra.mxu0 0
      %2110 = vmatprep.subr.bf16.mxu0 0
      %2111 = vmatpush1.bf16.xpose.msra.mxu0 0
      %2112 = vmatprep.subr.bf16.mxu0 0
      %2113 = vmatpush1.bf16.xpose.msra.mxu0 0
      %2114 = vmatprep.subr.bf16.mxu0 0
      %2115 = vmatpush1.bf16.xpose.msra.mxu0 0
      %2116 = vmatprep.subr.bf16.mxu0 0
      %2117 = vmatpush1.bf16.xpose.msra.mxu0 0
      %2118 = vmatprep.subr.bf16.mxu0 0
      %2119 = vmatpush1.bf16.xpose.msra.mxu0 0
      %2120 = vmatprep.subr.bf16.mxu0 0
      %2121 = vmatpush1.bf16.xpose.msra.mxu0 0
      %2122 = vmatprep.subr.bf16.mxu0 0
      %2123 = vmatpush1.bf16.xpose.msra.mxu0 %v2106
      %2124 = vmatprep.subr.bf16.mxu0 0
      %2125 = vmatpush2.bf16.xpose.msra.mxu0 0
      %2126 = vmatprep.subr.bf16.mxu0 0
      %2127 = vmatpush2.bf16.xpose.msra.mxu0 0
      %2128 = vmatprep.subr.bf16.mxu0 0
      %2129 = vmatpush2.bf16.xpose.msra.mxu0 0
      %2130 = vmatprep.subr.bf16.mxu0 0
      %2131 = vmatpush2.bf16.xpose.msra.mxu0 0
      %2132 = vmatprep.subr.bf16.mxu0 0
      %2133 = vmatpush2.bf16.xpose.msra.mxu0 0
      %2134 = vmatprep.subr.bf16.mxu0 0
      %2135 = vmatpush2.bf16.xpose.msra.mxu0 0
      %2136 = vmatprep.subr.bf16.mxu0 0
      %2137 = vmatpush2.bf16.xpose.msra.mxu0 0
      %2138 = vmatprep.subr.bf16.mxu0 0
      %2139 = vmatpush2.bf16.xpose.msra.mxu0 0
      %2140 = vmatprep.mubr.bf16.mxu0 0
      %2141 = vmatmul.mubr.bf16.gmra.mxu0 %v2103
      %v2142 = vpop.f32.mrf.mxu0
      %v2143 = vadd.f32 0.0, %v2142
      %v2144 = vpop.f32.mrf.mxu0
      %v2145 = vpop.f32.mrf.mxu0
      %v2146 = vadd.f32 0.0, %v2145
      %v2147 = vpop.f32.mrf.mxu0
      %2148 = vdwg.mxu0
      %v2150 = vsel %vm1631, %v1610, 0
      %v2153 = vsel %vm1631, %v1626, 0
      %2155 = vmatprep.subr.bf16.mxu0 0
      %2156 = vmatpush1.bf16.xpose.msra.mxu0 0
      %2157 = vmatprep.subr.bf16.mxu0 0
      %2158 = vmatpush1.bf16.xpose.msra.mxu0 0
      %2159 = vmatprep.subr.bf16.mxu0 0
      %2160 = vmatpush1.bf16.xpose.msra.mxu0 0
      %2161 = vmatprep.subr.bf16.mxu0 0
      %2162 = vmatpush1.bf16.xpose.msra.mxu0 0
      %2163 = vmatprep.subr.bf16.mxu0 0
      %2164 = vmatpush1.bf16.xpose.msra.mxu0 0
      %2165 = vmatprep.subr.bf16.mxu0 0
      %2166 = vmatpush1.bf16.xpose.msra.mxu0 0
      %2167 = vmatprep.subr.bf16.mxu0 0
      %2168 = vmatpush1.bf16.xpose.msra.mxu0 0
      %2169 = vmatprep.subr.bf16.mxu0 0
      %2170 = vmatpush1.bf16.xpose.msra.mxu0 %v2153
      %2171 = vmatprep.subr.bf16.mxu0 0
      %2172 = vmatpush2.bf16.xpose.msra.mxu0 0
      %2173 = vmatprep.subr.bf16.mxu0 0
      %2174 = vmatpush2.bf16.xpose.msra.mxu0 0
      %2175 = vmatprep.subr.bf16.mxu0 0
      %2176 = vmatpush2.bf16.xpose.msra.mxu0 0
      %2177 = vmatprep.subr.bf16.mxu0 0
      %2178 = vmatpush2.bf16.xpose.msra.mxu0 0
      %2179 = vmatprep.subr.bf16.mxu0 0
      %2180 = vmatpush2.bf16.xpose.msra.mxu0 0
      %2181 = vmatprep.subr.bf16.mxu0 0
      %2182 = vmatpush2.bf16.xpose.msra.mxu0 0
      %2183 = vmatprep.subr.bf16.mxu0 0
      %2184 = vmatpush2.bf16.xpose.msra.mxu0 0
      %2185 = vmatprep.subr.bf16.mxu0 0
      %2186 = vmatpush2.bf16.xpose.msra.mxu0 0
      %2187 = vmatprep.mubr.bf16.mxu0 0
      %2188 = vmatmul.mubr.bf16.gmra.mxu0 %v2150
      %v2189 = vpop.f32.mrf.mxu0
      %v2190 = vadd.f32 0.0, %v2189
      %v2191 = vpop.f32.mrf.mxu0
      %v2192 = vpop.f32.mrf.mxu0
      %v2193 = vadd.f32 0.0, %v2192
      %v2194 = vpop.f32.mrf.mxu0
      %2195 = vdwg.mxu0
      %v2197 = vsel %vm1631, %v1611, 0
      %v2200 = vsel %vm1631, %v1627, 0
      %2202 = vmatprep.subr.bf16.mxu0 0
      %2203 = vmatpush1.bf16.xpose.msra.mxu0 0
      %2204 = vmatprep.subr.bf16.mxu0 0
      %2205 = vmatpush1.bf16.xpose.msra.mxu0 0
      %2206 = vmatprep.subr.bf16.mxu0 0
      %2207 = vmatpush1.bf16.xpose.msra.mxu0 0
      %2208 = vmatprep.subr.bf16.mxu0 0
      %2209 = vmatpush1.bf16.xpose.msra.mxu0 0
      %2210 = vmatprep.subr.bf16.mxu0 0
      %2211 = vmatpush1.bf16.xpose.msra.mxu0 0
      %2212 = vmatprep.subr.bf16.mxu0 0
      %2213 = vmatpush1.bf16.xpose.msra.mxu0 0
      %2214 = vmatprep.subr.bf16.mxu0 0
      %2215 = vmatpush1.bf16.xpose.msra.mxu0 0
      %2216 = vmatprep.subr.bf16.mxu0 0
      %2217 = vmatpush1.bf16.xpose.msra.mxu0 %v2200
      %2218 = vmatprep.subr.bf16.mxu0 0
      %2219 = vmatpush2.bf16.xpose.msra.mxu0 0
      %2220 = vmatprep.subr.bf16.mxu0 0
      %2221 = vmatpush2.bf16.xpose.msra.mxu0 0
      %2222 = vmatprep.subr.bf16.mxu0 0
      %2223 = vmatpush2.bf16.xpose.msra.mxu0 0
      %2224 = vmatprep.subr.bf16.mxu0 0
      %2225 = vmatpush2.bf16.xpose.msra.mxu0 0
      %2226 = vmatprep.subr.bf16.mxu0 0
      %2227 = vmatpush2.bf16.xpose.msra.mxu0 0
      %2228 = vmatprep.subr.bf16.mxu0 0
      %2229 = vmatpush2.bf16.xpose.msra.mxu0 0
      %2230 = vmatprep.subr.bf16.mxu0 0
      %2231 = vmatpush2.bf16.xpose.msra.mxu0 0
      %2232 = vmatprep.subr.bf16.mxu0 0
      %2233 = vmatpush2.bf16.xpose.msra.mxu0 0
      %2234 = vmatprep.mubr.bf16.mxu0 0
      %2235 = vmatmul.mubr.bf16.gmra.mxu0 %v2197
      %v2236 = vpop.f32.mrf.mxu0
      %v2237 = vadd.f32 0.0, %v2236
      %v2238 = vpop.f32.mrf.mxu0
      %v2239 = vpop.f32.mrf.mxu0
      %v2240 = vadd.f32 0.0, %v2239
      %v2241 = vpop.f32.mrf.mxu0
      %2242 = vdwg.mxu0
      %v2244 = vsel %vm1631, %v1612, 0
      %v2247 = vsel %vm1631, %v1628, 0
      %2249 = vmatprep.subr.bf16.mxu0 0
      %2250 = vmatpush1.bf16.xpose.msra.mxu0 0
      %2251 = vmatprep.subr.bf16.mxu0 0
      %2252 = vmatpush1.bf16.xpose.msra.mxu0 0
      %2253 = vmatprep.subr.bf16.mxu0 0
      %2254 = vmatpush1.bf16.xpose.msra.mxu0 0
      %2255 = vmatprep.subr.bf16.mxu0 0
      %2256 = vmatpush1.bf16.xpose.msra.mxu0 0
      %2257 = vmatprep.subr.bf16.mxu0 0
      %2258 = vmatpush1.bf16.xpose.msra.mxu0 0
      %2259 = vmatprep.subr.bf16.mxu0 0
      %2260 = vmatpush1.bf16.xpose.msra.mxu0 0
      %2261 = vmatprep.subr.bf16.mxu0 0
      %2262 = vmatpush1.bf16.xpose.msra.mxu0 0
      %2263 = vmatprep.subr.bf16.mxu0 0
      %2264 = vmatpush1.bf16.xpose.msra.mxu0 %v2247
      %2265 = vmatprep.subr.bf16.mxu0 0
      %2266 = vmatpush2.bf16.xpose.msra.mxu0 0
      %2267 = vmatprep.subr.bf16.mxu0 0
      %2268 = vmatpush2.bf16.xpose.msra.mxu0 0
      %2269 = vmatprep.subr.bf16.mxu0 0
      %2270 = vmatpush2.bf16.xpose.msra.mxu0 0
      %2271 = vmatprep.subr.bf16.mxu0 0
      %2272 = vmatpush2.bf16.xpose.msra.mxu0 0
      %2273 = vmatprep.subr.bf16.mxu0 0
      %2274 = vmatpush2.bf16.xpose.msra.mxu0 0
      %2275 = vmatprep.subr.bf16.mxu0 0
      %2276 = vmatpush2.bf16.xpose.msra.mxu0 0
      %2277 = vmatprep.subr.bf16.mxu0 0
      %2278 = vmatpush2.bf16.xpose.msra.mxu0 0
      %2279 = vmatprep.subr.bf16.mxu0 0
      %2280 = vmatpush2.bf16.xpose.msra.mxu0 0
      %2281 = vmatprep.mubr.bf16.mxu0 0
      %2282 = vmatmul.mubr.bf16.gmra.mxu0 %v2244
      %v2283 = vpop.f32.mrf.mxu0
      %v2284 = vadd.f32 0.0, %v2283
      %v2285 = vpop.f32.mrf.mxu0
      %v2286 = vpop.f32.mrf.mxu0
      %v2287 = vadd.f32 0.0, %v2286
      %v2288 = vpop.f32.mrf.mxu0
      %2289 = vdwg.mxu0
      %v2291 = vsel %vm1631, %v1613, 0
      %v2294 = vsel %vm1631, %v1629, 0
      %2296 = vmatprep.subr.bf16.mxu0 0
      %2297 = vmatpush1.bf16.xpose.msra.mxu0 0
      %2298 = vmatprep.subr.bf16.mxu0 0
      %2299 = vmatpush1.bf16.xpose.msra.mxu0 0
      %2300 = vmatprep.subr.bf16.mxu0 0
      %2301 = vmatpush1.bf16.xpose.msra.mxu0 0
      %2302 = vmatprep.subr.bf16.mxu0 0
      %2303 = vmatpush1.bf16.xpose.msra.mxu0 0
      %2304 = vmatprep.subr.bf16.mxu0 0
      %2305 = vmatpush1.bf16.xpose.msra.mxu0 0
      %2306 = vmatprep.subr.bf16.mxu0 0
      %2307 = vmatpush1.bf16.xpose.msra.mxu0 0
      %2308 = vmatprep.subr.bf16.mxu0 0
      %2309 = vmatpush1.bf16.xpose.msra.mxu0 0
      %2310 = vmatprep.subr.bf16.mxu0 0
      %2311 = vmatpush1.bf16.xpose.msra.mxu0 %v2294
      %2312 = vmatprep.subr.bf16.mxu0 0
      %2313 = vmatpush2.bf16.xpose.msra.mxu0 0
      %2314 = vmatprep.subr.bf16.mxu0 0
      %2315 = vmatpush2.bf16.xpose.msra.mxu0 0
      %2316 = vmatprep.subr.bf16.mxu0 0
      %2317 = vmatpush2.bf16.xpose.msra.mxu0 0
      %2318 = vmatprep.subr.bf16.mxu0 0
      %2319 = vmatpush2.bf16.xpose.msra.mxu0 0
      %2320 = vmatprep.subr.bf16.mxu0 0
      %2321 = vmatpush2.bf16.xpose.msra.mxu0 0
      %2322 = vmatprep.subr.bf16.mxu0 0
      %2323 = vmatpush2.bf16.xpose.msra.mxu0 0
      %2324 = vmatprep.subr.bf16.mxu0 0
      %2325 = vmatpush2.bf16.xpose.msra.mxu0 0
      %2326 = vmatprep.subr.bf16.mxu0 0
      %2327 = vmatpush2.bf16.xpose.msra.mxu0 0
      %2328 = vmatprep.mubr.bf16.mxu0 0
      %2329 = vmatmul.mubr.bf16.gmra.mxu0 %v2291
      %v2330 = vpop.f32.mrf.mxu0
      %v2331 = vadd.f32 0.0, %v2330
      %v2332 = vpop.f32.mrf.mxu0
      %v2333 = vpop.f32.mrf.mxu0
      %v2334 = vadd.f32 0.0, %v2333
      %v2335 = vpop.f32.mrf.mxu0
      %2336 = vdwg.mxu0
      %v2338 = vsel %vm1631, %v1614, 0
      %v2341 = vsel %vm1631, %v1630, 0
      %2343 = vmatprep.subr.bf16.mxu0 0
      %2344 = vmatpush1.bf16.xpose.msra.mxu0 0
      %2345 = vmatprep.subr.bf16.mxu0 0
      %2346 = vmatpush1.bf16.xpose.msra.mxu0 0
      %2347 = vmatprep.subr.bf16.mxu0 0
      %2348 = vmatpush1.bf16.xpose.msra.mxu0 0
      %2349 = vmatprep.subr.bf16.mxu0 0
      %2350 = vmatpush1.bf16.xpose.msra.mxu0 0
      %2351 = vmatprep.subr.bf16.mxu0 0
      %2352 = vmatpush1.bf16.xpose.msra.mxu0 0
      %2353 = vmatprep.subr.bf16.mxu0 0
      %2354 = vmatpush1.bf16.xpose.msra.mxu0 0
      %2355 = vmatprep.subr.bf16.mxu0 0
      %2356 = vmatpush1.bf16.xpose.msra.mxu0 0
      %2357 = vmatprep.subr.bf16.mxu0 0
      %2358 = vmatpush1.bf16.xpose.msra.mxu0 %v2341
      %2359 = vmatprep.subr.bf16.mxu0 0
      %2360 = vmatpush2.bf16.xpose.msra.mxu0 0
      %2361 = vmatprep.subr.bf16.mxu0 0
      %2362 = vmatpush2.bf16.xpose.msra.mxu0 0
      %2363 = vmatprep.subr.bf16.mxu0 0
      %2364 = vmatpush2.bf16.xpose.msra.mxu0 0
      %2365 = vmatprep.subr.bf16.mxu0 0
      %2366 = vmatpush2.bf16.xpose.msra.mxu0 0
      %2367 = vmatprep.subr.bf16.mxu0 0
      %2368 = vmatpush2.bf16.xpose.msra.mxu0 0
      %2369 = vmatprep.subr.bf16.mxu0 0
      %2370 = vmatpush2.bf16.xpose.msra.mxu0 0
      %2371 = vmatprep.subr.bf16.mxu0 0
      %2372 = vmatpush2.bf16.xpose.msra.mxu0 0
      %2373 = vmatprep.subr.bf16.mxu0 0
      %2374 = vmatpush2.bf16.xpose.msra.mxu0 0
      %2375 = vmatprep.mubr.bf16.mxu0 0
      %2376 = vmatmul.mubr.bf16.gmra.mxu0 %v2338
      %v2377 = vpop.f32.mrf.mxu0
      %v2378 = vadd.f32 0.0, %v2377
      %v2379 = vpop.f32.mrf.mxu0
      %v2380 = vpop.f32.mrf.mxu0
      %v2381 = vadd.f32 0.0, %v2380
      %v2382 = vpop.f32.mrf.mxu0
      %2383 = vdwg.mxu0
      %v2384 = vpack.c.bf16 %v1154, %v1151
      %v2385 = vpack.c.bf16 %v1162, %v1159
      %v2386 = vpack.c.bf16 %v1170, %v1167
      %v2387 = vpack.c.bf16 %v1178, %v1175
      %v2388 = vpack.c.bf16 %v1186, %v1183
      %v2389 = vpack.c.bf16 %v1194, %v1191
      %v2390 = vpack.c.bf16 %v1202, %v1199
      %v2391 = vpack.c.bf16 %v1210, %v1207
      %v2392 = vpack.c.bf16 %v1218, %v1215
      %v2393 = vpack.c.bf16 %v1226, %v1223
      %v2394 = vpack.c.bf16 %v1234, %v1231
      %v2395 = vpack.c.bf16 %v1242, %v1239
      %v2396 = vpack.c.bf16 %v1250, %v1247
      %v2397 = vpack.c.bf16 %v1258, %v1255
      %v2398 = vpack.c.bf16 %v1266, %v1263
      %v2399 = vpack.c.bf16 %v1274, %v1271
      %v2400 = vpack.c.bf16 %v1315, %v1312
      %v2401 = vpack.c.bf16 %v1323, %v1320
      %v2402 = vpack.c.bf16 %v1331, %v1328
      %v2403 = vpack.c.bf16 %v1339, %v1336
      %v2404 = vpack.c.bf16 %v1347, %v1344
      %v2405 = vpack.c.bf16 %v1355, %v1352
      %v2406 = vpack.c.bf16 %v1363, %v1360
      %v2407 = vpack.c.bf16 %v1371, %v1368
      %v2408 = vpack.c.bf16 %v1379, %v1376
      %v2409 = vpack.c.bf16 %v1387, %v1384
      %v2410 = vpack.c.bf16 %v1395, %v1392
      %v2411 = vpack.c.bf16 %v1403, %v1400
      %v2412 = vpack.c.bf16 %v1411, %v1408
      %v2413 = vpack.c.bf16 %v1419, %v1416
      %v2414 = vpack.c.bf16 %v1427, %v1424
      %v2415 = vpack.c.bf16 %v1435, %v1432
      %v2417 = vsel %vm1631, %v2384, 0
      %v2420 = vsel %vm1631, %v2400, 0
      %2422 = vmatprep.subr.bf16.mxu0 0
      %2423 = vmatpush1.bf16.xpose.msra.mxu0 0
      %2424 = vmatprep.subr.bf16.mxu0 0
      %2425 = vmatpush1.bf16.xpose.msra.mxu0 0
      %2426 = vmatprep.subr.bf16.mxu0 0
      %2427 = vmatpush1.bf16.xpose.msra.mxu0 0
      %2428 = vmatprep.subr.bf16.mxu0 0
      %2429 = vmatpush1.bf16.xpose.msra.mxu0 0
      %2430 = vmatprep.subr.bf16.mxu0 0
      %2431 = vmatpush1.bf16.xpose.msra.mxu0 0
      %2432 = vmatprep.subr.bf16.mxu0 0
      %2433 = vmatpush1.bf16.xpose.msra.mxu0 0
      %2434 = vmatprep.subr.bf16.mxu0 0
      %2435 = vmatpush1.bf16.xpose.msra.mxu0 0
      %2436 = vmatprep.subr.bf16.mxu0 0
      %2437 = vmatpush1.bf16.xpose.msra.mxu0 %v2420
      %2438 = vmatprep.subr.bf16.mxu0 0
      %2439 = vmatpush2.bf16.xpose.msra.mxu0 0
      %2440 = vmatprep.subr.bf16.mxu0 0
      %2441 = vmatpush2.bf16.xpose.msra.mxu0 0
      %2442 = vmatprep.subr.bf16.mxu0 0
      %2443 = vmatpush2.bf16.xpose.msra.mxu0 0
      %2444 = vmatprep.subr.bf16.mxu0 0
      %2445 = vmatpush2.bf16.xpose.msra.mxu0 0
      %2446 = vmatprep.subr.bf16.mxu0 0
      %2447 = vmatpush2.bf16.xpose.msra.mxu0 0
      %2448 = vmatprep.subr.bf16.mxu0 0
      %2449 = vmatpush2.bf16.xpose.msra.mxu0 0
      %2450 = vmatprep.subr.bf16.mxu0 0
      %2451 = vmatpush2.bf16.xpose.msra.mxu0 0
      %2452 = vmatprep.subr.bf16.mxu0 0
      %2453 = vmatpush2.bf16.xpose.msra.mxu0 0
      %2454 = vmatprep.mubr.bf16.mxu0 0
      %2455 = vmatmul.mubr.bf16.gmra.mxu0 %v2417
      %v2456 = vpop.f32.mrf.mxu0
      %v2457 = vadd.f32 0.0, %v2456
      %v2458 = vpop.f32.mrf.mxu0
      %v2459 = vpop.f32.mrf.mxu0
      %v2460 = vadd.f32 0.0, %v2459
      %v2461 = vpop.f32.mrf.mxu0
      %2462 = vdwg.mxu0
      %v2464 = vsel %vm1631, %v2385, 0
      %v2467 = vsel %vm1631, %v2401, 0
      %2469 = vmatprep.subr.bf16.mxu0 0
      %2470 = vmatpush1.bf16.xpose.msra.mxu0 0
      %2471 = vmatprep.subr.bf16.mxu0 0
      %2472 = vmatpush1.bf16.xpose.msra.mxu0 0
      %2473 = vmatprep.subr.bf16.mxu0 0
      %2474 = vmatpush1.bf16.xpose.msra.mxu0 0
      %2475 = vmatprep.subr.bf16.mxu0 0
      %2476 = vmatpush1.bf16.xpose.msra.mxu0 0
      %2477 = vmatprep.subr.bf16.mxu0 0
      %2478 = vmatpush1.bf16.xpose.msra.mxu0 0
      %2479 = vmatprep.subr.bf16.mxu0 0
      %2480 = vmatpush1.bf16.xpose.msra.mxu0 0
      %2481 = vmatprep.subr.bf16.mxu0 0
      %2482 = vmatpush1.bf16.xpose.msra.mxu0 0
      %2483 = vmatprep.subr.bf16.mxu0 0
      %2484 = vmatpush1.bf16.xpose.msra.mxu0 %v2467
      %2485 = vmatprep.subr.bf16.mxu0 0
      %2486 = vmatpush2.bf16.xpose.msra.mxu0 0
      %2487 = vmatprep.subr.bf16.mxu0 0
      %2488 = vmatpush2.bf16.xpose.msra.mxu0 0
      %2489 = vmatprep.subr.bf16.mxu0 0
      %2490 = vmatpush2.bf16.xpose.msra.mxu0 0
      %2491 = vmatprep.subr.bf16.mxu0 0
      %2492 = vmatpush2.bf16.xpose.msra.mxu0 0
      %2493 = vmatprep.subr.bf16.mxu0 0
      %2494 = vmatpush2.bf16.xpose.msra.mxu0 0
      %2495 = vmatprep.subr.bf16.mxu0 0
      %2496 = vmatpush2.bf16.xpose.msra.mxu0 0
      %2497 = vmatprep.subr.bf16.mxu0 0
      %2498 = vmatpush2.bf16.xpose.msra.mxu0 0
      %2499 = vmatprep.subr.bf16.mxu0 0
      %2500 = vmatpush2.bf16.xpose.msra.mxu0 0
      %2501 = vmatprep.mubr.bf16.mxu0 0
      %2502 = vmatmul.mubr.bf16.gmra.mxu0 %v2464
      %v2503 = vpop.f32.mrf.mxu0
      %v2504 = vadd.f32 0.0, %v2503
      %v2505 = vpop.f32.mrf.mxu0
      %v2506 = vpop.f32.mrf.mxu0
      %v2507 = vadd.f32 0.0, %v2506
      %v2508 = vpop.f32.mrf.mxu0
      %2509 = vdwg.mxu0
      %v2511 = vsel %vm1631, %v2386, 0
      %v2514 = vsel %vm1631, %v2402, 0
      %2516 = vmatprep.subr.bf16.mxu0 0
      %2517 = vmatpush1.bf16.xpose.msra.mxu0 0
      %2518 = vmatprep.subr.bf16.mxu0 0
      %2519 = vmatpush1.bf16.xpose.msra.mxu0 0
      %2520 = vmatprep.subr.bf16.mxu0 0
      %2521 = vmatpush1.bf16.xpose.msra.mxu0 0
      %2522 = vmatprep.subr.bf16.mxu0 0
      %2523 = vmatpush1.bf16.xpose.msra.mxu0 0
      %2524 = vmatprep.subr.bf16.mxu0 0
      %2525 = vmatpush1.bf16.xpose.msra.mxu0 0
      %2526 = vmatprep.subr.bf16.mxu0 0
      %2527 = vmatpush1.bf16.xpose.msra.mxu0 0
      %2528 = vmatprep.subr.bf16.mxu0 0
      %2529 = vmatpush1.bf16.xpose.msra.mxu0 0
      %2530 = vmatprep.subr.bf16.mxu0 0
      %2531 = vmatpush1.bf16.xpose.msra.mxu0 %v2514
      %2532 = vmatprep.subr.bf16.mxu0 0
      %2533 = vmatpush2.bf16.xpose.msra.mxu0 0
      %2534 = vmatprep.subr.bf16.mxu0 0
      %2535 = vmatpush2.bf16.xpose.msra.mxu0 0
      %2536 = vmatprep.subr.bf16.mxu0 0
      %2537 = vmatpush2.bf16.xpose.msra.mxu0 0
      %2538 = vmatprep.subr.bf16.mxu0 0
      %2539 = vmatpush2.bf16.xpose.msra.mxu0 0
      %2540 = vmatprep.subr.bf16.mxu0 0
      %2541 = vmatpush2.bf16.xpose.msra.mxu0 0
      %2542 = vmatprep.subr.bf16.mxu0 0
      %2543 = vmatpush2.bf16.xpose.msra.mxu0 0
      %2544 = vmatprep.subr.bf16.mxu0 0
      %2545 = vmatpush2.bf16.xpose.msra.mxu0 0
      %2546 = vmatprep.subr.bf16.mxu0 0
      %2547 = vmatpush2.bf16.xpose.msra.mxu0 0
      %2548 = vmatprep.mubr.bf16.mxu0 0
      %2549 = vmatmul.mubr.bf16.gmra.mxu0 %v2511
      %v2550 = vpop.f32.mrf.mxu0
      %v2551 = vadd.f32 0.0, %v2550
      %v2552 = vpop.f32.mrf.mxu0
      %v2553 = vpop.f32.mrf.mxu0
      %v2554 = vadd.f32 0.0, %v2553
      %v2555 = vpop.f32.mrf.mxu0
      %2556 = vdwg.mxu0
      %v2558 = vsel %vm1631, %v2387, 0
      %v2561 = vsel %vm1631, %v2403, 0
      %2563 = vmatprep.subr.bf16.mxu0 0
      %2564 = vmatpush1.bf16.xpose.msra.mxu0 0
      %2565 = vmatprep.subr.bf16.mxu0 0
      %2566 = vmatpush1.bf16.xpose.msra.mxu0 0
      %2567 = vmatprep.subr.bf16.mxu0 0
      %2568 = vmatpush1.bf16.xpose.msra.mxu0 0
      %2569 = vmatprep.subr.bf16.mxu0 0
      %2570 = vmatpush1.bf16.xpose.msra.mxu0 0
      %2571 = vmatprep.subr.bf16.mxu0 0
      %2572 = vmatpush1.bf16.xpose.msra.mxu0 0
      %2573 = vmatprep.subr.bf16.mxu0 0
      %2574 = vmatpush1.bf16.xpose.msra.mxu0 0
      %2575 = vmatprep.subr.bf16.mxu0 0
      %2576 = vmatpush1.bf16.xpose.msra.mxu0 0
      %2577 = vmatprep.subr.bf16.mxu0 0
      %2578 = vmatpush1.bf16.xpose.msra.mxu0 %v2561
      %2579 = vmatprep.subr.bf16.mxu0 0
      %2580 = vmatpush2.bf16.xpose.msra.mxu0 0
      %2581 = vmatprep.subr.bf16.mxu0 0
      %2582 = vmatpush2.bf16.xpose.msra.mxu0 0
      %2583 = vmatprep.subr.bf16.mxu0 0
      %2584 = vmatpush2.bf16.xpose.msra.mxu0 0
      %2585 = vmatprep.subr.bf16.mxu0 0
      %2586 = vmatpush2.bf16.xpose.msra.mxu0 0
      %2587 = vmatprep.subr.bf16.mxu0 0
      %2588 = vmatpush2.bf16.xpose.msra.mxu0 0
      %2589 = vmatprep.subr.bf16.mxu0 0
      %2590 = vmatpush2.bf16.xpose.msra.mxu0 0
      %2591 = vmatprep.subr.bf16.mxu0 0
      %2592 = vmatpush2.bf16.xpose.msra.mxu0 0
      %2593 = vmatprep.subr.bf16.mxu0 0
      %2594 = vmatpush2.bf16.xpose.msra.mxu0 0
      %2595 = vmatprep.mubr.bf16.mxu0 0
      %2596 = vmatmul.mubr.bf16.gmra.mxu0 %v2558
      %v2597 = vpop.f32.mrf.mxu0
      %v2598 = vadd.f32 0.0, %v2597
      %v2599 = vpop.f32.mrf.mxu0
      %v2600 = vpop.f32.mrf.mxu0
      %v2601 = vadd.f32 0.0, %v2600
      %v2602 = vpop.f32.mrf.mxu0
      %2603 = vdwg.mxu0
      %v2605 = vsel %vm1631, %v2388, 0
      %v2608 = vsel %vm1631, %v2404, 0
      %2610 = vmatprep.subr.bf16.mxu0 0
      %2611 = vmatpush1.bf16.xpose.msra.mxu0 0
      %2612 = vmatprep.subr.bf16.mxu0 0
      %2613 = vmatpush1.bf16.xpose.msra.mxu0 0
      %2614 = vmatprep.subr.bf16.mxu0 0
      %2615 = vmatpush1.bf16.xpose.msra.mxu0 0
      %2616 = vmatprep.subr.bf16.mxu0 0
      %2617 = vmatpush1.bf16.xpose.msra.mxu0 0
      %2618 = vmatprep.subr.bf16.mxu0 0
      %2619 = vmatpush1.bf16.xpose.msra.mxu0 0
      %2620 = vmatprep.subr.bf16.mxu0 0
      %2621 = vmatpush1.bf16.xpose.msra.mxu0 0
      %2622 = vmatprep.subr.bf16.mxu0 0
      %2623 = vmatpush1.bf16.xpose.msra.mxu0 0
      %2624 = vmatprep.subr.bf16.mxu0 0
      %2625 = vmatpush1.bf16.xpose.msra.mxu0 %v2608
      %2626 = vmatprep.subr.bf16.mxu0 0
      %2627 = vmatpush2.bf16.xpose.msra.mxu0 0
      %2628 = vmatprep.subr.bf16.mxu0 0
      %2629 = vmatpush2.bf16.xpose.msra.mxu0 0
      %2630 = vmatprep.subr.bf16.mxu0 0
      %2631 = vmatpush2.bf16.xpose.msra.mxu0 0
      %2632 = vmatprep.subr.bf16.mxu0 0
      %2633 = vmatpush2.bf16.xpose.msra.mxu0 0
      %2634 = vmatprep.subr.bf16.mxu0 0
      %2635 = vmatpush2.bf16.xpose.msra.mxu0 0
      %2636 = vmatprep.subr.bf16.mxu0 0
      %2637 = vmatpush2.bf16.xpose.msra.mxu0 0
      %2638 = vmatprep.subr.bf16.mxu0 0
      %2639 = vmatpush2.bf16.xpose.msra.mxu0 0
      %2640 = vmatprep.subr.bf16.mxu0 0
      %2641 = vmatpush2.bf16.xpose.msra.mxu0 0
      %2642 = vmatprep.mubr.bf16.mxu0 0
      %2643 = vmatmul.mubr.bf16.gmra.mxu0 %v2605
      %v2644 = vpop.f32.mrf.mxu0
      %v2645 = vadd.f32 0.0, %v2644
      %v2646 = vpop.f32.mrf.mxu0
      %v2647 = vpop.f32.mrf.mxu0
      %v2648 = vadd.f32 0.0, %v2647
      %v2649 = vpop.f32.mrf.mxu0
      %2650 = vdwg.mxu0
      %v2652 = vsel %vm1631, %v2389, 0
      %v2655 = vsel %vm1631, %v2405, 0
      %2657 = vmatprep.subr.bf16.mxu0 0
      %2658 = vmatpush1.bf16.xpose.msra.mxu0 0
      %2659 = vmatprep.subr.bf16.mxu0 0
      %2660 = vmatpush1.bf16.xpose.msra.mxu0 0
      %2661 = vmatprep.subr.bf16.mxu0 0
      %2662 = vmatpush1.bf16.xpose.msra.mxu0 0
      %2663 = vmatprep.subr.bf16.mxu0 0
      %2664 = vmatpush1.bf16.xpose.msra.mxu0 0
      %2665 = vmatprep.subr.bf16.mxu0 0
      %2666 = vmatpush1.bf16.xpose.msra.mxu0 0
      %2667 = vmatprep.subr.bf16.mxu0 0
      %2668 = vmatpush1.bf16.xpose.msra.mxu0 0
      %2669 = vmatprep.subr.bf16.mxu0 0
      %2670 = vmatpush1.bf16.xpose.msra.mxu0 0
      %2671 = vmatprep.subr.bf16.mxu0 0
      %2672 = vmatpush1.bf16.xpose.msra.mxu0 %v2655
      %2673 = vmatprep.subr.bf16.mxu0 0
      %2674 = vmatpush2.bf16.xpose.msra.mxu0 0
      %2675 = vmatprep.subr.bf16.mxu0 0
      %2676 = vmatpush2.bf16.xpose.msra.mxu0 0
      %2677 = vmatprep.subr.bf16.mxu0 0
      %2678 = vmatpush2.bf16.xpose.msra.mxu0 0
      %2679 = vmatprep.subr.bf16.mxu0 0
      %2680 = vmatpush2.bf16.xpose.msra.mxu0 0
      %2681 = vmatprep.subr.bf16.mxu0 0
      %2682 = vmatpush2.bf16.xpose.msra.mxu0 0
      %2683 = vmatprep.subr.bf16.mxu0 0
      %2684 = vmatpush2.bf16.xpose.msra.mxu0 0
      %2685 = vmatprep.subr.bf16.mxu0 0
      %2686 = vmatpush2.bf16.xpose.msra.mxu0 0
      %2687 = vmatprep.subr.bf16.mxu0 0
      %2688 = vmatpush2.bf16.xpose.msra.mxu0 0
      %2689 = vmatprep.mubr.bf16.mxu0 0
      %2690 = vmatmul.mubr.bf16.gmra.mxu0 %v2652
      %v2691 = vpop.f32.mrf.mxu0
      %v2692 = vadd.f32 0.0, %v2691
      %v2693 = vpop.f32.mrf.mxu0
      %v2694 = vpop.f32.mrf.mxu0
      %v2695 = vadd.f32 0.0, %v2694
      %v2696 = vpop.f32.mrf.mxu0
      %2697 = vdwg.mxu0
      %v2699 = vsel %vm1631, %v2390, 0
      %v2702 = vsel %vm1631, %v2406, 0
      %2704 = vmatprep.subr.bf16.mxu0 0
      %2705 = vmatpush1.bf16.xpose.msra.mxu0 0
      %2706 = vmatprep.subr.bf16.mxu0 0
      %2707 = vmatpush1.bf16.xpose.msra.mxu0 0
      %2708 = vmatprep.subr.bf16.mxu0 0
      %2709 = vmatpush1.bf16.xpose.msra.mxu0 0
      %2710 = vmatprep.subr.bf16.mxu0 0
      %2711 = vmatpush1.bf16.xpose.msra.mxu0 0
      %2712 = vmatprep.subr.bf16.mxu0 0
      %2713 = vmatpush1.bf16.xpose.msra.mxu0 0
      %2714 = vmatprep.subr.bf16.mxu0 0
      %2715 = vmatpush1.bf16.xpose.msra.mxu0 0
      %2716 = vmatprep.subr.bf16.mxu0 0
      %2717 = vmatpush1.bf16.xpose.msra.mxu0 0
      %2718 = vmatprep.subr.bf16.mxu0 0
      %2719 = vmatpush1.bf16.xpose.msra.mxu0 %v2702
      %2720 = vmatprep.subr.bf16.mxu0 0
      %2721 = vmatpush2.bf16.xpose.msra.mxu0 0
      %2722 = vmatprep.subr.bf16.mxu0 0
      %2723 = vmatpush2.bf16.xpose.msra.mxu0 0
      %2724 = vmatprep.subr.bf16.mxu0 0
      %2725 = vmatpush2.bf16.xpose.msra.mxu0 0
      %2726 = vmatprep.subr.bf16.mxu0 0
      %2727 = vmatpush2.bf16.xpose.msra.mxu0 0
      %2728 = vmatprep.subr.bf16.mxu0 0
      %2729 = vmatpush2.bf16.xpose.msra.mxu0 0
      %2730 = vmatprep.subr.bf16.mxu0 0
      %2731 = vmatpush2.bf16.xpose.msra.mxu0 0
      %2732 = vmatprep.subr.bf16.mxu0 0
      %2733 = vmatpush2.bf16.xpose.msra.mxu0 0
      %2734 = vmatprep.subr.bf16.mxu0 0
      %2735 = vmatpush2.bf16.xpose.msra.mxu0 0
      %2736 = vmatprep.mubr.bf16.mxu0 0
      %2737 = vmatmul.mubr.bf16.gmra.mxu0 %v2699
      %v2738 = vpop.f32.mrf.mxu0
      %v2739 = vadd.f32 0.0, %v2738
      %v2740 = vpop.f32.mrf.mxu0
      %v2741 = vpop.f32.mrf.mxu0
      %v2742 = vadd.f32 0.0, %v2741
      %v2743 = vpop.f32.mrf.mxu0
      %2744 = vdwg.mxu0
      %v2746 = vsel %vm1631, %v2391, 0
      %v2749 = vsel %vm1631, %v2407, 0
      %2751 = vmatprep.subr.bf16.mxu0 0
      %2752 = vmatpush1.bf16.xpose.msra.mxu0 0
      %2753 = vmatprep.subr.bf16.mxu0 0
      %2754 = vmatpush1.bf16.xpose.msra.mxu0 0
      %2755 = vmatprep.subr.bf16.mxu0 0
      %2756 = vmatpush1.bf16.xpose.msra.mxu0 0
      %2757 = vmatprep.subr.bf16.mxu0 0
      %2758 = vmatpush1.bf16.xpose.msra.mxu0 0
      %2759 = vmatprep.subr.bf16.mxu0 0
      %2760 = vmatpush1.bf16.xpose.msra.mxu0 0
      %2761 = vmatprep.subr.bf16.mxu0 0
      %2762 = vmatpush1.bf16.xpose.msra.mxu0 0
      %2763 = vmatprep.subr.bf16.mxu0 0
      %2764 = vmatpush1.bf16.xpose.msra.mxu0 0
      %2765 = vmatprep.subr.bf16.mxu0 0
      %2766 = vmatpush1.bf16.xpose.msra.mxu0 %v2749
      %2767 = vmatprep.subr.bf16.mxu0 0
      %2768 = vmatpush2.bf16.xpose.msra.mxu0 0
      %2769 = vmatprep.subr.bf16.mxu0 0
      %2770 = vmatpush2.bf16.xpose.msra.mxu0 0
      %2771 = vmatprep.subr.bf16.mxu0 0
      %2772 = vmatpush2.bf16.xpose.msra.mxu0 0
      %2773 = vmatprep.subr.bf16.mxu0 0
      %2774 = vmatpush2.bf16.xpose.msra.mxu0 0
      %2775 = vmatprep.subr.bf16.mxu0 0
      %2776 = vmatpush2.bf16.xpose.msra.mxu0 0
      %2777 = vmatprep.subr.bf16.mxu0 0
      %2778 = vmatpush2.bf16.xpose.msra.mxu0 0
      %2779 = vmatprep.subr.bf16.mxu0 0
      %2780 = vmatpush2.bf16.xpose.msra.mxu0 0
      %2781 = vmatprep.subr.bf16.mxu0 0
      %2782 = vmatpush2.bf16.xpose.msra.mxu0 0
      %2783 = vmatprep.mubr.bf16.mxu0 0
      %2784 = vmatmul.mubr.bf16.gmra.mxu0 %v2746
      %v2785 = vpop.f32.mrf.mxu0
      %v2786 = vadd.f32 0.0, %v2785
      %v2787 = vpop.f32.mrf.mxu0
      %v2788 = vpop.f32.mrf.mxu0
      %v2789 = vadd.f32 0.0, %v2788
      %v2790 = vpop.f32.mrf.mxu0
      %2791 = vdwg.mxu0
      %v2793 = vsel %vm1631, %v2392, 0
      %v2796 = vsel %vm1631, %v2408, 0
      %2798 = vmatprep.subr.bf16.mxu0 0
      %2799 = vmatpush1.bf16.xpose.msra.mxu0 0
      %2800 = vmatprep.subr.bf16.mxu0 0
      %2801 = vmatpush1.bf16.xpose.msra.mxu0 0
      %2802 = vmatprep.subr.bf16.mxu0 0
      %2803 = vmatpush1.bf16.xpose.msra.mxu0 0
      %2804 = vmatprep.subr.bf16.mxu0 0
      %2805 = vmatpush1.bf16.xpose.msra.mxu0 0
      %2806 = vmatprep.subr.bf16.mxu0 0
      %2807 = vmatpush1.bf16.xpose.msra.mxu0 0
      %2808 = vmatprep.subr.bf16.mxu0 0
      %2809 = vmatpush1.bf16.xpose.msra.mxu0 0
      %2810 = vmatprep.subr.bf16.mxu0 0
      %2811 = vmatpush1.bf16.xpose.msra.mxu0 0
      %2812 = vmatprep.subr.bf16.mxu0 0
      %2813 = vmatpush1.bf16.xpose.msra.mxu0 %v2796
      %2814 = vmatprep.subr.bf16.mxu0 0
      %2815 = vmatpush2.bf16.xpose.msra.mxu0 0
      %2816 = vmatprep.subr.bf16.mxu0 0
      %2817 = vmatpush2.bf16.xpose.msra.mxu0 0
      %2818 = vmatprep.subr.bf16.mxu0 0
      %2819 = vmatpush2.bf16.xpose.msra.mxu0 0
      %2820 = vmatprep.subr.bf16.mxu0 0
      %2821 = vmatpush2.bf16.xpose.msra.mxu0 0
      %2822 = vmatprep.subr.bf16.mxu0 0
      %2823 = vmatpush2.bf16.xpose.msra.mxu0 0
      %2824 = vmatprep.subr.bf16.mxu0 0
      %2825 = vmatpush2.bf16.xpose.msra.mxu0 0
      %2826 = vmatprep.subr.bf16.mxu0 0
      %2827 = vmatpush2.bf16.xpose.msra.mxu0 0
      %2828 = vmatprep.subr.bf16.mxu0 0
      %2829 = vmatpush2.bf16.xpose.msra.mxu0 0
      %2830 = vmatprep.mubr.bf16.mxu0 0
      %2831 = vmatmul.mubr.bf16.gmra.mxu0 %v2793
      %v2832 = vpop.f32.mrf.mxu0
      %v2833 = vadd.f32 0.0, %v2832
      %v2834 = vpop.f32.mrf.mxu0
      %v2835 = vpop.f32.mrf.mxu0
      %v2836 = vadd.f32 0.0, %v2835
      %v2837 = vpop.f32.mrf.mxu0
      %2838 = vdwg.mxu0
      %v2840 = vsel %vm1631, %v2393, 0
      %v2843 = vsel %vm1631, %v2409, 0
      %2845 = vmatprep.subr.bf16.mxu0 0
      %2846 = vmatpush1.bf16.xpose.msra.mxu0 0
      %2847 = vmatprep.subr.bf16.mxu0 0
      %2848 = vmatpush1.bf16.xpose.msra.mxu0 0
      %2849 = vmatprep.subr.bf16.mxu0 0
      %2850 = vmatpush1.bf16.xpose.msra.mxu0 0
      %2851 = vmatprep.subr.bf16.mxu0 0
      %2852 = vmatpush1.bf16.xpose.msra.mxu0 0
      %2853 = vmatprep.subr.bf16.mxu0 0
      %2854 = vmatpush1.bf16.xpose.msra.mxu0 0
      %2855 = vmatprep.subr.bf16.mxu0 0
      %2856 = vmatpush1.bf16.xpose.msra.mxu0 0
      %2857 = vmatprep.subr.bf16.mxu0 0
      %2858 = vmatpush1.bf16.xpose.msra.mxu0 0
      %2859 = vmatprep.subr.bf16.mxu0 0
      %2860 = vmatpush1.bf16.xpose.msra.mxu0 %v2843
      %2861 = vmatprep.subr.bf16.mxu0 0
      %2862 = vmatpush2.bf16.xpose.msra.mxu0 0
      %2863 = vmatprep.subr.bf16.mxu0 0
      %2864 = vmatpush2.bf16.xpose.msra.mxu0 0
      %2865 = vmatprep.subr.bf16.mxu0 0
      %2866 = vmatpush2.bf16.xpose.msra.mxu0 0
      %2867 = vmatprep.subr.bf16.mxu0 0
      %2868 = vmatpush2.bf16.xpose.msra.mxu0 0
      %2869 = vmatprep.subr.bf16.mxu0 0
      %2870 = vmatpush2.bf16.xpose.msra.mxu0 0
      %2871 = vmatprep.subr.bf16.mxu0 0
      %2872 = vmatpush2.bf16.xpose.msra.mxu0 0
      %2873 = vmatprep.subr.bf16.mxu0 0
      %2874 = vmatpush2.bf16.xpose.msra.mxu0 0
      %2875 = vmatprep.subr.bf16.mxu0 0
      %2876 = vmatpush2.bf16.xpose.msra.mxu0 0
      %2877 = vmatprep.mubr.bf16.mxu0 0
      %2878 = vmatmul.mubr.bf16.gmra.mxu0 %v2840
      %v2879 = vpop.f32.mrf.mxu0
      %v2880 = vadd.f32 0.0, %v2879
      %v2881 = vpop.f32.mrf.mxu0
      %v2882 = vpop.f32.mrf.mxu0
      %v2883 = vadd.f32 0.0, %v2882
      %v2884 = vpop.f32.mrf.mxu0
      %2885 = vdwg.mxu0
      %v2887 = vsel %vm1631, %v2394, 0
      %v2890 = vsel %vm1631, %v2410, 0
      %2892 = vmatprep.subr.bf16.mxu0 0
      %2893 = vmatpush1.bf16.xpose.msra.mxu0 0
      %2894 = vmatprep.subr.bf16.mxu0 0
      %2895 = vmatpush1.bf16.xpose.msra.mxu0 0
      %2896 = vmatprep.subr.bf16.mxu0 0
      %2897 = vmatpush1.bf16.xpose.msra.mxu0 0
      %2898 = vmatprep.subr.bf16.mxu0 0
      %2899 = vmatpush1.bf16.xpose.msra.mxu0 0
      %2900 = vmatprep.subr.bf16.mxu0 0
      %2901 = vmatpush1.bf16.xpose.msra.mxu0 0
      %2902 = vmatprep.subr.bf16.mxu0 0
      %2903 = vmatpush1.bf16.xpose.msra.mxu0 0
      %2904 = vmatprep.subr.bf16.mxu0 0
      %2905 = vmatpush1.bf16.xpose.msra.mxu0 0
      %2906 = vmatprep.subr.bf16.mxu0 0
      %2907 = vmatpush1.bf16.xpose.msra.mxu0 %v2890
      %2908 = vmatprep.subr.bf16.mxu0 0
      %2909 = vmatpush2.bf16.xpose.msra.mxu0 0
      %2910 = vmatprep.subr.bf16.mxu0 0
      %2911 = vmatpush2.bf16.xpose.msra.mxu0 0
      %2912 = vmatprep.subr.bf16.mxu0 0
      %2913 = vmatpush2.bf16.xpose.msra.mxu0 0
      %2914 = vmatprep.subr.bf16.mxu0 0
      %2915 = vmatpush2.bf16.xpose.msra.mxu0 0
      %2916 = vmatprep.subr.bf16.mxu0 0
      %2917 = vmatpush2.bf16.xpose.msra.mxu0 0
      %2918 = vmatprep.subr.bf16.mxu0 0
      %2919 = vmatpush2.bf16.xpose.msra.mxu0 0
      %2920 = vmatprep.subr.bf16.mxu0 0
      %2921 = vmatpush2.bf16.xpose.msra.mxu0 0
      %2922 = vmatprep.subr.bf16.mxu0 0
      %2923 = vmatpush2.bf16.xpose.msra.mxu0 0
      %2924 = vmatprep.mubr.bf16.mxu0 0
      %2925 = vmatmul.mubr.bf16.gmra.mxu0 %v2887
      %v2926 = vpop.f32.mrf.mxu0
      %v2927 = vadd.f32 0.0, %v2926
      %v2928 = vpop.f32.mrf.mxu0
      %v2929 = vpop.f32.mrf.mxu0
      %v2930 = vadd.f32 0.0, %v2929
      %v2931 = vpop.f32.mrf.mxu0
      %2932 = vdwg.mxu0
      %v2934 = vsel %vm1631, %v2395, 0
      %v2937 = vsel %vm1631, %v2411, 0
      %2939 = vmatprep.subr.bf16.mxu0 0
      %2940 = vmatpush1.bf16.xpose.msra.mxu0 0
      %2941 = vmatprep.subr.bf16.mxu0 0
      %2942 = vmatpush1.bf16.xpose.msra.mxu0 0
      %2943 = vmatprep.subr.bf16.mxu0 0
      %2944 = vmatpush1.bf16.xpose.msra.mxu0 0
      %2945 = vmatprep.subr.bf16.mxu0 0
      %2946 = vmatpush1.bf16.xpose.msra.mxu0 0
      %2947 = vmatprep.subr.bf16.mxu0 0
      %2948 = vmatpush1.bf16.xpose.msra.mxu0 0
      %2949 = vmatprep.subr.bf16.mxu0 0
      %2950 = vmatpush1.bf16.xpose.msra.mxu0 0
      %2951 = vmatprep.subr.bf16.mxu0 0
      %2952 = vmatpush1.bf16.xpose.msra.mxu0 0
      %2953 = vmatprep.subr.bf16.mxu0 0
      %2954 = vmatpush1.bf16.xpose.msra.mxu0 %v2937
      %2955 = vmatprep.subr.bf16.mxu0 0
      %2956 = vmatpush2.bf16.xpose.msra.mxu0 0
      %2957 = vmatprep.subr.bf16.mxu0 0
      %2958 = vmatpush2.bf16.xpose.msra.mxu0 0
      %2959 = vmatprep.subr.bf16.mxu0 0
      %2960 = vmatpush2.bf16.xpose.msra.mxu0 0
      %2961 = vmatprep.subr.bf16.mxu0 0
      %2962 = vmatpush2.bf16.xpose.msra.mxu0 0
      %2963 = vmatprep.subr.bf16.mxu0 0
      %2964 = vmatpush2.bf16.xpose.msra.mxu0 0
      %2965 = vmatprep.subr.bf16.mxu0 0
      %2966 = vmatpush2.bf16.xpose.msra.mxu0 0
      %2967 = vmatprep.subr.bf16.mxu0 0
      %2968 = vmatpush2.bf16.xpose.msra.mxu0 0
      %2969 = vmatprep.subr.bf16.mxu0 0
      %2970 = vmatpush2.bf16.xpose.msra.mxu0 0
      %2971 = vmatprep.mubr.bf16.mxu0 0
      %2972 = vmatmul.mubr.bf16.gmra.mxu0 %v2934
      %v2973 = vpop.f32.mrf.mxu0
      %v2974 = vadd.f32 0.0, %v2973
      %v2975 = vpop.f32.mrf.mxu0
      %v2976 = vpop.f32.mrf.mxu0
      %v2977 = vadd.f32 0.0, %v2976
      %v2978 = vpop.f32.mrf.mxu0
      %2979 = vdwg.mxu0
      %v2981 = vsel %vm1631, %v2396, 0
      %v2984 = vsel %vm1631, %v2412, 0
      %2986 = vmatprep.subr.bf16.mxu0 0
      %2987 = vmatpush1.bf16.xpose.msra.mxu0 0
      %2988 = vmatprep.subr.bf16.mxu0 0
      %2989 = vmatpush1.bf16.xpose.msra.mxu0 0
      %2990 = vmatprep.subr.bf16.mxu0 0
      %2991 = vmatpush1.bf16.xpose.msra.mxu0 0
      %2992 = vmatprep.subr.bf16.mxu0 0
      %2993 = vmatpush1.bf16.xpose.msra.mxu0 0
      %2994 = vmatprep.subr.bf16.mxu0 0
      %2995 = vmatpush1.bf16.xpose.msra.mxu0 0
      %2996 = vmatprep.subr.bf16.mxu0 0
      %2997 = vmatpush1.bf16.xpose.msra.mxu0 0
      %2998 = vmatprep.subr.bf16.mxu0 0
      %2999 = vmatpush1.bf16.xpose.msra.mxu0 0
      %3000 = vmatprep.subr.bf16.mxu0 0
      %3001 = vmatpush1.bf16.xpose.msra.mxu0 %v2984
      %3002 = vmatprep.subr.bf16.mxu0 0
      %3003 = vmatpush2.bf16.xpose.msra.mxu0 0
      %3004 = vmatprep.subr.bf16.mxu0 0
      %3005 = vmatpush2.bf16.xpose.msra.mxu0 0
      %3006 = vmatprep.subr.bf16.mxu0 0
      %3007 = vmatpush2.bf16.xpose.msra.mxu0 0
      %3008 = vmatprep.subr.bf16.mxu0 0
      %3009 = vmatpush2.bf16.xpose.msra.mxu0 0
      %3010 = vmatprep.subr.bf16.mxu0 0
      %3011 = vmatpush2.bf16.xpose.msra.mxu0 0
      %3012 = vmatprep.subr.bf16.mxu0 0
      %3013 = vmatpush2.bf16.xpose.msra.mxu0 0
      %3014 = vmatprep.subr.bf16.mxu0 0
      %3015 = vmatpush2.bf16.xpose.msra.mxu0 0
      %3016 = vmatprep.subr.bf16.mxu0 0
      %3017 = vmatpush2.bf16.xpose.msra.mxu0 0
      %3018 = vmatprep.mubr.bf16.mxu0 0
      %3019 = vmatmul.mubr.bf16.gmra.mxu0 %v2981
      %v3020 = vpop.f32.mrf.mxu0
      %v3021 = vadd.f32 0.0, %v3020
      %v3022 = vpop.f32.mrf.mxu0
      %v3023 = vpop.f32.mrf.mxu0
      %v3024 = vadd.f32 0.0, %v3023
      %v3025 = vpop.f32.mrf.mxu0
      %3026 = vdwg.mxu0
      %v3028 = vsel %vm1631, %v2397, 0
      %v3031 = vsel %vm1631, %v2413, 0
      %3033 = vmatprep.subr.bf16.mxu0 0
      %3034 = vmatpush1.bf16.xpose.msra.mxu0 0
      %3035 = vmatprep.subr.bf16.mxu0 0
      %3036 = vmatpush1.bf16.xpose.msra.mxu0 0
      %3037 = vmatprep.subr.bf16.mxu0 0
      %3038 = vmatpush1.bf16.xpose.msra.mxu0 0
      %3039 = vmatprep.subr.bf16.mxu0 0
      %3040 = vmatpush1.bf16.xpose.msra.mxu0 0
      %3041 = vmatprep.subr.bf16.mxu0 0
      %3042 = vmatpush1.bf16.xpose.msra.mxu0 0
      %3043 = vmatprep.subr.bf16.mxu0 0
      %3044 = vmatpush1.bf16.xpose.msra.mxu0 0
      %3045 = vmatprep.subr.bf16.mxu0 0
      %3046 = vmatpush1.bf16.xpose.msra.mxu0 0
      %3047 = vmatprep.subr.bf16.mxu0 0
      %3048 = vmatpush1.bf16.xpose.msra.mxu0 %v3031
      %3049 = vmatprep.subr.bf16.mxu0 0
      %3050 = vmatpush2.bf16.xpose.msra.mxu0 0
      %3051 = vmatprep.subr.bf16.mxu0 0
      %3052 = vmatpush2.bf16.xpose.msra.mxu0 0
      %3053 = vmatprep.subr.bf16.mxu0 0
      %3054 = vmatpush2.bf16.xpose.msra.mxu0 0
      %3055 = vmatprep.subr.bf16.mxu0 0
      %3056 = vmatpush2.bf16.xpose.msra.mxu0 0
      %3057 = vmatprep.subr.bf16.mxu0 0
      %3058 = vmatpush2.bf16.xpose.msra.mxu0 0
      %3059 = vmatprep.subr.bf16.mxu0 0
      %3060 = vmatpush2.bf16.xpose.msra.mxu0 0
      %3061 = vmatprep.subr.bf16.mxu0 0
      %3062 = vmatpush2.bf16.xpose.msra.mxu0 0
      %3063 = vmatprep.subr.bf16.mxu0 0
      %3064 = vmatpush2.bf16.xpose.msra.mxu0 0
      %3065 = vmatprep.mubr.bf16.mxu0 0
      %3066 = vmatmul.mubr.bf16.gmra.mxu0 %v3028
      %v3067 = vpop.f32.mrf.mxu0
      %v3068 = vadd.f32 0.0, %v3067
      %v3069 = vpop.f32.mrf.mxu0
      %v3070 = vpop.f32.mrf.mxu0
      %v3071 = vadd.f32 0.0, %v3070
      %v3072 = vpop.f32.mrf.mxu0
      %3073 = vdwg.mxu0
      %v3075 = vsel %vm1631, %v2398, 0
      %v3078 = vsel %vm1631, %v2414, 0
      %3080 = vmatprep.subr.bf16.mxu0 0
      %3081 = vmatpush1.bf16.xpose.msra.mxu0 0
      %3082 = vmatprep.subr.bf16.mxu0 0
      %3083 = vmatpush1.bf16.xpose.msra.mxu0 0
      %3084 = vmatprep.subr.bf16.mxu0 0
      %3085 = vmatpush1.bf16.xpose.msra.mxu0 0
      %3086 = vmatprep.subr.bf16.mxu0 0
      %3087 = vmatpush1.bf16.xpose.msra.mxu0 0
      %3088 = vmatprep.subr.bf16.mxu0 0
      %3089 = vmatpush1.bf16.xpose.msra.mxu0 0
      %3090 = vmatprep.subr.bf16.mxu0 0
      %3091 = vmatpush1.bf16.xpose.msra.mxu0 0
      %3092 = vmatprep.subr.bf16.mxu0 0
      %3093 = vmatpush1.bf16.xpose.msra.mxu0 0
      %3094 = vmatprep.subr.bf16.mxu0 0
      %3095 = vmatpush1.bf16.xpose.msra.mxu0 %v3078
      %3096 = vmatprep.subr.bf16.mxu0 0
      %3097 = vmatpush2.bf16.xpose.msra.mxu0 0
      %3098 = vmatprep.subr.bf16.mxu0 0
      %3099 = vmatpush2.bf16.xpose.msra.mxu0 0
      %3100 = vmatprep.subr.bf16.mxu0 0
      %3101 = vmatpush2.bf16.xpose.msra.mxu0 0
      %3102 = vmatprep.subr.bf16.mxu0 0
      %3103 = vmatpush2.bf16.xpose.msra.mxu0 0
      %3104 = vmatprep.subr.bf16.mxu0 0
      %3105 = vmatpush2.bf16.xpose.msra.mxu0 0
      %3106 = vmatprep.subr.bf16.mxu0 0
      %3107 = vmatpush2.bf16.xpose.msra.mxu0 0
      %3108 = vmatprep.subr.bf16.mxu0 0
      %3109 = vmatpush2.bf16.xpose.msra.mxu0 0
      %3110 = vmatprep.subr.bf16.mxu0 0
      %3111 = vmatpush2.bf16.xpose.msra.mxu0 0
      %3112 = vmatprep.mubr.bf16.mxu0 0
      %3113 = vmatmul.mubr.bf16.gmra.mxu0 %v3075
      %v3114 = vpop.f32.mrf.mxu0
      %v3115 = vadd.f32 0.0, %v3114
      %v3116 = vpop.f32.mrf.mxu0
      %v3117 = vpop.f32.mrf.mxu0
      %v3118 = vadd.f32 0.0, %v3117
      %v3119 = vpop.f32.mrf.mxu0
      %3120 = vdwg.mxu0
      %v3122 = vsel %vm1631, %v2399, 0
      %v3125 = vsel %vm1631, %v2415, 0
      %3127 = vmatprep.subr.bf16.mxu0 0
      %3128 = vmatpush1.bf16.xpose.msra.mxu0 0
      %3129 = vmatprep.subr.bf16.mxu0 0
      %3130 = vmatpush1.bf16.xpose.msra.mxu0 0
      %3131 = vmatprep.subr.bf16.mxu0 0
      %3132 = vmatpush1.bf16.xpose.msra.mxu0 0
      %3133 = vmatprep.subr.bf16.mxu0 0
      %3134 = vmatpush1.bf16.xpose.msra.mxu0 0
      %3135 = vmatprep.subr.bf16.mxu0 0
      %3136 = vmatpush1.bf16.xpose.msra.mxu0 0
      %3137 = vmatprep.subr.bf16.mxu0 0
      %3138 = vmatpush1.bf16.xpose.msra.mxu0 0
      %3139 = vmatprep.subr.bf16.mxu0 0
      %3140 = vmatpush1.bf16.xpose.msra.mxu0 0
      %3141 = vmatprep.subr.bf16.mxu0 0
      %3142 = vmatpush1.bf16.xpose.msra.mxu0 %v3125
      %3143 = vmatprep.subr.bf16.mxu0 0
      %3144 = vmatpush2.bf16.xpose.msra.mxu0 0
      %3145 = vmatprep.subr.bf16.mxu0 0
      %3146 = vmatpush2.bf16.xpose.msra.mxu0 0
      %3147 = vmatprep.subr.bf16.mxu0 0
      %3148 = vmatpush2.bf16.xpose.msra.mxu0 0
      %3149 = vmatprep.subr.bf16.mxu0 0
      %3150 = vmatpush2.bf16.xpose.msra.mxu0 0
      %3151 = vmatprep.subr.bf16.mxu0 0
      %3152 = vmatpush2.bf16.xpose.msra.mxu0 0
      %3153 = vmatprep.subr.bf16.mxu0 0
      %3154 = vmatpush2.bf16.xpose.msra.mxu0 0
      %3155 = vmatprep.subr.bf16.mxu0 0
      %3156 = vmatpush2.bf16.xpose.msra.mxu0 0
      %3157 = vmatprep.subr.bf16.mxu0 0
      %3158 = vmatpush2.bf16.xpose.msra.mxu0 0
      %3159 = vmatprep.mubr.bf16.mxu0 0
      %3160 = vmatmul.mubr.bf16.gmra.mxu0 %v3122
      %v3161 = vpop.f32.mrf.mxu0
      %v3162 = vadd.f32 0.0, %v3161
      %v3163 = vpop.f32.mrf.mxu0
      %v3164 = vpop.f32.mrf.mxu0
      %v3165 = vadd.f32 0.0, %v3164
      %v3166 = vpop.f32.mrf.mxu0
      %3167 = vdwg.mxu0
      %v3168 = vlaneseq
      %v3169 = vshrl.u32 %v3168, 7
      %v3170 = vadd.s32 %v3169, 8
      %v3171 = vlaneseq
      %v3172 = vand.u32 %v3171, 127
      %vm3173 = vcmp.eq.s32.totalorder %v3169, %v3172
      %vm3174 = vcmp.eq.s32.totalorder %v3170, %v3172
      %v3175 = vsel %vm3173, 1, 0
      %v3176 = vsel %vm3174, 1, 0
      %vm3177 = vcmp.eq.s32.totalorder %v3175, 1
      %vm3178 = vcmp.eq.s32.totalorder %v3176, 1
      %v3179 = vsel %vm3177, -inf, %v2457
      %v3180 = vsel %vm3178, -inf, %v2460
      %v3181 = vsel %vm3177, -inf, %v2504
      %v3182 = vsel %vm3178, -inf, %v2507
      %v3183 = vsel %vm3177, -inf, %v2551
      %v3184 = vsel %vm3178, -inf, %v2554
      %v3185 = vsel %vm3177, -inf, %v2598
      %v3186 = vsel %vm3178, -inf, %v2601
      %v3187 = vsel %vm3177, -inf, %v2645
      %v3188 = vsel %vm3178, -inf, %v2648
      %v3189 = vsel %vm3177, -inf, %v2692
      %v3190 = vsel %vm3178, -inf, %v2695
      %v3191 = vsel %vm3177, -inf, %v2739
      %v3192 = vsel %vm3178, -inf, %v2742
      %v3193 = vsel %vm3177, -inf, %v2786
      %v3194 = vsel %vm3178, -inf, %v2789
      %v3195 = vsel %vm3177, -inf, %v2833
      %v3196 = vsel %vm3178, -inf, %v2836
      %v3197 = vsel %vm3177, -inf, %v2880
      %v3198 = vsel %vm3178, -inf, %v2883
      %v3199 = vsel %vm3177, -inf, %v2927
      %v3200 = vsel %vm3178, -inf, %v2930
      %v3201 = vsel %vm3177, -inf, %v2974
      %v3202 = vsel %vm3178, -inf, %v2977
      %v3203 = vsel %vm3177, -inf, %v3021
      %v3204 = vsel %vm3178, -inf, %v3024
      %v3205 = vsel %vm3177, -inf, %v3068
      %v3206 = vsel %vm3178, -inf, %v3071
      %v3207 = vsel %vm3177, -inf, %v3115
      %v3208 = vsel %vm3178, -inf, %v3118
      %v3209 = vsel %vm3177, -inf, %v3162
      %v3210 = vsel %vm3178, -inf, %v3165
      %v3211 = vsel %vm506, %v1673, -inf
      %3212 = vmax.xlane.f32.xlu0 %v3211
      %v3213 = vpop.xlane.xlu0 %3212
      %v3214 = vsel %vm506, %v1676, -inf
      %3215 = vmax.xlane.f32.xlu0 %v3214
      %v3216 = vpop.xlane.xlu0 %3215
      %v3217 = vsel %vm506, %v1720, -inf
      %3218 = vmax.xlane.f32.xlu0 %v3217
      %v3219 = vpop.xlane.xlu0 %3218
      %v3220 = vsel %vm506, %v1723, -inf
      %3221 = vmax.xlane.f32.xlu0 %v3220
      %v3222 = vpop.xlane.xlu0 %3221
      %v3223 = vsel %vm506, %v1767, -inf
      %3224 = vmax.xlane.f32.xlu0 %v3223
      %v3225 = vpop.xlane.xlu0 %3224
      %v3226 = vsel %vm506, %v1770, -inf
      %3227 = vmax.xlane.f32.xlu0 %v3226
      %v3228 = vpop.xlane.xlu0 %3227
      %v3229 = vsel %vm506, %v1814, -inf
      %3230 = vmax.xlane.f32.xlu0 %v3229
      %v3231 = vpop.xlane.xlu0 %3230
      %v3232 = vsel %vm506, %v1817, -inf
      %3233 = vmax.xlane.f32.xlu0 %v3232
      %v3234 = vpop.xlane.xlu0 %3233
      %v3235 = vsel %vm506, %v1861, -inf
      %3236 = vmax.xlane.f32.xlu0 %v3235
      %v3237 = vpop.xlane.xlu0 %3236
      %v3238 = vsel %vm506, %v1864, -inf
      %3239 = vmax.xlane.f32.xlu0 %v3238
      %v3240 = vpop.xlane.xlu0 %3239
      %v3241 = vsel %vm506, %v1908, -inf
      %3242 = vmax.xlane.f32.xlu0 %v3241
      %v3243 = vpop.xlane.xlu0 %3242
      %v3244 = vsel %vm506, %v1911, -inf
      %3245 = vmax.xlane.f32.xlu0 %v3244
      %v3246 = vpop.xlane.xlu0 %3245
      %v3247 = vsel %vm506, %v1955, -inf
      %3248 = vmax.xlane.f32.xlu0 %v3247
      %v3249 = vpop.xlane.xlu0 %3248
      %v3250 = vsel %vm506, %v1958, -inf
      %3251 = vmax.xlane.f32.xlu0 %v3250
      %v3252 = vpop.xlane.xlu0 %3251
      %v3253 = vsel %vm506, %v2002, -inf
      %3254 = vmax.xlane.f32.xlu0 %v3253
      %v3255 = vpop.xlane.xlu0 %3254
      %v3256 = vsel %vm506, %v2005, -inf
      %3257 = vmax.xlane.f32.xlu0 %v3256
      %v3258 = vpop.xlane.xlu0 %3257
      %v3259 = vsel %vm506, %v2049, -inf
      %3260 = vmax.xlane.f32.xlu0 %v3259
      %v3261 = vpop.xlane.xlu0 %3260
      %v3262 = vsel %vm506, %v2052, -inf
      %3263 = vmax.xlane.f32.xlu0 %v3262
      %v3264 = vpop.xlane.xlu0 %3263
      %v3265 = vsel %vm506, %v2096, -inf
      %3266 = vmax.xlane.f32.xlu0 %v3265
      %v3267 = vpop.xlane.xlu0 %3266
      %v3268 = vsel %vm506, %v2099, -inf
      %3269 = vmax.xlane.f32.xlu0 %v3268
      %v3270 = vpop.xlane.xlu0 %3269
      %v3271 = vsel %vm506, %v2143, -inf
      %3272 = vmax.xlane.f32.xlu0 %v3271
      %v3273 = vpop.xlane.xlu0 %3272
      %v3274 = vsel %vm506, %v2146, -inf
      %3275 = vmax.xlane.f32.xlu0 %v3274
      %v3276 = vpop.xlane.xlu0 %3275
      %v3277 = vsel %vm506, %v2190, -inf
      %3278 = vmax.xlane.f32.xlu0 %v3277
      %v3279 = vpop.xlane.xlu0 %3278
      %v3280 = vsel %vm506, %v2193, -inf
      %3281 = vmax.xlane.f32.xlu0 %v3280
      %v3282 = vpop.xlane.xlu0 %3281
      %v3283 = vsel %vm506, %v2237, -inf
      %3284 = vmax.xlane.f32.xlu0 %v3283
      %v3285 = vpop.xlane.xlu0 %3284
      %v3286 = vsel %vm506, %v2240, -inf
      %3287 = vmax.xlane.f32.xlu0 %v3286
      %v3288 = vpop.xlane.xlu0 %3287
      %v3289 = vsel %vm506, %v2284, -inf
      %3290 = vmax.xlane.f32.xlu0 %v3289
      %v3291 = vpop.xlane.xlu0 %3290
      %v3292 = vsel %vm506, %v2287, -inf
      %3293 = vmax.xlane.f32.xlu0 %v3292
      %v3294 = vpop.xlane.xlu0 %3293
      %v3295 = vsel %vm506, %v2331, -inf
      %3296 = vmax.xlane.f32.xlu0 %v3295
      %v3297 = vpop.xlane.xlu0 %3296
      %v3298 = vsel %vm506, %v2334, -inf
      %3299 = vmax.xlane.f32.xlu0 %v3298
      %v3300 = vpop.xlane.xlu0 %3299
      %v3301 = vsel %vm506, %v2378, -inf
      %3302 = vmax.xlane.f32.xlu0 %v3301
      %v3303 = vpop.xlane.xlu0 %3302
      %v3304 = vsel %vm506, %v2381, -inf
      %3305 = vmax.xlane.f32.xlu0 %v3304
      %v3306 = vpop.xlane.xlu0 %3305
      %v3307 = vsel %vm506, %v3179, -inf
      %3308 = vmax.xlane.f32.xlu0 %v3307
      %v3309 = vpop.xlane.xlu0 %3308
      %v3310 = vsel %vm506, %v3180, -inf
      %3311 = vmax.xlane.f32.xlu0 %v3310
      %v3312 = vpop.xlane.xlu0 %3311
      %v3313 = vsel %vm506, %v3181, -inf
      %3314 = vmax.xlane.f32.xlu0 %v3313
      %v3315 = vpop.xlane.xlu0 %3314
      %v3316 = vsel %vm506, %v3182, -inf
      %3317 = vmax.xlane.f32.xlu0 %v3316
      %v3318 = vpop.xlane.xlu0 %3317
      %v3319 = vsel %vm506, %v3183, -inf
      %3320 = vmax.xlane.f32.xlu0 %v3319
      %v3321 = vpop.xlane.xlu0 %3320
      %v3322 = vsel %vm506, %v3184, -inf
      %3323 = vmax.xlane.f32.xlu0 %v3322
      %v3324 = vpop.xlane.xlu0 %3323
      %v3325 = vsel %vm506, %v3185, -inf
      %3326 = vmax.xlane.f32.xlu0 %v3325
      %v3327 = vpop.xlane.xlu0 %3326
      %v3328 = vsel %vm506, %v3186, -inf
      %3329 = vmax.xlane.f32.xlu0 %v3328
      %v3330 = vpop.xlane.xlu0 %3329
      %v3331 = vsel %vm506, %v3187, -inf
      %3332 = vmax.xlane.f32.xlu0 %v3331
      %v3333 = vpop.xlane.xlu0 %3332
      %v3334 = vsel %vm506, %v3188, -inf
      %3335 = vmax.xlane.f32.xlu0 %v3334
      %v3336 = vpop.xlane.xlu0 %3335
      %v3337 = vsel %vm506, %v3189, -inf
      %3338 = vmax.xlane.f32.xlu0 %v3337
      %v3339 = vpop.xlane.xlu0 %3338
      %v3340 = vsel %vm506, %v3190, -inf
      %3341 = vmax.xlane.f32.xlu0 %v3340
      %v3342 = vpop.xlane.xlu0 %3341
      %v3343 = vsel %vm506, %v3191, -inf
      %3344 = vmax.xlane.f32.xlu0 %v3343
      %v3345 = vpop.xlane.xlu0 %3344
      %v3346 = vsel %vm506, %v3192, -inf
      %3347 = vmax.xlane.f32.xlu0 %v3346
      %v3348 = vpop.xlane.xlu0 %3347
      %v3349 = vsel %vm506, %v3193, -inf
      %3350 = vmax.xlane.f32.xlu0 %v3349
      %v3351 = vpop.xlane.xlu0 %3350
      %v3352 = vsel %vm506, %v3194, -inf
      %3353 = vmax.xlane.f32.xlu0 %v3352
      %v3354 = vpop.xlane.xlu0 %3353
      %v3355 = vsel %vm506, %v3195, -inf
      %3356 = vmax.xlane.f32.xlu0 %v3355
      %v3357 = vpop.xlane.xlu0 %3356
      %v3358 = vsel %vm506, %v3196, -inf
      %3359 = vmax.xlane.f32.xlu0 %v3358
      %v3360 = vpop.xlane.xlu0 %3359
      %v3361 = vsel %vm506, %v3197, -inf
      %3362 = vmax.xlane.f32.xlu0 %v3361
      %v3363 = vpop.xlane.xlu0 %3362
      %v3364 = vsel %vm506, %v3198, -inf
      %3365 = vmax.xlane.f32.xlu0 %v3364
      %v3366 = vpop.xlane.xlu0 %3365
      %v3367 = vsel %vm506, %v3199, -inf
      %3368 = vmax.xlane.f32.xlu0 %v3367
      %v3369 = vpop.xlane.xlu0 %3368
      %v3370 = vsel %vm506, %v3200, -inf
      %3371 = vmax.xlane.f32.xlu0 %v3370
      %v3372 = vpop.xlane.xlu0 %3371
      %v3373 = vsel %vm506, %v3201, -inf
      %3374 = vmax.xlane.f32.xlu0 %v3373
      %v3375 = vpop.xlane.xlu0 %3374
      %v3376 = vsel %vm506, %v3202, -inf
      %3377 = vmax.xlane.f32.xlu0 %v3376
      %v3378 = vpop.xlane.xlu0 %3377
      %v3379 = vsel %vm506, %v3203, -inf
      %3380 = vmax.xlane.f32.xlu0 %v3379
      %v3381 = vpop.xlane.xlu0 %3380
      %v3382 = vsel %vm506, %v3204, -inf
      %3383 = vmax.xlane.f32.xlu0 %v3382
      %v3384 = vpop.xlane.xlu0 %3383
      %v3385 = vsel %vm506, %v3205, -inf
      %3386 = vmax.xlane.f32.xlu0 %v3385
      %v3387 = vpop.xlane.xlu0 %3386
      %v3388 = vsel %vm506, %v3206, -inf
      %3389 = vmax.xlane.f32.xlu0 %v3388
      %v3390 = vpop.xlane.xlu0 %3389
      %v3391 = vsel %vm506, %v3207, -inf
      %3392 = vmax.xlane.f32.xlu0 %v3391
      %v3393 = vpop.xlane.xlu0 %3392
      %v3394 = vsel %vm506, %v3208, -inf
      %3395 = vmax.xlane.f32.xlu0 %v3394
      %v3396 = vpop.xlane.xlu0 %3395
      %v3397 = vsel %vm506, %v3209, -inf
      %3398 = vmax.xlane.f32.xlu0 %v3397
      %v3399 = vpop.xlane.xlu0 %3398
      %v3400 = vsel %vm506, %v3210, -inf
      %3401 = vmax.xlane.f32.xlu0 %v3400
      %v3402 = vpop.xlane.xlu0 %3401
      %v3435 = vlaneseq
      %v3436 = vshrl.u32 %v3435, 7
      %v3437 = vsub.s32 %v3172, %v3436
      %v3438 = vrot.slane %v3309, %v3437
      %v3439 = vadd.s32 %v3172, 4294967288
      %v3440 = vlaneseq
      %v3441 = vshrl.u32 %v3440, 7
      %v3442 = vsub.s32 %v3439, %v3441
      %v3443 = vrot.slane %v3312, %v3442
      %vm3444 = vcmask 130112
      %v3445 = vsel %vm3444, %v3443, %v3438
      %v3446 = vlaneseq
      %v3447 = vshrl.u32 %v3446, 7
      %v3448 = vsub.s32 %v3172, %v3447
      %v3449 = vrot.slane %v3315, %v3448
      %v3450 = vlaneseq
      %v3451 = vshrl.u32 %v3450, 7
      %v3452 = vsub.s32 %v3439, %v3451
      %v3453 = vrot.slane %v3318, %v3452
      %v3454 = vsel %vm3444, %v3453, %v3449
      %v3455 = vlaneseq
      %v3456 = vshrl.u32 %v3455, 7
      %v3457 = vsub.s32 %v3172, %v3456
      %v3458 = vrot.slane %v3321, %v3457
      %v3459 = vlaneseq
      %v3460 = vshrl.u32 %v3459, 7
      %v3461 = vsub.s32 %v3439, %v3460
      %v3462 = vrot.slane %v3324, %v3461
      %v3463 = vsel %vm3444, %v3462, %v3458
      %v3464 = vlaneseq
      %v3465 = vshrl.u32 %v3464, 7
      %v3466 = vsub.s32 %v3172, %v3465
      %v3467 = vrot.slane %v3327, %v3466
      %v3468 = vlaneseq
      %v3469 = vshrl.u32 %v3468, 7
      %v3470 = vsub.s32 %v3439, %v3469
      %v3471 = vrot.slane %v3330, %v3470
      %v3472 = vsel %vm3444, %v3471, %v3467
      %v3473 = vlaneseq
      %v3474 = vshrl.u32 %v3473, 7
      %v3475 = vsub.s32 %v3172, %v3474
      %v3476 = vrot.slane %v3333, %v3475
      %v3477 = vlaneseq
      %v3478 = vshrl.u32 %v3477, 7
      %v3479 = vsub.s32 %v3439, %v3478
      %v3480 = vrot.slane %v3336, %v3479
      %v3481 = vsel %vm3444, %v3480, %v3476
      %v3482 = vlaneseq
      %v3483 = vshrl.u32 %v3482, 7
      %v3484 = vsub.s32 %v3172, %v3483
      %v3485 = vrot.slane %v3339, %v3484
      %v3486 = vlaneseq
      %v3487 = vshrl.u32 %v3486, 7
      %v3488 = vsub.s32 %v3439, %v3487
      %v3489 = vrot.slane %v3342, %v3488
      %v3490 = vsel %vm3444, %v3489, %v3485
      %v3491 = vlaneseq
      %v3492 = vshrl.u32 %v3491, 7
      %v3493 = vsub.s32 %v3172, %v3492
      %v3494 = vrot.slane %v3345, %v3493
      %v3495 = vlaneseq
      %v3496 = vshrl.u32 %v3495, 7
      %v3497 = vsub.s32 %v3439, %v3496
      %v3498 = vrot.slane %v3348, %v3497
      %v3499 = vsel %vm3444, %v3498, %v3494
      %v3500 = vlaneseq
      %v3501 = vshrl.u32 %v3500, 7
      %v3502 = vsub.s32 %v3172, %v3501
      %v3503 = vrot.slane %v3351, %v3502
      %v3504 = vlaneseq
      %v3505 = vshrl.u32 %v3504, 7
      %v3506 = vsub.s32 %v3439, %v3505
      %v3507 = vrot.slane %v3354, %v3506
      %v3508 = vsel %vm3444, %v3507, %v3503
      %v3509 = vlaneseq
      %v3510 = vshrl.u32 %v3509, 7
      %v3511 = vsub.s32 %v3172, %v3510
      %v3512 = vrot.slane %v3357, %v3511
      %v3513 = vlaneseq
      %v3514 = vshrl.u32 %v3513, 7
      %v3515 = vsub.s32 %v3439, %v3514
      %v3516 = vrot.slane %v3360, %v3515
      %v3517 = vsel %vm3444, %v3516, %v3512
      %v3518 = vlaneseq
      %v3519 = vshrl.u32 %v3518, 7
      %v3520 = vsub.s32 %v3172, %v3519
      %v3521 = vrot.slane %v3363, %v3520
      %v3522 = vlaneseq
      %v3523 = vshrl.u32 %v3522, 7
      %v3524 = vsub.s32 %v3439, %v3523
      %v3525 = vrot.slane %v3366, %v3524
      %v3526 = vsel %vm3444, %v3525, %v3521
      %v3527 = vlaneseq
      %v3528 = vshrl.u32 %v3527, 7
      %v3529 = vsub.s32 %v3172, %v3528
      %v3530 = vrot.slane %v3369, %v3529
      %v3531 = vlaneseq
      %v3532 = vshrl.u32 %v3531, 7
      %v3533 = vsub.s32 %v3439, %v3532
      %v3534 = vrot.slane %v3372, %v3533
      %v3535 = vsel %vm3444, %v3534, %v3530
      %v3536 = vlaneseq
      %v3537 = vshrl.u32 %v3536, 7
      %v3538 = vsub.s32 %v3172, %v3537
      %v3539 = vrot.slane %v3375, %v3538
      %v3540 = vlaneseq
      %v3541 = vshrl.u32 %v3540, 7
      %v3542 = vsub.s32 %v3439, %v3541
      %v3543 = vrot.slane %v3378, %v3542
      %v3544 = vsel %vm3444, %v3543, %v3539
      %v3545 = vlaneseq
      %v3546 = vshrl.u32 %v3545, 7
      %v3547 = vsub.s32 %v3172, %v3546
      %v3548 = vrot.slane %v3381, %v3547
      %v3549 = vlaneseq
      %v3550 = vshrl.u32 %v3549, 7
      %v3551 = vsub.s32 %v3439, %v3550
      %v3552 = vrot.slane %v3384, %v3551
      %v3553 = vsel %vm3444, %v3552, %v3548
      %v3554 = vlaneseq
      %v3555 = vshrl.u32 %v3554, 7
      %v3556 = vsub.s32 %v3172, %v3555
      %v3557 = vrot.slane %v3387, %v3556
      %v3558 = vlaneseq
      %v3559 = vshrl.u32 %v3558, 7
      %v3560 = vsub.s32 %v3439, %v3559
      %v3561 = vrot.slane %v3390, %v3560
      %v3562 = vsel %vm3444, %v3561, %v3557
      %v3563 = vlaneseq
      %v3564 = vshrl.u32 %v3563, 7
      %v3565 = vsub.s32 %v3172, %v3564
      %v3566 = vrot.slane %v3393, %v3565
      %v3567 = vlaneseq
      %v3568 = vshrl.u32 %v3567, 7
      %v3569 = vsub.s32 %v3439, %v3568
      %v3570 = vrot.slane %v3396, %v3569
      %v3571 = vsel %vm3444, %v3570, %v3566
      %v3572 = vlaneseq
      %v3573 = vshrl.u32 %v3572, 7
      %v3574 = vsub.s32 %v3172, %v3573
      %v3575 = vrot.slane %v3399, %v3574
      %v3576 = vlaneseq
      %v3577 = vshrl.u32 %v3576, 7
      %v3578 = vsub.s32 %v3439, %v3577
      %v3579 = vrot.slane %v3402, %v3578
      %v3580 = vsel %vm3444, %v3579, %v3575
      %vm3581 = vcmask 1041409
      %v3582 = vsel %vm3581, %v3454, %v3445
      %vm3583 = vcmask 1042434
      %v3584 = vsel %vm3583, %v3463, %v3582
      %vm3585 = vcmask 1043459
      %v3586 = vsel %vm3585, %v3472, %v3584
      %vm3587 = vcmask 1044484
      %v3588 = vsel %vm3587, %v3481, %v3586
      %vm3589 = vcmask 1045509
      %v3590 = vsel %vm3589, %v3490, %v3588
      %vm3591 = vcmask 1046534
      %v3592 = vsel %vm3591, %v3499, %v3590
      %vm3593 = vcmask 1047559
      %v3594 = vsel %vm3593, %v3508, %v3592
      %v3595 = vsel %vm3581, %v3526, %v3517
      %v3596 = vsel %vm3583, %v3535, %v3595
      %v3597 = vsel %vm3585, %v3544, %v3596
      %v3598 = vsel %vm3587, %v3553, %v3597
      %v3599 = vsel %vm3589, %v3562, %v3598
      %v3600 = vsel %vm3591, %v3571, %v3599
      %v3601 = vsel %vm3593, %v3580, %v3600
      %3604 = vxpose.xlu0.b32.start [1/16] %v3594, 128
      %3605 = vxpose.xlu0.b32.cont [2/16] %v3601, 128
      %3606 = vxpose.xlu0.b32.cont [3/16] 0.0, 128
      %3607 = vxpose.xlu0.b32.cont [4/16] 0.0, 128
      %3608 = vxpose.xlu0.b32.cont [5/16] 0.0, 128
      %3609 = vxpose.xlu0.b32.cont [6/16] 0.0, 128
      %3610 = vxpose.xlu0.b32.cont [7/16] 0.0, 128
      %3611 = vxpose.xlu0.b32.cont [8/16] 0.0, 128
      %3612 = vxpose.xlu0.b32.cont [9/16] 0.0, 128
      %3613 = vxpose.xlu0.b32.cont [10/16] 0.0, 128
      %3614 = vxpose.xlu0.b32.cont [11/16] 0.0, 128
      %3615 = vxpose.xlu0.b32.cont [12/16] 0.0, 128
      %3616 = vxpose.xlu0.b32.cont [13/16] 0.0, 128
      %3617 = vxpose.xlu0.b32.cont [14/16] 0.0, 128
      %3618 = vxpose.xlu0.b32.cont [15/16] 0.0, 128
      %3619 = vxpose.xlu0.b32.end [16/16] 0.0, 128
      %v3620 = vpop.trf.xlu0
      %v3621 = vpop.trf.xlu0
      %v3622 = vpop.trf.xlu0
      %v3623 = vpop.trf.xlu0
      %v3624 = vpop.trf.xlu0
      %v3625 = vpop.trf.xlu0
      %v3626 = vpop.trf.xlu0
      %v3627 = vpop.trf.xlu0
      %v3628 = vpop.trf.xlu0
      %v3629 = vpop.trf.xlu0
      %v3630 = vpop.trf.xlu0
      %v3631 = vpop.trf.xlu0
      %v3632 = vpop.trf.xlu0
      %v3633 = vpop.trf.xlu0
      %v3634 = vpop.trf.xlu0
      %v3635 = vpop.trf.xlu0
      %v3638 = vlaneseq
      %v3639 = vshrl.u32 %v3638, 7
      %v3640 = vsub.s32 0, %v3639
      %v3641 = vrot.slane %v3620, %v3640
      %3643 = vbcast.lane.b32.xlu0 %v3641, 256
      %v3644 = vpop.permute.xlu0 %3643
      %s3646 = sor.u32 256, 8
      %3647 = vbcast.lane.b32.xlu0 %v3641, %s3646
      %v3648 = vpop.permute.xlu0 %3647
      %v3649 = vlaneseq
      %v3650 = vshrl.u32 %v3649, 7
      %v3651 = vsub.s32 1, %v3650
      %v3652 = vrot.slane %v3620, %v3651
      %3654 = vbcast.lane.b32.xlu0 %v3652, 256
      %v3655 = vpop.permute.xlu0 %3654
      %s3657 = sor.u32 256, 8
      %3658 = vbcast.lane.b32.xlu0 %v3652, %s3657
      %v3659 = vpop.permute.xlu0 %3658
      %v3660 = vlaneseq
      %v3661 = vshrl.u32 %v3660, 7
      %v3662 = vsub.s32 2, %v3661
      %v3663 = vrot.slane %v3620, %v3662
      %3665 = vbcast.lane.b32.xlu0 %v3663, 256
      %v3666 = vpop.permute.xlu0 %3665
      %s3668 = sor.u32 256, 8
      %3669 = vbcast.lane.b32.xlu0 %v3663, %s3668
      %v3670 = vpop.permute.xlu0 %3669
      %v3671 = vlaneseq
      %v3672 = vshrl.u32 %v3671, 7
      %v3673 = vsub.s32 3, %v3672
      %v3674 = vrot.slane %v3620, %v3673
      %3676 = vbcast.lane.b32.xlu0 %v3674, 256
      %v3677 = vpop.permute.xlu0 %3676
      %s3679 = sor.u32 256, 8
      %3680 = vbcast.lane.b32.xlu0 %v3674, %s3679
      %v3681 = vpop.permute.xlu0 %3680
      %v3682 = vlaneseq
      %v3683 = vshrl.u32 %v3682, 7
      %v3684 = vsub.s32 4, %v3683
      %v3685 = vrot.slane %v3620, %v3684
      %3687 = vbcast.lane.b32.xlu0 %v3685, 256
      %v3688 = vpop.permute.xlu0 %3687
      %s3690 = sor.u32 256, 8
      %3691 = vbcast.lane.b32.xlu0 %v3685, %s3690
      %v3692 = vpop.permute.xlu0 %3691
      %v3693 = vlaneseq
      %v3694 = vshrl.u32 %v3693, 7
      %v3695 = vsub.s32 5, %v3694
      %v3696 = vrot.slane %v3620, %v3695
      %3698 = vbcast.lane.b32.xlu0 %v3696, 256
      %v3699 = vpop.permute.xlu0 %3698
      %s3701 = sor.u32 256, 8
      %3702 = vbcast.lane.b32.xlu0 %v3696, %s3701
      %v3703 = vpop.permute.xlu0 %3702
      %v3704 = vlaneseq
      %v3705 = vshrl.u32 %v3704, 7
      %v3706 = vsub.s32 6, %v3705
      %v3707 = vrot.slane %v3620, %v3706
      %3709 = vbcast.lane.b32.xlu0 %v3707, 256
      %v3710 = vpop.permute.xlu0 %3709
      %s3712 = sor.u32 256, 8
      %3713 = vbcast.lane.b32.xlu0 %v3707, %s3712
      %v3714 = vpop.permute.xlu0 %3713
      %v3715 = vlaneseq
      %v3716 = vshrl.u32 %v3715, 7
      %v3717 = vsub.s32 7, %v3716
      %v3718 = vrot.slane %v3620, %v3717
      %3720 = vbcast.lane.b32.xlu0 %v3718, 256
      %v3721 = vpop.permute.xlu0 %3720
      %s3723 = sor.u32 256, 8
      %3724 = vbcast.lane.b32.xlu0 %v3718, %s3723
      %v3725 = vpop.permute.xlu0 %3724
      %v3726 = vlaneseq
      %v3727 = vshrl.u32 %v3726, 7
      %v3728 = vsub.s32 0, %v3727
      %v3729 = vrot.slane %v3621, %v3728
      %3731 = vbcast.lane.b32.xlu0 %v3729, 256
      %v3732 = vpop.permute.xlu0 %3731
      %s3734 = sor.u32 256, 8
      %3735 = vbcast.lane.b32.xlu0 %v3729, %s3734
      %v3736 = vpop.permute.xlu0 %3735
      %v3737 = vlaneseq
      %v3738 = vshrl.u32 %v3737, 7
      %v3739 = vsub.s32 1, %v3738
      %v3740 = vrot.slane %v3621, %v3739
      %3742 = vbcast.lane.b32.xlu0 %v3740, 256
      %v3743 = vpop.permute.xlu0 %3742
      %s3745 = sor.u32 256, 8
      %3746 = vbcast.lane.b32.xlu0 %v3740, %s3745
      %v3747 = vpop.permute.xlu0 %3746
      %v3748 = vlaneseq
      %v3749 = vshrl.u32 %v3748, 7
      %v3750 = vsub.s32 2, %v3749
      %v3751 = vrot.slane %v3621, %v3750
      %3753 = vbcast.lane.b32.xlu0 %v3751, 256
      %v3754 = vpop.permute.xlu0 %3753
      %s3756 = sor.u32 256, 8
      %3757 = vbcast.lane.b32.xlu0 %v3751, %s3756
      %v3758 = vpop.permute.xlu0 %3757
      %v3759 = vlaneseq
      %v3760 = vshrl.u32 %v3759, 7
      %v3761 = vsub.s32 3, %v3760
      %v3762 = vrot.slane %v3621, %v3761
      %3764 = vbcast.lane.b32.xlu0 %v3762, 256
      %v3765 = vpop.permute.xlu0 %3764
      %s3767 = sor.u32 256, 8
      %3768 = vbcast.lane.b32.xlu0 %v3762, %s3767
      %v3769 = vpop.permute.xlu0 %3768
      %v3770 = vlaneseq
      %v3771 = vshrl.u32 %v3770, 7
      %v3772 = vsub.s32 4, %v3771
      %v3773 = vrot.slane %v3621, %v3772
      %3775 = vbcast.lane.b32.xlu0 %v3773, 256
      %v3776 = vpop.permute.xlu0 %3775
      %s3778 = sor.u32 256, 8
      %3779 = vbcast.lane.b32.xlu0 %v3773, %s3778
      %v3780 = vpop.permute.xlu0 %3779
      %v3781 = vlaneseq
      %v3782 = vshrl.u32 %v3781, 7
      %v3783 = vsub.s32 5, %v3782
      %v3784 = vrot.slane %v3621, %v3783
      %3786 = vbcast.lane.b32.xlu0 %v3784, 256
      %v3787 = vpop.permute.xlu0 %3786
      %s3789 = sor.u32 256, 8
      %3790 = vbcast.lane.b32.xlu0 %v3784, %s3789
      %v3791 = vpop.permute.xlu0 %3790
      %v3792 = vlaneseq
      %v3793 = vshrl.u32 %v3792, 7
      %v3794 = vsub.s32 6, %v3793
      %v3795 = vrot.slane %v3621, %v3794
      %3797 = vbcast.lane.b32.xlu0 %v3795, 256
      %v3798 = vpop.permute.xlu0 %3797
      %s3800 = sor.u32 256, 8
      %3801 = vbcast.lane.b32.xlu0 %v3795, %s3800
      %v3802 = vpop.permute.xlu0 %3801
      %v3803 = vlaneseq
      %v3804 = vshrl.u32 %v3803, 7
      %v3805 = vsub.s32 7, %v3804
      %v3806 = vrot.slane %v3621, %v3805
      %3808 = vbcast.lane.b32.xlu0 %v3806, 256
      %v3809 = vpop.permute.xlu0 %3808
      %s3811 = sor.u32 256, 8
      %3812 = vbcast.lane.b32.xlu0 %v3806, %s3811
      %v3813 = vpop.permute.xlu0 %3812
      %v3846 = vmax.f32 %v3213, %v3644
      %v3847 = vmax.f32 %v3216, %v3648
      %v3848 = vmax.f32 %v3219, %v3655
      %v3849 = vmax.f32 %v3222, %v3659
      %v3850 = vmax.f32 %v3225, %v3666
      %v3851 = vmax.f32 %v3228, %v3670
      %v3852 = vmax.f32 %v3231, %v3677
      %v3853 = vmax.f32 %v3234, %v3681
      %v3854 = vmax.f32 %v3237, %v3688
      %v3855 = vmax.f32 %v3240, %v3692
      %v3856 = vmax.f32 %v3243, %v3699
      %v3857 = vmax.f32 %v3246, %v3703
      %v3858 = vmax.f32 %v3249, %v3710
      %v3859 = vmax.f32 %v3252, %v3714
      %v3860 = vmax.f32 %v3255, %v3721
      %v3861 = vmax.f32 %v3258, %v3725
      %v3862 = vmax.f32 %v3261, %v3732
      %v3863 = vmax.f32 %v3264, %v3736
      %v3864 = vmax.f32 %v3267, %v3743
      %v3865 = vmax.f32 %v3270, %v3747
      %v3866 = vmax.f32 %v3273, %v3754
      %v3867 = vmax.f32 %v3276, %v3758
      %v3868 = vmax.f32 %v3279, %v3765
      %v3869 = vmax.f32 %v3282, %v3769
      %v3870 = vmax.f32 %v3285, %v3776
      %v3871 = vmax.f32 %v3288, %v3780
      %v3872 = vmax.f32 %v3291, %v3787
      %v3873 = vmax.f32 %v3294, %v3791
      %v3874 = vmax.f32 %v3297, %v3798
      %v3875 = vmax.f32 %v3300, %v3802
      %v3876 = vmax.f32 %v3303, %v3809
      %v3877 = vmax.f32 %v3306, %v3813
      %3879 = vset.pattern.permute.xlu0 0
      %3880 = vperm.xlu0 %3879, %v3846
      %v3881 = vpop.permute.xlu0 %3880
      %3884 = vset.pattern.permute.xlu0 0
      %3885 = vperm.xlu0 %3884, %v3847
      %v3886 = vpop.permute.xlu0 %3885
      %3889 = vset.pattern.permute.xlu0 0
      %3890 = vperm.xlu0 %3889, %v3848
      %v3891 = vpop.permute.xlu0 %3890
      %3894 = vset.pattern.permute.xlu0 0
      %3895 = vperm.xlu0 %3894, %v3849
      %v3896 = vpop.permute.xlu0 %3895
      %3899 = vset.pattern.permute.xlu0 0
      %3900 = vperm.xlu0 %3899, %v3850
      %v3901 = vpop.permute.xlu0 %3900
      %3904 = vset.pattern.permute.xlu0 0
      %3905 = vperm.xlu0 %3904, %v3851
      %v3906 = vpop.permute.xlu0 %3905
      %3909 = vset.pattern.permute.xlu0 0
      %3910 = vperm.xlu0 %3909, %v3852
      %v3911 = vpop.permute.xlu0 %3910
      %3914 = vset.pattern.permute.xlu0 0
      %3915 = vperm.xlu0 %3914, %v3853
      %v3916 = vpop.permute.xlu0 %3915
      %3919 = vset.pattern.permute.xlu0 0
      %3920 = vperm.xlu0 %3919, %v3854
      %v3921 = vpop.permute.xlu0 %3920
      %3924 = vset.pattern.permute.xlu0 0
      %3925 = vperm.xlu0 %3924, %v3855
      %v3926 = vpop.permute.xlu0 %3925
      %3929 = vset.pattern.permute.xlu0 0
      %3930 = vperm.xlu0 %3929, %v3856
      %v3931 = vpop.permute.xlu0 %3930
      %3934 = vset.pattern.permute.xlu0 0
      %3935 = vperm.xlu0 %3934, %v3857
      %v3936 = vpop.permute.xlu0 %3935
      %3939 = vset.pattern.permute.xlu0 0
      %3940 = vperm.xlu0 %3939, %v3858
      %v3941 = vpop.permute.xlu0 %3940
      %3944 = vset.pattern.permute.xlu0 0
      %3945 = vperm.xlu0 %3944, %v3859
      %v3946 = vpop.permute.xlu0 %3945
      %3949 = vset.pattern.permute.xlu0 0
      %3950 = vperm.xlu0 %3949, %v3860
      %v3951 = vpop.permute.xlu0 %3950
      %3954 = vset.pattern.permute.xlu0 0
      %3955 = vperm.xlu0 %3954, %v3861
      %v3956 = vpop.permute.xlu0 %3955
      %3959 = vset.pattern.permute.xlu0 0
      %3960 = vperm.xlu0 %3959, %v3862
      %v3961 = vpop.permute.xlu0 %3960
      %3964 = vset.pattern.permute.xlu0 0
      %3965 = vperm.xlu0 %3964, %v3863
      %v3966 = vpop.permute.xlu0 %3965
      %3969 = vset.pattern.permute.xlu0 0
      %3970 = vperm.xlu0 %3969, %v3864
      %v3971 = vpop.permute.xlu0 %3970
      %3974 = vset.pattern.permute.xlu0 0
      %3975 = vperm.xlu0 %3974, %v3865
      %v3976 = vpop.permute.xlu0 %3975
      %3979 = vset.pattern.permute.xlu0 0
      %3980 = vperm.xlu0 %3979, %v3866
      %v3981 = vpop.permute.xlu0 %3980
      %3984 = vset.pattern.permute.xlu0 0
      %3985 = vperm.xlu0 %3984, %v3867
      %v3986 = vpop.permute.xlu0 %3985
      %3989 = vset.pattern.permute.xlu0 0
      %3990 = vperm.xlu0 %3989, %v3868
      %v3991 = vpop.permute.xlu0 %3990
      %3994 = vset.pattern.permute.xlu0 0
      %3995 = vperm.xlu0 %3994, %v3869
      %v3996 = vpop.permute.xlu0 %3995
      %3999 = vset.pattern.permute.xlu0 0
      %4000 = vperm.xlu0 %3999, %v3870
      %v4001 = vpop.permute.xlu0 %4000
      %4004 = vset.pattern.permute.xlu0 0
      %4005 = vperm.xlu0 %4004, %v3871
      %v4006 = vpop.permute.xlu0 %4005
      %4009 = vset.pattern.permute.xlu0 0
      %4010 = vperm.xlu0 %4009, %v3872
      %v4011 = vpop.permute.xlu0 %4010
      %4014 = vset.pattern.permute.xlu0 0
      %4015 = vperm.xlu0 %4014, %v3873
      %v4016 = vpop.permute.xlu0 %4015
      %4019 = vset.pattern.permute.xlu0 0
      %4020 = vperm.xlu0 %4019, %v3874
      %v4021 = vpop.permute.xlu0 %4020
      %4024 = vset.pattern.permute.xlu0 0
      %4025 = vperm.xlu0 %4024, %v3875
      %v4026 = vpop.permute.xlu0 %4025
      %4029 = vset.pattern.permute.xlu0 0
      %4030 = vperm.xlu0 %4029, %v3876
      %v4031 = vpop.permute.xlu0 %4030
      %4034 = vset.pattern.permute.xlu0 0
      %4035 = vperm.xlu0 %4034, %v3877
      %v4036 = vpop.permute.xlu0 %4035
      %v4038 = vsub.f32 %v1673, %v3881
      %v4039 = vsub.f32 %v1676, %v3886
      %v4040 = vsub.f32 %v1720, %v3891
      %v4041 = vsub.f32 %v1723, %v3896
      %v4042 = vsub.f32 %v1767, %v3901
      %v4043 = vsub.f32 %v1770, %v3906
      %v4044 = vsub.f32 %v1814, %v3911
      %v4045 = vsub.f32 %v1817, %v3916
      %v4046 = vsub.f32 %v1861, %v3921
      %v4047 = vsub.f32 %v1864, %v3926
      %v4048 = vsub.f32 %v1908, %v3931
      %v4049 = vsub.f32 %v1911, %v3936
      %v4050 = vsub.f32 %v1955, %v3941
      %v4051 = vsub.f32 %v1958, %v3946
      %v4052 = vsub.f32 %v2002, %v3951
      %v4053 = vsub.f32 %v2005, %v3956
      %v4054 = vsub.f32 %v2049, %v3961
      %v4055 = vsub.f32 %v2052, %v3966
      %v4056 = vsub.f32 %v2096, %v3971
      %v4057 = vsub.f32 %v2099, %v3976
      %v4058 = vsub.f32 %v2143, %v3981
      %v4059 = vsub.f32 %v2146, %v3986
      %v4060 = vsub.f32 %v2190, %v3991
      %v4061 = vsub.f32 %v2193, %v3996
      %v4062 = vsub.f32 %v2237, %v4001
      %v4063 = vsub.f32 %v2240, %v4006
      %v4064 = vsub.f32 %v2284, %v4011
      %v4065 = vsub.f32 %v2287, %v4016
      %v4066 = vsub.f32 %v2331, %v4021
      %v4067 = vsub.f32 %v2334, %v4026
      %v4068 = vsub.f32 %v2378, %v4031
      %v4069 = vsub.f32 %v2381, %v4036
      %v4070 = vmul.f32 %v4038, 1.442695
      %v4071 = vpow.pop %v4070
      %v4072 = vmul.f32 %v4039, 1.442695
      %v4073 = vpow.pop %v4072
      %v4074 = vmul.f32 %v4040, 1.442695
      %v4075 = vpow.pop %v4074
      %v4076 = vmul.f32 %v4041, 1.442695
      %v4077 = vpow.pop %v4076
      %v4078 = vmul.f32 %v4042, 1.442695
      %v4079 = vpow.pop %v4078
      %v4080 = vmul.f32 %v4043, 1.442695
      %v4081 = vpow.pop %v4080
      %v4082 = vmul.f32 %v4044, 1.442695
      %v4083 = vpow.pop %v4082
      %v4084 = vmul.f32 %v4045, 1.442695
      %v4085 = vpow.pop %v4084
      %v4086 = vmul.f32 %v4046, 1.442695
      %v4087 = vpow.pop %v4086
      %v4088 = vmul.f32 %v4047, 1.442695
      %v4089 = vpow.pop %v4088
      %v4090 = vmul.f32 %v4048, 1.442695
      %v4091 = vpow.pop %v4090
      %v4092 = vmul.f32 %v4049, 1.442695
      %v4093 = vpow.pop %v4092
      %v4094 = vmul.f32 %v4050, 1.442695
      %v4095 = vpow.pop %v4094
      %v4096 = vmul.f32 %v4051, 1.442695
      %v4097 = vpow.pop %v4096
      %v4098 = vmul.f32 %v4052, 1.442695
      %v4099 = vpow.pop %v4098
      %v4100 = vmul.f32 %v4053, 1.442695
      %v4101 = vpow.pop %v4100
      %v4102 = vmul.f32 %v4054, 1.442695
      %v4103 = vpow.pop %v4102
      %v4104 = vmul.f32 %v4055, 1.442695
      %v4105 = vpow.pop %v4104
      %v4106 = vmul.f32 %v4056, 1.442695
      %v4107 = vpow.pop %v4106
      %v4108 = vmul.f32 %v4057, 1.442695
      %v4109 = vpow.pop %v4108
      %v4110 = vmul.f32 %v4058, 1.442695
      %v4111 = vpow.pop %v4110
      %v4112 = vmul.f32 %v4059, 1.442695
      %v4113 = vpow.pop %v4112
      %v4114 = vmul.f32 %v4060, 1.442695
      %v4115 = vpow.pop %v4114
      %v4116 = vmul.f32 %v4061, 1.442695
      %v4117 = vpow.pop %v4116
      %v4118 = vmul.f32 %v4062, 1.442695
      %v4119 = vpow.pop %v4118
      %v4120 = vmul.f32 %v4063, 1.442695
      %v4121 = vpow.pop %v4120
      %v4122 = vmul.f32 %v4064, 1.442695
      %v4123 = vpow.pop %v4122
      %v4124 = vmul.f32 %v4065, 1.442695
      %v4125 = vpow.pop %v4124
      %v4126 = vmul.f32 %v4066, 1.442695
      %v4127 = vpow.pop %v4126
      %v4128 = vmul.f32 %v4067, 1.442695
      %v4129 = vpow.pop %v4128
      %v4130 = vmul.f32 %v4068, 1.442695
      %v4131 = vpow.pop %v4130
      %v4132 = vmul.f32 %v4069, 1.442695
      %v4133 = vpow.pop %v4132
      %v4134 = vlaneseq
      %v4135 = vshrl.u32 %v4134, 7
      %v4136 = vsub.s32 %v3172, %v4135
      %v4137 = vrot.slane %v3881, %v4136
      %v4138 = vlaneseq
      %v4139 = vshrl.u32 %v4138, 7
      %v4140 = vsub.s32 %v3439, %v4139
      %v4141 = vrot.slane %v3886, %v4140
      %v4142 = vsel %vm3444, %v4141, %v4137
      %v4143 = vlaneseq
      %v4144 = vshrl.u32 %v4143, 7
      %v4145 = vsub.s32 %v3172, %v4144
      %v4146 = vrot.slane %v3891, %v4145
      %v4147 = vlaneseq
      %v4148 = vshrl.u32 %v4147, 7
      %v4149 = vsub.s32 %v3439, %v4148
      %v4150 = vrot.slane %v3896, %v4149
      %v4151 = vsel %vm3444, %v4150, %v4146
      %v4152 = vlaneseq
      %v4153 = vshrl.u32 %v4152, 7
      %v4154 = vsub.s32 %v3172, %v4153
      %v4155 = vrot.slane %v3901, %v4154
      %v4156 = vlaneseq
      %v4157 = vshrl.u32 %v4156, 7
      %v4158 = vsub.s32 %v3439, %v4157
      %v4159 = vrot.slane %v3906, %v4158
      %v4160 = vsel %vm3444, %v4159, %v4155
      %v4161 = vlaneseq
      %v4162 = vshrl.u32 %v4161, 7
      %v4163 = vsub.s32 %v3172, %v4162
      %v4164 = vrot.slane %v3911, %v4163
      %v4165 = vlaneseq
      %v4166 = vshrl.u32 %v4165, 7
      %v4167 = vsub.s32 %v3439, %v4166
      %v4168 = vrot.slane %v3916, %v4167
      %v4169 = vsel %vm3444, %v4168, %v4164
      %v4170 = vlaneseq
      %v4171 = vshrl.u32 %v4170, 7
      %v4172 = vsub.s32 %v3172, %v4171
      %v4173 = vrot.slane %v3921, %v4172
      %v4174 = vlaneseq
      %v4175 = vshrl.u32 %v4174, 7
      %v4176 = vsub.s32 %v3439, %v4175
      %v4177 = vrot.slane %v3926, %v4176
      %v4178 = vsel %vm3444, %v4177, %v4173
      %v4179 = vlaneseq
      %v4180 = vshrl.u32 %v4179, 7
      %v4181 = vsub.s32 %v3172, %v4180
      %v4182 = vrot.slane %v3931, %v4181
      %v4183 = vlaneseq
      %v4184 = vshrl.u32 %v4183, 7
      %v4185 = vsub.s32 %v3439, %v4184
      %v4186 = vrot.slane %v3936, %v4185
      %v4187 = vsel %vm3444, %v4186, %v4182
      %v4188 = vlaneseq
      %v4189 = vshrl.u32 %v4188, 7
      %v4190 = vsub.s32 %v3172, %v4189
      %v4191 = vrot.slane %v3941, %v4190
      %v4192 = vlaneseq
      %v4193 = vshrl.u32 %v4192, 7
      %v4194 = vsub.s32 %v3439, %v4193
      %v4195 = vrot.slane %v3946, %v4194
      %v4196 = vsel %vm3444, %v4195, %v4191
      %v4197 = vlaneseq
      %v4198 = vshrl.u32 %v4197, 7
      %v4199 = vsub.s32 %v3172, %v4198
      %v4200 = vrot.slane %v3951, %v4199
      %v4201 = vlaneseq
      %v4202 = vshrl.u32 %v4201, 7
      %v4203 = vsub.s32 %v3439, %v4202
      %v4204 = vrot.slane %v3956, %v4203
      %v4205 = vsel %vm3444, %v4204, %v4200
      %v4206 = vlaneseq
      %v4207 = vshrl.u32 %v4206, 7
      %v4208 = vsub.s32 %v3172, %v4207
      %v4209 = vrot.slane %v3961, %v4208
      %v4210 = vlaneseq
      %v4211 = vshrl.u32 %v4210, 7
      %v4212 = vsub.s32 %v3439, %v4211
      %v4213 = vrot.slane %v3966, %v4212
      %v4214 = vsel %vm3444, %v4213, %v4209
      %v4215 = vlaneseq
      %v4216 = vshrl.u32 %v4215, 7
      %v4217 = vsub.s32 %v3172, %v4216
      %v4218 = vrot.slane %v3971, %v4217
      %v4219 = vlaneseq
      %v4220 = vshrl.u32 %v4219, 7
      %v4221 = vsub.s32 %v3439, %v4220
      %v4222 = vrot.slane %v3976, %v4221
      %v4223 = vsel %vm3444, %v4222, %v4218
      %v4224 = vlaneseq
      %v4225 = vshrl.u32 %v4224, 7
      %v4226 = vsub.s32 %v3172, %v4225
      %v4227 = vrot.slane %v3981, %v4226
      %v4228 = vlaneseq
      %v4229 = vshrl.u32 %v4228, 7
      %v4230 = vsub.s32 %v3439, %v4229
      %v4231 = vrot.slane %v3986, %v4230
      %v4232 = vsel %vm3444, %v4231, %v4227
      %v4233 = vlaneseq
      %v4234 = vshrl.u32 %v4233, 7
      %v4235 = vsub.s32 %v3172, %v4234
      %v4236 = vrot.slane %v3991, %v4235
      %v4237 = vlaneseq
      %v4238 = vshrl.u32 %v4237, 7
      %v4239 = vsub.s32 %v3439, %v4238
      %v4240 = vrot.slane %v3996, %v4239
      %v4241 = vsel %vm3444, %v4240, %v4236
      %v4242 = vlaneseq
      %v4243 = vshrl.u32 %v4242, 7
      %v4244 = vsub.s32 %v3172, %v4243
      %v4245 = vrot.slane %v4001, %v4244
      %v4246 = vlaneseq
      %v4247 = vshrl.u32 %v4246, 7
      %v4248 = vsub.s32 %v3439, %v4247
      %v4249 = vrot.slane %v4006, %v4248
      %v4250 = vsel %vm3444, %v4249, %v4245
      %v4251 = vlaneseq
      %v4252 = vshrl.u32 %v4251, 7
      %v4253 = vsub.s32 %v3172, %v4252
      %v4254 = vrot.slane %v4011, %v4253
      %v4255 = vlaneseq
      %v4256 = vshrl.u32 %v4255, 7
      %v4257 = vsub.s32 %v3439, %v4256
      %v4258 = vrot.slane %v4016, %v4257
      %v4259 = vsel %vm3444, %v4258, %v4254
      %v4260 = vlaneseq
      %v4261 = vshrl.u32 %v4260, 7
      %v4262 = vsub.s32 %v3172, %v4261
      %v4263 = vrot.slane %v4021, %v4262
      %v4264 = vlaneseq
      %v4265 = vshrl.u32 %v4264, 7
      %v4266 = vsub.s32 %v3439, %v4265
      %v4267 = vrot.slane %v4026, %v4266
      %v4268 = vsel %vm3444, %v4267, %v4263
      %v4269 = vlaneseq
      %v4270 = vshrl.u32 %v4269, 7
      %v4271 = vsub.s32 %v3172, %v4270
      %v4272 = vrot.slane %v4031, %v4271
      %v4273 = vlaneseq
      %v4274 = vshrl.u32 %v4273, 7
      %v4275 = vsub.s32 %v3439, %v4274
      %v4276 = vrot.slane %v4036, %v4275
      %v4277 = vsel %vm3444, %v4276, %v4272
      %v4278 = vsel %vm3581, %v4151, %v4142
      %v4279 = vsel %vm3583, %v4160, %v4278
      %v4280 = vsel %vm3585, %v4169, %v4279
      %v4281 = vsel %vm3587, %v4178, %v4280
      %v4282 = vsel %vm3589, %v4187, %v4281
      %v4283 = vsel %vm3591, %v4196, %v4282
      %v4284 = vsel %vm3593, %v4205, %v4283
      %v4285 = vsel %vm3581, %v4223, %v4214
      %v4286 = vsel %vm3583, %v4232, %v4285
      %v4287 = vsel %vm3585, %v4241, %v4286
      %v4288 = vsel %vm3587, %v4250, %v4287
      %v4289 = vsel %vm3589, %v4259, %v4288
      %v4290 = vsel %vm3591, %v4268, %v4289
      %v4291 = vsel %vm3593, %v4277, %v4290
      %4294 = vxpose.xlu0.b32.start [1/16] %v4284, 128
      %4295 = vxpose.xlu0.b32.cont [2/16] %v4291, 128
      %4296 = vxpose.xlu0.b32.cont [3/16] 0.0, 128
      %4297 = vxpose.xlu0.b32.cont [4/16] 0.0, 128
      %4298 = vxpose.xlu0.b32.cont [5/16] 0.0, 128
      %4299 = vxpose.xlu0.b32.cont [6/16] 0.0, 128
      %4300 = vxpose.xlu0.b32.cont [7/16] 0.0, 128
      %4301 = vxpose.xlu0.b32.cont [8/16] 0.0, 128
      %4302 = vxpose.xlu0.b32.cont [9/16] 0.0, 128
      %4303 = vxpose.xlu0.b32.cont [10/16] 0.0, 128
      %4304 = vxpose.xlu0.b32.cont [11/16] 0.0, 128
      %4305 = vxpose.xlu0.b32.cont [12/16] 0.0, 128
      %4306 = vxpose.xlu0.b32.cont [13/16] 0.0, 128
      %4307 = vxpose.xlu0.b32.cont [14/16] 0.0, 128
      %4308 = vxpose.xlu0.b32.cont [15/16] 0.0, 128
      %4309 = vxpose.xlu0.b32.end [16/16] 0.0, 128
      %v4310 = vpop.trf.xlu0
      %v4311 = vpop.trf.xlu0
      %v4312 = vpop.trf.xlu0
      %v4313 = vpop.trf.xlu0
      %v4314 = vpop.trf.xlu0
      %v4315 = vpop.trf.xlu0
      %v4316 = vpop.trf.xlu0
      %v4317 = vpop.trf.xlu0
      %v4318 = vpop.trf.xlu0
      %v4319 = vpop.trf.xlu0
      %v4320 = vpop.trf.xlu0
      %v4321 = vpop.trf.xlu0
      %v4322 = vpop.trf.xlu0
      %v4323 = vpop.trf.xlu0
      %v4324 = vpop.trf.xlu0
      %v4325 = vpop.trf.xlu0
      %v4326 = vlaneseq
      %v4327 = vshrl.u32 %v4326, 7
      %v4328 = vsub.s32 0, %v4327
      %v4329 = vrot.slane %v4310, %v4328
      %4331 = vbcast.lane.b32.xlu0 %v4329, 256
      %v4332 = vpop.permute.xlu0 %4331
      %s4334 = sor.u32 256, 8
      %4335 = vbcast.lane.b32.xlu0 %v4329, %s4334
      %v4336 = vpop.permute.xlu0 %4335
      %v4337 = vlaneseq
      %v4338 = vshrl.u32 %v4337, 7
      %v4339 = vsub.s32 1, %v4338
      %v4340 = vrot.slane %v4310, %v4339
      %4342 = vbcast.lane.b32.xlu0 %v4340, 256
      %v4343 = vpop.permute.xlu0 %4342
      %s4345 = sor.u32 256, 8
      %4346 = vbcast.lane.b32.xlu0 %v4340, %s4345
      %v4347 = vpop.permute.xlu0 %4346
      %v4348 = vlaneseq
      %v4349 = vshrl.u32 %v4348, 7
      %v4350 = vsub.s32 2, %v4349
      %v4351 = vrot.slane %v4310, %v4350
      %4353 = vbcast.lane.b32.xlu0 %v4351, 256
      %v4354 = vpop.permute.xlu0 %4353
      %s4356 = sor.u32 256, 8
      %4357 = vbcast.lane.b32.xlu0 %v4351, %s4356
      %v4358 = vpop.permute.xlu0 %4357
      %v4359 = vlaneseq
      %v4360 = vshrl.u32 %v4359, 7
      %v4361 = vsub.s32 3, %v4360
      %v4362 = vrot.slane %v4310, %v4361
      %4364 = vbcast.lane.b32.xlu0 %v4362, 256
      %v4365 = vpop.permute.xlu0 %4364
      %s4367 = sor.u32 256, 8
      %4368 = vbcast.lane.b32.xlu0 %v4362, %s4367
      %v4369 = vpop.permute.xlu0 %4368
      %v4370 = vlaneseq
      %v4371 = vshrl.u32 %v4370, 7
      %v4372 = vsub.s32 4, %v4371
      %v4373 = vrot.slane %v4310, %v4372
      %4375 = vbcast.lane.b32.xlu0 %v4373, 256
      %v4376 = vpop.permute.xlu0 %4375
      %s4378 = sor.u32 256, 8
      %4379 = vbcast.lane.b32.xlu0 %v4373, %s4378
      %v4380 = vpop.permute.xlu0 %4379
      %v4381 = vlaneseq
      %v4382 = vshrl.u32 %v4381, 7
      %v4383 = vsub.s32 5, %v4382
      %v4384 = vrot.slane %v4310, %v4383
      %4386 = vbcast.lane.b32.xlu0 %v4384, 256
      %v4387 = vpop.permute.xlu0 %4386
      %s4389 = sor.u32 256, 8
      %4390 = vbcast.lane.b32.xlu0 %v4384, %s4389
      %v4391 = vpop.permute.xlu0 %4390
      %v4392 = vlaneseq
      %v4393 = vshrl.u32 %v4392, 7
      %v4394 = vsub.s32 6, %v4393
      %v4395 = vrot.slane %v4310, %v4394
      %4397 = vbcast.lane.b32.xlu0 %v4395, 256
      %v4398 = vpop.permute.xlu0 %4397
      %s4400 = sor.u32 256, 8
      %4401 = vbcast.lane.b32.xlu0 %v4395, %s4400
      %v4402 = vpop.permute.xlu0 %4401
      %v4403 = vlaneseq
      %v4404 = vshrl.u32 %v4403, 7
      %v4405 = vsub.s32 7, %v4404
      %v4406 = vrot.slane %v4310, %v4405
      %4408 = vbcast.lane.b32.xlu0 %v4406, 256
      %v4409 = vpop.permute.xlu0 %4408
      %s4411 = sor.u32 256, 8
      %4412 = vbcast.lane.b32.xlu0 %v4406, %s4411
      %v4413 = vpop.permute.xlu0 %4412
      %v4414 = vlaneseq
      %v4415 = vshrl.u32 %v4414, 7
      %v4416 = vsub.s32 0, %v4415
      %v4417 = vrot.slane %v4311, %v4416
      %4419 = vbcast.lane.b32.xlu0 %v4417, 256
      %v4420 = vpop.permute.xlu0 %4419
      %s4422 = sor.u32 256, 8
      %4423 = vbcast.lane.b32.xlu0 %v4417, %s4422
      %v4424 = vpop.permute.xlu0 %4423
      %v4425 = vlaneseq
      %v4426 = vshrl.u32 %v4425, 7
      %v4427 = vsub.s32 1, %v4426
      %v4428 = vrot.slane %v4311, %v4427
      %4430 = vbcast.lane.b32.xlu0 %v4428, 256
      %v4431 = vpop.permute.xlu0 %4430
      %s4433 = sor.u32 256, 8
      %4434 = vbcast.lane.b32.xlu0 %v4428, %s4433
      %v4435 = vpop.permute.xlu0 %4434
      %v4436 = vlaneseq
      %v4437 = vshrl.u32 %v4436, 7
      %v4438 = vsub.s32 2, %v4437
      %v4439 = vrot.slane %v4311, %v4438
      %4441 = vbcast.lane.b32.xlu0 %v4439, 256
      %v4442 = vpop.permute.xlu0 %4441
      %s4444 = sor.u32 256, 8
      %4445 = vbcast.lane.b32.xlu0 %v4439, %s4444
      %v4446 = vpop.permute.xlu0 %4445
      %v4447 = vlaneseq
      %v4448 = vshrl.u32 %v4447, 7
      %v4449 = vsub.s32 3, %v4448
      %v4450 = vrot.slane %v4311, %v4449
      %4452 = vbcast.lane.b32.xlu0 %v4450, 256
      %v4453 = vpop.permute.xlu0 %4452
      %s4455 = sor.u32 256, 8
      %4456 = vbcast.lane.b32.xlu0 %v4450, %s4455
      %v4457 = vpop.permute.xlu0 %4456
      %v4458 = vlaneseq
      %v4459 = vshrl.u32 %v4458, 7
      %v4460 = vsub.s32 4, %v4459
      %v4461 = vrot.slane %v4311, %v4460
      %4463 = vbcast.lane.b32.xlu0 %v4461, 256
      %v4464 = vpop.permute.xlu0 %4463
      %s4466 = sor.u32 256, 8
      %4467 = vbcast.lane.b32.xlu0 %v4461, %s4466
      %v4468 = vpop.permute.xlu0 %4467
      %v4469 = vlaneseq
      %v4470 = vshrl.u32 %v4469, 7
      %v4471 = vsub.s32 5, %v4470
      %v4472 = vrot.slane %v4311, %v4471
      %4474 = vbcast.lane.b32.xlu0 %v4472, 256
      %v4475 = vpop.permute.xlu0 %4474
      %s4477 = sor.u32 256, 8
      %4478 = vbcast.lane.b32.xlu0 %v4472, %s4477
      %v4479 = vpop.permute.xlu0 %4478
      %v4480 = vlaneseq
      %v4481 = vshrl.u32 %v4480, 7
      %v4482 = vsub.s32 6, %v4481
      %v4483 = vrot.slane %v4311, %v4482
      %4485 = vbcast.lane.b32.xlu0 %v4483, 256
      %v4486 = vpop.permute.xlu0 %4485
      %s4488 = sor.u32 256, 8
      %4489 = vbcast.lane.b32.xlu0 %v4483, %s4488
      %v4490 = vpop.permute.xlu0 %4489
      %v4491 = vlaneseq
      %v4492 = vshrl.u32 %v4491, 7
      %v4493 = vsub.s32 7, %v4492
      %v4494 = vrot.slane %v4311, %v4493
      %4496 = vbcast.lane.b32.xlu0 %v4494, 256
      %v4497 = vpop.permute.xlu0 %4496
      %s4499 = sor.u32 256, 8
      %4500 = vbcast.lane.b32.xlu0 %v4494, %s4499
      %v4501 = vpop.permute.xlu0 %4500
      %v4502 = vsub.f32 %v3179, %v4332
      %v4503 = vsub.f32 %v3180, %v4336
      %v4504 = vsub.f32 %v3181, %v4343
      %v4505 = vsub.f32 %v3182, %v4347
      %v4506 = vsub.f32 %v3183, %v4354
      %v4507 = vsub.f32 %v3184, %v4358
      %v4508 = vsub.f32 %v3185, %v4365
      %v4509 = vsub.f32 %v3186, %v4369
      %v4510 = vsub.f32 %v3187, %v4376
      %v4511 = vsub.f32 %v3188, %v4380
      %v4512 = vsub.f32 %v3189, %v4387
      %v4513 = vsub.f32 %v3190, %v4391
      %v4514 = vsub.f32 %v3191, %v4398
      %v4515 = vsub.f32 %v3192, %v4402
      %v4516 = vsub.f32 %v3193, %v4409
      %v4517 = vsub.f32 %v3194, %v4413
      %v4518 = vsub.f32 %v3195, %v4420
      %v4519 = vsub.f32 %v3196, %v4424
      %v4520 = vsub.f32 %v3197, %v4431
      %v4521 = vsub.f32 %v3198, %v4435
      %v4522 = vsub.f32 %v3199, %v4442
      %v4523 = vsub.f32 %v3200, %v4446
      %v4524 = vsub.f32 %v3201, %v4453
      %v4525 = vsub.f32 %v3202, %v4457
      %v4526 = vsub.f32 %v3203, %v4464
      %v4527 = vsub.f32 %v3204, %v4468
      %v4528 = vsub.f32 %v3205, %v4475
      %v4529 = vsub.f32 %v3206, %v4479
      %v4530 = vsub.f32 %v3207, %v4486
      %v4531 = vsub.f32 %v3208, %v4490
      %v4532 = vsub.f32 %v3209, %v4497
      %v4533 = vsub.f32 %v3210, %v4501
      %v4534 = vmul.f32 %v4502, 1.442695
      %v4535 = vpow.pop %v4534
      %v4536 = vmul.f32 %v4503, 1.442695
      %v4537 = vpow.pop %v4536
      %v4538 = vmul.f32 %v4504, 1.442695
      %v4539 = vpow.pop %v4538
      %v4540 = vmul.f32 %v4505, 1.442695
      %v4541 = vpow.pop %v4540
      %v4542 = vmul.f32 %v4506, 1.442695
      %v4543 = vpow.pop %v4542
      %v4544 = vmul.f32 %v4507, 1.442695
      %v4545 = vpow.pop %v4544
      %v4546 = vmul.f32 %v4508, 1.442695
      %v4547 = vpow.pop %v4546
      %v4548 = vmul.f32 %v4509, 1.442695
      %v4549 = vpow.pop %v4548
      %v4550 = vmul.f32 %v4510, 1.442695
      %v4551 = vpow.pop %v4550
      %v4552 = vmul.f32 %v4511, 1.442695
      %v4553 = vpow.pop %v4552
      %v4554 = vmul.f32 %v4512, 1.442695
      %v4555 = vpow.pop %v4554
      %v4556 = vmul.f32 %v4513, 1.442695
      %v4557 = vpow.pop %v4556
      %v4558 = vmul.f32 %v4514, 1.442695
      %v4559 = vpow.pop %v4558
      %v4560 = vmul.f32 %v4515, 1.442695
      %v4561 = vpow.pop %v4560
      %v4562 = vmul.f32 %v4516, 1.442695
      %v4563 = vpow.pop %v4562
      %v4564 = vmul.f32 %v4517, 1.442695
      %v4565 = vpow.pop %v4564
      %v4566 = vmul.f32 %v4518, 1.442695
      %v4567 = vpow.pop %v4566
      %v4568 = vmul.f32 %v4519, 1.442695
      %v4569 = vpow.pop %v4568
      %v4570 = vmul.f32 %v4520, 1.442695
      %v4571 = vpow.pop %v4570
      %v4572 = vmul.f32 %v4521, 1.442695
      %v4573 = vpow.pop %v4572
      %v4574 = vmul.f32 %v4522, 1.442695
      %v4575 = vpow.pop %v4574
      %v4576 = vmul.f32 %v4523, 1.442695
      %v4577 = vpow.pop %v4576
      %v4578 = vmul.f32 %v4524, 1.442695
      %v4579 = vpow.pop %v4578
      %v4580 = vmul.f32 %v4525, 1.442695
      %v4581 = vpow.pop %v4580
      %v4582 = vmul.f32 %v4526, 1.442695
      %v4583 = vpow.pop %v4582
      %v4584 = vmul.f32 %v4527, 1.442695
      %v4585 = vpow.pop %v4584
      %v4586 = vmul.f32 %v4528, 1.442695
      %v4587 = vpow.pop %v4586
      %v4588 = vmul.f32 %v4529, 1.442695
      %v4589 = vpow.pop %v4588
      %v4590 = vmul.f32 %v4530, 1.442695
      %v4591 = vpow.pop %v4590
      %v4592 = vmul.f32 %v4531, 1.442695
      %v4593 = vpow.pop %v4592
      %v4594 = vmul.f32 %v4532, 1.442695
      %v4595 = vpow.pop %v4594
      %v4596 = vmul.f32 %v4533, 1.442695
      %v4597 = vpow.pop %v4596
      %v4598 = vsel %vm506, %v4071, 0.0
      %4599 = vadd.xlane.f32.xlu0 %v4598
      %v4600 = vpop.xlane.xlu0 %4599
      %v4601 = vsel %vm506, %v4073, 0.0
      %4602 = vadd.xlane.f32.xlu0 %v4601
      %v4603 = vpop.xlane.xlu0 %4602
      %v4604 = vsel %vm506, %v4075, 0.0
      %4605 = vadd.xlane.f32.xlu0 %v4604
      %v4606 = vpop.xlane.xlu0 %4605
      %v4607 = vsel %vm506, %v4077, 0.0
      %4608 = vadd.xlane.f32.xlu0 %v4607
      %v4609 = vpop.xlane.xlu0 %4608
      %v4610 = vsel %vm506, %v4079, 0.0
      %4611 = vadd.xlane.f32.xlu0 %v4610
      %v4612 = vpop.xlane.xlu0 %4611
      %v4613 = vsel %vm506, %v4081, 0.0
      %4614 = vadd.xlane.f32.xlu0 %v4613
      %v4615 = vpop.xlane.xlu0 %4614
      %v4616 = vsel %vm506, %v4083, 0.0
      %4617 = vadd.xlane.f32.xlu0 %v4616
      %v4618 = vpop.xlane.xlu0 %4617
      %v4619 = vsel %vm506, %v4085, 0.0
      %4620 = vadd.xlane.f32.xlu0 %v4619
      %v4621 = vpop.xlane.xlu0 %4620
      %v4622 = vsel %vm506, %v4087, 0.0
      %4623 = vadd.xlane.f32.xlu0 %v4622
      %v4624 = vpop.xlane.xlu0 %4623
      %v4625 = vsel %vm506, %v4089, 0.0
      %4626 = vadd.xlane.f32.xlu0 %v4625
      %v4627 = vpop.xlane.xlu0 %4626
      %v4628 = vsel %vm506, %v4091, 0.0
      %4629 = vadd.xlane.f32.xlu0 %v4628
      %v4630 = vpop.xlane.xlu0 %4629
      %v4631 = vsel %vm506, %v4093, 0.0
      %4632 = vadd.xlane.f32.xlu0 %v4631
      %v4633 = vpop.xlane.xlu0 %4632
      %v4634 = vsel %vm506, %v4095, 0.0
      %4635 = vadd.xlane.f32.xlu0 %v4634
      %v4636 = vpop.xlane.xlu0 %4635
      %v4637 = vsel %vm506, %v4097, 0.0
      %4638 = vadd.xlane.f32.xlu0 %v4637
      %v4639 = vpop.xlane.xlu0 %4638
      %v4640 = vsel %vm506, %v4099, 0.0
      %4641 = vadd.xlane.f32.xlu0 %v4640
      %v4642 = vpop.xlane.xlu0 %4641
      %v4643 = vsel %vm506, %v4101, 0.0
      %4644 = vadd.xlane.f32.xlu0 %v4643
      %v4645 = vpop.xlane.xlu0 %4644
      %v4646 = vsel %vm506, %v4103, 0.0
      %4647 = vadd.xlane.f32.xlu0 %v4646
      %v4648 = vpop.xlane.xlu0 %4647
      %v4649 = vsel %vm506, %v4105, 0.0
      %4650 = vadd.xlane.f32.xlu0 %v4649
      %v4651 = vpop.xlane.xlu0 %4650
      %v4652 = vsel %vm506, %v4107, 0.0
      %4653 = vadd.xlane.f32.xlu0 %v4652
      %v4654 = vpop.xlane.xlu0 %4653
      %v4655 = vsel %vm506, %v4109, 0.0
      %4656 = vadd.xlane.f32.xlu0 %v4655
      %v4657 = vpop.xlane.xlu0 %4656
      %v4658 = vsel %vm506, %v4111, 0.0
      %4659 = vadd.xlane.f32.xlu0 %v4658
      %v4660 = vpop.xlane.xlu0 %4659
      %v4661 = vsel %vm506, %v4113, 0.0
      %4662 = vadd.xlane.f32.xlu0 %v4661
      %v4663 = vpop.xlane.xlu0 %4662
      %v4664 = vsel %vm506, %v4115, 0.0
      %4665 = vadd.xlane.f32.xlu0 %v4664
      %v4666 = vpop.xlane.xlu0 %4665
      %v4667 = vsel %vm506, %v4117, 0.0
      %4668 = vadd.xlane.f32.xlu0 %v4667
      %v4669 = vpop.xlane.xlu0 %4668
      %v4670 = vsel %vm506, %v4119, 0.0
      %4671 = vadd.xlane.f32.xlu0 %v4670
      %v4672 = vpop.xlane.xlu0 %4671
      %v4673 = vsel %vm506, %v4121, 0.0
      %4674 = vadd.xlane.f32.xlu0 %v4673
      %v4675 = vpop.xlane.xlu0 %4674
      %v4676 = vsel %vm506, %v4123, 0.0
      %4677 = vadd.xlane.f32.xlu0 %v4676
      %v4678 = vpop.xlane.xlu0 %4677
      %v4679 = vsel %vm506, %v4125, 0.0
      %4680 = vadd.xlane.f32.xlu0 %v4679
      %v4681 = vpop.xlane.xlu0 %4680
      %v4682 = vsel %vm506, %v4127, 0.0
      %4683 = vadd.xlane.f32.xlu0 %v4682
      %v4684 = vpop.xlane.xlu0 %4683
      %v4685 = vsel %vm506, %v4129, 0.0
      %4686 = vadd.xlane.f32.xlu0 %v4685
      %v4687 = vpop.xlane.xlu0 %4686
      %v4688 = vsel %vm506, %v4131, 0.0
      %4689 = vadd.xlane.f32.xlu0 %v4688
      %v4690 = vpop.xlane.xlu0 %4689
      %v4691 = vsel %vm506, %v4133, 0.0
      %4692 = vadd.xlane.f32.xlu0 %v4691
      %v4693 = vpop.xlane.xlu0 %4692
      %v4694 = vsel %vm506, %v4535, 0.0
      %4695 = vadd.xlane.f32.xlu0 %v4694
      %v4696 = vpop.xlane.xlu0 %4695
      %v4697 = vsel %vm506, %v4537, 0.0
      %4698 = vadd.xlane.f32.xlu0 %v4697
      %v4699 = vpop.xlane.xlu0 %4698
      %v4700 = vsel %vm506, %v4539, 0.0
      %4701 = vadd.xlane.f32.xlu0 %v4700
      %v4702 = vpop.xlane.xlu0 %4701
      %v4703 = vsel %vm506, %v4541, 0.0
      %4704 = vadd.xlane.f32.xlu0 %v4703
      %v4705 = vpop.xlane.xlu0 %4704
      %v4706 = vsel %vm506, %v4543, 0.0
      %4707 = vadd.xlane.f32.xlu0 %v4706
      %v4708 = vpop.xlane.xlu0 %4707
      %v4709 = vsel %vm506, %v4545, 0.0
      %4710 = vadd.xlane.f32.xlu0 %v4709
      %v4711 = vpop.xlane.xlu0 %4710
      %v4712 = vsel %vm506, %v4547, 0.0
      %4713 = vadd.xlane.f32.xlu0 %v4712
      %v4714 = vpop.xlane.xlu0 %4713
      %v4715 = vsel %vm506, %v4549, 0.0
      %4716 = vadd.xlane.f32.xlu0 %v4715
      %v4717 = vpop.xlane.xlu0 %4716
      %v4718 = vsel %vm506, %v4551, 0.0
      %4719 = vadd.xlane.f32.xlu0 %v4718
      %v4720 = vpop.xlane.xlu0 %4719
      %v4721 = vsel %vm506, %v4553, 0.0
      %4722 = vadd.xlane.f32.xlu0 %v4721
      %v4723 = vpop.xlane.xlu0 %4722
      %v4724 = vsel %vm506, %v4555, 0.0
      %4725 = vadd.xlane.f32.xlu0 %v4724
      %v4726 = vpop.xlane.xlu0 %4725
      %v4727 = vsel %vm506, %v4557, 0.0
      %4728 = vadd.xlane.f32.xlu0 %v4727
      %v4729 = vpop.xlane.xlu0 %4728
      %v4730 = vsel %vm506, %v4559, 0.0
      %4731 = vadd.xlane.f32.xlu0 %v4730
      %v4732 = vpop.xlane.xlu0 %4731
      %v4733 = vsel %vm506, %v4561, 0.0
      %4734 = vadd.xlane.f32.xlu0 %v4733
      %v4735 = vpop.xlane.xlu0 %4734
      %v4736 = vsel %vm506, %v4563, 0.0
      %4737 = vadd.xlane.f32.xlu0 %v4736
      %v4738 = vpop.xlane.xlu0 %4737
      %v4739 = vsel %vm506, %v4565, 0.0
      %4740 = vadd.xlane.f32.xlu0 %v4739
      %v4741 = vpop.xlane.xlu0 %4740
      %v4742 = vsel %vm506, %v4567, 0.0
      %4743 = vadd.xlane.f32.xlu0 %v4742
      %v4744 = vpop.xlane.xlu0 %4743
      %v4745 = vsel %vm506, %v4569, 0.0
      %4746 = vadd.xlane.f32.xlu0 %v4745
      %v4747 = vpop.xlane.xlu0 %4746
      %v4748 = vsel %vm506, %v4571, 0.0
      %4749 = vadd.xlane.f32.xlu0 %v4748
      %v4750 = vpop.xlane.xlu0 %4749
      %v4751 = vsel %vm506, %v4573, 0.0
      %4752 = vadd.xlane.f32.xlu0 %v4751
      %v4753 = vpop.xlane.xlu0 %4752
      %v4754 = vsel %vm506, %v4575, 0.0
      %4755 = vadd.xlane.f32.xlu0 %v4754
      %v4756 = vpop.xlane.xlu0 %4755
      %v4757 = vsel %vm506, %v4577, 0.0
      %4758 = vadd.xlane.f32.xlu0 %v4757
      %v4759 = vpop.xlane.xlu0 %4758
      %v4760 = vsel %vm506, %v4579, 0.0
      %4761 = vadd.xlane.f32.xlu0 %v4760
      %v4762 = vpop.xlane.xlu0 %4761
      %v4763 = vsel %vm506, %v4581, 0.0
      %4764 = vadd.xlane.f32.xlu0 %v4763
      %v4765 = vpop.xlane.xlu0 %4764
      %v4766 = vsel %vm506, %v4583, 0.0
      %4767 = vadd.xlane.f32.xlu0 %v4766
      %v4768 = vpop.xlane.xlu0 %4767
      %v4769 = vsel %vm506, %v4585, 0.0
      %4770 = vadd.xlane.f32.xlu0 %v4769
      %v4771 = vpop.xlane.xlu0 %4770
      %v4772 = vsel %vm506, %v4587, 0.0
      %4773 = vadd.xlane.f32.xlu0 %v4772
      %v4774 = vpop.xlane.xlu0 %4773
      %v4775 = vsel %vm506, %v4589, 0.0
      %4776 = vadd.xlane.f32.xlu0 %v4775
      %v4777 = vpop.xlane.xlu0 %4776
      %v4778 = vsel %vm506, %v4591, 0.0
      %4779 = vadd.xlane.f32.xlu0 %v4778
      %v4780 = vpop.xlane.xlu0 %4779
      %v4781 = vsel %vm506, %v4593, 0.0
      %4782 = vadd.xlane.f32.xlu0 %v4781
      %v4783 = vpop.xlane.xlu0 %4782
      %v4784 = vsel %vm506, %v4595, 0.0
      %4785 = vadd.xlane.f32.xlu0 %v4784
      %v4786 = vpop.xlane.xlu0 %4785
      %v4787 = vsel %vm506, %v4597, 0.0
      %4788 = vadd.xlane.f32.xlu0 %v4787
      %v4789 = vpop.xlane.xlu0 %4788
      %v4822 = vlaneseq
      %v4823 = vshrl.u32 %v4822, 7
      %v4824 = vsub.s32 %v3172, %v4823
      %v4825 = vrot.slane %v4696, %v4824
      %v4826 = vlaneseq
      %v4827 = vshrl.u32 %v4826, 7
      %v4828 = vsub.s32 %v3439, %v4827
      %v4829 = vrot.slane %v4699, %v4828
      %v4830 = vsel %vm3444, %v4829, %v4825
      %v4831 = vlaneseq
      %v4832 = vshrl.u32 %v4831, 7
      %v4833 = vsub.s32 %v3172, %v4832
      %v4834 = vrot.slane %v4702, %v4833
      %v4835 = vlaneseq
      %v4836 = vshrl.u32 %v4835, 7
      %v4837 = vsub.s32 %v3439, %v4836
      %v4838 = vrot.slane %v4705, %v4837
      %v4839 = vsel %vm3444, %v4838, %v4834
      %v4840 = vlaneseq
      %v4841 = vshrl.u32 %v4840, 7
      %v4842 = vsub.s32 %v3172, %v4841
      %v4843 = vrot.slane %v4708, %v4842
      %v4844 = vlaneseq
      %v4845 = vshrl.u32 %v4844, 7
      %v4846 = vsub.s32 %v3439, %v4845
      %v4847 = vrot.slane %v4711, %v4846
      %v4848 = vsel %vm3444, %v4847, %v4843
      %v4849 = vlaneseq
      %v4850 = vshrl.u32 %v4849, 7
      %v4851 = vsub.s32 %v3172, %v4850
      %v4852 = vrot.slane %v4714, %v4851
      %v4853 = vlaneseq
      %v4854 = vshrl.u32 %v4853, 7
      %v4855 = vsub.s32 %v3439, %v4854
      %v4856 = vrot.slane %v4717, %v4855
      %v4857 = vsel %vm3444, %v4856, %v4852
      %v4858 = vlaneseq
      %v4859 = vshrl.u32 %v4858, 7
      %v4860 = vsub.s32 %v3172, %v4859
      %v4861 = vrot.slane %v4720, %v4860
      %v4862 = vlaneseq
      %v4863 = vshrl.u32 %v4862, 7
      %v4864 = vsub.s32 %v3439, %v4863
      %v4865 = vrot.slane %v4723, %v4864
      %v4866 = vsel %vm3444, %v4865, %v4861
      %v4867 = vlaneseq
      %v4868 = vshrl.u32 %v4867, 7
      %v4869 = vsub.s32 %v3172, %v4868
      %v4870 = vrot.slane %v4726, %v4869
      %v4871 = vlaneseq
      %v4872 = vshrl.u32 %v4871, 7
      %v4873 = vsub.s32 %v3439, %v4872
      %v4874 = vrot.slane %v4729, %v4873
      %v4875 = vsel %vm3444, %v4874, %v4870
      %v4876 = vlaneseq
      %v4877 = vshrl.u32 %v4876, 7
      %v4878 = vsub.s32 %v3172, %v4877
      %v4879 = vrot.slane %v4732, %v4878
      %v4880 = vlaneseq
      %v4881 = vshrl.u32 %v4880, 7
      %v4882 = vsub.s32 %v3439, %v4881
      %v4883 = vrot.slane %v4735, %v4882
      %v4884 = vsel %vm3444, %v4883, %v4879
      %v4885 = vlaneseq
      %v4886 = vshrl.u32 %v4885, 7
      %v4887 = vsub.s32 %v3172, %v4886
      %v4888 = vrot.slane %v4738, %v4887
      %v4889 = vlaneseq
      %v4890 = vshrl.u32 %v4889, 7
      %v4891 = vsub.s32 %v3439, %v4890
      %v4892 = vrot.slane %v4741, %v4891
      %v4893 = vsel %vm3444, %v4892, %v4888
      %v4894 = vlaneseq
      %v4895 = vshrl.u32 %v4894, 7
      %v4896 = vsub.s32 %v3172, %v4895
      %v4897 = vrot.slane %v4744, %v4896
      %v4898 = vlaneseq
      %v4899 = vshrl.u32 %v4898, 7
      %v4900 = vsub.s32 %v3439, %v4899
      %v4901 = vrot.slane %v4747, %v4900
      %v4902 = vsel %vm3444, %v4901, %v4897
      %v4903 = vlaneseq
      %v4904 = vshrl.u32 %v4903, 7
      %v4905 = vsub.s32 %v3172, %v4904
      %v4906 = vrot.slane %v4750, %v4905
      %v4907 = vlaneseq
      %v4908 = vshrl.u32 %v4907, 7
      %v4909 = vsub.s32 %v3439, %v4908
      %v4910 = vrot.slane %v4753, %v4909
      %v4911 = vsel %vm3444, %v4910, %v4906
      %v4912 = vlaneseq
      %v4913 = vshrl.u32 %v4912, 7
      %v4914 = vsub.s32 %v3172, %v4913
      %v4915 = vrot.slane %v4756, %v4914
      %v4916 = vlaneseq
      %v4917 = vshrl.u32 %v4916, 7
      %v4918 = vsub.s32 %v3439, %v4917
      %v4919 = vrot.slane %v4759, %v4918
      %v4920 = vsel %vm3444, %v4919, %v4915
      %v4921 = vlaneseq
      %v4922 = vshrl.u32 %v4921, 7
      %v4923 = vsub.s32 %v3172, %v4922
      %v4924 = vrot.slane %v4762, %v4923
      %v4925 = vlaneseq
      %v4926 = vshrl.u32 %v4925, 7
      %v4927 = vsub.s32 %v3439, %v4926
      %v4928 = vrot.slane %v4765, %v4927
      %v4929 = vsel %vm3444, %v4928, %v4924
      %v4930 = vlaneseq
      %v4931 = vshrl.u32 %v4930, 7
      %v4932 = vsub.s32 %v3172, %v4931
      %v4933 = vrot.slane %v4768, %v4932
      %v4934 = vlaneseq
      %v4935 = vshrl.u32 %v4934, 7
      %v4936 = vsub.s32 %v3439, %v4935
      %v4937 = vrot.slane %v4771, %v4936
      %v4938 = vsel %vm3444, %v4937, %v4933
      %v4939 = vlaneseq
      %v4940 = vshrl.u32 %v4939, 7
      %v4941 = vsub.s32 %v3172, %v4940
      %v4942 = vrot.slane %v4774, %v4941
      %v4943 = vlaneseq
      %v4944 = vshrl.u32 %v4943, 7
      %v4945 = vsub.s32 %v3439, %v4944
      %v4946 = vrot.slane %v4777, %v4945
      %v4947 = vsel %vm3444, %v4946, %v4942
      %v4948 = vlaneseq
      %v4949 = vshrl.u32 %v4948, 7
      %v4950 = vsub.s32 %v3172, %v4949
      %v4951 = vrot.slane %v4780, %v4950
      %v4952 = vlaneseq
      %v4953 = vshrl.u32 %v4952, 7
      %v4954 = vsub.s32 %v3439, %v4953
      %v4955 = vrot.slane %v4783, %v4954
      %v4956 = vsel %vm3444, %v4955, %v4951
      %v4957 = vlaneseq
      %v4958 = vshrl.u32 %v4957, 7
      %v4959 = vsub.s32 %v3172, %v4958
      %v4960 = vrot.slane %v4786, %v4959
      %v4961 = vlaneseq
      %v4962 = vshrl.u32 %v4961, 7
      %v4963 = vsub.s32 %v3439, %v4962
      %v4964 = vrot.slane %v4789, %v4963
      %v4965 = vsel %vm3444, %v4964, %v4960
      %v4966 = vsel %vm3581, %v4839, %v4830
      %v4967 = vsel %vm3583, %v4848, %v4966
      %v4968 = vsel %vm3585, %v4857, %v4967
      %v4969 = vsel %vm3587, %v4866, %v4968
      %v4970 = vsel %vm3589, %v4875, %v4969
      %v4971 = vsel %vm3591, %v4884, %v4970
      %v4972 = vsel %vm3593, %v4893, %v4971
      %v4973 = vsel %vm3581, %v4911, %v4902
      %v4974 = vsel %vm3583, %v4920, %v4973
      %v4975 = vsel %vm3585, %v4929, %v4974
      %v4976 = vsel %vm3587, %v4938, %v4975
      %v4977 = vsel %vm3589, %v4947, %v4976
      %v4978 = vsel %vm3591, %v4956, %v4977
      %v4979 = vsel %vm3593, %v4965, %v4978
      %4982 = vxpose.xlu0.b32.start [1/16] %v4972, 128
      %4983 = vxpose.xlu0.b32.cont [2/16] %v4979, 128
      %4984 = vxpose.xlu0.b32.cont [3/16] 0.0, 128
      %4985 = vxpose.xlu0.b32.cont [4/16] 0.0, 128
      %4986 = vxpose.xlu0.b32.cont [5/16] 0.0, 128
      %4987 = vxpose.xlu0.b32.cont [6/16] 0.0, 128
      %4988 = vxpose.xlu0.b32.cont [7/16] 0.0, 128
      %4989 = vxpose.xlu0.b32.cont [8/16] 0.0, 128
      %4990 = vxpose.xlu0.b32.cont [9/16] 0.0, 128
      %4991 = vxpose.xlu0.b32.cont [10/16] 0.0, 128
      %4992 = vxpose.xlu0.b32.cont [11/16] 0.0, 128
      %4993 = vxpose.xlu0.b32.cont [12/16] 0.0, 128
      %4994 = vxpose.xlu0.b32.cont [13/16] 0.0, 128
      %4995 = vxpose.xlu0.b32.cont [14/16] 0.0, 128
      %4996 = vxpose.xlu0.b32.cont [15/16] 0.0, 128
      %4997 = vxpose.xlu0.b32.end [16/16] 0.0, 128
      %v4998 = vpop.trf.xlu0
      %v4999 = vpop.trf.xlu0
      %v5000 = vpop.trf.xlu0
      %v5001 = vpop.trf.xlu0
      %v5002 = vpop.trf.xlu0
      %v5003 = vpop.trf.xlu0
      %v5004 = vpop.trf.xlu0
      %v5005 = vpop.trf.xlu0
      %v5006 = vpop.trf.xlu0
      %v5007 = vpop.trf.xlu0
      %v5008 = vpop.trf.xlu0
      %v5009 = vpop.trf.xlu0
      %v5010 = vpop.trf.xlu0
      %v5011 = vpop.trf.xlu0
      %v5012 = vpop.trf.xlu0
      %v5013 = vpop.trf.xlu0
      %v5016 = vlaneseq
      %v5017 = vshrl.u32 %v5016, 7
      %v5018 = vsub.s32 0, %v5017
      %v5019 = vrot.slane %v4998, %v5018
      %5021 = vbcast.lane.b32.xlu0 %v5019, 256
      %v5022 = vpop.permute.xlu0 %5021
      %s5024 = sor.u32 256, 8
      %5025 = vbcast.lane.b32.xlu0 %v5019, %s5024
      %v5026 = vpop.permute.xlu0 %5025
      %v5027 = vlaneseq
      %v5028 = vshrl.u32 %v5027, 7
      %v5029 = vsub.s32 1, %v5028
      %v5030 = vrot.slane %v4998, %v5029
      %5032 = vbcast.lane.b32.xlu0 %v5030, 256
      %v5033 = vpop.permute.xlu0 %5032
      %s5035 = sor.u32 256, 8
      %5036 = vbcast.lane.b32.xlu0 %v5030, %s5035
      %v5037 = vpop.permute.xlu0 %5036
      %v5038 = vlaneseq
      %v5039 = vshrl.u32 %v5038, 7
      %v5040 = vsub.s32 2, %v5039
      %v5041 = vrot.slane %v4998, %v5040
      %5043 = vbcast.lane.b32.xlu0 %v5041, 256
      %v5044 = vpop.permute.xlu0 %5043
      %s5046 = sor.u32 256, 8
      %5047 = vbcast.lane.b32.xlu0 %v5041, %s5046
      %v5048 = vpop.permute.xlu0 %5047
      %v5049 = vlaneseq
      %v5050 = vshrl.u32 %v5049, 7
      %v5051 = vsub.s32 3, %v5050
      %v5052 = vrot.slane %v4998, %v5051
      %5054 = vbcast.lane.b32.xlu0 %v5052, 256
      %v5055 = vpop.permute.xlu0 %5054
      %s5057 = sor.u32 256, 8
      %5058 = vbcast.lane.b32.xlu0 %v5052, %s5057
      %v5059 = vpop.permute.xlu0 %5058
      %v5060 = vlaneseq
      %v5061 = vshrl.u32 %v5060, 7
      %v5062 = vsub.s32 4, %v5061
      %v5063 = vrot.slane %v4998, %v5062
      %5065 = vbcast.lane.b32.xlu0 %v5063, 256
      %v5066 = vpop.permute.xlu0 %5065
      %s5068 = sor.u32 256, 8
      %5069 = vbcast.lane.b32.xlu0 %v5063, %s5068
      %v5070 = vpop.permute.xlu0 %5069
      %v5071 = vlaneseq
      %v5072 = vshrl.u32 %v5071, 7
      %v5073 = vsub.s32 5, %v5072
      %v5074 = vrot.slane %v4998, %v5073
      %5076 = vbcast.lane.b32.xlu0 %v5074, 256
      %v5077 = vpop.permute.xlu0 %5076
      %s5079 = sor.u32 256, 8
      %5080 = vbcast.lane.b32.xlu0 %v5074, %s5079
      %v5081 = vpop.permute.xlu0 %5080
      %v5082 = vlaneseq
      %v5083 = vshrl.u32 %v5082, 7
      %v5084 = vsub.s32 6, %v5083
      %v5085 = vrot.slane %v4998, %v5084
      %5087 = vbcast.lane.b32.xlu0 %v5085, 256
      %v5088 = vpop.permute.xlu0 %5087
      %s5090 = sor.u32 256, 8
      %5091 = vbcast.lane.b32.xlu0 %v5085, %s5090
      %v5092 = vpop.permute.xlu0 %5091
      %v5093 = vlaneseq
      %v5094 = vshrl.u32 %v5093, 7
      %v5095 = vsub.s32 7, %v5094
      %v5096 = vrot.slane %v4998, %v5095
      %5098 = vbcast.lane.b32.xlu0 %v5096, 256
      %v5099 = vpop.permute.xlu0 %5098
      %s5101 = sor.u32 256, 8
      %5102 = vbcast.lane.b32.xlu0 %v5096, %s5101
      %v5103 = vpop.permute.xlu0 %5102
      %v5104 = vlaneseq
      %v5105 = vshrl.u32 %v5104, 7
      %v5106 = vsub.s32 0, %v5105
      %v5107 = vrot.slane %v4999, %v5106
      %5109 = vbcast.lane.b32.xlu0 %v5107, 256
      %v5110 = vpop.permute.xlu0 %5109
      %s5112 = sor.u32 256, 8
      %5113 = vbcast.lane.b32.xlu0 %v5107, %s5112
      %v5114 = vpop.permute.xlu0 %5113
      %v5115 = vlaneseq
      %v5116 = vshrl.u32 %v5115, 7
      %v5117 = vsub.s32 1, %v5116
      %v5118 = vrot.slane %v4999, %v5117
      %5120 = vbcast.lane.b32.xlu0 %v5118, 256
      %v5121 = vpop.permute.xlu0 %5120
      %s5123 = sor.u32 256, 8
      %5124 = vbcast.lane.b32.xlu0 %v5118, %s5123
      %v5125 = vpop.permute.xlu0 %5124
      %v5126 = vlaneseq
      %v5127 = vshrl.u32 %v5126, 7
      %v5128 = vsub.s32 2, %v5127
      %v5129 = vrot.slane %v4999, %v5128
      %5131 = vbcast.lane.b32.xlu0 %v5129, 256
      %v5132 = vpop.permute.xlu0 %5131
      %s5134 = sor.u32 256, 8
      %5135 = vbcast.lane.b32.xlu0 %v5129, %s5134
      %v5136 = vpop.permute.xlu0 %5135
      %v5137 = vlaneseq
      %v5138 = vshrl.u32 %v5137, 7
      %v5139 = vsub.s32 3, %v5138
      %v5140 = vrot.slane %v4999, %v5139
      %5142 = vbcast.lane.b32.xlu0 %v5140, 256
      %v5143 = vpop.permute.xlu0 %5142
      %s5145 = sor.u32 256, 8
      %5146 = vbcast.lane.b32.xlu0 %v5140, %s5145
      %v5147 = vpop.permute.xlu0 %5146
      %v5148 = vlaneseq
      %v5149 = vshrl.u32 %v5148, 7
      %v5150 = vsub.s32 4, %v5149
      %v5151 = vrot.slane %v4999, %v5150
      %5153 = vbcast.lane.b32.xlu0 %v5151, 256
      %v5154 = vpop.permute.xlu0 %5153
      %s5156 = sor.u32 256, 8
      %5157 = vbcast.lane.b32.xlu0 %v5151, %s5156
      %v5158 = vpop.permute.xlu0 %5157
      %v5159 = vlaneseq
      %v5160 = vshrl.u32 %v5159, 7
      %v5161 = vsub.s32 5, %v5160
      %v5162 = vrot.slane %v4999, %v5161
      %5164 = vbcast.lane.b32.xlu0 %v5162, 256
      %v5165 = vpop.permute.xlu0 %5164
      %s5167 = sor.u32 256, 8
      %5168 = vbcast.lane.b32.xlu0 %v5162, %s5167
      %v5169 = vpop.permute.xlu0 %5168
      %v5170 = vlaneseq
      %v5171 = vshrl.u32 %v5170, 7
      %v5172 = vsub.s32 6, %v5171
      %v5173 = vrot.slane %v4999, %v5172
      %5175 = vbcast.lane.b32.xlu0 %v5173, 256
      %v5176 = vpop.permute.xlu0 %5175
      %s5178 = sor.u32 256, 8
      %5179 = vbcast.lane.b32.xlu0 %v5173, %s5178
      %v5180 = vpop.permute.xlu0 %5179
      %v5181 = vlaneseq
      %v5182 = vshrl.u32 %v5181, 7
      %v5183 = vsub.s32 7, %v5182
      %v5184 = vrot.slane %v4999, %v5183
      %5186 = vbcast.lane.b32.xlu0 %v5184, 256
      %v5187 = vpop.permute.xlu0 %5186
      %s5189 = sor.u32 256, 8
      %5190 = vbcast.lane.b32.xlu0 %v5184, %s5189
      %v5191 = vpop.permute.xlu0 %5190
      %v5224 = vadd.f32 %v4600, %v5022
      %v5225 = vadd.f32 %v4603, %v5026
      %v5226 = vadd.f32 %v4606, %v5033
      %v5227 = vadd.f32 %v4609, %v5037
      %v5228 = vadd.f32 %v4612, %v5044
      %v5229 = vadd.f32 %v4615, %v5048
      %v5230 = vadd.f32 %v4618, %v5055
      %v5231 = vadd.f32 %v4621, %v5059
      %v5232 = vadd.f32 %v4624, %v5066
      %v5233 = vadd.f32 %v4627, %v5070
      %v5234 = vadd.f32 %v4630, %v5077
      %v5235 = vadd.f32 %v4633, %v5081
      %v5236 = vadd.f32 %v4636, %v5088
      %v5237 = vadd.f32 %v4639, %v5092
      %v5238 = vadd.f32 %v4642, %v5099
      %v5239 = vadd.f32 %v4645, %v5103
      %v5240 = vadd.f32 %v4648, %v5110
      %v5241 = vadd.f32 %v4651, %v5114
      %v5242 = vadd.f32 %v4654, %v5121
      %v5243 = vadd.f32 %v4657, %v5125
      %v5244 = vadd.f32 %v4660, %v5132
      %v5245 = vadd.f32 %v4663, %v5136
      %v5246 = vadd.f32 %v4666, %v5143
      %v5247 = vadd.f32 %v4669, %v5147
      %v5248 = vadd.f32 %v4672, %v5154
      %v5249 = vadd.f32 %v4675, %v5158
      %v5250 = vadd.f32 %v4678, %v5165
      %v5251 = vadd.f32 %v4681, %v5169
      %v5252 = vadd.f32 %v4684, %v5176
      %v5253 = vadd.f32 %v4687, %v5180
      %v5254 = vadd.f32 %v4690, %v5187
      %v5255 = vadd.f32 %v4693, %v5191
      %v5256 = vrcp.pop %v5224
      %v5257 = vrcp.pop %v5225
      %v5258 = vrcp.pop %v5226
      %v5259 = vrcp.pop %v5227
      %v5260 = vrcp.pop %v5228
      %v5261 = vrcp.pop %v5229
      %v5262 = vrcp.pop %v5230
      %v5263 = vrcp.pop %v5231
      %v5264 = vrcp.pop %v5232
      %v5265 = vrcp.pop %v5233
      %v5266 = vrcp.pop %v5234
      %v5267 = vrcp.pop %v5235
      %v5268 = vrcp.pop %v5236
      %v5269 = vrcp.pop %v5237
      %v5270 = vrcp.pop %v5238
      %v5271 = vrcp.pop %v5239
      %v5272 = vrcp.pop %v5240
      %v5273 = vrcp.pop %v5241
      %v5274 = vrcp.pop %v5242
      %v5275 = vrcp.pop %v5243
      %v5276 = vrcp.pop %v5244
      %v5277 = vrcp.pop %v5245
      %v5278 = vrcp.pop %v5246
      %v5279 = vrcp.pop %v5247
      %v5280 = vrcp.pop %v5248
      %v5281 = vrcp.pop %v5249
      %v5282 = vrcp.pop %v5250
      %v5283 = vrcp.pop %v5251
      %v5284 = vrcp.pop %v5252
      %v5285 = vrcp.pop %v5253
      %v5286 = vrcp.pop %v5254
      %v5287 = vrcp.pop %v5255
      %5289 = vset.pattern.permute.xlu0 0
      %5290 = vperm.xlu0 %5289, %v5256
      %v5291 = vpop.permute.xlu0 %5290
      %5294 = vset.pattern.permute.xlu0 0
      %5295 = vperm.xlu0 %5294, %v5257
      %v5296 = vpop.permute.xlu0 %5295
      %5299 = vset.pattern.permute.xlu0 0
      %5300 = vperm.xlu0 %5299, %v5258
      %v5301 = vpop.permute.xlu0 %5300
      %5304 = vset.pattern.permute.xlu0 0
      %5305 = vperm.xlu0 %5304, %v5259
      %v5306 = vpop.permute.xlu0 %5305
      %5309 = vset.pattern.permute.xlu0 0
      %5310 = vperm.xlu0 %5309, %v5260
      %v5311 = vpop.permute.xlu0 %5310
      %5314 = vset.pattern.permute.xlu0 0
      %5315 = vperm.xlu0 %5314, %v5261
      %v5316 = vpop.permute.xlu0 %5315
      %5319 = vset.pattern.permute.xlu0 0
      %5320 = vperm.xlu0 %5319, %v5262
      %v5321 = vpop.permute.xlu0 %5320
      %5324 = vset.pattern.permute.xlu0 0
      %5325 = vperm.xlu0 %5324, %v5263
      %v5326 = vpop.permute.xlu0 %5325
      %5329 = vset.pattern.permute.xlu0 0
      %5330 = vperm.xlu0 %5329, %v5264
      %v5331 = vpop.permute.xlu0 %5330
      %5334 = vset.pattern.permute.xlu0 0
      %5335 = vperm.xlu0 %5334, %v5265
      %v5336 = vpop.permute.xlu0 %5335
      %5339 = vset.pattern.permute.xlu0 0
      %5340 = vperm.xlu0 %5339, %v5266
      %v5341 = vpop.permute.xlu0 %5340
      %5344 = vset.pattern.permute.xlu0 0
      %5345 = vperm.xlu0 %5344, %v5267
      %v5346 = vpop.permute.xlu0 %5345
      %5349 = vset.pattern.permute.xlu0 0
      %5350 = vperm.xlu0 %5349, %v5268
      %v5351 = vpop.permute.xlu0 %5350
      %5354 = vset.pattern.permute.xlu0 0
      %5355 = vperm.xlu0 %5354, %v5269
      %v5356 = vpop.permute.xlu0 %5355
      %5359 = vset.pattern.permute.xlu0 0
      %5360 = vperm.xlu0 %5359, %v5270
      %v5361 = vpop.permute.xlu0 %5360
      %5364 = vset.pattern.permute.xlu0 0
      %5365 = vperm.xlu0 %5364, %v5271
      %v5366 = vpop.permute.xlu0 %5365
      %5369 = vset.pattern.permute.xlu0 0
      %5370 = vperm.xlu0 %5369, %v5272
      %v5371 = vpop.permute.xlu0 %5370
      %5374 = vset.pattern.permute.xlu0 0
      %5375 = vperm.xlu0 %5374, %v5273
      %v5376 = vpop.permute.xlu0 %5375
      %5379 = vset.pattern.permute.xlu0 0
      %5380 = vperm.xlu0 %5379, %v5274
      %v5381 = vpop.permute.xlu0 %5380
      %5384 = vset.pattern.permute.xlu0 0
      %5385 = vperm.xlu0 %5384, %v5275
      %v5386 = vpop.permute.xlu0 %5385
      %5389 = vset.pattern.permute.xlu0 0
      %5390 = vperm.xlu0 %5389, %v5276
      %v5391 = vpop.permute.xlu0 %5390
      %5394 = vset.pattern.permute.xlu0 0
      %5395 = vperm.xlu0 %5394, %v5277
      %v5396 = vpop.permute.xlu0 %5395
      %5399 = vset.pattern.permute.xlu0 0
      %5400 = vperm.xlu0 %5399, %v5278
      %v5401 = vpop.permute.xlu0 %5400
      %5404 = vset.pattern.permute.xlu0 0
      %5405 = vperm.xlu0 %5404, %v5279
      %v5406 = vpop.permute.xlu0 %5405
      %5409 = vset.pattern.permute.xlu0 0
      %5410 = vperm.xlu0 %5409, %v5280
      %v5411 = vpop.permute.xlu0 %5410
      %5414 = vset.pattern.permute.xlu0 0
      %5415 = vperm.xlu0 %5414, %v5281
      %v5416 = vpop.permute.xlu0 %5415
      %5419 = vset.pattern.permute.xlu0 0
      %5420 = vperm.xlu0 %5419, %v5282
      %v5421 = vpop.permute.xlu0 %5420
      %5424 = vset.pattern.permute.xlu0 0
      %5425 = vperm.xlu0 %5424, %v5283
      %v5426 = vpop.permute.xlu0 %5425
      %5429 = vset.pattern.permute.xlu0 0
      %5430 = vperm.xlu0 %5429, %v5284
      %v5431 = vpop.permute.xlu0 %5430
      %5434 = vset.pattern.permute.xlu0 0
      %5435 = vperm.xlu0 %5434, %v5285
      %v5436 = vpop.permute.xlu0 %5435
      %5439 = vset.pattern.permute.xlu0 0
      %5440 = vperm.xlu0 %5439, %v5286
      %v5441 = vpop.permute.xlu0 %5440
      %5444 = vset.pattern.permute.xlu0 0
      %5445 = vperm.xlu0 %5444, %v5287
      %v5446 = vpop.permute.xlu0 %5445
      %v5448 = vmul.f32 %v4071, %v5291
      %v5449 = vmul.f32 %v4073, %v5296
      %v5450 = vmul.f32 %v4075, %v5301
      %v5451 = vmul.f32 %v4077, %v5306
      %v5452 = vmul.f32 %v4079, %v5311
      %v5453 = vmul.f32 %v4081, %v5316
      %v5454 = vmul.f32 %v4083, %v5321
      %v5455 = vmul.f32 %v4085, %v5326
      %v5456 = vmul.f32 %v4087, %v5331
      %v5457 = vmul.f32 %v4089, %v5336
      %v5458 = vmul.f32 %v4091, %v5341
      %v5459 = vmul.f32 %v4093, %v5346
      %v5460 = vmul.f32 %v4095, %v5351
      %v5461 = vmul.f32 %v4097, %v5356
      %v5462 = vmul.f32 %v4099, %v5361
      %v5463 = vmul.f32 %v4101, %v5366
      %v5464 = vmul.f32 %v4103, %v5371
      %v5465 = vmul.f32 %v4105, %v5376
      %v5466 = vmul.f32 %v4107, %v5381
      %v5467 = vmul.f32 %v4109, %v5386
      %v5468 = vmul.f32 %v4111, %v5391
      %v5469 = vmul.f32 %v4113, %v5396
      %v5470 = vmul.f32 %v4115, %v5401
      %v5471 = vmul.f32 %v4117, %v5406
      %v5472 = vmul.f32 %v4119, %v5411
      %v5473 = vmul.f32 %v4121, %v5416
      %v5474 = vmul.f32 %v4123, %v5421
      %v5475 = vmul.f32 %v4125, %v5426
      %v5476 = vmul.f32 %v4127, %v5431
      %v5477 = vmul.f32 %v4129, %v5436
      %v5478 = vmul.f32 %v4131, %v5441
      %v5479 = vmul.f32 %v4133, %v5446
      %v5480 = vpack.c.bf16 %v5449, %v5448
      %v5481 = vpack.c.bf16 %v5451, %v5450
      %v5482 = vpack.c.bf16 %v5453, %v5452
      %v5483 = vpack.c.bf16 %v5455, %v5454
      %v5484 = vpack.c.bf16 %v5457, %v5456
      %v5485 = vpack.c.bf16 %v5459, %v5458
      %v5486 = vpack.c.bf16 %v5461, %v5460
      %v5487 = vpack.c.bf16 %v5463, %v5462
      %v5488 = vpack.c.bf16 %v5465, %v5464
      %v5489 = vpack.c.bf16 %v5467, %v5466
      %v5490 = vpack.c.bf16 %v5469, %v5468
      %v5491 = vpack.c.bf16 %v5471, %v5470
      %v5492 = vpack.c.bf16 %v5473, %v5472
      %v5493 = vpack.c.bf16 %v5475, %v5474
      %v5494 = vpack.c.bf16 %v5477, %v5476
      %v5495 = vpack.c.bf16 %v5479, %v5478
      %v5496 = vlaneseq
      %v5497 = vshrl.u32 %v5496, 7
      %v5498 = vsub.s32 %v3172, %v5497
      %v5499 = vrot.slane %v5291, %v5498
      %v5500 = vlaneseq
      %v5501 = vshrl.u32 %v5500, 7
      %v5502 = vsub.s32 %v3439, %v5501
      %v5503 = vrot.slane %v5296, %v5502
      %v5504 = vsel %vm3444, %v5503, %v5499
      %v5505 = vlaneseq
      %v5506 = vshrl.u32 %v5505, 7
      %v5507 = vsub.s32 %v3172, %v5506
      %v5508 = vrot.slane %v5301, %v5507
      %v5509 = vlaneseq
      %v5510 = vshrl.u32 %v5509, 7
      %v5511 = vsub.s32 %v3439, %v5510
      %v5512 = vrot.slane %v5306, %v5511
      %v5513 = vsel %vm3444, %v5512, %v5508
      %v5514 = vlaneseq
      %v5515 = vshrl.u32 %v5514, 7
      %v5516 = vsub.s32 %v3172, %v5515
      %v5517 = vrot.slane %v5311, %v5516
      %v5518 = vlaneseq
      %v5519 = vshrl.u32 %v5518, 7
      %v5520 = vsub.s32 %v3439, %v5519
      %v5521 = vrot.slane %v5316, %v5520
      %v5522 = vsel %vm3444, %v5521, %v5517
      %v5523 = vlaneseq
      %v5524 = vshrl.u32 %v5523, 7
      %v5525 = vsub.s32 %v3172, %v5524
      %v5526 = vrot.slane %v5321, %v5525
      %v5527 = vlaneseq
      %v5528 = vshrl.u32 %v5527, 7
      %v5529 = vsub.s32 %v3439, %v5528
      %v5530 = vrot.slane %v5326, %v5529
      %v5531 = vsel %vm3444, %v5530, %v5526
      %v5532 = vlaneseq
      %v5533 = vshrl.u32 %v5532, 7
      %v5534 = vsub.s32 %v3172, %v5533
      %v5535 = vrot.slane %v5331, %v5534
      %v5536 = vlaneseq
      %v5537 = vshrl.u32 %v5536, 7
      %v5538 = vsub.s32 %v3439, %v5537
      %v5539 = vrot.slane %v5336, %v5538
      %v5540 = vsel %vm3444, %v5539, %v5535
      %v5541 = vlaneseq
      %v5542 = vshrl.u32 %v5541, 7
      %v5543 = vsub.s32 %v3172, %v5542
      %v5544 = vrot.slane %v5341, %v5543
      %v5545 = vlaneseq
      %v5546 = vshrl.u32 %v5545, 7
      %v5547 = vsub.s32 %v3439, %v5546
      %v5548 = vrot.slane %v5346, %v5547
      %v5549 = vsel %vm3444, %v5548, %v5544
      %v5550 = vlaneseq
      %v5551 = vshrl.u32 %v5550, 7
      %v5552 = vsub.s32 %v3172, %v5551
      %v5553 = vrot.slane %v5351, %v5552
      %v5554 = vlaneseq
      %v5555 = vshrl.u32 %v5554, 7
      %v5556 = vsub.s32 %v3439, %v5555
      %v5557 = vrot.slane %v5356, %v5556
      %v5558 = vsel %vm3444, %v5557, %v5553
      %v5559 = vlaneseq
      %v5560 = vshrl.u32 %v5559, 7
      %v5561 = vsub.s32 %v3172, %v5560
      %v5562 = vrot.slane %v5361, %v5561
      %v5563 = vlaneseq
      %v5564 = vshrl.u32 %v5563, 7
      %v5565 = vsub.s32 %v3439, %v5564
      %v5566 = vrot.slane %v5366, %v5565
      %v5567 = vsel %vm3444, %v5566, %v5562
      %v5568 = vlaneseq
      %v5569 = vshrl.u32 %v5568, 7
      %v5570 = vsub.s32 %v3172, %v5569
      %v5571 = vrot.slane %v5371, %v5570
      %v5572 = vlaneseq
      %v5573 = vshrl.u32 %v5572, 7
      %v5574 = vsub.s32 %v3439, %v5573
      %v5575 = vrot.slane %v5376, %v5574
      %v5576 = vsel %vm3444, %v5575, %v5571
      %v5577 = vlaneseq
      %v5578 = vshrl.u32 %v5577, 7
      %v5579 = vsub.s32 %v3172, %v5578
      %v5580 = vrot.slane %v5381, %v5579
      %v5581 = vlaneseq
      %v5582 = vshrl.u32 %v5581, 7
      %v5583 = vsub.s32 %v3439, %v5582
      %v5584 = vrot.slane %v5386, %v5583
      %v5585 = vsel %vm3444, %v5584, %v5580
      %v5586 = vlaneseq
      %v5587 = vshrl.u32 %v5586, 7
      %v5588 = vsub.s32 %v3172, %v5587
      %v5589 = vrot.slane %v5391, %v5588
      %v5590 = vlaneseq
      %v5591 = vshrl.u32 %v5590, 7
      %v5592 = vsub.s32 %v3439, %v5591
      %v5593 = vrot.slane %v5396, %v5592
      %v5594 = vsel %vm3444, %v5593, %v5589
      %v5595 = vlaneseq
      %v5596 = vshrl.u32 %v5595, 7
      %v5597 = vsub.s32 %v3172, %v5596
      %v5598 = vrot.slane %v5401, %v5597
      %v5599 = vlaneseq
      %v5600 = vshrl.u32 %v5599, 7
      %v5601 = vsub.s32 %v3439, %v5600
      %v5602 = vrot.slane %v5406, %v5601
      %v5603 = vsel %vm3444, %v5602, %v5598
      %v5604 = vlaneseq
      %v5605 = vshrl.u32 %v5604, 7
      %v5606 = vsub.s32 %v3172, %v5605
      %v5607 = vrot.slane %v5411, %v5606
      %v5608 = vlaneseq
      %v5609 = vshrl.u32 %v5608, 7
      %v5610 = vsub.s32 %v3439, %v5609
      %v5611 = vrot.slane %v5416, %v5610
      %v5612 = vsel %vm3444, %v5611, %v5607
      %v5613 = vlaneseq
      %v5614 = vshrl.u32 %v5613, 7
      %v5615 = vsub.s32 %v3172, %v5614
      %v5616 = vrot.slane %v5421, %v5615
      %v5617 = vlaneseq
      %v5618 = vshrl.u32 %v5617, 7
      %v5619 = vsub.s32 %v3439, %v5618
      %v5620 = vrot.slane %v5426, %v5619
      %v5621 = vsel %vm3444, %v5620, %v5616
      %v5622 = vlaneseq
      %v5623 = vshrl.u32 %v5622, 7
      %v5624 = vsub.s32 %v3172, %v5623
      %v5625 = vrot.slane %v5431, %v5624
      %v5626 = vlaneseq
      %v5627 = vshrl.u32 %v5626, 7
      %v5628 = vsub.s32 %v3439, %v5627
      %v5629 = vrot.slane %v5436, %v5628
      %v5630 = vsel %vm3444, %v5629, %v5625
      %v5631 = vlaneseq
      %v5632 = vshrl.u32 %v5631, 7
      %v5633 = vsub.s32 %v3172, %v5632
      %v5634 = vrot.slane %v5441, %v5633
      %v5635 = vlaneseq
      %v5636 = vshrl.u32 %v5635, 7
      %v5637 = vsub.s32 %v3439, %v5636
      %v5638 = vrot.slane %v5446, %v5637
      %v5639 = vsel %vm3444, %v5638, %v5634
      %v5640 = vsel %vm3581, %v5513, %v5504
      %v5641 = vsel %vm3583, %v5522, %v5640
      %v5642 = vsel %vm3585, %v5531, %v5641
      %v5643 = vsel %vm3587, %v5540, %v5642
      %v5644 = vsel %vm3589, %v5549, %v5643
      %v5645 = vsel %vm3591, %v5558, %v5644
      %v5646 = vsel %vm3593, %v5567, %v5645
      %v5647 = vsel %vm3581, %v5585, %v5576
      %v5648 = vsel %vm3583, %v5594, %v5647
      %v5649 = vsel %vm3585, %v5603, %v5648
      %v5650 = vsel %vm3587, %v5612, %v5649
      %v5651 = vsel %vm3589, %v5621, %v5650
      %v5652 = vsel %vm3591, %v5630, %v5651
      %v5653 = vsel %vm3593, %v5639, %v5652
      %5656 = vxpose.xlu0.b32.start [1/16] %v5646, 128
      %5657 = vxpose.xlu0.b32.cont [2/16] %v5653, 128
      %5658 = vxpose.xlu0.b32.cont [3/16] 0.0, 128
      %5659 = vxpose.xlu0.b32.cont [4/16] 0.0, 128
      %5660 = vxpose.xlu0.b32.cont [5/16] 0.0, 128
      %5661 = vxpose.xlu0.b32.cont [6/16] 0.0, 128
      %5662 = vxpose.xlu0.b32.cont [7/16] 0.0, 128
      %5663 = vxpose.xlu0.b32.cont [8/16] 0.0, 128
      %5664 = vxpose.xlu0.b32.cont [9/16] 0.0, 128
      %5665 = vxpose.xlu0.b32.cont [10/16] 0.0, 128
      %5666 = vxpose.xlu0.b32.cont [11/16] 0.0, 128
      %5667 = vxpose.xlu0.b32.cont [12/16] 0.0, 128
      %5668 = vxpose.xlu0.b32.cont [13/16] 0.0, 128
      %5669 = vxpose.xlu0.b32.cont [14/16] 0.0, 128
      %5670 = vxpose.xlu0.b32.cont [15/16] 0.0, 128
      %5671 = vxpose.xlu0.b32.end [16/16] 0.0, 128
      %v5672 = vpop.trf.xlu0
      %v5673 = vpop.trf.xlu0
      %v5674 = vpop.trf.xlu0
      %v5675 = vpop.trf.xlu0
      %v5676 = vpop.trf.xlu0
      %v5677 = vpop.trf.xlu0
      %v5678 = vpop.trf.xlu0
      %v5679 = vpop.trf.xlu0
      %v5680 = vpop.trf.xlu0
      %v5681 = vpop.trf.xlu0
      %v5682 = vpop.trf.xlu0
      %v5683 = vpop.trf.xlu0
      %v5684 = vpop.trf.xlu0
      %v5685 = vpop.trf.xlu0
      %v5686 = vpop.trf.xlu0
      %v5687 = vpop.trf.xlu0
      %v5688 = vlaneseq
      %v5689 = vshrl.u32 %v5688, 7
      %v5690 = vsub.s32 0, %v5689
      %v5691 = vrot.slane %v5672, %v5690
      %5693 = vbcast.lane.b32.xlu0 %v5691, 256
      %v5694 = vpop.permute.xlu0 %5693
      %s5696 = sor.u32 256, 8
      %5697 = vbcast.lane.b32.xlu0 %v5691, %s5696
      %v5698 = vpop.permute.xlu0 %5697
      %v5699 = vlaneseq
      %v5700 = vshrl.u32 %v5699, 7
      %v5701 = vsub.s32 1, %v5700
      %v5702 = vrot.slane %v5672, %v5701
      %5704 = vbcast.lane.b32.xlu0 %v5702, 256
      %v5705 = vpop.permute.xlu0 %5704
      %s5707 = sor.u32 256, 8
      %5708 = vbcast.lane.b32.xlu0 %v5702, %s5707
      %v5709 = vpop.permute.xlu0 %5708
      %v5710 = vlaneseq
      %v5711 = vshrl.u32 %v5710, 7
      %v5712 = vsub.s32 2, %v5711
      %v5713 = vrot.slane %v5672, %v5712
      %5715 = vbcast.lane.b32.xlu0 %v5713, 256
      %v5716 = vpop.permute.xlu0 %5715
      %s5718 = sor.u32 256, 8
      %5719 = vbcast.lane.b32.xlu0 %v5713, %s5718
      %v5720 = vpop.permute.xlu0 %5719
      %v5721 = vlaneseq
      %v5722 = vshrl.u32 %v5721, 7
      %v5723 = vsub.s32 3, %v5722
      %v5724 = vrot.slane %v5672, %v5723
      %5726 = vbcast.lane.b32.xlu0 %v5724, 256
      %v5727 = vpop.permute.xlu0 %5726
      %s5729 = sor.u32 256, 8
      %5730 = vbcast.lane.b32.xlu0 %v5724, %s5729
      %v5731 = vpop.permute.xlu0 %5730
      %v5732 = vlaneseq
      %v5733 = vshrl.u32 %v5732, 7
      %v5734 = vsub.s32 4, %v5733
      %v5735 = vrot.slane %v5672, %v5734
      %5737 = vbcast.lane.b32.xlu0 %v5735, 256
      %v5738 = vpop.permute.xlu0 %5737
      %s5740 = sor.u32 256, 8
      %5741 = vbcast.lane.b32.xlu0 %v5735, %s5740
      %v5742 = vpop.permute.xlu0 %5741
      %v5743 = vlaneseq
      %v5744 = vshrl.u32 %v5743, 7
      %v5745 = vsub.s32 5, %v5744
      %v5746 = vrot.slane %v5672, %v5745
      %5748 = vbcast.lane.b32.xlu0 %v5746, 256
      %v5749 = vpop.permute.xlu0 %5748
      %s5751 = sor.u32 256, 8
      %5752 = vbcast.lane.b32.xlu0 %v5746, %s5751
      %v5753 = vpop.permute.xlu0 %5752
      %v5754 = vlaneseq
      %v5755 = vshrl.u32 %v5754, 7
      %v5756 = vsub.s32 6, %v5755
      %v5757 = vrot.slane %v5672, %v5756
      %5759 = vbcast.lane.b32.xlu0 %v5757, 256
      %v5760 = vpop.permute.xlu0 %5759
      %s5762 = sor.u32 256, 8
      %5763 = vbcast.lane.b32.xlu0 %v5757, %s5762
      %v5764 = vpop.permute.xlu0 %5763
      %v5765 = vlaneseq
      %v5766 = vshrl.u32 %v5765, 7
      %v5767 = vsub.s32 7, %v5766
      %v5768 = vrot.slane %v5672, %v5767
      %5770 = vbcast.lane.b32.xlu0 %v5768, 256
      %v5771 = vpop.permute.xlu0 %5770
      %s5773 = sor.u32 256, 8
      %5774 = vbcast.lane.b32.xlu0 %v5768, %s5773
      %v5775 = vpop.permute.xlu0 %5774
      %v5776 = vlaneseq
      %v5777 = vshrl.u32 %v5776, 7
      %v5778 = vsub.s32 0, %v5777
      %v5779 = vrot.slane %v5673, %v5778
      %5781 = vbcast.lane.b32.xlu0 %v5779, 256
      %v5782 = vpop.permute.xlu0 %5781
      %s5784 = sor.u32 256, 8
      %5785 = vbcast.lane.b32.xlu0 %v5779, %s5784
      %v5786 = vpop.permute.xlu0 %5785
      %v5787 = vlaneseq
      %v5788 = vshrl.u32 %v5787, 7
      %v5789 = vsub.s32 1, %v5788
      %v5790 = vrot.slane %v5673, %v5789
      %5792 = vbcast.lane.b32.xlu0 %v5790, 256
      %v5793 = vpop.permute.xlu0 %5792
      %s5795 = sor.u32 256, 8
      %5796 = vbcast.lane.b32.xlu0 %v5790, %s5795
      %v5797 = vpop.permute.xlu0 %5796
      %v5798 = vlaneseq
      %v5799 = vshrl.u32 %v5798, 7
      %v5800 = vsub.s32 2, %v5799
      %v5801 = vrot.slane %v5673, %v5800
      %5803 = vbcast.lane.b32.xlu0 %v5801, 256
      %v5804 = vpop.permute.xlu0 %5803
      %s5806 = sor.u32 256, 8
      %5807 = vbcast.lane.b32.xlu0 %v5801, %s5806
      %v5808 = vpop.permute.xlu0 %5807
      %v5809 = vlaneseq
      %v5810 = vshrl.u32 %v5809, 7
      %v5811 = vsub.s32 3, %v5810
      %v5812 = vrot.slane %v5673, %v5811
      %5814 = vbcast.lane.b32.xlu0 %v5812, 256
      %v5815 = vpop.permute.xlu0 %5814
      %s5817 = sor.u32 256, 8
      %5818 = vbcast.lane.b32.xlu0 %v5812, %s5817
      %v5819 = vpop.permute.xlu0 %5818
      %v5820 = vlaneseq
      %v5821 = vshrl.u32 %v5820, 7
      %v5822 = vsub.s32 4, %v5821
      %v5823 = vrot.slane %v5673, %v5822
      %5825 = vbcast.lane.b32.xlu0 %v5823, 256
      %v5826 = vpop.permute.xlu0 %5825
      %s5828 = sor.u32 256, 8
      %5829 = vbcast.lane.b32.xlu0 %v5823, %s5828
      %v5830 = vpop.permute.xlu0 %5829
      %v5831 = vlaneseq
      %v5832 = vshrl.u32 %v5831, 7
      %v5833 = vsub.s32 5, %v5832
      %v5834 = vrot.slane %v5673, %v5833
      %5836 = vbcast.lane.b32.xlu0 %v5834, 256
      %v5837 = vpop.permute.xlu0 %5836
      %s5839 = sor.u32 256, 8
      %5840 = vbcast.lane.b32.xlu0 %v5834, %s5839
      %v5841 = vpop.permute.xlu0 %5840
      %v5842 = vlaneseq
      %v5843 = vshrl.u32 %v5842, 7
      %v5844 = vsub.s32 6, %v5843
      %v5845 = vrot.slane %v5673, %v5844
      %5847 = vbcast.lane.b32.xlu0 %v5845, 256
      %v5848 = vpop.permute.xlu0 %5847
      %s5850 = sor.u32 256, 8
      %5851 = vbcast.lane.b32.xlu0 %v5845, %s5850
      %v5852 = vpop.permute.xlu0 %5851
      %v5853 = vlaneseq
      %v5854 = vshrl.u32 %v5853, 7
      %v5855 = vsub.s32 7, %v5854
      %v5856 = vrot.slane %v5673, %v5855
      %5858 = vbcast.lane.b32.xlu0 %v5856, 256
      %v5859 = vpop.permute.xlu0 %5858
      %s5861 = sor.u32 256, 8
      %5862 = vbcast.lane.b32.xlu0 %v5856, %s5861
      %v5863 = vpop.permute.xlu0 %5862
      %v5864 = vmul.f32 %v4535, %v5694
      %v5865 = vmul.f32 %v4537, %v5698
      %v5866 = vmul.f32 %v4539, %v5705
      %v5867 = vmul.f32 %v4541, %v5709
      %v5868 = vmul.f32 %v4543, %v5716
      %v5869 = vmul.f32 %v4545, %v5720
      %v5870 = vmul.f32 %v4547, %v5727
      %v5871 = vmul.f32 %v4549, %v5731
      %v5872 = vmul.f32 %v4551, %v5738
      %v5873 = vmul.f32 %v4553, %v5742
      %v5874 = vmul.f32 %v4555, %v5749
      %v5875 = vmul.f32 %v4557, %v5753
      %v5876 = vmul.f32 %v4559, %v5760
      %v5877 = vmul.f32 %v4561, %v5764
      %v5878 = vmul.f32 %v4563, %v5771
      %v5879 = vmul.f32 %v4565, %v5775
      %v5880 = vmul.f32 %v4567, %v5782
      %v5881 = vmul.f32 %v4569, %v5786
      %v5882 = vmul.f32 %v4571, %v5793
      %v5883 = vmul.f32 %v4573, %v5797
      %v5884 = vmul.f32 %v4575, %v5804
      %v5885 = vmul.f32 %v4577, %v5808
      %v5886 = vmul.f32 %v4579, %v5815
      %v5887 = vmul.f32 %v4581, %v5819
      %v5888 = vmul.f32 %v4583, %v5826
      %v5889 = vmul.f32 %v4585, %v5830
      %v5890 = vmul.f32 %v4587, %v5837
      %v5891 = vmul.f32 %v4589, %v5841
      %v5892 = vmul.f32 %v4591, %v5848
      %v5893 = vmul.f32 %v4593, %v5852
      %v5894 = vmul.f32 %v4595, %v5859
      %v5895 = vmul.f32 %v4597, %v5863
      %v5896 = vpack.c.bf16 %v5865, %v5864
      %v5897 = vpack.c.bf16 %v5867, %v5866
      %v5898 = vpack.c.bf16 %v5869, %v5868
      %v5899 = vpack.c.bf16 %v5871, %v5870
      %v5900 = vpack.c.bf16 %v5873, %v5872
      %v5901 = vpack.c.bf16 %v5875, %v5874
      %v5902 = vpack.c.bf16 %v5877, %v5876
      %v5903 = vpack.c.bf16 %v5879, %v5878
      %v5904 = vpack.c.bf16 %v5881, %v5880
      %v5905 = vpack.c.bf16 %v5883, %v5882
      %v5906 = vpack.c.bf16 %v5885, %v5884
      %v5907 = vpack.c.bf16 %v5887, %v5886
      %v5908 = vpack.c.bf16 %v5889, %v5888
      %v5909 = vpack.c.bf16 %v5891, %v5890
      %v5910 = vpack.c.bf16 %v5893, %v5892
      %v5911 = vpack.c.bf16 %v5895, %v5894
      %v5912 = vpack.c.bf16 %v945, %v942
      %v5913 = vpack.c.bf16 %v953, %v950
      %v5914 = vpack.c.bf16 %v961, %v958
      %v5915 = vpack.c.bf16 %v969, %v966
      %v5916 = vpack.c.bf16 %v977, %v974
      %v5917 = vpack.c.bf16 %v985, %v982
      %v5918 = vpack.c.bf16 %v993, %v990
      %v5919 = vpack.c.bf16 %v1001, %v998
      %v5920 = vpack.c.bf16 %v1009, %v1006
      %v5921 = vpack.c.bf16 %v1017, %v1014
      %v5922 = vpack.c.bf16 %v1025, %v1022
      %v5923 = vpack.c.bf16 %v1033, %v1030
      %v5924 = vpack.c.bf16 %v1041, %v1038
      %v5925 = vpack.c.bf16 %v1049, %v1046
      %v5926 = vpack.c.bf16 %v1057, %v1054
      %v5927 = vpack.c.bf16 %v1065, %v1062
      %v5929 = vsel %vm506, %v5480, 0
      %5931 = vmatprep.subr.bf16.mxu0 0
      %5932 = vmatpush1.bf16.msra.mxu0 0
      %5933 = vmatprep.subr.bf16.mxu0 0
      %5934 = vmatpush1.bf16.msra.mxu0 0
      %5935 = vmatprep.subr.bf16.mxu0 0
      %5936 = vmatpush1.bf16.msra.mxu0 0
      %5937 = vmatprep.subr.bf16.mxu0 0
      %5938 = vmatpush1.bf16.msra.mxu0 0
      %5939 = vmatprep.subr.bf16.mxu0 0
      %5940 = vmatpush1.bf16.msra.mxu0 0
      %5941 = vmatprep.subr.bf16.mxu0 0
      %5942 = vmatpush1.bf16.msra.mxu0 0
      %5943 = vmatprep.subr.bf16.mxu0 0
      %5944 = vmatpush1.bf16.msra.mxu0 0
      %5945 = vmatprep.subr.bf16.mxu0 0
      %5946 = vmatpush1.bf16.msra.mxu0 %v5912
      %5947 = vmatprep.subr.bf16.mxu0 0
      %5948 = vmatpush2.bf16.msra.mxu0 0
      %5949 = vmatprep.subr.bf16.mxu0 0
      %5950 = vmatpush2.bf16.msra.mxu0 0
      %5951 = vmatprep.subr.bf16.mxu0 0
      %5952 = vmatpush2.bf16.msra.mxu0 0
      %5953 = vmatprep.subr.bf16.mxu0 0
      %5954 = vmatpush2.bf16.msra.mxu0 0
      %5955 = vmatprep.subr.bf16.mxu0 0
      %5956 = vmatpush2.bf16.msra.mxu0 0
      %5957 = vmatprep.subr.bf16.mxu0 0
      %5958 = vmatpush2.bf16.msra.mxu0 0
      %5959 = vmatprep.subr.bf16.mxu0 0
      %5960 = vmatpush2.bf16.msra.mxu0 0
      %5961 = vmatprep.subr.bf16.mxu0 0
      %5962 = vmatpush2.bf16.msra.mxu0 0
      %5963 = vmatprep.mubr.bf16.mxu0 0
      %5964 = vmatmul.mubr.bf16.gmra.mxu0 %v5929
      %v5965 = vpop.f32.mrf.mxu0
      %v5966 = vadd.f32 0.0, %v5965
      %v5967 = vpop.f32.mrf.mxu0
      %v5968 = vpop.f32.mrf.mxu0
      %v5969 = vadd.f32 0.0, %v5968
      %v5970 = vpop.f32.mrf.mxu0
      %5971 = vdwg.mxu0
      %v5973 = vsel %vm506, %v5481, 0
      %5975 = vmatprep.subr.bf16.mxu0 0
      %5976 = vmatpush1.bf16.msra.mxu0 0
      %5977 = vmatprep.subr.bf16.mxu0 0
      %5978 = vmatpush1.bf16.msra.mxu0 0
      %5979 = vmatprep.subr.bf16.mxu0 0
      %5980 = vmatpush1.bf16.msra.mxu0 0
      %5981 = vmatprep.subr.bf16.mxu0 0
      %5982 = vmatpush1.bf16.msra.mxu0 0
      %5983 = vmatprep.subr.bf16.mxu0 0
      %5984 = vmatpush1.bf16.msra.mxu0 0
      %5985 = vmatprep.subr.bf16.mxu0 0
      %5986 = vmatpush1.bf16.msra.mxu0 0
      %5987 = vmatprep.subr.bf16.mxu0 0
      %5988 = vmatpush1.bf16.msra.mxu0 0
      %5989 = vmatprep.subr.bf16.mxu0 0
      %5990 = vmatpush1.bf16.msra.mxu0 %v5913
      %5991 = vmatprep.subr.bf16.mxu0 0
      %5992 = vmatpush2.bf16.msra.mxu0 0
      %5993 = vmatprep.subr.bf16.mxu0 0
      %5994 = vmatpush2.bf16.msra.mxu0 0
      %5995 = vmatprep.subr.bf16.mxu0 0
      %5996 = vmatpush2.bf16.msra.mxu0 0
      %5997 = vmatprep.subr.bf16.mxu0 0
      %5998 = vmatpush2.bf16.msra.mxu0 0
      %5999 = vmatprep.subr.bf16.mxu0 0
      %6000 = vmatpush2.bf16.msra.mxu0 0
      %6001 = vmatprep.subr.bf16.mxu0 0
      %6002 = vmatpush2.bf16.msra.mxu0 0
      %6003 = vmatprep.subr.bf16.mxu0 0
      %6004 = vmatpush2.bf16.msra.mxu0 0
      %6005 = vmatprep.subr.bf16.mxu0 0
      %6006 = vmatpush2.bf16.msra.mxu0 0
      %6007 = vmatprep.mubr.bf16.mxu0 0
      %6008 = vmatmul.mubr.bf16.gmra.mxu0 %v5973
      %v6009 = vpop.f32.mrf.mxu0
      %v6010 = vadd.f32 0.0, %v6009
      %v6011 = vpop.f32.mrf.mxu0
      %v6012 = vpop.f32.mrf.mxu0
      %v6013 = vadd.f32 0.0, %v6012
      %v6014 = vpop.f32.mrf.mxu0
      %6015 = vdwg.mxu0
      %v6017 = vsel %vm506, %v5482, 0
      %6019 = vmatprep.subr.bf16.mxu0 0
      %6020 = vmatpush1.bf16.msra.mxu0 0
      %6021 = vmatprep.subr.bf16.mxu0 0
      %6022 = vmatpush1.bf16.msra.mxu0 0
      %6023 = vmatprep.subr.bf16.mxu0 0
      %6024 = vmatpush1.bf16.msra.mxu0 0
      %6025 = vmatprep.subr.bf16.mxu0 0
      %6026 = vmatpush1.bf16.msra.mxu0 0
      %6027 = vmatprep.subr.bf16.mxu0 0
      %6028 = vmatpush1.bf16.msra.mxu0 0
      %6029 = vmatprep.subr.bf16.mxu0 0
      %6030 = vmatpush1.bf16.msra.mxu0 0
      %6031 = vmatprep.subr.bf16.mxu0 0
      %6032 = vmatpush1.bf16.msra.mxu0 0
      %6033 = vmatprep.subr.bf16.mxu0 0
      %6034 = vmatpush1.bf16.msra.mxu0 %v5914
      %6035 = vmatprep.subr.bf16.mxu0 0
      %6036 = vmatpush2.bf16.msra.mxu0 0
      %6037 = vmatprep.subr.bf16.mxu0 0
      %6038 = vmatpush2.bf16.msra.mxu0 0
      %6039 = vmatprep.subr.bf16.mxu0 0
      %6040 = vmatpush2.bf16.msra.mxu0 0
      %6041 = vmatprep.subr.bf16.mxu0 0
      %6042 = vmatpush2.bf16.msra.mxu0 0
      %6043 = vmatprep.subr.bf16.mxu0 0
      %6044 = vmatpush2.bf16.msra.mxu0 0
      %6045 = vmatprep.subr.bf16.mxu0 0
      %6046 = vmatpush2.bf16.msra.mxu0 0
      %6047 = vmatprep.subr.bf16.mxu0 0
      %6048 = vmatpush2.bf16.msra.mxu0 0
      %6049 = vmatprep.subr.bf16.mxu0 0
      %6050 = vmatpush2.bf16.msra.mxu0 0
      %6051 = vmatprep.mubr.bf16.mxu0 0
      %6052 = vmatmul.mubr.bf16.gmra.mxu0 %v6017
      %v6053 = vpop.f32.mrf.mxu0
      %v6054 = vadd.f32 0.0, %v6053
      %v6055 = vpop.f32.mrf.mxu0
      %v6056 = vpop.f32.mrf.mxu0
      %v6057 = vadd.f32 0.0, %v6056
      %v6058 = vpop.f32.mrf.mxu0
      %6059 = vdwg.mxu0
      %v6061 = vsel %vm506, %v5483, 0
      %6063 = vmatprep.subr.bf16.mxu0 0
      %6064 = vmatpush1.bf16.msra.mxu0 0
      %6065 = vmatprep.subr.bf16.mxu0 0
      %6066 = vmatpush1.bf16.msra.mxu0 0
      %6067 = vmatprep.subr.bf16.mxu0 0
      %6068 = vmatpush1.bf16.msra.mxu0 0
      %6069 = vmatprep.subr.bf16.mxu0 0
      %6070 = vmatpush1.bf16.msra.mxu0 0
      %6071 = vmatprep.subr.bf16.mxu0 0
      %6072 = vmatpush1.bf16.msra.mxu0 0
      %6073 = vmatprep.subr.bf16.mxu0 0
      %6074 = vmatpush1.bf16.msra.mxu0 0
      %6075 = vmatprep.subr.bf16.mxu0 0
      %6076 = vmatpush1.bf16.msra.mxu0 0
      %6077 = vmatprep.subr.bf16.mxu0 0
      %6078 = vmatpush1.bf16.msra.mxu0 %v5915
      %6079 = vmatprep.subr.bf16.mxu0 0
      %6080 = vmatpush2.bf16.msra.mxu0 0
      %6081 = vmatprep.subr.bf16.mxu0 0
      %6082 = vmatpush2.bf16.msra.mxu0 0
      %6083 = vmatprep.subr.bf16.mxu0 0
      %6084 = vmatpush2.bf16.msra.mxu0 0
      %6085 = vmatprep.subr.bf16.mxu0 0
      %6086 = vmatpush2.bf16.msra.mxu0 0
      %6087 = vmatprep.subr.bf16.mxu0 0
      %6088 = vmatpush2.bf16.msra.mxu0 0
      %6089 = vmatprep.subr.bf16.mxu0 0
      %6090 = vmatpush2.bf16.msra.mxu0 0
      %6091 = vmatprep.subr.bf16.mxu0 0
      %6092 = vmatpush2.bf16.msra.mxu0 0
      %6093 = vmatprep.subr.bf16.mxu0 0
      %6094 = vmatpush2.bf16.msra.mxu0 0
      %6095 = vmatprep.mubr.bf16.mxu0 0
      %6096 = vmatmul.mubr.bf16.gmra.mxu0 %v6061
      %v6097 = vpop.f32.mrf.mxu0
      %v6098 = vadd.f32 0.0, %v6097
      %v6099 = vpop.f32.mrf.mxu0
      %v6100 = vpop.f32.mrf.mxu0
      %v6101 = vadd.f32 0.0, %v6100
      %v6102 = vpop.f32.mrf.mxu0
      %6103 = vdwg.mxu0
      %v6105 = vsel %vm506, %v5484, 0
      %6107 = vmatprep.subr.bf16.mxu0 0
      %6108 = vmatpush1.bf16.msra.mxu0 0
      %6109 = vmatprep.subr.bf16.mxu0 0
      %6110 = vmatpush1.bf16.msra.mxu0 0
      %6111 = vmatprep.subr.bf16.mxu0 0
      %6112 = vmatpush1.bf16.msra.mxu0 0
      %6113 = vmatprep.subr.bf16.mxu0 0
      %6114 = vmatpush1.bf16.msra.mxu0 0
      %6115 = vmatprep.subr.bf16.mxu0 0
      %6116 = vmatpush1.bf16.msra.mxu0 0
      %6117 = vmatprep.subr.bf16.mxu0 0
      %6118 = vmatpush1.bf16.msra.mxu0 0
      %6119 = vmatprep.subr.bf16.mxu0 0
      %6120 = vmatpush1.bf16.msra.mxu0 0
      %6121 = vmatprep.subr.bf16.mxu0 0
      %6122 = vmatpush1.bf16.msra.mxu0 %v5916
      %6123 = vmatprep.subr.bf16.mxu0 0
      %6124 = vmatpush2.bf16.msra.mxu0 0
      %6125 = vmatprep.subr.bf16.mxu0 0
      %6126 = vmatpush2.bf16.msra.mxu0 0
      %6127 = vmatprep.subr.bf16.mxu0 0
      %6128 = vmatpush2.bf16.msra.mxu0 0
      %6129 = vmatprep.subr.bf16.mxu0 0
      %6130 = vmatpush2.bf16.msra.mxu0 0
      %6131 = vmatprep.subr.bf16.mxu0 0
      %6132 = vmatpush2.bf16.msra.mxu0 0
      %6133 = vmatprep.subr.bf16.mxu0 0
      %6134 = vmatpush2.bf16.msra.mxu0 0
      %6135 = vmatprep.subr.bf16.mxu0 0
      %6136 = vmatpush2.bf16.msra.mxu0 0
      %6137 = vmatprep.subr.bf16.mxu0 0
      %6138 = vmatpush2.bf16.msra.mxu0 0
      %6139 = vmatprep.mubr.bf16.mxu0 0
      %6140 = vmatmul.mubr.bf16.gmra.mxu0 %v6105
      %v6141 = vpop.f32.mrf.mxu0
      %v6142 = vadd.f32 0.0, %v6141
      %v6143 = vpop.f32.mrf.mxu0
      %v6144 = vpop.f32.mrf.mxu0
      %v6145 = vadd.f32 0.0, %v6144
      %v6146 = vpop.f32.mrf.mxu0
      %6147 = vdwg.mxu0
      %v6149 = vsel %vm506, %v5485, 0
      %6151 = vmatprep.subr.bf16.mxu0 0
      %6152 = vmatpush1.bf16.msra.mxu0 0
      %6153 = vmatprep.subr.bf16.mxu0 0
      %6154 = vmatpush1.bf16.msra.mxu0 0
      %6155 = vmatprep.subr.bf16.mxu0 0
      %6156 = vmatpush1.bf16.msra.mxu0 0
      %6157 = vmatprep.subr.bf16.mxu0 0
      %6158 = vmatpush1.bf16.msra.mxu0 0
      %6159 = vmatprep.subr.bf16.mxu0 0
      %6160 = vmatpush1.bf16.msra.mxu0 0
      %6161 = vmatprep.subr.bf16.mxu0 0
      %6162 = vmatpush1.bf16.msra.mxu0 0
      %6163 = vmatprep.subr.bf16.mxu0 0
      %6164 = vmatpush1.bf16.msra.mxu0 0
      %6165 = vmatprep.subr.bf16.mxu0 0
      %6166 = vmatpush1.bf16.msra.mxu0 %v5917
      %6167 = vmatprep.subr.bf16.mxu0 0
      %6168 = vmatpush2.bf16.msra.mxu0 0
      %6169 = vmatprep.subr.bf16.mxu0 0
      %6170 = vmatpush2.bf16.msra.mxu0 0
      %6171 = vmatprep.subr.bf16.mxu0 0
      %6172 = vmatpush2.bf16.msra.mxu0 0
      %6173 = vmatprep.subr.bf16.mxu0 0
      %6174 = vmatpush2.bf16.msra.mxu0 0
      %6175 = vmatprep.subr.bf16.mxu0 0
      %6176 = vmatpush2.bf16.msra.mxu0 0
      %6177 = vmatprep.subr.bf16.mxu0 0
      %6178 = vmatpush2.bf16.msra.mxu0 0
      %6179 = vmatprep.subr.bf16.mxu0 0
      %6180 = vmatpush2.bf16.msra.mxu0 0
      %6181 = vmatprep.subr.bf16.mxu0 0
      %6182 = vmatpush2.bf16.msra.mxu0 0
      %6183 = vmatprep.mubr.bf16.mxu0 0
      %6184 = vmatmul.mubr.bf16.gmra.mxu0 %v6149
      %v6185 = vpop.f32.mrf.mxu0
      %v6186 = vadd.f32 0.0, %v6185
      %v6187 = vpop.f32.mrf.mxu0
      %v6188 = vpop.f32.mrf.mxu0
      %v6189 = vadd.f32 0.0, %v6188
      %v6190 = vpop.f32.mrf.mxu0
      %6191 = vdwg.mxu0
      %v6193 = vsel %vm506, %v5486, 0
      %6195 = vmatprep.subr.bf16.mxu0 0
      %6196 = vmatpush1.bf16.msra.mxu0 0
      %6197 = vmatprep.subr.bf16.mxu0 0
      %6198 = vmatpush1.bf16.msra.mxu0 0
      %6199 = vmatprep.subr.bf16.mxu0 0
      %6200 = vmatpush1.bf16.msra.mxu0 0
      %6201 = vmatprep.subr.bf16.mxu0 0
      %6202 = vmatpush1.bf16.msra.mxu0 0
      %6203 = vmatprep.subr.bf16.mxu0 0
      %6204 = vmatpush1.bf16.msra.mxu0 0
      %6205 = vmatprep.subr.bf16.mxu0 0
      %6206 = vmatpush1.bf16.msra.mxu0 0
      %6207 = vmatprep.subr.bf16.mxu0 0
      %6208 = vmatpush1.bf16.msra.mxu0 0
      %6209 = vmatprep.subr.bf16.mxu0 0
      %6210 = vmatpush1.bf16.msra.mxu0 %v5918
      %6211 = vmatprep.subr.bf16.mxu0 0
      %6212 = vmatpush2.bf16.msra.mxu0 0
      %6213 = vmatprep.subr.bf16.mxu0 0
      %6214 = vmatpush2.bf16.msra.mxu0 0
      %6215 = vmatprep.subr.bf16.mxu0 0
      %6216 = vmatpush2.bf16.msra.mxu0 0
      %6217 = vmatprep.subr.bf16.mxu0 0
      %6218 = vmatpush2.bf16.msra.mxu0 0
      %6219 = vmatprep.subr.bf16.mxu0 0
      %6220 = vmatpush2.bf16.msra.mxu0 0
      %6221 = vmatprep.subr.bf16.mxu0 0
      %6222 = vmatpush2.bf16.msra.mxu0 0
      %6223 = vmatprep.subr.bf16.mxu0 0
      %6224 = vmatpush2.bf16.msra.mxu0 0
      %6225 = vmatprep.subr.bf16.mxu0 0
      %6226 = vmatpush2.bf16.msra.mxu0 0
      %6227 = vmatprep.mubr.bf16.mxu0 0
      %6228 = vmatmul.mubr.bf16.gmra.mxu0 %v6193
      %v6229 = vpop.f32.mrf.mxu0
      %v6230 = vadd.f32 0.0, %v6229
      %v6231 = vpop.f32.mrf.mxu0
      %v6232 = vpop.f32.mrf.mxu0
      %v6233 = vadd.f32 0.0, %v6232
      %v6234 = vpop.f32.mrf.mxu0
      %6235 = vdwg.mxu0
      %v6237 = vsel %vm506, %v5487, 0
      %6239 = vmatprep.subr.bf16.mxu0 0
      %6240 = vmatpush1.bf16.msra.mxu0 0
      %6241 = vmatprep.subr.bf16.mxu0 0
      %6242 = vmatpush1.bf16.msra.mxu0 0
      %6243 = vmatprep.subr.bf16.mxu0 0
      %6244 = vmatpush1.bf16.msra.mxu0 0
      %6245 = vmatprep.subr.bf16.mxu0 0
      %6246 = vmatpush1.bf16.msra.mxu0 0
      %6247 = vmatprep.subr.bf16.mxu0 0
      %6248 = vmatpush1.bf16.msra.mxu0 0
      %6249 = vmatprep.subr.bf16.mxu0 0
      %6250 = vmatpush1.bf16.msra.mxu0 0
      %6251 = vmatprep.subr.bf16.mxu0 0
      %6252 = vmatpush1.bf16.msra.mxu0 0
      %6253 = vmatprep.subr.bf16.mxu0 0
      %6254 = vmatpush1.bf16.msra.mxu0 %v5919
      %6255 = vmatprep.subr.bf16.mxu0 0
      %6256 = vmatpush2.bf16.msra.mxu0 0
      %6257 = vmatprep.subr.bf16.mxu0 0
      %6258 = vmatpush2.bf16.msra.mxu0 0
      %6259 = vmatprep.subr.bf16.mxu0 0
      %6260 = vmatpush2.bf16.msra.mxu0 0
      %6261 = vmatprep.subr.bf16.mxu0 0
      %6262 = vmatpush2.bf16.msra.mxu0 0
      %6263 = vmatprep.subr.bf16.mxu0 0
      %6264 = vmatpush2.bf16.msra.mxu0 0
      %6265 = vmatprep.subr.bf16.mxu0 0
      %6266 = vmatpush2.bf16.msra.mxu0 0
      %6267 = vmatprep.subr.bf16.mxu0 0
      %6268 = vmatpush2.bf16.msra.mxu0 0
      %6269 = vmatprep.subr.bf16.mxu0 0
      %6270 = vmatpush2.bf16.msra.mxu0 0
      %6271 = vmatprep.mubr.bf16.mxu0 0
      %6272 = vmatmul.mubr.bf16.gmra.mxu0 %v6237
      %v6273 = vpop.f32.mrf.mxu0
      %v6274 = vadd.f32 0.0, %v6273
      %v6275 = vpop.f32.mrf.mxu0
      %v6276 = vpop.f32.mrf.mxu0
      %v6277 = vadd.f32 0.0, %v6276
      %v6278 = vpop.f32.mrf.mxu0
      %6279 = vdwg.mxu0
      %v6281 = vsel %vm506, %v5488, 0
      %6283 = vmatprep.subr.bf16.mxu0 0
      %6284 = vmatpush1.bf16.msra.mxu0 0
      %6285 = vmatprep.subr.bf16.mxu0 0
      %6286 = vmatpush1.bf16.msra.mxu0 0
      %6287 = vmatprep.subr.bf16.mxu0 0
      %6288 = vmatpush1.bf16.msra.mxu0 0
      %6289 = vmatprep.subr.bf16.mxu0 0
      %6290 = vmatpush1.bf16.msra.mxu0 0
      %6291 = vmatprep.subr.bf16.mxu0 0
      %6292 = vmatpush1.bf16.msra.mxu0 0
      %6293 = vmatprep.subr.bf16.mxu0 0
      %6294 = vmatpush1.bf16.msra.mxu0 0
      %6295 = vmatprep.subr.bf16.mxu0 0
      %6296 = vmatpush1.bf16.msra.mxu0 0
      %6297 = vmatprep.subr.bf16.mxu0 0
      %6298 = vmatpush1.bf16.msra.mxu0 %v5920
      %6299 = vmatprep.subr.bf16.mxu0 0
      %6300 = vmatpush2.bf16.msra.mxu0 0
      %6301 = vmatprep.subr.bf16.mxu0 0
      %6302 = vmatpush2.bf16.msra.mxu0 0
      %6303 = vmatprep.subr.bf16.mxu0 0
      %6304 = vmatpush2.bf16.msra.mxu0 0
      %6305 = vmatprep.subr.bf16.mxu0 0
      %6306 = vmatpush2.bf16.msra.mxu0 0
      %6307 = vmatprep.subr.bf16.mxu0 0
      %6308 = vmatpush2.bf16.msra.mxu0 0
      %6309 = vmatprep.subr.bf16.mxu0 0
      %6310 = vmatpush2.bf16.msra.mxu0 0
      %6311 = vmatprep.subr.bf16.mxu0 0
      %6312 = vmatpush2.bf16.msra.mxu0 0
      %6313 = vmatprep.subr.bf16.mxu0 0
      %6314 = vmatpush2.bf16.msra.mxu0 0
      %6315 = vmatprep.mubr.bf16.mxu0 0
      %6316 = vmatmul.mubr.bf16.gmra.mxu0 %v6281
      %v6317 = vpop.f32.mrf.mxu0
      %v6318 = vadd.f32 0.0, %v6317
      %v6319 = vpop.f32.mrf.mxu0
      %v6320 = vpop.f32.mrf.mxu0
      %v6321 = vadd.f32 0.0, %v6320
      %v6322 = vpop.f32.mrf.mxu0
      %6323 = vdwg.mxu0
      %v6325 = vsel %vm506, %v5489, 0
      %6327 = vmatprep.subr.bf16.mxu0 0
      %6328 = vmatpush1.bf16.msra.mxu0 0
      %6329 = vmatprep.subr.bf16.mxu0 0
      %6330 = vmatpush1.bf16.msra.mxu0 0
      %6331 = vmatprep.subr.bf16.mxu0 0
      %6332 = vmatpush1.bf16.msra.mxu0 0
      %6333 = vmatprep.subr.bf16.mxu0 0
      %6334 = vmatpush1.bf16.msra.mxu0 0
      %6335 = vmatprep.subr.bf16.mxu0 0
      %6336 = vmatpush1.bf16.msra.mxu0 0
      %6337 = vmatprep.subr.bf16.mxu0 0
      %6338 = vmatpush1.bf16.msra.mxu0 0
      %6339 = vmatprep.subr.bf16.mxu0 0
      %6340 = vmatpush1.bf16.msra.mxu0 0
      %6341 = vmatprep.subr.bf16.mxu0 0
      %6342 = vmatpush1.bf16.msra.mxu0 %v5921
      %6343 = vmatprep.subr.bf16.mxu0 0
      %6344 = vmatpush2.bf16.msra.mxu0 0
      %6345 = vmatprep.subr.bf16.mxu0 0
      %6346 = vmatpush2.bf16.msra.mxu0 0
      %6347 = vmatprep.subr.bf16.mxu0 0
      %6348 = vmatpush2.bf16.msra.mxu0 0
      %6349 = vmatprep.subr.bf16.mxu0 0
      %6350 = vmatpush2.bf16.msra.mxu0 0
      %6351 = vmatprep.subr.bf16.mxu0 0
      %6352 = vmatpush2.bf16.msra.mxu0 0
      %6353 = vmatprep.subr.bf16.mxu0 0
      %6354 = vmatpush2.bf16.msra.mxu0 0
      %6355 = vmatprep.subr.bf16.mxu0 0
      %6356 = vmatpush2.bf16.msra.mxu0 0
      %6357 = vmatprep.subr.bf16.mxu0 0
      %6358 = vmatpush2.bf16.msra.mxu0 0
      %6359 = vmatprep.mubr.bf16.mxu0 0
      %6360 = vmatmul.mubr.bf16.gmra.mxu0 %v6325
      %v6361 = vpop.f32.mrf.mxu0
      %v6362 = vadd.f32 0.0, %v6361
      %v6363 = vpop.f32.mrf.mxu0
      %v6364 = vpop.f32.mrf.mxu0
      %v6365 = vadd.f32 0.0, %v6364
      %v6366 = vpop.f32.mrf.mxu0
      %6367 = vdwg.mxu0
      %v6369 = vsel %vm506, %v5490, 0
      %6371 = vmatprep.subr.bf16.mxu0 0
      %6372 = vmatpush1.bf16.msra.mxu0 0
      %6373 = vmatprep.subr.bf16.mxu0 0
      %6374 = vmatpush1.bf16.msra.mxu0 0
      %6375 = vmatprep.subr.bf16.mxu0 0
      %6376 = vmatpush1.bf16.msra.mxu0 0
      %6377 = vmatprep.subr.bf16.mxu0 0
      %6378 = vmatpush1.bf16.msra.mxu0 0
      %6379 = vmatprep.subr.bf16.mxu0 0
      %6380 = vmatpush1.bf16.msra.mxu0 0
      %6381 = vmatprep.subr.bf16.mxu0 0
      %6382 = vmatpush1.bf16.msra.mxu0 0
      %6383 = vmatprep.subr.bf16.mxu0 0
      %6384 = vmatpush1.bf16.msra.mxu0 0
      %6385 = vmatprep.subr.bf16.mxu0 0
      %6386 = vmatpush1.bf16.msra.mxu0 %v5922
      %6387 = vmatprep.subr.bf16.mxu0 0
      %6388 = vmatpush2.bf16.msra.mxu0 0
      %6389 = vmatprep.subr.bf16.mxu0 0
      %6390 = vmatpush2.bf16.msra.mxu0 0
      %6391 = vmatprep.subr.bf16.mxu0 0
      %6392 = vmatpush2.bf16.msra.mxu0 0
      %6393 = vmatprep.subr.bf16.mxu0 0
      %6394 = vmatpush2.bf16.msra.mxu0 0
      %6395 = vmatprep.subr.bf16.mxu0 0
      %6396 = vmatpush2.bf16.msra.mxu0 0
      %6397 = vmatprep.subr.bf16.mxu0 0
      %6398 = vmatpush2.bf16.msra.mxu0 0
      %6399 = vmatprep.subr.bf16.mxu0 0
      %6400 = vmatpush2.bf16.msra.mxu0 0
      %6401 = vmatprep.subr.bf16.mxu0 0
      %6402 = vmatpush2.bf16.msra.mxu0 0
      %6403 = vmatprep.mubr.bf16.mxu0 0
      %6404 = vmatmul.mubr.bf16.gmra.mxu0 %v6369
      %v6405 = vpop.f32.mrf.mxu0
      %v6406 = vadd.f32 0.0, %v6405
      %v6407 = vpop.f32.mrf.mxu0
      %v6408 = vpop.f32.mrf.mxu0
      %v6409 = vadd.f32 0.0, %v6408
      %v6410 = vpop.f32.mrf.mxu0
      %6411 = vdwg.mxu0
      %v6413 = vsel %vm506, %v5491, 0
      %6415 = vmatprep.subr.bf16.mxu0 0
      %6416 = vmatpush1.bf16.msra.mxu0 0
      %6417 = vmatprep.subr.bf16.mxu0 0
      %6418 = vmatpush1.bf16.msra.mxu0 0
      %6419 = vmatprep.subr.bf16.mxu0 0
      %6420 = vmatpush1.bf16.msra.mxu0 0
      %6421 = vmatprep.subr.bf16.mxu0 0
      %6422 = vmatpush1.bf16.msra.mxu0 0
      %6423 = vmatprep.subr.bf16.mxu0 0
      %6424 = vmatpush1.bf16.msra.mxu0 0
      %6425 = vmatprep.subr.bf16.mxu0 0
      %6426 = vmatpush1.bf16.msra.mxu0 0
      %6427 = vmatprep.subr.bf16.mxu0 0
      %6428 = vmatpush1.bf16.msra.mxu0 0
      %6429 = vmatprep.subr.bf16.mxu0 0
      %6430 = vmatpush1.bf16.msra.mxu0 %v5923
      %6431 = vmatprep.subr.bf16.mxu0 0
      %6432 = vmatpush2.bf16.msra.mxu0 0
      %6433 = vmatprep.subr.bf16.mxu0 0
      %6434 = vmatpush2.bf16.msra.mxu0 0
      %6435 = vmatprep.subr.bf16.mxu0 0
      %6436 = vmatpush2.bf16.msra.mxu0 0
      %6437 = vmatprep.subr.bf16.mxu0 0
      %6438 = vmatpush2.bf16.msra.mxu0 0
      %6439 = vmatprep.subr.bf16.mxu0 0
      %6440 = vmatpush2.bf16.msra.mxu0 0
      %6441 = vmatprep.subr.bf16.mxu0 0
      %6442 = vmatpush2.bf16.msra.mxu0 0
      %6443 = vmatprep.subr.bf16.mxu0 0
      %6444 = vmatpush2.bf16.msra.mxu0 0
      %6445 = vmatprep.subr.bf16.mxu0 0
      %6446 = vmatpush2.bf16.msra.mxu0 0
      %6447 = vmatprep.mubr.bf16.mxu0 0
      %6448 = vmatmul.mubr.bf16.gmra.mxu0 %v6413
      %v6449 = vpop.f32.mrf.mxu0
      %v6450 = vadd.f32 0.0, %v6449
      %v6451 = vpop.f32.mrf.mxu0
      %v6452 = vpop.f32.mrf.mxu0
      %v6453 = vadd.f32 0.0, %v6452
      %v6454 = vpop.f32.mrf.mxu0
      %6455 = vdwg.mxu0
      %v6457 = vsel %vm506, %v5492, 0
      %6459 = vmatprep.subr.bf16.mxu0 0
      %6460 = vmatpush1.bf16.msra.mxu0 0
      %6461 = vmatprep.subr.bf16.mxu0 0
      %6462 = vmatpush1.bf16.msra.mxu0 0
      %6463 = vmatprep.subr.bf16.mxu0 0
      %6464 = vmatpush1.bf16.msra.mxu0 0
      %6465 = vmatprep.subr.bf16.mxu0 0
      %6466 = vmatpush1.bf16.msra.mxu0 0
      %6467 = vmatprep.subr.bf16.mxu0 0
      %6468 = vmatpush1.bf16.msra.mxu0 0
      %6469 = vmatprep.subr.bf16.mxu0 0
      %6470 = vmatpush1.bf16.msra.mxu0 0
      %6471 = vmatprep.subr.bf16.mxu0 0
      %6472 = vmatpush1.bf16.msra.mxu0 0
      %6473 = vmatprep.subr.bf16.mxu0 0
      %6474 = vmatpush1.bf16.msra.mxu0 %v5924
      %6475 = vmatprep.subr.bf16.mxu0 0
      %6476 = vmatpush2.bf16.msra.mxu0 0
      %6477 = vmatprep.subr.bf16.mxu0 0
      %6478 = vmatpush2.bf16.msra.mxu0 0
      %6479 = vmatprep.subr.bf16.mxu0 0
      %6480 = vmatpush2.bf16.msra.mxu0 0
      %6481 = vmatprep.subr.bf16.mxu0 0
      %6482 = vmatpush2.bf16.msra.mxu0 0
      %6483 = vmatprep.subr.bf16.mxu0 0
      %6484 = vmatpush2.bf16.msra.mxu0 0
      %6485 = vmatprep.subr.bf16.mxu0 0
      %6486 = vmatpush2.bf16.msra.mxu0 0
      %6487 = vmatprep.subr.bf16.mxu0 0
      %6488 = vmatpush2.bf16.msra.mxu0 0
      %6489 = vmatprep.subr.bf16.mxu0 0
      %6490 = vmatpush2.bf16.msra.mxu0 0
      %6491 = vmatprep.mubr.bf16.mxu0 0
      %6492 = vmatmul.mubr.bf16.gmra.mxu0 %v6457
      %v6493 = vpop.f32.mrf.mxu0
      %v6494 = vadd.f32 0.0, %v6493
      %v6495 = vpop.f32.mrf.mxu0
      %v6496 = vpop.f32.mrf.mxu0
      %v6497 = vadd.f32 0.0, %v6496
      %v6498 = vpop.f32.mrf.mxu0
      %6499 = vdwg.mxu0
      %v6501 = vsel %vm506, %v5493, 0
      %6503 = vmatprep.subr.bf16.mxu0 0
      %6504 = vmatpush1.bf16.msra.mxu0 0
      %6505 = vmatprep.subr.bf16.mxu0 0
      %6506 = vmatpush1.bf16.msra.mxu0 0
      %6507 = vmatprep.subr.bf16.mxu0 0
      %6508 = vmatpush1.bf16.msra.mxu0 0
      %6509 = vmatprep.subr.bf16.mxu0 0
      %6510 = vmatpush1.bf16.msra.mxu0 0
      %6511 = vmatprep.subr.bf16.mxu0 0
      %6512 = vmatpush1.bf16.msra.mxu0 0
      %6513 = vmatprep.subr.bf16.mxu0 0
      %6514 = vmatpush1.bf16.msra.mxu0 0
      %6515 = vmatprep.subr.bf16.mxu0 0
      %6516 = vmatpush1.bf16.msra.mxu0 0
      %6517 = vmatprep.subr.bf16.mxu0 0
      %6518 = vmatpush1.bf16.msra.mxu0 %v5925
      %6519 = vmatprep.subr.bf16.mxu0 0
      %6520 = vmatpush2.bf16.msra.mxu0 0
      %6521 = vmatprep.subr.bf16.mxu0 0
      %6522 = vmatpush2.bf16.msra.mxu0 0
      %6523 = vmatprep.subr.bf16.mxu0 0
      %6524 = vmatpush2.bf16.msra.mxu0 0
      %6525 = vmatprep.subr.bf16.mxu0 0
      %6526 = vmatpush2.bf16.msra.mxu0 0
      %6527 = vmatprep.subr.bf16.mxu0 0
      %6528 = vmatpush2.bf16.msra.mxu0 0
      %6529 = vmatprep.subr.bf16.mxu0 0
      %6530 = vmatpush2.bf16.msra.mxu0 0
      %6531 = vmatprep.subr.bf16.mxu0 0
      %6532 = vmatpush2.bf16.msra.mxu0 0
      %6533 = vmatprep.subr.bf16.mxu0 0
      %6534 = vmatpush2.bf16.msra.mxu0 0
      %6535 = vmatprep.mubr.bf16.mxu0 0
      %6536 = vmatmul.mubr.bf16.gmra.mxu0 %v6501
      %v6537 = vpop.f32.mrf.mxu0
      %v6538 = vadd.f32 0.0, %v6537
      %v6539 = vpop.f32.mrf.mxu0
      %v6540 = vpop.f32.mrf.mxu0
      %v6541 = vadd.f32 0.0, %v6540
      %v6542 = vpop.f32.mrf.mxu0
      %6543 = vdwg.mxu0
      %v6545 = vsel %vm506, %v5494, 0
      %6547 = vmatprep.subr.bf16.mxu0 0
      %6548 = vmatpush1.bf16.msra.mxu0 0
      %6549 = vmatprep.subr.bf16.mxu0 0
      %6550 = vmatpush1.bf16.msra.mxu0 0
      %6551 = vmatprep.subr.bf16.mxu0 0
      %6552 = vmatpush1.bf16.msra.mxu0 0
      %6553 = vmatprep.subr.bf16.mxu0 0
      %6554 = vmatpush1.bf16.msra.mxu0 0
      %6555 = vmatprep.subr.bf16.mxu0 0
      %6556 = vmatpush1.bf16.msra.mxu0 0
      %6557 = vmatprep.subr.bf16.mxu0 0
      %6558 = vmatpush1.bf16.msra.mxu0 0
      %6559 = vmatprep.subr.bf16.mxu0 0
      %6560 = vmatpush1.bf16.msra.mxu0 0
      %6561 = vmatprep.subr.bf16.mxu0 0
      %6562 = vmatpush1.bf16.msra.mxu0 %v5926
      %6563 = vmatprep.subr.bf16.mxu0 0
      %6564 = vmatpush2.bf16.msra.mxu0 0
      %6565 = vmatprep.subr.bf16.mxu0 0
      %6566 = vmatpush2.bf16.msra.mxu0 0
      %6567 = vmatprep.subr.bf16.mxu0 0
      %6568 = vmatpush2.bf16.msra.mxu0 0
      %6569 = vmatprep.subr.bf16.mxu0 0
      %6570 = vmatpush2.bf16.msra.mxu0 0
      %6571 = vmatprep.subr.bf16.mxu0 0
      %6572 = vmatpush2.bf16.msra.mxu0 0
      %6573 = vmatprep.subr.bf16.mxu0 0
      %6574 = vmatpush2.bf16.msra.mxu0 0
      %6575 = vmatprep.subr.bf16.mxu0 0
      %6576 = vmatpush2.bf16.msra.mxu0 0
      %6577 = vmatprep.subr.bf16.mxu0 0
      %6578 = vmatpush2.bf16.msra.mxu0 0
      %6579 = vmatprep.mubr.bf16.mxu0 0
      %6580 = vmatmul.mubr.bf16.gmra.mxu0 %v6545
      %v6581 = vpop.f32.mrf.mxu0
      %v6582 = vadd.f32 0.0, %v6581
      %v6583 = vpop.f32.mrf.mxu0
      %v6584 = vpop.f32.mrf.mxu0
      %v6585 = vadd.f32 0.0, %v6584
      %v6586 = vpop.f32.mrf.mxu0
      %6587 = vdwg.mxu0
      %v6589 = vsel %vm506, %v5495, 0
      %6591 = vmatprep.subr.bf16.mxu0 0
      %6592 = vmatpush1.bf16.msra.mxu0 0
      %6593 = vmatprep.subr.bf16.mxu0 0
      %6594 = vmatpush1.bf16.msra.mxu0 0
      %6595 = vmatprep.subr.bf16.mxu0 0
      %6596 = vmatpush1.bf16.msra.mxu0 0
      %6597 = vmatprep.subr.bf16.mxu0 0
      %6598 = vmatpush1.bf16.msra.mxu0 0
      %6599 = vmatprep.subr.bf16.mxu0 0
      %6600 = vmatpush1.bf16.msra.mxu0 0
      %6601 = vmatprep.subr.bf16.mxu0 0
      %6602 = vmatpush1.bf16.msra.mxu0 0
      %6603 = vmatprep.subr.bf16.mxu0 0
      %6604 = vmatpush1.bf16.msra.mxu0 0
      %6605 = vmatprep.subr.bf16.mxu0 0
      %6606 = vmatpush1.bf16.msra.mxu0 %v5927
      %6607 = vmatprep.subr.bf16.mxu0 0
      %6608 = vmatpush2.bf16.msra.mxu0 0
      %6609 = vmatprep.subr.bf16.mxu0 0
      %6610 = vmatpush2.bf16.msra.mxu0 0
      %6611 = vmatprep.subr.bf16.mxu0 0
      %6612 = vmatpush2.bf16.msra.mxu0 0
      %6613 = vmatprep.subr.bf16.mxu0 0
      %6614 = vmatpush2.bf16.msra.mxu0 0
      %6615 = vmatprep.subr.bf16.mxu0 0
      %6616 = vmatpush2.bf16.msra.mxu0 0
      %6617 = vmatprep.subr.bf16.mxu0 0
      %6618 = vmatpush2.bf16.msra.mxu0 0
      %6619 = vmatprep.subr.bf16.mxu0 0
      %6620 = vmatpush2.bf16.msra.mxu0 0
      %6621 = vmatprep.subr.bf16.mxu0 0
      %6622 = vmatpush2.bf16.msra.mxu0 0
      %6623 = vmatprep.mubr.bf16.mxu0 0
      %6624 = vmatmul.mubr.bf16.gmra.mxu0 %v6589
      %v6625 = vpop.f32.mrf.mxu0
      %v6626 = vadd.f32 0.0, %v6625
      %v6627 = vpop.f32.mrf.mxu0
      %v6628 = vpop.f32.mrf.mxu0
      %v6629 = vadd.f32 0.0, %v6628
      %v6630 = vpop.f32.mrf.mxu0
      %6631 = vdwg.mxu0
      %v6632 = vpack.c.bf16 %v1476, %v1473
      %v6633 = vpack.c.bf16 %v1484, %v1481
      %v6634 = vpack.c.bf16 %v1492, %v1489
      %v6635 = vpack.c.bf16 %v1500, %v1497
      %v6636 = vpack.c.bf16 %v1508, %v1505
      %v6637 = vpack.c.bf16 %v1516, %v1513
      %v6638 = vpack.c.bf16 %v1524, %v1521
      %v6639 = vpack.c.bf16 %v1532, %v1529
      %v6640 = vpack.c.bf16 %v1540, %v1537
      %v6641 = vpack.c.bf16 %v1548, %v1545
      %v6642 = vpack.c.bf16 %v1556, %v1553
      %v6643 = vpack.c.bf16 %v1564, %v1561
      %v6644 = vpack.c.bf16 %v1572, %v1569
      %v6645 = vpack.c.bf16 %v1580, %v1577
      %v6646 = vpack.c.bf16 %v1588, %v1585
      %v6647 = vpack.c.bf16 %v1596, %v1593
      %v6649 = vsel %vm506, %v5896, 0
      %6651 = vmatprep.subr.bf16.mxu0 0
      %6652 = vmatpush1.bf16.msra.mxu0 0
      %6653 = vmatprep.subr.bf16.mxu0 0
      %6654 = vmatpush1.bf16.msra.mxu0 0
      %6655 = vmatprep.subr.bf16.mxu0 0
      %6656 = vmatpush1.bf16.msra.mxu0 0
      %6657 = vmatprep.subr.bf16.mxu0 0
      %6658 = vmatpush1.bf16.msra.mxu0 0
      %6659 = vmatprep.subr.bf16.mxu0 0
      %6660 = vmatpush1.bf16.msra.mxu0 0
      %6661 = vmatprep.subr.bf16.mxu0 0
      %6662 = vmatpush1.bf16.msra.mxu0 0
      %6663 = vmatprep.subr.bf16.mxu0 0
      %6664 = vmatpush1.bf16.msra.mxu0 0
      %6665 = vmatprep.subr.bf16.mxu0 0
      %6666 = vmatpush1.bf16.msra.mxu0 %v6632
      %6667 = vmatprep.subr.bf16.mxu0 0
      %6668 = vmatpush2.bf16.msra.mxu0 0
      %6669 = vmatprep.subr.bf16.mxu0 0
      %6670 = vmatpush2.bf16.msra.mxu0 0
      %6671 = vmatprep.subr.bf16.mxu0 0
      %6672 = vmatpush2.bf16.msra.mxu0 0
      %6673 = vmatprep.subr.bf16.mxu0 0
      %6674 = vmatpush2.bf16.msra.mxu0 0
      %6675 = vmatprep.subr.bf16.mxu0 0
      %6676 = vmatpush2.bf16.msra.mxu0 0
      %6677 = vmatprep.subr.bf16.mxu0 0
      %6678 = vmatpush2.bf16.msra.mxu0 0
      %6679 = vmatprep.subr.bf16.mxu0 0
      %6680 = vmatpush2.bf16.msra.mxu0 0
      %6681 = vmatprep.subr.bf16.mxu0 0
      %6682 = vmatpush2.bf16.msra.mxu0 0
      %6683 = vmatprep.mubr.bf16.mxu0 0
      %6684 = vmatmul.mubr.bf16.gmra.mxu0 %v6649
      %v6685 = vpop.f32.mrf.mxu0
      %v6686 = vadd.f32 0.0, %v6685
      %v6687 = vpop.f32.mrf.mxu0
      %v6688 = vpop.f32.mrf.mxu0
      %v6689 = vadd.f32 0.0, %v6688
      %v6690 = vpop.f32.mrf.mxu0
      %6691 = vdwg.mxu0
      %v6693 = vsel %vm506, %v5897, 0
      %6695 = vmatprep.subr.bf16.mxu0 0
      %6696 = vmatpush1.bf16.msra.mxu0 0
      %6697 = vmatprep.subr.bf16.mxu0 0
      %6698 = vmatpush1.bf16.msra.mxu0 0
      %6699 = vmatprep.subr.bf16.mxu0 0
      %6700 = vmatpush1.bf16.msra.mxu0 0
      %6701 = vmatprep.subr.bf16.mxu0 0
      %6702 = vmatpush1.bf16.msra.mxu0 0
      %6703 = vmatprep.subr.bf16.mxu0 0
      %6704 = vmatpush1.bf16.msra.mxu0 0
      %6705 = vmatprep.subr.bf16.mxu0 0
      %6706 = vmatpush1.bf16.msra.mxu0 0
      %6707 = vmatprep.subr.bf16.mxu0 0
      %6708 = vmatpush1.bf16.msra.mxu0 0
      %6709 = vmatprep.subr.bf16.mxu0 0
      %6710 = vmatpush1.bf16.msra.mxu0 %v6633
      %6711 = vmatprep.subr.bf16.mxu0 0
      %6712 = vmatpush2.bf16.msra.mxu0 0
      %6713 = vmatprep.subr.bf16.mxu0 0
      %6714 = vmatpush2.bf16.msra.mxu0 0
      %6715 = vmatprep.subr.bf16.mxu0 0
      %6716 = vmatpush2.bf16.msra.mxu0 0
      %6717 = vmatprep.subr.bf16.mxu0 0
      %6718 = vmatpush2.bf16.msra.mxu0 0
      %6719 = vmatprep.subr.bf16.mxu0 0
      %6720 = vmatpush2.bf16.msra.mxu0 0
      %6721 = vmatprep.subr.bf16.mxu0 0
      %6722 = vmatpush2.bf16.msra.mxu0 0
      %6723 = vmatprep.subr.bf16.mxu0 0
      %6724 = vmatpush2.bf16.msra.mxu0 0
      %6725 = vmatprep.subr.bf16.mxu0 0
      %6726 = vmatpush2.bf16.msra.mxu0 0
      %6727 = vmatprep.mubr.bf16.mxu0 0
      %6728 = vmatmul.mubr.bf16.gmra.mxu0 %v6693
      %v6729 = vpop.f32.mrf.mxu0
      %v6730 = vadd.f32 0.0, %v6729
      %v6731 = vpop.f32.mrf.mxu0
      %v6732 = vpop.f32.mrf.mxu0
      %v6733 = vadd.f32 0.0, %v6732
      %v6734 = vpop.f32.mrf.mxu0
      %6735 = vdwg.mxu0
      %v6737 = vsel %vm506, %v5898, 0
      %6739 = vmatprep.subr.bf16.mxu0 0
      %6740 = vmatpush1.bf16.msra.mxu0 0
      %6741 = vmatprep.subr.bf16.mxu0 0
      %6742 = vmatpush1.bf16.msra.mxu0 0
      %6743 = vmatprep.subr.bf16.mxu0 0
      %6744 = vmatpush1.bf16.msra.mxu0 0
      %6745 = vmatprep.subr.bf16.mxu0 0
      %6746 = vmatpush1.bf16.msra.mxu0 0
      %6747 = vmatprep.subr.bf16.mxu0 0
      %6748 = vmatpush1.bf16.msra.mxu0 0
      %6749 = vmatprep.subr.bf16.mxu0 0
      %6750 = vmatpush1.bf16.msra.mxu0 0
      %6751 = vmatprep.subr.bf16.mxu0 0
      %6752 = vmatpush1.bf16.msra.mxu0 0
      %6753 = vmatprep.subr.bf16.mxu0 0
      %6754 = vmatpush1.bf16.msra.mxu0 %v6634
      %6755 = vmatprep.subr.bf16.mxu0 0
      %6756 = vmatpush2.bf16.msra.mxu0 0
      %6757 = vmatprep.subr.bf16.mxu0 0
      %6758 = vmatpush2.bf16.msra.mxu0 0
      %6759 = vmatprep.subr.bf16.mxu0 0
      %6760 = vmatpush2.bf16.msra.mxu0 0
      %6761 = vmatprep.subr.bf16.mxu0 0
      %6762 = vmatpush2.bf16.msra.mxu0 0
      %6763 = vmatprep.subr.bf16.mxu0 0
      %6764 = vmatpush2.bf16.msra.mxu0 0
      %6765 = vmatprep.subr.bf16.mxu0 0
      %6766 = vmatpush2.bf16.msra.mxu0 0
      %6767 = vmatprep.subr.bf16.mxu0 0
      %6768 = vmatpush2.bf16.msra.mxu0 0
      %6769 = vmatprep.subr.bf16.mxu0 0
      %6770 = vmatpush2.bf16.msra.mxu0 0
      %6771 = vmatprep.mubr.bf16.mxu0 0
      %6772 = vmatmul.mubr.bf16.gmra.mxu0 %v6737
      %v6773 = vpop.f32.mrf.mxu0
      %v6774 = vadd.f32 0.0, %v6773
      %v6775 = vpop.f32.mrf.mxu0
      %v6776 = vpop.f32.mrf.mxu0
      %v6777 = vadd.f32 0.0, %v6776
      %v6778 = vpop.f32.mrf.mxu0
      %6779 = vdwg.mxu0
      %v6781 = vsel %vm506, %v5899, 0
      %6783 = vmatprep.subr.bf16.mxu0 0
      %6784 = vmatpush1.bf16.msra.mxu0 0
      %6785 = vmatprep.subr.bf16.mxu0 0
      %6786 = vmatpush1.bf16.msra.mxu0 0
      %6787 = vmatprep.subr.bf16.mxu0 0
      %6788 = vmatpush1.bf16.msra.mxu0 0
      %6789 = vmatprep.subr.bf16.mxu0 0
      %6790 = vmatpush1.bf16.msra.mxu0 0
      %6791 = vmatprep.subr.bf16.mxu0 0
      %6792 = vmatpush1.bf16.msra.mxu0 0
      %6793 = vmatprep.subr.bf16.mxu0 0
      %6794 = vmatpush1.bf16.msra.mxu0 0
      %6795 = vmatprep.subr.bf16.mxu0 0
      %6796 = vmatpush1.bf16.msra.mxu0 0
      %6797 = vmatprep.subr.bf16.mxu0 0
      %6798 = vmatpush1.bf16.msra.mxu0 %v6635
      %6799 = vmatprep.subr.bf16.mxu0 0
      %6800 = vmatpush2.bf16.msra.mxu0 0
      %6801 = vmatprep.subr.bf16.mxu0 0
      %6802 = vmatpush2.bf16.msra.mxu0 0
      %6803 = vmatprep.subr.bf16.mxu0 0
      %6804 = vmatpush2.bf16.msra.mxu0 0
      %6805 = vmatprep.subr.bf16.mxu0 0
      %6806 = vmatpush2.bf16.msra.mxu0 0
      %6807 = vmatprep.subr.bf16.mxu0 0
      %6808 = vmatpush2.bf16.msra.mxu0 0
      %6809 = vmatprep.subr.bf16.mxu0 0
      %6810 = vmatpush2.bf16.msra.mxu0 0
      %6811 = vmatprep.subr.bf16.mxu0 0
      %6812 = vmatpush2.bf16.msra.mxu0 0
      %6813 = vmatprep.subr.bf16.mxu0 0
      %6814 = vmatpush2.bf16.msra.mxu0 0
      %6815 = vmatprep.mubr.bf16.mxu0 0
      %6816 = vmatmul.mubr.bf16.gmra.mxu0 %v6781
      %v6817 = vpop.f32.mrf.mxu0
      %v6818 = vadd.f32 0.0, %v6817
      %v6819 = vpop.f32.mrf.mxu0
      %v6820 = vpop.f32.mrf.mxu0
      %v6821 = vadd.f32 0.0, %v6820
      %v6822 = vpop.f32.mrf.mxu0
      %6823 = vdwg.mxu0
      %v6825 = vsel %vm506, %v5900, 0
      %6827 = vmatprep.subr.bf16.mxu0 0
      %6828 = vmatpush1.bf16.msra.mxu0 0
      %6829 = vmatprep.subr.bf16.mxu0 0
      %6830 = vmatpush1.bf16.msra.mxu0 0
      %6831 = vmatprep.subr.bf16.mxu0 0
      %6832 = vmatpush1.bf16.msra.mxu0 0
      %6833 = vmatprep.subr.bf16.mxu0 0
      %6834 = vmatpush1.bf16.msra.mxu0 0
      %6835 = vmatprep.subr.bf16.mxu0 0
      %6836 = vmatpush1.bf16.msra.mxu0 0
      %6837 = vmatprep.subr.bf16.mxu0 0
      %6838 = vmatpush1.bf16.msra.mxu0 0
      %6839 = vmatprep.subr.bf16.mxu0 0
      %6840 = vmatpush1.bf16.msra.mxu0 0
      %6841 = vmatprep.subr.bf16.mxu0 0
      %6842 = vmatpush1.bf16.msra.mxu0 %v6636
      %6843 = vmatprep.subr.bf16.mxu0 0
      %6844 = vmatpush2.bf16.msra.mxu0 0
      %6845 = vmatprep.subr.bf16.mxu0 0
      %6846 = vmatpush2.bf16.msra.mxu0 0
      %6847 = vmatprep.subr.bf16.mxu0 0
      %6848 = vmatpush2.bf16.msra.mxu0 0
      %6849 = vmatprep.subr.bf16.mxu0 0
      %6850 = vmatpush2.bf16.msra.mxu0 0
      %6851 = vmatprep.subr.bf16.mxu0 0
      %6852 = vmatpush2.bf16.msra.mxu0 0
      %6853 = vmatprep.subr.bf16.mxu0 0
      %6854 = vmatpush2.bf16.msra.mxu0 0
      %6855 = vmatprep.subr.bf16.mxu0 0
      %6856 = vmatpush2.bf16.msra.mxu0 0
      %6857 = vmatprep.subr.bf16.mxu0 0
      %6858 = vmatpush2.bf16.msra.mxu0 0
      %6859 = vmatprep.mubr.bf16.mxu0 0
      %6860 = vmatmul.mubr.bf16.gmra.mxu0 %v6825
      %v6861 = vpop.f32.mrf.mxu0
      %v6862 = vadd.f32 0.0, %v6861
      %v6863 = vpop.f32.mrf.mxu0
      %v6864 = vpop.f32.mrf.mxu0
      %v6865 = vadd.f32 0.0, %v6864
      %v6866 = vpop.f32.mrf.mxu0
      %6867 = vdwg.mxu0
      %v6869 = vsel %vm506, %v5901, 0
      %6871 = vmatprep.subr.bf16.mxu0 0
      %6872 = vmatpush1.bf16.msra.mxu0 0
      %6873 = vmatprep.subr.bf16.mxu0 0
      %6874 = vmatpush1.bf16.msra.mxu0 0
      %6875 = vmatprep.subr.bf16.mxu0 0
      %6876 = vmatpush1.bf16.msra.mxu0 0
      %6877 = vmatprep.subr.bf16.mxu0 0
      %6878 = vmatpush1.bf16.msra.mxu0 0
      %6879 = vmatprep.subr.bf16.mxu0 0
      %6880 = vmatpush1.bf16.msra.mxu0 0
      %6881 = vmatprep.subr.bf16.mxu0 0
      %6882 = vmatpush1.bf16.msra.mxu0 0
      %6883 = vmatprep.subr.bf16.mxu0 0
      %6884 = vmatpush1.bf16.msra.mxu0 0
      %6885 = vmatprep.subr.bf16.mxu0 0
      %6886 = vmatpush1.bf16.msra.mxu0 %v6637
      %6887 = vmatprep.subr.bf16.mxu0 0
      %6888 = vmatpush2.bf16.msra.mxu0 0
      %6889 = vmatprep.subr.bf16.mxu0 0
      %6890 = vmatpush2.bf16.msra.mxu0 0
      %6891 = vmatprep.subr.bf16.mxu0 0
      %6892 = vmatpush2.bf16.msra.mxu0 0
      %6893 = vmatprep.subr.bf16.mxu0 0
      %6894 = vmatpush2.bf16.msra.mxu0 0
      %6895 = vmatprep.subr.bf16.mxu0 0
      %6896 = vmatpush2.bf16.msra.mxu0 0
      %6897 = vmatprep.subr.bf16.mxu0 0
      %6898 = vmatpush2.bf16.msra.mxu0 0
      %6899 = vmatprep.subr.bf16.mxu0 0
      %6900 = vmatpush2.bf16.msra.mxu0 0
      %6901 = vmatprep.subr.bf16.mxu0 0
      %6902 = vmatpush2.bf16.msra.mxu0 0
      %6903 = vmatprep.mubr.bf16.mxu0 0
      %6904 = vmatmul.mubr.bf16.gmra.mxu0 %v6869
      %v6905 = vpop.f32.mrf.mxu0
      %v6906 = vadd.f32 0.0, %v6905
      %v6907 = vpop.f32.mrf.mxu0
      %v6908 = vpop.f32.mrf.mxu0
      %v6909 = vadd.f32 0.0, %v6908
      %v6910 = vpop.f32.mrf.mxu0
      %6911 = vdwg.mxu0
      %v6913 = vsel %vm506, %v5902, 0
      %6915 = vmatprep.subr.bf16.mxu0 0
      %6916 = vmatpush1.bf16.msra.mxu0 0
      %6917 = vmatprep.subr.bf16.mxu0 0
      %6918 = vmatpush1.bf16.msra.mxu0 0
      %6919 = vmatprep.subr.bf16.mxu0 0
      %6920 = vmatpush1.bf16.msra.mxu0 0
      %6921 = vmatprep.subr.bf16.mxu0 0
      %6922 = vmatpush1.bf16.msra.mxu0 0
      %6923 = vmatprep.subr.bf16.mxu0 0
      %6924 = vmatpush1.bf16.msra.mxu0 0
      %6925 = vmatprep.subr.bf16.mxu0 0
      %6926 = vmatpush1.bf16.msra.mxu0 0
      %6927 = vmatprep.subr.bf16.mxu0 0
      %6928 = vmatpush1.bf16.msra.mxu0 0
      %6929 = vmatprep.subr.bf16.mxu0 0
      %6930 = vmatpush1.bf16.msra.mxu0 %v6638
      %6931 = vmatprep.subr.bf16.mxu0 0
      %6932 = vmatpush2.bf16.msra.mxu0 0
      %6933 = vmatprep.subr.bf16.mxu0 0
      %6934 = vmatpush2.bf16.msra.mxu0 0
      %6935 = vmatprep.subr.bf16.mxu0 0
      %6936 = vmatpush2.bf16.msra.mxu0 0
      %6937 = vmatprep.subr.bf16.mxu0 0
      %6938 = vmatpush2.bf16.msra.mxu0 0
      %6939 = vmatprep.subr.bf16.mxu0 0
      %6940 = vmatpush2.bf16.msra.mxu0 0
      %6941 = vmatprep.subr.bf16.mxu0 0
      %6942 = vmatpush2.bf16.msra.mxu0 0
      %6943 = vmatprep.subr.bf16.mxu0 0
      %6944 = vmatpush2.bf16.msra.mxu0 0
      %6945 = vmatprep.subr.bf16.mxu0 0
      %6946 = vmatpush2.bf16.msra.mxu0 0
      %6947 = vmatprep.mubr.bf16.mxu0 0
      %6948 = vmatmul.mubr.bf16.gmra.mxu0 %v6913
      %v6949 = vpop.f32.mrf.mxu0
      %v6950 = vadd.f32 0.0, %v6949
      %v6951 = vpop.f32.mrf.mxu0
      %v6952 = vpop.f32.mrf.mxu0
      %v6953 = vadd.f32 0.0, %v6952
      %v6954 = vpop.f32.mrf.mxu0
      %6955 = vdwg.mxu0
      %v6957 = vsel %vm506, %v5903, 0
      %6959 = vmatprep.subr.bf16.mxu0 0
      %6960 = vmatpush1.bf16.msra.mxu0 0
      %6961 = vmatprep.subr.bf16.mxu0 0
      %6962 = vmatpush1.bf16.msra.mxu0 0
      %6963 = vmatprep.subr.bf16.mxu0 0
      %6964 = vmatpush1.bf16.msra.mxu0 0
      %6965 = vmatprep.subr.bf16.mxu0 0
      %6966 = vmatpush1.bf16.msra.mxu0 0
      %6967 = vmatprep.subr.bf16.mxu0 0
      %6968 = vmatpush1.bf16.msra.mxu0 0
      %6969 = vmatprep.subr.bf16.mxu0 0
      %6970 = vmatpush1.bf16.msra.mxu0 0
      %6971 = vmatprep.subr.bf16.mxu0 0
      %6972 = vmatpush1.bf16.msra.mxu0 0
      %6973 = vmatprep.subr.bf16.mxu0 0
      %6974 = vmatpush1.bf16.msra.mxu0 %v6639
      %6975 = vmatprep.subr.bf16.mxu0 0
      %6976 = vmatpush2.bf16.msra.mxu0 0
      %6977 = vmatprep.subr.bf16.mxu0 0
      %6978 = vmatpush2.bf16.msra.mxu0 0
      %6979 = vmatprep.subr.bf16.mxu0 0
      %6980 = vmatpush2.bf16.msra.mxu0 0
      %6981 = vmatprep.subr.bf16.mxu0 0
      %6982 = vmatpush2.bf16.msra.mxu0 0
      %6983 = vmatprep.subr.bf16.mxu0 0
      %6984 = vmatpush2.bf16.msra.mxu0 0
      %6985 = vmatprep.subr.bf16.mxu0 0
      %6986 = vmatpush2.bf16.msra.mxu0 0
      %6987 = vmatprep.subr.bf16.mxu0 0
      %6988 = vmatpush2.bf16.msra.mxu0 0
      %6989 = vmatprep.subr.bf16.mxu0 0
      %6990 = vmatpush2.bf16.msra.mxu0 0
      %6991 = vmatprep.mubr.bf16.mxu0 0
      %6992 = vmatmul.mubr.bf16.gmra.mxu0 %v6957
      %v6993 = vpop.f32.mrf.mxu0
      %v6994 = vadd.f32 0.0, %v6993
      %v6995 = vpop.f32.mrf.mxu0
      %v6996 = vpop.f32.mrf.mxu0
      %v6997 = vadd.f32 0.0, %v6996
      %v6998 = vpop.f32.mrf.mxu0
      %6999 = vdwg.mxu0
      %v7001 = vsel %vm506, %v5904, 0
      %7003 = vmatprep.subr.bf16.mxu0 0
      %7004 = vmatpush1.bf16.msra.mxu0 0
      %7005 = vmatprep.subr.bf16.mxu0 0
      %7006 = vmatpush1.bf16.msra.mxu0 0
      %7007 = vmatprep.subr.bf16.mxu0 0
      %7008 = vmatpush1.bf16.msra.mxu0 0
      %7009 = vmatprep.subr.bf16.mxu0 0
      %7010 = vmatpush1.bf16.msra.mxu0 0
      %7011 = vmatprep.subr.bf16.mxu0 0
      %7012 = vmatpush1.bf16.msra.mxu0 0
      %7013 = vmatprep.subr.bf16.mxu0 0
      %7014 = vmatpush1.bf16.msra.mxu0 0
      %7015 = vmatprep.subr.bf16.mxu0 0
      %7016 = vmatpush1.bf16.msra.mxu0 0
      %7017 = vmatprep.subr.bf16.mxu0 0
      %7018 = vmatpush1.bf16.msra.mxu0 %v6640
      %7019 = vmatprep.subr.bf16.mxu0 0
      %7020 = vmatpush2.bf16.msra.mxu0 0
      %7021 = vmatprep.subr.bf16.mxu0 0
      %7022 = vmatpush2.bf16.msra.mxu0 0
      %7023 = vmatprep.subr.bf16.mxu0 0
      %7024 = vmatpush2.bf16.msra.mxu0 0
      %7025 = vmatprep.subr.bf16.mxu0 0
      %7026 = vmatpush2.bf16.msra.mxu0 0
      %7027 = vmatprep.subr.bf16.mxu0 0
      %7028 = vmatpush2.bf16.msra.mxu0 0
      %7029 = vmatprep.subr.bf16.mxu0 0
      %7030 = vmatpush2.bf16.msra.mxu0 0
      %7031 = vmatprep.subr.bf16.mxu0 0
      %7032 = vmatpush2.bf16.msra.mxu0 0
      %7033 = vmatprep.subr.bf16.mxu0 0
      %7034 = vmatpush2.bf16.msra.mxu0 0
      %7035 = vmatprep.mubr.bf16.mxu0 0
      %7036 = vmatmul.mubr.bf16.gmra.mxu0 %v7001
      %v7037 = vpop.f32.mrf.mxu0
      %v7038 = vadd.f32 0.0, %v7037
      %v7039 = vpop.f32.mrf.mxu0
      %v7040 = vpop.f32.mrf.mxu0
      %v7041 = vadd.f32 0.0, %v7040
      %v7042 = vpop.f32.mrf.mxu0
      %7043 = vdwg.mxu0
      %v7045 = vsel %vm506, %v5905, 0
      %7047 = vmatprep.subr.bf16.mxu0 0
      %7048 = vmatpush1.bf16.msra.mxu0 0
      %7049 = vmatprep.subr.bf16.mxu0 0
      %7050 = vmatpush1.bf16.msra.mxu0 0
      %7051 = vmatprep.subr.bf16.mxu0 0
      %7052 = vmatpush1.bf16.msra.mxu0 0
      %7053 = vmatprep.subr.bf16.mxu0 0
      %7054 = vmatpush1.bf16.msra.mxu0 0
      %7055 = vmatprep.subr.bf16.mxu0 0
      %7056 = vmatpush1.bf16.msra.mxu0 0
      %7057 = vmatprep.subr.bf16.mxu0 0
      %7058 = vmatpush1.bf16.msra.mxu0 0
      %7059 = vmatprep.subr.bf16.mxu0 0
      %7060 = vmatpush1.bf16.msra.mxu0 0
      %7061 = vmatprep.subr.bf16.mxu0 0
      %7062 = vmatpush1.bf16.msra.mxu0 %v6641
      %7063 = vmatprep.subr.bf16.mxu0 0
      %7064 = vmatpush2.bf16.msra.mxu0 0
      %7065 = vmatprep.subr.bf16.mxu0 0
      %7066 = vmatpush2.bf16.msra.mxu0 0
      %7067 = vmatprep.subr.bf16.mxu0 0
      %7068 = vmatpush2.bf16.msra.mxu0 0
      %7069 = vmatprep.subr.bf16.mxu0 0
      %7070 = vmatpush2.bf16.msra.mxu0 0
      %7071 = vmatprep.subr.bf16.mxu0 0
      %7072 = vmatpush2.bf16.msra.mxu0 0
      %7073 = vmatprep.subr.bf16.mxu0 0
      %7074 = vmatpush2.bf16.msra.mxu0 0
      %7075 = vmatprep.subr.bf16.mxu0 0
      %7076 = vmatpush2.bf16.msra.mxu0 0
      %7077 = vmatprep.subr.bf16.mxu0 0
      %7078 = vmatpush2.bf16.msra.mxu0 0
      %7079 = vmatprep.mubr.bf16.mxu0 0
      %7080 = vmatmul.mubr.bf16.gmra.mxu0 %v7045
      %v7081 = vpop.f32.mrf.mxu0
      %v7082 = vadd.f32 0.0, %v7081
      %v7083 = vpop.f32.mrf.mxu0
      %v7084 = vpop.f32.mrf.mxu0
      %v7085 = vadd.f32 0.0, %v7084
      %v7086 = vpop.f32.mrf.mxu0
      %7087 = vdwg.mxu0
      %v7089 = vsel %vm506, %v5906, 0
      %7091 = vmatprep.subr.bf16.mxu0 0
      %7092 = vmatpush1.bf16.msra.mxu0 0
      %7093 = vmatprep.subr.bf16.mxu0 0
      %7094 = vmatpush1.bf16.msra.mxu0 0
      %7095 = vmatprep.subr.bf16.mxu0 0
      %7096 = vmatpush1.bf16.msra.mxu0 0
      %7097 = vmatprep.subr.bf16.mxu0 0
      %7098 = vmatpush1.bf16.msra.mxu0 0
      %7099 = vmatprep.subr.bf16.mxu0 0
      %7100 = vmatpush1.bf16.msra.mxu0 0
      %7101 = vmatprep.subr.bf16.mxu0 0
      %7102 = vmatpush1.bf16.msra.mxu0 0
      %7103 = vmatprep.subr.bf16.mxu0 0
      %7104 = vmatpush1.bf16.msra.mxu0 0
      %7105 = vmatprep.subr.bf16.mxu0 0
      %7106 = vmatpush1.bf16.msra.mxu0 %v6642
      %7107 = vmatprep.subr.bf16.mxu0 0
      %7108 = vmatpush2.bf16.msra.mxu0 0
      %7109 = vmatprep.subr.bf16.mxu0 0
      %7110 = vmatpush2.bf16.msra.mxu0 0
      %7111 = vmatprep.subr.bf16.mxu0 0
      %7112 = vmatpush2.bf16.msra.mxu0 0
      %7113 = vmatprep.subr.bf16.mxu0 0
      %7114 = vmatpush2.bf16.msra.mxu0 0
      %7115 = vmatprep.subr.bf16.mxu0 0
      %7116 = vmatpush2.bf16.msra.mxu0 0
      %7117 = vmatprep.subr.bf16.mxu0 0
      %7118 = vmatpush2.bf16.msra.mxu0 0
      %7119 = vmatprep.subr.bf16.mxu0 0
      %7120 = vmatpush2.bf16.msra.mxu0 0
      %7121 = vmatprep.subr.bf16.mxu0 0
      %7122 = vmatpush2.bf16.msra.mxu0 0
      %7123 = vmatprep.mubr.bf16.mxu0 0
      %7124 = vmatmul.mubr.bf16.gmra.mxu0 %v7089
      %v7125 = vpop.f32.mrf.mxu0
      %v7126 = vadd.f32 0.0, %v7125
      %v7127 = vpop.f32.mrf.mxu0
      %v7128 = vpop.f32.mrf.mxu0
      %v7129 = vadd.f32 0.0, %v7128
      %v7130 = vpop.f32.mrf.mxu0
      %7131 = vdwg.mxu0
      %v7133 = vsel %vm506, %v5907, 0
      %7135 = vmatprep.subr.bf16.mxu0 0
      %7136 = vmatpush1.bf16.msra.mxu0 0
      %7137 = vmatprep.subr.bf16.mxu0 0
      %7138 = vmatpush1.bf16.msra.mxu0 0
      %7139 = vmatprep.subr.bf16.mxu0 0
      %7140 = vmatpush1.bf16.msra.mxu0 0
      %7141 = vmatprep.subr.bf16.mxu0 0
      %7142 = vmatpush1.bf16.msra.mxu0 0
      %7143 = vmatprep.subr.bf16.mxu0 0
      %7144 = vmatpush1.bf16.msra.mxu0 0
      %7145 = vmatprep.subr.bf16.mxu0 0
      %7146 = vmatpush1.bf16.msra.mxu0 0
      %7147 = vmatprep.subr.bf16.mxu0 0
      %7148 = vmatpush1.bf16.msra.mxu0 0
      %7149 = vmatprep.subr.bf16.mxu0 0
      %7150 = vmatpush1.bf16.msra.mxu0 %v6643
      %7151 = vmatprep.subr.bf16.mxu0 0
      %7152 = vmatpush2.bf16.msra.mxu0 0
      %7153 = vmatprep.subr.bf16.mxu0 0
      %7154 = vmatpush2.bf16.msra.mxu0 0
      %7155 = vmatprep.subr.bf16.mxu0 0
      %7156 = vmatpush2.bf16.msra.mxu0 0
      %7157 = vmatprep.subr.bf16.mxu0 0
      %7158 = vmatpush2.bf16.msra.mxu0 0
      %7159 = vmatprep.subr.bf16.mxu0 0
      %7160 = vmatpush2.bf16.msra.mxu0 0
      %7161 = vmatprep.subr.bf16.mxu0 0
      %7162 = vmatpush2.bf16.msra.mxu0 0
      %7163 = vmatprep.subr.bf16.mxu0 0
      %7164 = vmatpush2.bf16.msra.mxu0 0
      %7165 = vmatprep.subr.bf16.mxu0 0
      %7166 = vmatpush2.bf16.msra.mxu0 0
      %7167 = vmatprep.mubr.bf16.mxu0 0
      %7168 = vmatmul.mubr.bf16.gmra.mxu0 %v7133
      %v7169 = vpop.f32.mrf.mxu0
      %v7170 = vadd.f32 0.0, %v7169
      %v7171 = vpop.f32.mrf.mxu0
      %v7172 = vpop.f32.mrf.mxu0
      %v7173 = vadd.f32 0.0, %v7172
      %v7174 = vpop.f32.mrf.mxu0
      %7175 = vdwg.mxu0
      %v7177 = vsel %vm506, %v5908, 0
      %7179 = vmatprep.subr.bf16.mxu0 0
      %7180 = vmatpush1.bf16.msra.mxu0 0
      %7181 = vmatprep.subr.bf16.mxu0 0
      %7182 = vmatpush1.bf16.msra.mxu0 0
      %7183 = vmatprep.subr.bf16.mxu0 0
      %7184 = vmatpush1.bf16.msra.mxu0 0
      %7185 = vmatprep.subr.bf16.mxu0 0
      %7186 = vmatpush1.bf16.msra.mxu0 0
      %7187 = vmatprep.subr.bf16.mxu0 0
      %7188 = vmatpush1.bf16.msra.mxu0 0
      %7189 = vmatprep.subr.bf16.mxu0 0
      %7190 = vmatpush1.bf16.msra.mxu0 0
      %7191 = vmatprep.subr.bf16.mxu0 0
      %7192 = vmatpush1.bf16.msra.mxu0 0
      %7193 = vmatprep.subr.bf16.mxu0 0
      %7194 = vmatpush1.bf16.msra.mxu0 %v6644
      %7195 = vmatprep.subr.bf16.mxu0 0
      %7196 = vmatpush2.bf16.msra.mxu0 0
      %7197 = vmatprep.subr.bf16.mxu0 0
      %7198 = vmatpush2.bf16.msra.mxu0 0
      %7199 = vmatprep.subr.bf16.mxu0 0
      %7200 = vmatpush2.bf16.msra.mxu0 0
      %7201 = vmatprep.subr.bf16.mxu0 0
      %7202 = vmatpush2.bf16.msra.mxu0 0
      %7203 = vmatprep.subr.bf16.mxu0 0
      %7204 = vmatpush2.bf16.msra.mxu0 0
      %7205 = vmatprep.subr.bf16.mxu0 0
      %7206 = vmatpush2.bf16.msra.mxu0 0
      %7207 = vmatprep.subr.bf16.mxu0 0
      %7208 = vmatpush2.bf16.msra.mxu0 0
      %7209 = vmatprep.subr.bf16.mxu0 0
      %7210 = vmatpush2.bf16.msra.mxu0 0
      %7211 = vmatprep.mubr.bf16.mxu0 0
      %7212 = vmatmul.mubr.bf16.gmra.mxu0 %v7177
      %v7213 = vpop.f32.mrf.mxu0
      %v7214 = vadd.f32 0.0, %v7213
      %v7215 = vpop.f32.mrf.mxu0
      %v7216 = vpop.f32.mrf.mxu0
      %v7217 = vadd.f32 0.0, %v7216
      %v7218 = vpop.f32.mrf.mxu0
      %7219 = vdwg.mxu0
      %v7221 = vsel %vm506, %v5909, 0
      %7223 = vmatprep.subr.bf16.mxu0 0
      %7224 = vmatpush1.bf16.msra.mxu0 0
      %7225 = vmatprep.subr.bf16.mxu0 0
      %7226 = vmatpush1.bf16.msra.mxu0 0
      %7227 = vmatprep.subr.bf16.mxu0 0
      %7228 = vmatpush1.bf16.msra.mxu0 0
      %7229 = vmatprep.subr.bf16.mxu0 0
      %7230 = vmatpush1.bf16.msra.mxu0 0
      %7231 = vmatprep.subr.bf16.mxu0 0
      %7232 = vmatpush1.bf16.msra.mxu0 0
      %7233 = vmatprep.subr.bf16.mxu0 0
      %7234 = vmatpush1.bf16.msra.mxu0 0
      %7235 = vmatprep.subr.bf16.mxu0 0
      %7236 = vmatpush1.bf16.msra.mxu0 0
      %7237 = vmatprep.subr.bf16.mxu0 0
      %7238 = vmatpush1.bf16.msra.mxu0 %v6645
      %7239 = vmatprep.subr.bf16.mxu0 0
      %7240 = vmatpush2.bf16.msra.mxu0 0
      %7241 = vmatprep.subr.bf16.mxu0 0
      %7242 = vmatpush2.bf16.msra.mxu0 0
      %7243 = vmatprep.subr.bf16.mxu0 0
      %7244 = vmatpush2.bf16.msra.mxu0 0
      %7245 = vmatprep.subr.bf16.mxu0 0
      %7246 = vmatpush2.bf16.msra.mxu0 0
      %7247 = vmatprep.subr.bf16.mxu0 0
      %7248 = vmatpush2.bf16.msra.mxu0 0
      %7249 = vmatprep.subr.bf16.mxu0 0
      %7250 = vmatpush2.bf16.msra.mxu0 0
      %7251 = vmatprep.subr.bf16.mxu0 0
      %7252 = vmatpush2.bf16.msra.mxu0 0
      %7253 = vmatprep.subr.bf16.mxu0 0
      %7254 = vmatpush2.bf16.msra.mxu0 0
      %7255 = vmatprep.mubr.bf16.mxu0 0
      %7256 = vmatmul.mubr.bf16.gmra.mxu0 %v7221
      %v7257 = vpop.f32.mrf.mxu0
      %v7258 = vadd.f32 0.0, %v7257
      %v7259 = vpop.f32.mrf.mxu0
      %v7260 = vpop.f32.mrf.mxu0
      %v7261 = vadd.f32 0.0, %v7260
      %v7262 = vpop.f32.mrf.mxu0
      %7263 = vdwg.mxu0
      %v7265 = vsel %vm506, %v5910, 0
      %7267 = vmatprep.subr.bf16.mxu0 0
      %7268 = vmatpush1.bf16.msra.mxu0 0
      %7269 = vmatprep.subr.bf16.mxu0 0
      %7270 = vmatpush1.bf16.msra.mxu0 0
      %7271 = vmatprep.subr.bf16.mxu0 0
      %7272 = vmatpush1.bf16.msra.mxu0 0
      %7273 = vmatprep.subr.bf16.mxu0 0
      %7274 = vmatpush1.bf16.msra.mxu0 0
      %7275 = vmatprep.subr.bf16.mxu0 0
      %7276 = vmatpush1.bf16.msra.mxu0 0
      %7277 = vmatprep.subr.bf16.mxu0 0
      %7278 = vmatpush1.bf16.msra.mxu0 0
      %7279 = vmatprep.subr.bf16.mxu0 0
      %7280 = vmatpush1.bf16.msra.mxu0 0
      %7281 = vmatprep.subr.bf16.mxu0 0
      %7282 = vmatpush1.bf16.msra.mxu0 %v6646
      %7283 = vmatprep.subr.bf16.mxu0 0
      %7284 = vmatpush2.bf16.msra.mxu0 0
      %7285 = vmatprep.subr.bf16.mxu0 0
      %7286 = vmatpush2.bf16.msra.mxu0 0
      %7287 = vmatprep.subr.bf16.mxu0 0
      %7288 = vmatpush2.bf16.msra.mxu0 0
      %7289 = vmatprep.subr.bf16.mxu0 0
      %7290 = vmatpush2.bf16.msra.mxu0 0
      %7291 = vmatprep.subr.bf16.mxu0 0
      %7292 = vmatpush2.bf16.msra.mxu0 0
      %7293 = vmatprep.subr.bf16.mxu0 0
      %7294 = vmatpush2.bf16.msra.mxu0 0
      %7295 = vmatprep.subr.bf16.mxu0 0
      %7296 = vmatpush2.bf16.msra.mxu0 0
      %7297 = vmatprep.subr.bf16.mxu0 0
      %7298 = vmatpush2.bf16.msra.mxu0 0
      %7299 = vmatprep.mubr.bf16.mxu0 0
      %7300 = vmatmul.mubr.bf16.gmra.mxu0 %v7265
      %v7301 = vpop.f32.mrf.mxu0
      %v7302 = vadd.f32 0.0, %v7301
      %v7303 = vpop.f32.mrf.mxu0
      %v7304 = vpop.f32.mrf.mxu0
      %v7305 = vadd.f32 0.0, %v7304
      %v7306 = vpop.f32.mrf.mxu0
      %7307 = vdwg.mxu0
      %v7309 = vsel %vm506, %v5911, 0
      %7311 = vmatprep.subr.bf16.mxu0 0
      %7312 = vmatpush1.bf16.msra.mxu0 0
      %7313 = vmatprep.subr.bf16.mxu0 0
      %7314 = vmatpush1.bf16.msra.mxu0 0
      %7315 = vmatprep.subr.bf16.mxu0 0
      %7316 = vmatpush1.bf16.msra.mxu0 0
      %7317 = vmatprep.subr.bf16.mxu0 0
      %7318 = vmatpush1.bf16.msra.mxu0 0
      %7319 = vmatprep.subr.bf16.mxu0 0
      %7320 = vmatpush1.bf16.msra.mxu0 0
      %7321 = vmatprep.subr.bf16.mxu0 0
      %7322 = vmatpush1.bf16.msra.mxu0 0
      %7323 = vmatprep.subr.bf16.mxu0 0
      %7324 = vmatpush1.bf16.msra.mxu0 0
      %7325 = vmatprep.subr.bf16.mxu0 0
      %7326 = vmatpush1.bf16.msra.mxu0 %v6647
      %7327 = vmatprep.subr.bf16.mxu0 0
      %7328 = vmatpush2.bf16.msra.mxu0 0
      %7329 = vmatprep.subr.bf16.mxu0 0
      %7330 = vmatpush2.bf16.msra.mxu0 0
      %7331 = vmatprep.subr.bf16.mxu0 0
      %7332 = vmatpush2.bf16.msra.mxu0 0
      %7333 = vmatprep.subr.bf16.mxu0 0
      %7334 = vmatpush2.bf16.msra.mxu0 0
      %7335 = vmatprep.subr.bf16.mxu0 0
      %7336 = vmatpush2.bf16.msra.mxu0 0
      %7337 = vmatprep.subr.bf16.mxu0 0
      %7338 = vmatpush2.bf16.msra.mxu0 0
      %7339 = vmatprep.subr.bf16.mxu0 0
      %7340 = vmatpush2.bf16.msra.mxu0 0
      %7341 = vmatprep.subr.bf16.mxu0 0
      %7342 = vmatpush2.bf16.msra.mxu0 0
      %7343 = vmatprep.mubr.bf16.mxu0 0
      %7344 = vmatmul.mubr.bf16.gmra.mxu0 %v7309
      %v7345 = vpop.f32.mrf.mxu0
      %v7346 = vadd.f32 0.0, %v7345
      %v7347 = vpop.f32.mrf.mxu0
      %v7348 = vpop.f32.mrf.mxu0
      %v7349 = vadd.f32 0.0, %v7348
      %v7350 = vpop.f32.mrf.mxu0
      %7351 = vdwg.mxu0
      %s7352 = sld [smem:[#allocation2]]
      %v7353 = vstv %s7352
      %v7354 = vmul.f32 %v7353, %v5966
      %v7355 = vmul.f32 %v7353, %v5969
      %v7356 = vmul.f32 %v7353, %v6010
      %v7357 = vmul.f32 %v7353, %v6013
      %v7358 = vmul.f32 %v7353, %v6054
      %v7359 = vmul.f32 %v7353, %v6057
      %v7360 = vmul.f32 %v7353, %v6098
      %v7361 = vmul.f32 %v7353, %v6101
      %v7362 = vmul.f32 %v7353, %v6142
      %v7363 = vmul.f32 %v7353, %v6145
      %v7364 = vmul.f32 %v7353, %v6186
      %v7365 = vmul.f32 %v7353, %v6189
      %v7366 = vmul.f32 %v7353, %v6230
      %v7367 = vmul.f32 %v7353, %v6233
      %v7368 = vmul.f32 %v7353, %v6274
      %v7369 = vmul.f32 %v7353, %v6277
      %v7370 = vmul.f32 %v7353, %v6318
      %v7371 = vmul.f32 %v7353, %v6321
      %v7372 = vmul.f32 %v7353, %v6362
      %v7373 = vmul.f32 %v7353, %v6365
      %v7374 = vmul.f32 %v7353, %v6406
      %v7375 = vmul.f32 %v7353, %v6409
      %v7376 = vmul.f32 %v7353, %v6450
      %v7377 = vmul.f32 %v7353, %v6453
      %v7378 = vmul.f32 %v7353, %v6494
      %v7379 = vmul.f32 %v7353, %v6497
      %v7380 = vmul.f32 %v7353, %v6538
      %v7381 = vmul.f32 %v7353, %v6541
      %v7382 = vmul.f32 %v7353, %v6582
      %v7383 = vmul.f32 %v7353, %v6585
      %v7384 = vmul.f32 %v7353, %v6626
      %v7385 = vmul.f32 %v7353, %v6629
      %v7386 = vadd.f32 %v7354, %v395
      %v7387 = vadd.f32 %v7355, %v396
      %v7388 = vadd.f32 %v7356, %v397
      %v7389 = vadd.f32 %v7357, %v398
      %v7390 = vadd.f32 %v7358, %v399
      %v7391 = vadd.f32 %v7359, %v400
      %v7392 = vadd.f32 %v7360, %v401
      %v7393 = vadd.f32 %v7361, %v402
      %v7394 = vadd.f32 %v7362, %v403
      %v7395 = vadd.f32 %v7363, %v404
      %v7396 = vadd.f32 %v7364, %v405
      %v7397 = vadd.f32 %v7365, %v406
      %v7398 = vadd.f32 %v7366, %v407
      %v7399 = vadd.f32 %v7367, %v408
      %v7400 = vadd.f32 %v7368, %v409
      %v7401 = vadd.f32 %v7369, %v410
      %v7402 = vadd.f32 %v7370, %v411
      %v7403 = vadd.f32 %v7371, %v412
      %v7404 = vadd.f32 %v7372, %v413
      %v7405 = vadd.f32 %v7373, %v414
      %v7406 = vadd.f32 %v7374, %v415
      %v7407 = vadd.f32 %v7375, %v416
      %v7408 = vadd.f32 %v7376, %v417
      %v7409 = vadd.f32 %v7377, %v418
      %v7410 = vadd.f32 %v7378, %v419
      %v7411 = vadd.f32 %v7379, %v420
      %v7412 = vadd.f32 %v7380, %v421
      %v7413 = vadd.f32 %v7381, %v422
      %v7414 = vadd.f32 %v7382, %v423
      %v7415 = vadd.f32 %v7383, %v424
      %v7416 = vadd.f32 %v7384, %v425
      %v7417 = vadd.f32 %v7385, %v426
      %7418 = vst.msk [vmem:[%s388] sm:$0xff] %vm506, %v7386
      %7419 = vst.msk [vmem:[%s388 + $0x8] sm:$0xff] %vm506, %v7387
      %7420 = vst.msk [vmem:[%s388 + $0x10] sm:$0xff] %vm506, %v7388
      %7421 = vst.msk [vmem:[%s388 + $0x18] sm:$0xff] %vm506, %v7389
      %7422 = vst.msk [vmem:[%s388 + $0x20] sm:$0xff] %vm506, %v7390
      %7423 = vst.msk [vmem:[%s388 + $0x28] sm:$0xff] %vm506, %v7391
      %7424 = vst.msk [vmem:[%s388 + $0x30] sm:$0xff] %vm506, %v7392
      %7425 = vst.msk [vmem:[%s388 + $0x38] sm:$0xff] %vm506, %v7393
      %7426 = vst.msk [vmem:[%s388 + $0x40] sm:$0xff] %vm506, %v7394
      %7427 = vst.msk [vmem:[%s388 + $0x48] sm:$0xff] %vm506, %v7395
      %7428 = vst.msk [vmem:[%s388 + $0x50] sm:$0xff] %vm506, %v7396
      %7429 = vst.msk [vmem:[%s388 + $0x58] sm:$0xff] %vm506, %v7397
      %7430 = vst.msk [vmem:[%s388 + $0x60] sm:$0xff] %vm506, %v7398
      %7431 = vst.msk [vmem:[%s388 + $0x68] sm:$0xff] %vm506, %v7399
      %7432 = vst.msk [vmem:[%s388 + $0x70] sm:$0xff] %vm506, %v7400
      %7433 = vst.msk [vmem:[%s388 + $0x78] sm:$0xff] %vm506, %v7401
      %7434 = vst.msk [vmem:[%s388 + $0x80] sm:$0xff] %vm506, %v7402
      %7435 = vst.msk [vmem:[%s388 + $0x88] sm:$0xff] %vm506, %v7403
      %7436 = vst.msk [vmem:[%s388 + $0x90] sm:$0xff] %vm506, %v7404
      %7437 = vst.msk [vmem:[%s388 + $0x98] sm:$0xff] %vm506, %v7405
      %7438 = vst.msk [vmem:[%s388 + $0xa0] sm:$0xff] %vm506, %v7406
      %7439 = vst.msk [vmem:[%s388 + $0xa8] sm:$0xff] %vm506, %v7407
      %7440 = vst.msk [vmem:[%s388 + $0xb0] sm:$0xff] %vm506, %v7408
      %7441 = vst.msk [vmem:[%s388 + $0xb8] sm:$0xff] %vm506, %v7409
      %7442 = vst.msk [vmem:[%s388 + $0xc0] sm:$0xff] %vm506, %v7410
      %7443 = vst.msk [vmem:[%s388 + $0xc8] sm:$0xff] %vm506, %v7411
      %7444 = vst.msk [vmem:[%s388 + $0xd0] sm:$0xff] %vm506, %v7412
      %7445 = vst.msk [vmem:[%s388 + $0xd8] sm:$0xff] %vm506, %v7413
      %7446 = vst.msk [vmem:[%s388 + $0xe0] sm:$0xff] %vm506, %v7414
      %7447 = vst.msk [vmem:[%s388 + $0xe8] sm:$0xff] %vm506, %v7415
      %7448 = vst.msk [vmem:[%s388 + $0xf0] sm:$0xff] %vm506, %v7416
      %7449 = vst.msk [vmem:[%s388 + $0xf8] sm:$0xff] %vm506, %v7417
      %v7450 = vmul.f32 %v7353, %v6686
      %v7451 = vmul.f32 %v7353, %v6689
      %v7452 = vmul.f32 %v7353, %v6730
      %v7453 = vmul.f32 %v7353, %v6733
      %v7454 = vmul.f32 %v7353, %v6774
      %v7455 = vmul.f32 %v7353, %v6777
      %v7456 = vmul.f32 %v7353, %v6818
      %v7457 = vmul.f32 %v7353, %v6821
      %v7458 = vmul.f32 %v7353, %v6862
      %v7459 = vmul.f32 %v7353, %v6865
      %v7460 = vmul.f32 %v7353, %v6906
      %v7461 = vmul.f32 %v7353, %v6909
      %v7462 = vmul.f32 %v7353, %v6950
      %v7463 = vmul.f32 %v7353, %v6953
      %v7464 = vmul.f32 %v7353, %v6994
      %v7465 = vmul.f32 %v7353, %v6997
      %v7466 = vmul.f32 %v7353, %v7038
      %v7467 = vmul.f32 %v7353, %v7041
      %v7468 = vmul.f32 %v7353, %v7082
      %v7469 = vmul.f32 %v7353, %v7085
      %v7470 = vmul.f32 %v7353, %v7126
      %v7471 = vmul.f32 %v7353, %v7129
      %v7472 = vmul.f32 %v7353, %v7170
      %v7473 = vmul.f32 %v7353, %v7173
      %v7474 = vmul.f32 %v7353, %v7214
      %v7475 = vmul.f32 %v7353, %v7217
      %v7476 = vmul.f32 %v7353, %v7258
      %v7477 = vmul.f32 %v7353, %v7261
      %v7478 = vmul.f32 %v7353, %v7302
      %v7479 = vmul.f32 %v7353, %v7305
      %v7480 = vmul.f32 %v7353, %v7346
      %v7481 = vmul.f32 %v7353, %v7349
      %7482 = vst.msk [vmem:[%s393] sm:$0xff] %vm506, %v7450
      %7483 = vst.msk [vmem:[%s393 + $0x8] sm:$0xff] %vm506, %v7451
      %7484 = vst.msk [vmem:[%s393 + $0x10] sm:$0xff] %vm506, %v7452
      %7485 = vst.msk [vmem:[%s393 + $0x18] sm:$0xff] %vm506, %v7453
      %7486 = vst.msk [vmem:[%s393 + $0x20] sm:$0xff] %vm506, %v7454
      %7487 = vst.msk [vmem:[%s393 + $0x28] sm:$0xff] %vm506, %v7455
      %7488 = vst.msk [vmem:[%s393 + $0x30] sm:$0xff] %vm506, %v7456
      %7489 = vst.msk [vmem:[%s393 + $0x38] sm:$0xff] %vm506, %v7457
      %7490 = vst.msk [vmem:[%s393 + $0x40] sm:$0xff] %vm506, %v7458
      %7491 = vst.msk [vmem:[%s393 + $0x48] sm:$0xff] %vm506, %v7459
      %7492 = vst.msk [vmem:[%s393 + $0x50] sm:$0xff] %vm506, %v7460
      %7493 = vst.msk [vmem:[%s393 + $0x58] sm:$0xff] %vm506, %v7461
      %7494 = vst.msk [vmem:[%s393 + $0x60] sm:$0xff] %vm506, %v7462
      %7495 = vst.msk [vmem:[%s393 + $0x68] sm:$0xff] %vm506, %v7463
      %7496 = vst.msk [vmem:[%s393 + $0x70] sm:$0xff] %vm506, %v7464
      %7497 = vst.msk [vmem:[%s393 + $0x78] sm:$0xff] %vm506, %v7465
      %7498 = vst.msk [vmem:[%s393 + $0x80] sm:$0xff] %vm506, %v7466
      %7499 = vst.msk [vmem:[%s393 + $0x88] sm:$0xff] %vm506, %v7467
      %7500 = vst.msk [vmem:[%s393 + $0x90] sm:$0xff] %vm506, %v7468
      %7501 = vst.msk [vmem:[%s393 + $0x98] sm:$0xff] %vm506, %v7469
      %7502 = vst.msk [vmem:[%s393 + $0xa0] sm:$0xff] %vm506, %v7470
      %7503 = vst.msk [vmem:[%s393 + $0xa8] sm:$0xff] %vm506, %v7471
      %7504 = vst.msk [vmem:[%s393 + $0xb0] sm:$0xff] %vm506, %v7472
      %7505 = vst.msk [vmem:[%s393 + $0xb8] sm:$0xff] %vm506, %v7473
      %7506 = vst.msk [vmem:[%s393 + $0xc0] sm:$0xff] %vm506, %v7474
      %7507 = vst.msk [vmem:[%s393 + $0xc8] sm:$0xff] %vm506, %v7475
      %7508 = vst.msk [vmem:[%s393 + $0xd0] sm:$0xff] %vm506, %v7476
      %7509 = vst.msk [vmem:[%s393 + $0xd8] sm:$0xff] %vm506, %v7477
      %7510 = vst.msk [vmem:[%s393 + $0xe0] sm:$0xff] %vm506, %v7478
      %7511 = vst.msk [vmem:[%s393 + $0xe8] sm:$0xff] %vm506, %v7479
      %7512 = vst.msk [vmem:[%s393 + $0xf0] sm:$0xff] %vm506, %v7480
      %7513 = vst.msk [vmem:[%s393 + $0xf8] sm:$0xff] %vm506, %v7481
      %p7514 = scmp.lt.s32.totalorder %s23, 1
      %s7515 = scalar_select %p7514, %s23, 1
      %s7516 = smul.addr %s7515, 32
      %s7517 = smul.addr %s7516, 8
      %s7518 = scalar_lea.vmem %s9, %s7517
      %p7519 = scmp.lt.s32.totalorder %s23, 1
      %s7520 = scalar_select %p7519, %s23, 1
      %s7521 = smul.addr %s7520, 32
      %s7522 = smul.addr %s7521, 8
      %s7523 = scalar_lea.vmem %s10, %s7522
      // Predicated region
      $region57: #{rcca_forward.6} parent=55 // pred_check
        %p7524 = pneg %p240
      $region58: #{rcca_forward.6} parent=55 // pred_check_branch
        %7526 = sbr.rel (%p7524) target = $region60
      $region59: #{rcca_forward.6} parent=55 // pred_region
        _
      $region60: #{rcca_forward.6} parent=55 // pred_fallthru
        _
      // Predicated region
      $region61: #{rcca_forward.6} parent=55 // pred_check
        %p7527 = pneg %p266
      $region62: #{rcca_forward.6} parent=55 // pred_check_branch
        %7529 = sbr.rel (%p7527) target = $region64
      $region63: #{rcca_forward.6} parent=55 // pred_region
        _
      $region64: #{rcca_forward.6} parent=55 // pred_fallthru
        _
    $region56: #{rcca_forward.6} parent=5 // pred_fallthru
      _
    %p7530 = scmp.le.s32.totalorder 2, %s18
    // Predicated region
    $region65: #{rcca_forward.6} parent=5 // pred_check
      %p7531 = pneg %p7530
    $region66: #{rcca_forward.6} parent=5 // pred_check_branch
      %7533 = sbr.rel (%p7531) target = $region68
    $region67: #{rcca_forward.6} parent=5 // pred_region
      %s7534 = ssub.s32 %s18, 2
      // Predicated region
      $region69: #{rcca_forward.6} parent=67 // pred_check
        %p7535 = pneg %p246
      $region70: #{rcca_forward.6} parent=67 // pred_check_branch
        %7537 = sbr.rel (%p7535) target = $region72
      $region71: #{rcca_forward.6} parent=67 // pred_region
        %p7538 = scmp.lt.s32.totalorder %s24, 1
        %s7539 = scalar_select %p7538, %s24, 1
        %s7540 = smul.addr %s7539, 32
        %s7541 = smul.addr %s7540, 8
        %s7542 = scalar_lea.vmem %s9, %s7541
      $region72: #{rcca_forward.6} parent=67 // pred_fallthru
        _
      // Predicated region
      $region73: #{rcca_forward.6} parent=67 // pred_check
        %p7543 = pneg %p272
      $region74: #{rcca_forward.6} parent=67 // pred_check_branch
        %7545 = sbr.rel (%p7543) target = $region76
      $region75: #{rcca_forward.6} parent=67 // pred_region
        %p7546 = scmp.lt.s32.totalorder %s24, 1
        %s7547 = scalar_select %p7546, %s24, 1
        %s7548 = smul.addr %s7547, 32
        %s7549 = smul.addr %s7548, 8
        %s7550 = scalar_lea.vmem %s10, %s7549
      $region76: #{rcca_forward.6} parent=67 // pred_fallthru
        _
    $region68: #{rcca_forward.6} parent=5 // pred_fallthru
      _
  $region6: #{rcca_forward.6} parent=0 // loop_footer
    %s22 = sadd.s32 1, %s18
  $region7: #{rcca_forward.6} parent=0 // loop_footer_branch
    %17 = sbr.rel target = $region3
  $region8: #{rcca_forward.6} parent=0 // loop_exit
    _

</llo_original>
